<compile_context>
chip_gen: v7x
topology: tpu7x:2x2x1
jax: 0.10.0
libtpu: 0.0.40
codegen_flags: <defaults>
</compile_context>

<pallas_src>
import jax
import jax.numpy as jnp
from jax.experimental import pallas as pl
from jax.experimental.pallas import tpu as pltpu


# ----------------------------------------------------------------------------
# Fused RCAB kernel (one grid step = one batch element)
# ----------------------------------------------------------------------------
def _rcab_kernel(x_ref, w1_ref, b1_ref, w2_ref, b2_ref,
                 wd_ref, bd_ref, wu_ref, bu_ref, o_ref,
                 xpad_ref, h1pad_ref):
    C, H, W = x_ref.shape                 # NCHW block for one batch element
    M = H * W

    def pad_same(hwc_bf16):
        # (H, W, C) -> (H+2, W+2, C) zero 'same' halo, built in registers so
        # the scratch write is a single aligned full-ref store (no per-step
        # halo zero-fill, no cross-grid-step scratch state).
        zc = jnp.zeros((H, 1, C), hwc_bf16.dtype)
        zr = jnp.zeros((1, W + 2, C), hwc_bf16.dtype)
        body = jnp.concatenate([zc, hwc_bf16, zc], axis=1)
        return jnp.concatenate([zr, body, zr], axis=0)

    def im2col(pad_ref):
        # Nine shifted (H, W, C) windows of the padded activation,
        # tap-major / channel-minor -> (M, 9C) bf16 slab matching
        # w.reshape(9*C, C).  One K=9C MXU matmul per conv.
        cols = []
        for dy in range(3):
            for dx in range(3):
                cols.append(pad_ref[dy:dy + H, dx:dx + W, :].reshape(M, C))
        return jnp.concatenate(cols, axis=-1)

    # ---- NCHW -> HWC transpose + 'same' zero-pad, entirely in VMEM ---------
    x_cm = x_ref[...].reshape(C, M)                       # (C, M) f32 residual
    x_hwc = jnp.transpose(x_cm).astype(jnp.bfloat16).reshape(H, W, C)
    xpad_ref[...] = pad_same(x_hwc)

    # ---- conv1 (3x3 'same'): single (M,9C)x(9C,C) matmul + bias + ReLU -----
    h1 = jnp.dot(im2col(xpad_ref), w1_ref[...],
                 preferred_element_type=jnp.float32) + b1_ref[...]
    h1 = jnp.maximum(h1, 0.0)                                        # (M, C)
    h1pad_ref[...] = pad_same(h1.astype(jnp.bfloat16).reshape(H, W, C))

    # ---- conv2 (3x3 'same'): single fused matmul (bias folded below) -------
    res_mc = jnp.dot(im2col(h1pad_ref), w2_ref[...],
                     preferred_element_type=jnp.float32)             # (M, C)

    # ---- CALayer: global avg pool -> 1x1 -> ReLU -> 1x1 -> sigmoid ---------
    pooled = jnp.mean(res_mc, axis=0, keepdims=True) + b2_ref[...]   # (1, C)
    z = jnp.maximum(
        jnp.dot(pooled, wd_ref[...], preferred_element_type=jnp.float32)
        + bd_ref[...], 0.0)                                          # (1, Cr)
    gate = jax.nn.sigmoid(
        jnp.dot(z, wu_ref[...], preferred_element_type=jnp.float32)
        + bu_ref[...])                                               # (1, C)

    # ---- lane-dense (C, M) epilogue: bias + gate + residual (== NCHW) ------
    res_cm = jnp.transpose(res_mc) + jnp.transpose(b2_ref[...])      # (C, M)
    o_ref[...] = (res_cm * jnp.transpose(gate) + x_cm).astype(o_ref.dtype)


# ----------------------------------------------------------------------------
# Wrapper
# ----------------------------------------------------------------------------
def rcab_forward(x_nchw, params):
    """RCAB forward. x_nchw: (N, C, H, W) float32 -> (N, C, H, W) float32."""
    N, C, H, W = x_nchw.shape
    wd = params["ca_w_down"].astype(jnp.float32)   # (C, C // reduction)
    Cr = wd.shape[1]

    # (3,3,Cin,Cout) HWIO -> (9*Cin, Cout) slabs, bf16 for the MXU (f32 acc).
    w1 = params["conv1_w"].reshape(9 * C, C).astype(jnp.bfloat16)
    w2 = params["conv2_w"].reshape(9 * C, C).astype(jnp.bfloat16)
    b1 = params["conv1_b"].reshape(1, C).astype(jnp.float32)
    b2 = params["conv2_b"].reshape(1, C).astype(jnp.float32)
    bd = params["ca_b_down"].reshape(1, Cr).astype(jnp.float32)
    wu = params["ca_w_up"].astype(jnp.float32)
    bu = params["ca_b_up"].reshape(1, C).astype(jnp.float32)

    out = pl.pallas_call(
        _rcab_kernel,
        out_shape=jax.ShapeDtypeStruct((N, C, H * W), jnp.float32),
        grid=(N,),
        in_specs=[
            pl.BlockSpec((None, C, H, W), lambda n: (n, 0, 0, 0)),  # x (NCHW)
            pl.BlockSpec((9 * C, C), lambda n: (0, 0)),             # w1
            pl.BlockSpec((1, C), lambda n: (0, 0)),                 # b1
            pl.BlockSpec((9 * C, C), lambda n: (0, 0)),             # w2
            pl.BlockSpec((1, C), lambda n: (0, 0)),                 # b2
            pl.BlockSpec((C, Cr), lambda n: (0, 0)),                # wd
            pl.BlockSpec((1, Cr), lambda n: (0, 0)),                # bd
            pl.BlockSpec((Cr, C), lambda n: (0, 0)),                # wu
            pl.BlockSpec((1, C), lambda n: (0, 0)),                 # bu
        ],
        out_specs=pl.BlockSpec((None, C, H * W), lambda n: (n, 0, 0)),
        scratch_shapes=[
            pltpu.VMEM((H + 2, W + 2, C), jnp.bfloat16),   # padded input
            pltpu.VMEM((H + 2, W + 2, C), jnp.bfloat16),   # padded relu(conv1)
        ],
        compiler_params=pltpu.CompilerParams(
            dimension_semantics=("parallel",),
            vmem_limit_bytes=32 * 1024 * 1024),
    )(x_nchw, w1, b1, w2, b2, wd, bd, wu, bu)

    # (N, C, H*W) is already channel-major (NCHW); just unflatten spatial.
    return out.reshape(N, C, H, W)


# ----------------------------------------------------------------------------
# Parameter init (HWIO conv weights, matmul-style CA weights)
# ----------------------------------------------------------------------------
def init_rcab_params(key, n_feat, reduction):
    cr = max(n_feat // reduction, 1)
    keys = jax.random.split(key, 8)
    s3 = 1.0 / (3.0 * float(n_feat) ** 0.5)     # ~ 1/sqrt(9 * n_feat) fan-in
    s1 = 1.0 / float(n_feat) ** 0.5
    s1u = 1.0 / float(cr) ** 0.5
    return {
        "conv1_w": s3 * jax.random.normal(keys[0], (3, 3, n_feat, n_feat),
                                          jnp.float32),
        "conv1_b": 0.02 * jax.random.normal(keys[1], (n_feat,), jnp.float32),
        "conv2_w": s3 * jax.random.normal(keys[2], (3, 3, n_feat, n_feat),
                                          jnp.float32),
        "conv2_b": 0.02 * jax.random.normal(keys[3], (n_feat,), jnp.float32),
        "ca_w_down": s1 * jax.random.normal(keys[4], (n_feat, cr), jnp.float32),
        "ca_b_down": 0.02 * jax.random.normal(keys[5], (cr,), jnp.float32),
        "ca_w_up": s1u * jax.random.normal(keys[6], (cr, n_feat), jnp.float32),
        "ca_b_up": 0.02 * jax.random.normal(keys[7], (n_feat,), jnp.float32),
    }


# ----------------------------------------------------------------------------
# Pure-JAX reference (full f32, for the correctness check)
# ----------------------------------------------------------------------------
def rcab_reference(x_nchw, p):
    x = jnp.transpose(x_nchw, (0, 2, 3, 1))     # NHWC

    def conv(v, w, b):
        return jax.lax.conv_general_dilated(
            v, w, (1, 1), "SAME",
            dimension_numbers=("NHWC", "HWIO", "NHWC"),
            precision=jax.lax.Precision.HIGHEST) + b

    h = jnp.maximum(conv(x, p["conv1_w"], p["conv1_b"]), 0.0)
    r = conv(h, p["conv2_w"], p["conv2_b"])
    pooled = jnp.mean(r, axis=(1, 2))                       # (N, C)
    z = jnp.maximum(
        jnp.dot(pooled, p["ca_w_down"],
                precision=jax.lax.Precision.HIGHEST) + p["ca_b_down"], 0.0)
    gate = jax.nn.sigmoid(
        jnp.dot(z, p["ca_w_up"],
                precision=jax.lax.Precision.HIGHEST) + p["ca_b_up"])
    out = r * gate[:, None, None, :] + x
    return jnp.transpose(out, (0, 3, 1, 2))                 # back to NCHW


# ----------------------------------------------------------------------------
if __name__ == "__main__":
    N, C, H, W = 2, 16, 16, 16      # n_feat = 16
    reduction = 4                   # -> 4 channel-attention bottleneck channels
    key = jax.random.PRNGKey(0)
    kx, kp = jax.random.split(key)

    x_nchw = jax.random.normal(kx, (N, C, H, W), jnp.float32)
    params = init_rcab_params(kp, C, reduction)

    out = jax.block_until_ready(rcab_forward(x_nchw, params))
    assert out.shape == (N, C, H, W)

    ref = jax.block_until_ready(rcab_reference(x_nchw, params))
    max_err = float(jnp.max(jnp.abs(out - ref)))
    # bf16 MXU inputs with f32 accumulation -> small quantization error vs the
    # full-f32 HIGHEST-precision reference.
    assert jnp.allclose(out, ref, atol=1e-2, rtol=1e-2), max_err
    print("KERNEL_OK")
</pallas_src>

<mosaic_0001>
module attributes {stable_mosaic.version = 11 : i64} {
  func.func @_rcab_kernel(%arg0: i32, %arg1: memref<1x16x16x16xf32, #tpu.memory_space<vmem>>, %arg2: memref<144x16xbf16, #tpu.memory_space<vmem>>, %arg3: memref<1x16xf32, #tpu.memory_space<vmem>>, %arg4: memref<144x16xbf16, #tpu.memory_space<vmem>>, %arg5: memref<1x16xf32, #tpu.memory_space<vmem>>, %arg6: memref<16x4xf32, #tpu.memory_space<vmem>>, %arg7: memref<1x4xf32, #tpu.memory_space<vmem>>, %arg8: memref<4x16xf32, #tpu.memory_space<vmem>>, %arg9: memref<1x16xf32, #tpu.memory_space<vmem>>, %arg10: memref<1x16x256xf32, #tpu.memory_space<vmem>>, %arg11: memref<18x18x16xbf16, #tpu.memory_space<vmem>>, %arg12: memref<18x18x16xbf16, #tpu.memory_space<vmem>>) attributes {dimension_semantics = [#tpu.dimension_semantics<parallel>], iteration_bounds = array<i64: 2>, scalar_prefetch = 0 : i64, scratch_operands = 2 : i64, tpu.core_type = #tpu.core_type<tc>, window_params = [{transform_indices = @transform_0, window_bounds = array<i64: 1, 16, 16, 16>}, {pipeline_mode = #tpu.pipeline_mode<synchronous>, transform_indices = @transform_1, window_bounds = array<i64: 144, 16>}, {pipeline_mode = #tpu.pipeline_mode<synchronous>, transform_indices = @transform_2, window_bounds = array<i64: 1, 16>}, {pipeline_mode = #tpu.pipeline_mode<synchronous>, transform_indices = @transform_3, window_bounds = array<i64: 144, 16>}, {pipeline_mode = #tpu.pipeline_mode<synchronous>, transform_indices = @transform_4, window_bounds = array<i64: 1, 16>}, {pipeline_mode = #tpu.pipeline_mode<synchronous>, transform_indices = @transform_5, window_bounds = array<i64: 16, 4>}, {pipeline_mode = #tpu.pipeline_mode<synchronous>, transform_indices = @transform_6, window_bounds = array<i64: 1, 4>}, {pipeline_mode = #tpu.pipeline_mode<synchronous>, transform_indices = @transform_7, window_bounds = array<i64: 4, 16>}, {pipeline_mode = #tpu.pipeline_mode<synchronous>, transform_indices = @transform_8, window_bounds = array<i64: 1, 16>}, {transform_indices = @transform_9, window_bounds = array<i64: 1, 16, 256>}]} {
    %c0 = arith.constant 0 : index
    %c0_0 = arith.constant 0 : index
    %c0_1 = arith.constant 0 : index
    %c0_2 = arith.constant 0 : index
    %0 = vector.load %arg1[%c0, %c0_0, %c0_1, %c0_2] : memref<1x16x16x16xf32, #tpu.memory_space<vmem>>, vector<1x16x16x16xf32>
    %1 = vector.shape_cast %0 : vector<1x16x16x16xf32> to vector<16x16x16xf32>
    %2 = vector.shape_cast %1 : vector<16x16x16xf32> to vector<16x256xf32>
    %3 = tpu.transpose %2, [1, 0] : vector<16x256xf32> -> vector<256x16xf32>
    %4 = arith.truncf %3 : vector<256x16xf32> to vector<256x16xbf16>
    %5 = vector.shape_cast %4 : vector<256x16xbf16> to vector<16x16x16xbf16>
    %cst = arith.constant 0.000000e+00 : bf16
    %6 = vector.broadcast %cst : bf16 to vector<16x1x16xbf16>
    %cst_3 = arith.constant 0.000000e+00 : bf16
    %7 = vector.broadcast %cst_3 : bf16 to vector<1x18x16xbf16>
    %8 = tpu.concatenate %6, %5, %6 in 1 : vector<16x1x16xbf16>, vector<16x16x16xbf16>, vector<16x1x16xbf16> -> vector<16x18x16xbf16>
    %9 = tpu.concatenate %7, %8, %7 in 0 : vector<1x18x16xbf16>, vector<16x18x16xbf16>, vector<1x18x16xbf16> -> vector<18x18x16xbf16>
    %c0_4 = arith.constant 0 : index
    %c0_5 = arith.constant 0 : index
    %c0_6 = arith.constant 0 : index
    %10 = vector.load %arg11[%c0_4, %c0_5, %c0_6] : memref<18x18x16xbf16, #tpu.memory_space<vmem>>, vector<18x18x16xbf16>
    tpu.vector_store %arg11[%c0_4, %c0_5, %c0_6], %9 {strides = array<i32>} : memref<18x18x16xbf16, #tpu.memory_space<vmem>>, vector<18x18x16xbf16>,
    %c0_7 = arith.constant 0 : index
    %c0_8 = arith.constant 0 : index
    %c0_9 = arith.constant 0 : index
    %11 = vector.load %arg11[%c0_7, %c0_8, %c0_9] : memref<18x18x16xbf16, #tpu.memory_space<vmem>>, vector<16x16x16xbf16>
    %12 = vector.shape_cast %11 : vector<16x16x16xbf16> to vector<256x16xbf16>
    %c0_10 = arith.constant 0 : index
    %c1 = arith.constant 1 : index
    %c0_11 = arith.constant 0 : index
    %13 = vector.load %arg11[%c0_10, %c1, %c0_11] : memref<18x18x16xbf16, #tpu.memory_space<vmem>>, vector<16x16x16xbf16>
    %14 = vector.shape_cast %13 : vector<16x16x16xbf16> to vector<256x16xbf16>
    %c0_12 = arith.constant 0 : index
    %c2 = arith.constant 2 : index
    %c0_13 = arith.constant 0 : index
    %15 = vector.load %arg11[%c0_12, %c2, %c0_13] : memref<18x18x16xbf16, #tpu.memory_space<vmem>>, vector<16x16x16xbf16>
    %16 = vector.shape_cast %15 : vector<16x16x16xbf16> to vector<256x16xbf16>
    %c1_14 = arith.constant 1 : index
    %c0_15 = arith.constant 0 : index
    %c0_16 = arith.constant 0 : index
    %17 = vector.load %arg11[%c1_14, %c0_15, %c0_16] : memref<18x18x16xbf16, #tpu.memory_space<vmem>>, vector<16x16x16xbf16>
    %18 = vector.shape_cast %17 : vector<16x16x16xbf16> to vector<256x16xbf16>
    %c1_17 = arith.constant 1 : index
    %c1_18 = arith.constant 1 : index
    %c0_19 = arith.constant 0 : index
    %19 = vector.load %arg11[%c1_17, %c1_18, %c0_19] : memref<18x18x16xbf16, #tpu.memory_space<vmem>>, vector<16x16x16xbf16>
    %20 = vector.shape_cast %19 : vector<16x16x16xbf16> to vector<256x16xbf16>
    %c1_20 = arith.constant 1 : index
    %c2_21 = arith.constant 2 : index
    %c0_22 = arith.constant 0 : index
    %21 = vector.load %arg11[%c1_20, %c2_21, %c0_22] : memref<18x18x16xbf16, #tpu.memory_space<vmem>>, vector<16x16x16xbf16>
    %22 = vector.shape_cast %21 : vector<16x16x16xbf16> to vector<256x16xbf16>
    %c2_23 = arith.constant 2 : index
    %c0_24 = arith.constant 0 : index
    %c0_25 = arith.constant 0 : index
    %23 = vector.load %arg11[%c2_23, %c0_24, %c0_25] : memref<18x18x16xbf16, #tpu.memory_space<vmem>>, vector<16x16x16xbf16>
    %24 = vector.shape_cast %23 : vector<16x16x16xbf16> to vector<256x16xbf16>
    %c2_26 = arith.constant 2 : index
    %c1_27 = arith.constant 1 : index
    %c0_28 = arith.constant 0 : index
    %25 = vector.load %arg11[%c2_26, %c1_27, %c0_28] : memref<18x18x16xbf16, #tpu.memory_space<vmem>>, vector<16x16x16xbf16>
    %26 = vector.shape_cast %25 : vector<16x16x16xbf16> to vector<256x16xbf16>
    %c2_29 = arith.constant 2 : index
    %c2_30 = arith.constant 2 : index
    %c0_31 = arith.constant 0 : index
    %27 = vector.load %arg11[%c2_29, %c2_30, %c0_31] : memref<18x18x16xbf16, #tpu.memory_space<vmem>>, vector<16x16x16xbf16>
    %28 = vector.shape_cast %27 : vector<16x16x16xbf16> to vector<256x16xbf16>
    %29 = tpu.concatenate %12, %14, %16, %18, %20, %22, %24, %26, %28 in 1 : vector<256x16xbf16>, vector<256x16xbf16>, vector<256x16xbf16>, vector<256x16xbf16>, vector<256x16xbf16>, vector<256x16xbf16>, vector<256x16xbf16>, vector<256x16xbf16>, vector<256x16xbf16> -> vector<256x144xbf16>
    %c0_32 = arith.constant 0 : index
    %c0_33 = arith.constant 0 : index
    %30 = vector.load %arg2[%c0_32, %c0_33] : memref<144x16xbf16, #tpu.memory_space<vmem>>, vector<144x16xbf16>
    %cst_34 = arith.constant dense<0.000000e+00> : vector<256x16xf32>
    %31 = tpu.matmul %29, %30, %cst_34 {dimension_numbers = #tpu.dot_dimension_numbers<[1], [0], [0], [1], [0, 0, 1, 1], [], []>} : vector<256x144xbf16>, vector<144x16xbf16>, vector<256x16xf32> -> vector<256x16xf32>
    %c0_35 = arith.constant 0 : index
    %c0_36 = arith.constant 0 : index
    %32 = vector.load %arg3[%c0_35, %c0_36] : memref<1x16xf32, #tpu.memory_space<vmem>>, vector<1x16xf32>
    %33 = vector.broadcast %32 : vector<1x16xf32> to vector<256x16xf32>
    %34 = arith.addf %31, %33 : vector<256x16xf32>
    %cst_37 = arith.constant 0.000000e+00 : f32
    %35 = vector.broadcast %cst_37 : f32 to vector<256x16xf32>
    %36 = arith.maximumf %34, %35 : vector<256x16xf32>
    %37 = arith.truncf %36 : vector<256x16xf32> to vector<256x16xbf16>
    %38 = vector.shape_cast %37 : vector<256x16xbf16> to vector<16x16x16xbf16>
    %cst_38 = arith.constant 0.000000e+00 : bf16
    %39 = vector.broadcast %cst_38 : bf16 to vector<16x1x16xbf16>
    %cst_39 = arith.constant 0.000000e+00 : bf16
    %40 = vector.broadcast %cst_39 : bf16 to vector<1x18x16xbf16>
    %41 = tpu.concatenate %39, %38, %39 in 1 : vector<16x1x16xbf16>, vector<16x16x16xbf16>, vector<16x1x16xbf16> -> vector<16x18x16xbf16>
    %42 = tpu.concatenate %40, %41, %40 in 0 : vector<1x18x16xbf16>, vector<16x18x16xbf16>, vector<1x18x16xbf16> -> vector<18x18x16xbf16>
    %c0_40 = arith.constant 0 : index
    %c0_41 = arith.constant 0 : index
    %c0_42 = arith.constant 0 : index
    %43 = vector.load %arg12[%c0_40, %c0_41, %c0_42] : memref<18x18x16xbf16, #tpu.memory_space<vmem>>, vector<18x18x16xbf16>
    tpu.vector_store %arg12[%c0_40, %c0_41, %c0_42], %42 {strides = array<i32>} : memref<18x18x16xbf16, #tpu.memory_space<vmem>>, vector<18x18x16xbf16>,
    %c0_43 = arith.constant 0 : index
    %c0_44 = arith.constant 0 : index
    %c0_45 = arith.constant 0 : index
    %44 = vector.load %arg12[%c0_43, %c0_44, %c0_45] : memref<18x18x16xbf16, #tpu.memory_space<vmem>>, vector<16x16x16xbf16>
    %45 = vector.shape_cast %44 : vector<16x16x16xbf16> to vector<256x16xbf16>
    %c0_46 = arith.constant 0 : index
    %c1_47 = arith.constant 1 : index
    %c0_48 = arith.constant 0 : index
    %46 = vector.load %arg12[%c0_46, %c1_47, %c0_48] : memref<18x18x16xbf16, #tpu.memory_space<vmem>>, vector<16x16x16xbf16>
    %47 = vector.shape_cast %46 : vector<16x16x16xbf16> to vector<256x16xbf16>
    %c0_49 = arith.constant 0 : index
    %c2_50 = arith.constant 2 : index
    %c0_51 = arith.constant 0 : index
    %48 = vector.load %arg12[%c0_49, %c2_50, %c0_51] : memref<18x18x16xbf16, #tpu.memory_space<vmem>>, vector<16x16x16xbf16>
    %49 = vector.shape_cast %48 : vector<16x16x16xbf16> to vector<256x16xbf16>
    %c1_52 = arith.constant 1 : index
    %c0_53 = arith.constant 0 : index
    %c0_54 = arith.constant 0 : index
    %50 = vector.load %arg12[%c1_52, %c0_53, %c0_54] : memref<18x18x16xbf16, #tpu.memory_space<vmem>>, vector<16x16x16xbf16>
    %51 = vector.shape_cast %50 : vector<16x16x16xbf16> to vector<256x16xbf16>
    %c1_55 = arith.constant 1 : index
    %c1_56 = arith.constant 1 : index
    %c0_57 = arith.constant 0 : index
    %52 = vector.load %arg12[%c1_55, %c1_56, %c0_57] : memref<18x18x16xbf16, #tpu.memory_space<vmem>>, vector<16x16x16xbf16>
    %53 = vector.shape_cast %52 : vector<16x16x16xbf16> to vector<256x16xbf16>
    %c1_58 = arith.constant 1 : index
    %c2_59 = arith.constant 2 : index
    %c0_60 = arith.constant 0 : index
    %54 = vector.load %arg12[%c1_58, %c2_59, %c0_60] : memref<18x18x16xbf16, #tpu.memory_space<vmem>>, vector<16x16x16xbf16>
    %55 = vector.shape_cast %54 : vector<16x16x16xbf16> to vector<256x16xbf16>
    %c2_61 = arith.constant 2 : index
    %c0_62 = arith.constant 0 : index
    %c0_63 = arith.constant 0 : index
    %56 = vector.load %arg12[%c2_61, %c0_62, %c0_63] : memref<18x18x16xbf16, #tpu.memory_space<vmem>>, vector<16x16x16xbf16>
    %57 = vector.shape_cast %56 : vector<16x16x16xbf16> to vector<256x16xbf16>
    %c2_64 = arith.constant 2 : index
    %c1_65 = arith.constant 1 : index
    %c0_66 = arith.constant 0 : index
    %58 = vector.load %arg12[%c2_64, %c1_65, %c0_66] : memref<18x18x16xbf16, #tpu.memory_space<vmem>>, vector<16x16x16xbf16>
    %59 = vector.shape_cast %58 : vector<16x16x16xbf16> to vector<256x16xbf16>
    %c2_67 = arith.constant 2 : index
    %c2_68 = arith.constant 2 : index
    %c0_69 = arith.constant 0 : index
    %60 = vector.load %arg12[%c2_67, %c2_68, %c0_69] : memref<18x18x16xbf16, #tpu.memory_space<vmem>>, vector<16x16x16xbf16>
    %61 = vector.shape_cast %60 : vector<16x16x16xbf16> to vector<256x16xbf16>
    %62 = tpu.concatenate %45, %47, %49, %51, %53, %55, %57, %59, %61 in 1 : vector<256x16xbf16>, vector<256x16xbf16>, vector<256x16xbf16>, vector<256x16xbf16>, vector<256x16xbf16>, vector<256x16xbf16>, vector<256x16xbf16>, vector<256x16xbf16>, vector<256x16xbf16> -> vector<256x144xbf16>
    %c0_70 = arith.constant 0 : index
    %c0_71 = arith.constant 0 : index
    %63 = vector.load %arg4[%c0_70, %c0_71] : memref<144x16xbf16, #tpu.memory_space<vmem>>, vector<144x16xbf16>
    %cst_72 = arith.constant dense<0.000000e+00> : vector<256x16xf32>
    %64 = tpu.matmul %62, %63, %cst_72 {dimension_numbers = #tpu.dot_dimension_numbers<[1], [0], [0], [1], [0, 0, 1, 1], [], []>} : vector<256x144xbf16>, vector<144x16xbf16>, vector<256x16xf32> -> vector<256x16xf32>
    %cst_73 = arith.constant dense<0.000000e+00> : vector<16xf32>
    %65 = vector.multi_reduction <add>, %64, %cst_73 [0] : vector<256x16xf32> to vector<16xf32>
    %66 = vector.shape_cast %65 : vector<16xf32> to vector<1x16xf32>
    %cst_74 = arith.constant 2.560000e+02 : f32
    %67 = vector.broadcast %cst_74 : f32 to vector<1x16xf32>
    %68 = arith.divf %66, %67 : vector<1x16xf32>
    %c0_75 = arith.constant 0 : index
    %c0_76 = arith.constant 0 : index
    %69 = vector.load %arg5[%c0_75, %c0_76] : memref<1x16xf32, #tpu.memory_space<vmem>>, vector<1x16xf32>
    %70 = arith.addf %68, %69 : vector<1x16xf32>
    %c0_77 = arith.constant 0 : index
    %c0_78 = arith.constant 0 : index
    %71 = vector.load %arg6[%c0_77, %c0_78] : memref<16x4xf32, #tpu.memory_space<vmem>>, vector<16x4xf32>
    %cst_79 = arith.constant dense<0.000000e+00> : vector<1x4xf32>
    %72 = tpu.matmul %70, %71, %cst_79 {dimension_numbers = #tpu.dot_dimension_numbers<[1], [0], [0], [1], [0, 0, 1, 1], [], []>} : vector<1x16xf32>, vector<16x4xf32>, vector<1x4xf32> -> vector<1x4xf32>
    %c0_80 = arith.constant 0 : index
    %c0_81 = arith.constant 0 : index
    %73 = vector.load %arg7[%c0_80, %c0_81] : memref<1x4xf32, #tpu.memory_space<vmem>>, vector<1x4xf32>
    %74 = arith.addf %72, %73 : vector<1x4xf32>
    %cst_82 = arith.constant 0.000000e+00 : f32
    %75 = vector.broadcast %cst_82 : f32 to vector<1x4xf32>
    %76 = arith.maximumf %74, %75 : vector<1x4xf32>
    %c0_83 = arith.constant 0 : index
    %c0_84 = arith.constant 0 : index
    %77 = vector.load %arg8[%c0_83, %c0_84] : memref<4x16xf32, #tpu.memory_space<vmem>>, vector<4x16xf32>
    %cst_85 = arith.constant dense<0.000000e+00> : vector<1x16xf32>
    %78 = tpu.matmul %76, %77, %cst_85 {dimension_numbers = #tpu.dot_dimension_numbers<[1], [0], [0], [1], [0, 0, 1, 1], [], []>} : vector<1x4xf32>, vector<4x16xf32>, vector<1x16xf32> -> vector<1x16xf32>
    %c0_86 = arith.constant 0 : index
    %c0_87 = arith.constant 0 : index
    %79 = vector.load %arg9[%c0_86, %c0_87] : memref<1x16xf32, #tpu.memory_space<vmem>>, vector<1x16xf32>
    %80 = arith.addf %78, %79 : vector<1x16xf32>
    %81 = arith.negf %80 : vector<1x16xf32>
    %82 = math.exp %81 : vector<1x16xf32>
    %cst_88 = arith.constant 1.000000e+00 : f32
    %83 = vector.broadcast %cst_88 : f32 to vector<1x16xf32>
    %84 = arith.addf %83, %82 : vector<1x16xf32>
    %85 = arith.divf %83, %84 : vector<1x16xf32>
    %86 = tpu.transpose %64, [1, 0] : vector<256x16xf32> -> vector<16x256xf32>
    %c0_89 = arith.constant 0 : index
    %c0_90 = arith.constant 0 : index
    %87 = vector.load %arg5[%c0_89, %c0_90] : memref<1x16xf32, #tpu.memory_space<vmem>>, vector<1x16xf32>
    %88 = tpu.transpose %87, [1, 0] : vector<1x16xf32> -> vector<16x1xf32>
    %89 = vector.broadcast %88 : vector<16x1xf32> to vector<16x256xf32>
    %90 = arith.addf %86, %89 : vector<16x256xf32>
    %91 = tpu.transpose %85, [1, 0] : vector<1x16xf32> -> vector<16x1xf32>
    %92 = vector.broadcast %91 : vector<16x1xf32> to vector<16x256xf32>
    %93 = arith.mulf %90, %92 : vector<16x256xf32>
    %94 = arith.addf %93, %2 : vector<16x256xf32>
    %c0_91 = arith.constant 0 : index
    %c0_92 = arith.constant 0 : index
    %c0_93 = arith.constant 0 : index
    %95 = vector.load %arg10[%c0_91, %c0_92, %c0_93] : memref<1x16x256xf32, #tpu.memory_space<vmem>>, vector<1x16x256xf32>
    %96 = vector.shape_cast %95 : vector<1x16x256xf32> to vector<16x256xf32>
    %97 = vector.shape_cast %94 : vector<16x256xf32> to vector<1x16x256xf32>
    tpu.vector_store %arg10[%c0_91, %c0_92, %c0_93], %97 {strides = array<i32>} : memref<1x16x256xf32, #tpu.memory_space<vmem>>, vector<1x16x256xf32>,
    return
  }
  func.func @transform_0(%arg0: i32) -> (i32, i32, i32, i32) {
    %c0_i32 = arith.constant 0 : i32
    %c0_i32_0 = arith.constant 0 : i32
    %c0_i32_1 = arith.constant 0 : i32
    %c0_i32_2 = arith.constant 0 : i32
    return %arg0, %c0_i32, %c0_i32_0, %c0_i32_1 : i32, i32, i32, i32
  }
  func.func @transform_1(%arg0: i32) -> (i32, i32) {
    %c0_i32 = arith.constant 0 : i32
    %c0_i32_0 = arith.constant 0 : i32
    %c0_i32_1 = arith.constant 0 : i32
    return %c0_i32, %c0_i32_0 : i32, i32
  }
  func.func @transform_2(%arg0: i32) -> (i32, i32) {
    %c0_i32 = arith.constant 0 : i32
    %c0_i32_0 = arith.constant 0 : i32
    %c0_i32_1 = arith.constant 0 : i32
    return %c0_i32, %c0_i32_0 : i32, i32
  }
  func.func @transform_3(%arg0: i32) -> (i32, i32) {
    %c0_i32 = arith.constant 0 : i32
    %c0_i32_0 = arith.constant 0 : i32
    %c0_i32_1 = arith.constant 0 : i32
    return %c0_i32, %c0_i32_0 : i32, i32
  }
  func.func @transform_4(%arg0: i32) -> (i32, i32) {
    %c0_i32 = arith.constant 0 : i32
    %c0_i32_0 = arith.constant 0 : i32
    %c0_i32_1 = arith.constant 0 : i32
    return %c0_i32, %c0_i32_0 : i32, i32
  }
  func.func @transform_5(%arg0: i32) -> (i32, i32) {
    %c0_i32 = arith.constant 0 : i32
    %c0_i32_0 = arith.constant 0 : i32
    %c0_i32_1 = arith.constant 0 : i32
    return %c0_i32, %c0_i32_0 : i32, i32
  }
  func.func @transform_6(%arg0: i32) -> (i32, i32) {
    %c0_i32 = arith.constant 0 : i32
    %c0_i32_0 = arith.constant 0 : i32
    %c0_i32_1 = arith.constant 0 : i32
    return %c0_i32, %c0_i32_0 : i32, i32
  }
  func.func @transform_7(%arg0: i32) -> (i32, i32) {
    %c0_i32 = arith.constant 0 : i32
    %c0_i32_0 = arith.constant 0 : i32
    %c0_i32_1 = arith.constant 0 : i32
    return %c0_i32, %c0_i32_0 : i32, i32
  }
  func.func @transform_8(%arg0: i32) -> (i32, i32) {
    %c0_i32 = arith.constant 0 : i32
    %c0_i32_0 = arith.constant 0 : i32
    %c0_i32_1 = arith.constant 0 : i32
    return %c0_i32, %c0_i32_0 : i32, i32
  }
  func.func @transform_9(%arg0: i32) -> (i32, i32, i32) {
    %c0_i32 = arith.constant 0 : i32
    %c0_i32_0 = arith.constant 0 : i32
    %c0_i32_1 = arith.constant 0 : i32
    return %arg0, %c0_i32, %c0_i32_0 : i32, i32, i32
  }
}

</mosaic_0001>

<llo_original>
// kernel: tpu_custom_call.1
$region0: #{tpu_custom_call.1}
  #allocation0 [shape = 'u32[]', space=smem, size = 0x4, offset = 0x4, fixed_abs, tag = 'smem constant byte address 0x4 - core index']
  #allocation1 [shape = 'u32[144,128]{1,0:T(1,128)}', space=vmem, size = 0x12000, scoped, tag = 'internal scratch']
  #allocation2 [shape = 'bf16[18,18,16]{2,1,0:T(8,128)(2,1)}', space=vmem, size = 0x1b000, scoped, tag = 'scratch operand']
  #allocation3 [shape = 'bf16[18,18,16]{2,1,0:T(8,128)(2,1)}', space=vmem, size = 0x1b000, scoped, tag = 'scratch operand']
  %s0 = inlined_call_operand.hbm [shape: f32[2,16,16,16], index: 0, kind: input, shape index: {}]
  %s1 = inlined_call_operand.vmem [shape: bf16[144,16], index: 1, kind: input, shape index: {}]
  %s2 = inlined_call_operand.vmem [shape: f32[1,16], index: 2, kind: input, shape index: {}]
  %s3 = inlined_call_operand.vmem [shape: bf16[144,16], index: 3, kind: input, shape index: {}]
  %s4 = inlined_call_operand.vmem [shape: f32[1,16], index: 4, kind: input, shape index: {}]
  %s5 = inlined_call_operand.vmem [shape: f32[16,4], index: 5, kind: input, shape index: {}]
  %s6 = inlined_call_operand.vmem [shape: f32[1,4], index: 6, kind: input, shape index: {}]
  %s7 = inlined_call_operand.vmem [shape: f32[4,16], index: 7, kind: input, shape index: {}]
  %s8 = inlined_call_operand.vmem [shape: f32[1,16], index: 8, kind: input, shape index: {}]
  %s9 = inlined_call_operand.hbm [shape: f32[2,16,256], index: 9, kind: output, shape index: {}]
  %s10 = sld [smem:[#allocation0]]
  $region73: #{tpu_custom_call.1} parent=0
    _
  %s12 = ssub.s32 1, %s10
  %s13 = scalar_select 0, %s12, %s10
  $region1: #{tpu_custom_call.1} parent=0
    #allocation4 [shape = 'u8[262144]{0}', space=vmem, size = 0x40000, scoped, tag = 'input window, operand 0']
    #allocation5 [shape = 's32[2]{0}', space=sflag, size = 0x8, scoped, tag = 'scoped memory for tpu_custom_call.1']
    #allocation6 [shape = 's32[2]{0}', space=sflag, size = 0x8, scoped, tag = 'scoped memory for tpu_custom_call.1']
    #allocation7 [shape = 'u8[32768]{0}', space=vmem, size = 0x8000, scoped, tag = 'output window, operand 0']
    %14 = vsyncpa [#allocation5], 0
    %s15 = scalar_lea.sflag [#allocation5], 1
    %16 = vsyncpa %s15, 0
    %17 = vsyncpa [#allocation6], 0
    %s18 = scalar_lea.sflag [#allocation6], 1
    %19 = vsyncpa %s18, 0
    loop: start=0, step=1, limit=4
    $region2: #{tpu_custom_call.1} parent=1 // loop_pre_header
      _
    $region3: #{tpu_custom_call.1} parent=1 // loop_header
      %s21 = sphi 0, %s25
      %p22 = scmp.ge.s32.totalorder %s21, 4
      %s31 = sphi 0, %s33
      %s34 = sphi 0, %s31
      %s35 = sphi 0, %s34
      %s51 = sphi 0, %s35
      %s55 = sphi 0, %s55
      %s57 = sphi 0, %s55
      %s58 = sphi 0, %s57
      %s72 = sphi 0, %s58
      %s76 = sphi 0, %s76
      %s78 = sphi 0, %s76
      %s79 = sphi 0, %s78
      %s93 = sphi 0, %s79
      %s97 = sphi 0, %s97
      %s99 = sphi 0, %s97
      %s100 = sphi 0, %s99
      %s114 = sphi 0, %s100
      %s118 = sphi 0, %s118
      %s120 = sphi 0, %s118
      %s121 = sphi 0, %s120
      %s135 = sphi 0, %s121
      %s139 = sphi 0, %s139
      %s141 = sphi 0, %s139
      %s142 = sphi 0, %s141
      %s156 = sphi 0, %s142
      %s160 = sphi 0, %s160
      %s162 = sphi 0, %s160
      %s163 = sphi 0, %s162
      %s177 = sphi 0, %s163
      %s181 = sphi 0, %s181
      %s183 = sphi 0, %s181
      %s184 = sphi 0, %s183
      %s198 = sphi 0, %s184
      %s202 = sphi 0, %s202
      %s204 = sphi 0, %s202
      %s205 = sphi 0, %s204
      %s219 = sphi 0, %s205
      %s225 = sphi 0, %s227
      %s228 = sphi 0, %s225
      %s229 = sphi 0, %s228
      %s245 = sphi 0, %s229
    $region4: #{tpu_custom_call.1} parent=1 // loop_header_branch
      %24 = sbr.rel (%p22) target = $region8
    $region5: #{tpu_custom_call.1} parent=1 // loop_body
      %s26 = ssub.s32 %s21, 1
      %s27 = ssub.s32 %s21, 2
      %s28 = sadd.s32 %s21, 1
      %s29 = ssub.s32 %s21, %s28
      %p30 = scmp.eq.s32.totalorder %s29, 0
      %s32 = sadd.s32 %s31, 1
      %s33 = scalar_select %p30, %s31, %s32
      %p36 = pneg %p30
      %p37 = scmp.eq.s32.totalorder %s21, 1
      %p38 = por %p36, %p37
      %p39 = scmp.ne.s32.totalorder %s31, %s34
      %p40 = scmp.eq.s32.totalorder %s21, 0
      %p41 = por %p39, %p40
      %p42 = scmp.ne.s32.totalorder %s31, %s34
      %p43 = scmp.eq.s32.totalorder %s26, 1
      %p44 = por %p42, %p43
      %p45 = scmp.ne.s32.totalorder %s34, %s35
      %p46 = scmp.eq.s32.totalorder %s26, 0
      %p47 = por %p45, %p46
      %p48 = scmp.ne.s32.totalorder %s34, %s35
      %p49 = scmp.eq.s32.totalorder %s27, 1
      %p50 = por %p48, %p49
      %p52 = scmp.ne.s32.totalorder %s35, %s51
      %p53 = scmp.eq.s32.totalorder %s27, 0
      %p54 = por %p52, %p53
      %s56 = sadd.s32 %s55, 1
      %p59 = scmp.eq.s32.totalorder %s21, 1
      %p60 = scmp.ne.s32.totalorder %s55, %s57
      %p61 = scmp.eq.s32.totalorder %s21, 0
      %p62 = por %p60, %p61
      %p63 = scmp.ne.s32.totalorder %s55, %s57
      %p64 = scmp.eq.s32.totalorder %s26, 1
      %p65 = por %p63, %p64
      %p66 = scmp.ne.s32.totalorder %s57, %s58
      %p67 = scmp.eq.s32.totalorder %s26, 0
      %p68 = por %p66, %p67
      %p69 = scmp.ne.s32.totalorder %s57, %s58
      %p70 = scmp.eq.s32.totalorder %s27, 1
      %p71 = por %p69, %p70
      %p73 = scmp.ne.s32.totalorder %s58, %s72
      %p74 = scmp.eq.s32.totalorder %s27, 0
      %p75 = por %p73, %p74
      %s77 = sadd.s32 %s76, 1
      %p80 = scmp.eq.s32.totalorder %s21, 1
      %p81 = scmp.ne.s32.totalorder %s76, %s78
      %p82 = scmp.eq.s32.totalorder %s21, 0
      %p83 = por %p81, %p82
      %p84 = scmp.ne.s32.totalorder %s76, %s78
      %p85 = scmp.eq.s32.totalorder %s26, 1
      %p86 = por %p84, %p85
      %p87 = scmp.ne.s32.totalorder %s78, %s79
      %p88 = scmp.eq.s32.totalorder %s26, 0
      %p89 = por %p87, %p88
      %p90 = scmp.ne.s32.totalorder %s78, %s79
      %p91 = scmp.eq.s32.totalorder %s27, 1
      %p92 = por %p90, %p91
      %p94 = scmp.ne.s32.totalorder %s79, %s93
      %p95 = scmp.eq.s32.totalorder %s27, 0
      %p96 = por %p94, %p95
      %s98 = sadd.s32 %s97, 1
      %p101 = scmp.eq.s32.totalorder %s21, 1
      %p102 = scmp.ne.s32.totalorder %s97, %s99
      %p103 = scmp.eq.s32.totalorder %s21, 0
      %p104 = por %p102, %p103
      %p105 = scmp.ne.s32.totalorder %s97, %s99
      %p106 = scmp.eq.s32.totalorder %s26, 1
      %p107 = por %p105, %p106
      %p108 = scmp.ne.s32.totalorder %s99, %s100
      %p109 = scmp.eq.s32.totalorder %s26, 0
      %p110 = por %p108, %p109
      %p111 = scmp.ne.s32.totalorder %s99, %s100
      %p112 = scmp.eq.s32.totalorder %s27, 1
      %p113 = por %p111, %p112
      %p115 = scmp.ne.s32.totalorder %s100, %s114
      %p116 = scmp.eq.s32.totalorder %s27, 0
      %p117 = por %p115, %p116
      %s119 = sadd.s32 %s118, 1
      %p122 = scmp.eq.s32.totalorder %s21, 1
      %p123 = scmp.ne.s32.totalorder %s118, %s120
      %p124 = scmp.eq.s32.totalorder %s21, 0
      %p125 = por %p123, %p124
      %p126 = scmp.ne.s32.totalorder %s118, %s120
      %p127 = scmp.eq.s32.totalorder %s26, 1
      %p128 = por %p126, %p127
      %p129 = scmp.ne.s32.totalorder %s120, %s121
      %p130 = scmp.eq.s32.totalorder %s26, 0
      %p131 = por %p129, %p130
      %p132 = scmp.ne.s32.totalorder %s120, %s121
      %p133 = scmp.eq.s32.totalorder %s27, 1
      %p134 = por %p132, %p133
      %p136 = scmp.ne.s32.totalorder %s121, %s135
      %p137 = scmp.eq.s32.totalorder %s27, 0
      %p138 = por %p136, %p137
      %s140 = sadd.s32 %s139, 1
      %p143 = scmp.eq.s32.totalorder %s21, 1
      %p144 = scmp.ne.s32.totalorder %s139, %s141
      %p145 = scmp.eq.s32.totalorder %s21, 0
      %p146 = por %p144, %p145
      %p147 = scmp.ne.s32.totalorder %s139, %s141
      %p148 = scmp.eq.s32.totalorder %s26, 1
      %p149 = por %p147, %p148
      %p150 = scmp.ne.s32.totalorder %s141, %s142
      %p151 = scmp.eq.s32.totalorder %s26, 0
      %p152 = por %p150, %p151
      %p153 = scmp.ne.s32.totalorder %s141, %s142
      %p154 = scmp.eq.s32.totalorder %s27, 1
      %p155 = por %p153, %p154
      %p157 = scmp.ne.s32.totalorder %s142, %s156
      %p158 = scmp.eq.s32.totalorder %s27, 0
      %p159 = por %p157, %p158
      %s161 = sadd.s32 %s160, 1
      %p164 = scmp.eq.s32.totalorder %s21, 1
      %p165 = scmp.ne.s32.totalorder %s160, %s162
      %p166 = scmp.eq.s32.totalorder %s21, 0
      %p167 = por %p165, %p166
      %p168 = scmp.ne.s32.totalorder %s160, %s162
      %p169 = scmp.eq.s32.totalorder %s26, 1
      %p170 = por %p168, %p169
      %p171 = scmp.ne.s32.totalorder %s162, %s163
      %p172 = scmp.eq.s32.totalorder %s26, 0
      %p173 = por %p171, %p172
      %p174 = scmp.ne.s32.totalorder %s162, %s163
      %p175 = scmp.eq.s32.totalorder %s27, 1
      %p176 = por %p174, %p175
      %p178 = scmp.ne.s32.totalorder %s163, %s177
      %p179 = scmp.eq.s32.totalorder %s27, 0
      %p180 = por %p178, %p179
      %s182 = sadd.s32 %s181, 1
      %p185 = scmp.eq.s32.totalorder %s21, 1
      %p186 = scmp.ne.s32.totalorder %s181, %s183
      %p187 = scmp.eq.s32.totalorder %s21, 0
      %p188 = por %p186, %p187
      %p189 = scmp.ne.s32.totalorder %s181, %s183
      %p190 = scmp.eq.s32.totalorder %s26, 1
      %p191 = por %p189, %p190
      %p192 = scmp.ne.s32.totalorder %s183, %s184
      %p193 = scmp.eq.s32.totalorder %s26, 0
      %p194 = por %p192, %p193
      %p195 = scmp.ne.s32.totalorder %s183, %s184
      %p196 = scmp.eq.s32.totalorder %s27, 1
      %p197 = por %p195, %p196
      %p199 = scmp.ne.s32.totalorder %s184, %s198
      %p200 = scmp.eq.s32.totalorder %s27, 0
      %p201 = por %p199, %p200
      %s203 = sadd.s32 %s202, 1
      %p206 = scmp.eq.s32.totalorder %s21, 1
      %p207 = scmp.ne.s32.totalorder %s202, %s204
      %p208 = scmp.eq.s32.totalorder %s21, 0
      %p209 = por %p207, %p208
      %p210 = scmp.ne.s32.totalorder %s202, %s204
      %p211 = scmp.eq.s32.totalorder %s26, 1
      %p212 = por %p210, %p211
      %p213 = scmp.ne.s32.totalorder %s204, %s205
      %p214 = scmp.eq.s32.totalorder %s26, 0
      %p215 = por %p213, %p214
      %p216 = scmp.ne.s32.totalorder %s204, %s205
      %p217 = scmp.eq.s32.totalorder %s27, 1
      %p218 = por %p216, %p217
      %p220 = scmp.ne.s32.totalorder %s205, %s219
      %p221 = scmp.eq.s32.totalorder %s27, 0
      %p222 = por %p220, %p221
      %s223 = ssub.s32 %s21, %s28
      %p224 = scmp.eq.s32.totalorder %s223, 0
      %s226 = sadd.s32 %s225, 1
      %s227 = scalar_select %p224, %s225, %s226
      %p230 = pneg %p224
      %p231 = scmp.eq.s32.totalorder %s21, 1
      %p232 = por %p230, %p231
      %p233 = scmp.ne.s32.totalorder %s225, %s228
      %p234 = scmp.eq.s32.totalorder %s21, 0
      %p235 = por %p233, %p234
      %p236 = scmp.ne.s32.totalorder %s225, %s228
      %p237 = scmp.eq.s32.totalorder %s26, 1
      %p238 = por %p236, %p237
      %p239 = scmp.ne.s32.totalorder %s228, %s229
      %p240 = scmp.eq.s32.totalorder %s26, 0
      %p241 = por %p239, %p240
      %p242 = scmp.ne.s32.totalorder %s228, %s229
      %p243 = scmp.eq.s32.totalorder %s27, 1
      %p244 = por %p242, %p243
      %p246 = scmp.ne.s32.totalorder %s229, %s245
      %p247 = scmp.eq.s32.totalorder %s27, 0
      %p248 = por %p246, %p247
      %p249 = scmp.le.s32.totalorder 1, %s21
      %p250 = scmp.lt.s32.totalorder %s21, 3
      %p251 = pnand %p249, %p250
      %p252 = pneg %p251
      // Predicated region
      $region9: #{tpu_custom_call.1} parent=5 // pred_check
        _
      $region10: #{tpu_custom_call.1} parent=5 // pred_check_branch
        %254 = sbr.rel (%p251) target = $region12
      $region11: #{tpu_custom_call.1} parent=5 // pred_region
        %s255 = ssub.s32 %s21, 1
        // Predicated region
        $region13: #{tpu_custom_call.1} parent=11 // pred_check
          %p256 = pneg %p68
        $region14: #{tpu_custom_call.1} parent=11 // pred_check_branch
          %258 = sbr.rel (%p256) target = $region16
        $region15: #{tpu_custom_call.1} parent=11 // pred_region
          _
        $region16: #{tpu_custom_call.1} parent=11 // pred_fallthru
          _
        // Predicated region
        $region17: #{tpu_custom_call.1} parent=11 // pred_check
          %p259 = pneg %p89
        $region18: #{tpu_custom_call.1} parent=11 // pred_check_branch
          %261 = sbr.rel (%p259) target = $region20
        $region19: #{tpu_custom_call.1} parent=11 // pred_region
          _
        $region20: #{tpu_custom_call.1} parent=11 // pred_fallthru
          _
        // Predicated region
        $region21: #{tpu_custom_call.1} parent=11 // pred_check
          %p262 = pneg %p110
        $region22: #{tpu_custom_call.1} parent=11 // pred_check_branch
          %264 = sbr.rel (%p262) target = $region24
        $region23: #{tpu_custom_call.1} parent=11 // pred_region
          _
        $region24: #{tpu_custom_call.1} parent=11 // pred_fallthru
          _
        // Predicated region
        $region25: #{tpu_custom_call.1} parent=11 // pred_check
          %p265 = pneg %p131
        $region26: #{tpu_custom_call.1} parent=11 // pred_check_branch
          %267 = sbr.rel (%p265) target = $region28
        $region27: #{tpu_custom_call.1} parent=11 // pred_region
          _
        $region28: #{tpu_custom_call.1} parent=11 // pred_fallthru
          _
        // Predicated region
        $region29: #{tpu_custom_call.1} parent=11 // pred_check
          %p268 = pneg %p152
        $region30: #{tpu_custom_call.1} parent=11 // pred_check_branch
          %270 = sbr.rel (%p268) target = $region32
        $region31: #{tpu_custom_call.1} parent=11 // pred_region
          _
        $region32: #{tpu_custom_call.1} parent=11 // pred_fallthru
          _
        // Predicated region
        $region33: #{tpu_custom_call.1} parent=11 // pred_check
          %p271 = pneg %p173
        $region34: #{tpu_custom_call.1} parent=11 // pred_check_branch
          %273 = sbr.rel (%p271) target = $region36
        $region35: #{tpu_custom_call.1} parent=11 // pred_region
          _
        $region36: #{tpu_custom_call.1} parent=11 // pred_fallthru
          _
        // Predicated region
        $region37: #{tpu_custom_call.1} parent=11 // pred_check
          %p274 = pneg %p194
        $region38: #{tpu_custom_call.1} parent=11 // pred_check_branch
          %276 = sbr.rel (%p274) target = $region40
        $region39: #{tpu_custom_call.1} parent=11 // pred_region
          _
        $region40: #{tpu_custom_call.1} parent=11 // pred_fallthru
          _
        // Predicated region
        $region41: #{tpu_custom_call.1} parent=11 // pred_check
          %p277 = pneg %p215
        $region42: #{tpu_custom_call.1} parent=11 // pred_check_branch
          %279 = sbr.rel (%p277) target = $region44
        $region43: #{tpu_custom_call.1} parent=11 // pred_region
          _
        $region44: #{tpu_custom_call.1} parent=11 // pred_fallthru
          _
      $region12: #{tpu_custom_call.1} parent=5 // pred_fallthru
        _
      %p280 = scmp.lt.s32.totalorder %s21, 2
      // Predicated region
      $region45: #{tpu_custom_call.1} parent=5 // pred_check
        %p281 = pneg %p280
      $region46: #{tpu_custom_call.1} parent=5 // pred_check_branch
        %283 = sbr.rel (%p281) target = $region48
      $region47: #{tpu_custom_call.1} parent=5 // pred_region
        // Predicated region
        $region49: #{tpu_custom_call.1} parent=47 // pred_check
          %p284 = pneg %p41
        $region50: #{tpu_custom_call.1} parent=47 // pred_check_branch
          %286 = sbr.rel (%p284) target = $region52
        $region51: #{tpu_custom_call.1} parent=47 // pred_region
          %s287 = sand.u32 %s31, 1
          %s288 = scalar_lea.sflag [#allocation5], %s287
          %s289 = sand.u32 %s31, 1
          %s290 = smul.addr %s289, 256
          %s291 = scalar_lea.vmem [#allocation4], %s290
          %s293 = ssub.s32 4096, 4096
          %294 = vsyncadd %s288, %s293
          %s295 = smul.addr %s21, 32
          %s296 = smul.addr %s295, 128
          %s297 = scalar_lea.hbm %s0, %s296
          %s298 = sshll.u32 %s291, 4
          %s299 = int_to_ptr.vmem [resolvable:$true] %s298
          %304 = dma.hbm_to_vmem [thread:$0]  %s297, 4096, %s299, %s288, 128, 128, 8
        $region52: #{tpu_custom_call.1} parent=47 // pred_fallthru
          _
      $region48: #{tpu_custom_call.1} parent=5 // pred_fallthru
        _
      %p305 = scmp.le.s32.totalorder 1, %s21
      %p306 = scmp.lt.s32.totalorder %s21, 3
      %p307 = pnand %p305, %p306
      %p308 = pneg %p307
      // Predicated region
      $region53: #{tpu_custom_call.1} parent=5 // pred_check
        _
      $region54: #{tpu_custom_call.1} parent=5 // pred_check_branch
        %310 = sbr.rel (%p307) target = $region56
      $region55: #{tpu_custom_call.1} parent=5 // pred_region
        %s311 = ssub.s32 %s21, 1
        %s312 = sand.u32 %s34, 1
        %s313 = scalar_lea.sflag [#allocation5], %s312
        %s314 = sand.u32 %s34, 1
        %s315 = smul.addr %s314, 256
        %s316 = scalar_lea.vmem [#allocation4], %s315
        // Predicated region
        $region57: #{tpu_custom_call.1} parent=55 // pred_check
          %p317 = pneg %p47
        $region58: #{tpu_custom_call.1} parent=55 // pred_check_branch
          %319 = sbr.rel (%p317) target = $region60
        $region59: #{tpu_custom_call.1} parent=55 // pred_region
          %320 = dma.done %s313, 4096
        $region60: #{tpu_custom_call.1} parent=55 // pred_fallthru
          _
        %s321 = sand.u32 %s34, 1
        %s322 = scalar_lea.sflag [#allocation5], %s321
        %s323 = sand.u32 %s34, 1
        %s324 = smul.addr %s323, 256
        %s325 = scalar_lea.vmem [#allocation4], %s324
        %p326 = pneg %p47
        %p327 = pneg %p44
        %p328 = pneg %p68
        %p329 = pneg %p65
        %p330 = pneg %p89
        %p331 = pneg %p86
        %p332 = pneg %p110
        %p333 = pneg %p107
        %p334 = pneg %p131
        %p335 = pneg %p128
        %p336 = pneg %p152
        %p337 = pneg %p149
        %p338 = pneg %p173
        %p339 = pneg %p170
        %p340 = pneg %p194
        %p341 = pneg %p191
        %p342 = pneg %p215
        %p343 = pneg %p212
        %p344 = pneg %p241
        %p345 = pneg %p238
        %s346 = sand.u32 %s228, 1
        %s347 = scalar_lea.sflag [#allocation6], %s346
        %s348 = sand.u32 %s228, 1
        %s349 = smul.addr %s348, 32
        %s350 = scalar_lea.vmem [#allocation7], %s349
        %v352 = vld [vmem:[%s316] sm:$0xff]
        %v353 = vld [vmem:[%s316 + $0x8] sm:$0xff]
        %v354 = vld [vmem:[%s316 + $0x10] sm:$0xff]
        %v355 = vld [vmem:[%s316 + $0x18] sm:$0xff]
        %v356 = vld [vmem:[%s316 + $0x20] sm:$0xff]
        %v357 = vld [vmem:[%s316 + $0x28] sm:$0xff]
        %v358 = vld [vmem:[%s316 + $0x30] sm:$0xff]
        %v359 = vld [vmem:[%s316 + $0x38] sm:$0xff]
        %v360 = vld [vmem:[%s316 + $0x40] sm:$0xff]
        %v361 = vld [vmem:[%s316 + $0x48] sm:$0xff]
        %v362 = vld [vmem:[%s316 + $0x50] sm:$0xff]
        %v363 = vld [vmem:[%s316 + $0x58] sm:$0xff]
        %v364 = vld [vmem:[%s316 + $0x60] sm:$0xff]
        %v365 = vld [vmem:[%s316 + $0x68] sm:$0xff]
        %v366 = vld [vmem:[%s316 + $0x70] sm:$0xff]
        %v367 = vld [vmem:[%s316 + $0x78] sm:$0xff]
        %v368 = vld [vmem:[%s316 + $0x80] sm:$0xff]
        %v369 = vld [vmem:[%s316 + $0x88] sm:$0xff]
        %v370 = vld [vmem:[%s316 + $0x90] sm:$0xff]
        %v371 = vld [vmem:[%s316 + $0x98] sm:$0xff]
        %v372 = vld [vmem:[%s316 + $0xa0] sm:$0xff]
        %v373 = vld [vmem:[%s316 + $0xa8] sm:$0xff]
        %v374 = vld [vmem:[%s316 + $0xb0] sm:$0xff]
        %v375 = vld [vmem:[%s316 + $0xb8] sm:$0xff]
        %v376 = vld [vmem:[%s316 + $0xc0] sm:$0xff]
        %v377 = vld [vmem:[%s316 + $0xc8] sm:$0xff]
        %v378 = vld [vmem:[%s316 + $0xd0] sm:$0xff]
        %v379 = vld [vmem:[%s316 + $0xd8] sm:$0xff]
        %v380 = vld [vmem:[%s316 + $0xe0] sm:$0xff]
        %v381 = vld [vmem:[%s316 + $0xe8] sm:$0xff]
        %v382 = vld [vmem:[%s316 + $0xf0] sm:$0xff]
        %v383 = vld [vmem:[%s316 + $0xf8] sm:$0xff]
        %v384 = vcombine.low %v352, %v356
        %v385 = vcombine.high %v352, %v356
        %v387 = vunpack.c.l.s4 1983009808
        %v388 = vunpack.c.0.s8 %v387
        %v389 = vlaneseq
        %v390 = vshrl.u32 %v389, 7
        %v391 = vsub.s32 %v388, %v390
        %v392 = vrot.slane %v384, %v391
        %v394 = vunpack.c.l.s4 1983009808
        %v395 = vunpack.c.0.s8 %v394
        %v396 = vlaneseq
        %v397 = vshrl.u32 %v396, 7
        %v398 = vsub.s32 %v395, %v397
        %v399 = vrot.slane %v385, %v398
        %v400 = vcombine.low %v354, %v358
        %v401 = vcombine.high %v354, %v358
        %v403 = vunpack.c.l.s4 1983009808
        %v404 = vunpack.c.0.s8 %v403
        %v405 = vlaneseq
        %v406 = vshrl.u32 %v405, 7
        %v407 = vsub.s32 %v404, %v406
        %v408 = vrot.slane %v400, %v407
        %v410 = vunpack.c.l.s4 1983009808
        %v411 = vunpack.c.0.s8 %v410
        %v412 = vlaneseq
        %v413 = vshrl.u32 %v412, 7
        %v414 = vsub.s32 %v411, %v413
        %v415 = vrot.slane %v401, %v414
        %v416 = vcombine.low %v360, %v364
        %v417 = vcombine.high %v360, %v364
        %v419 = vunpack.c.l.s4 1983009808
        %v420 = vunpack.c.0.s8 %v419
        %v421 = vlaneseq
        %v422 = vshrl.u32 %v421, 7
        %v423 = vsub.s32 %v420, %v422
        %v424 = vrot.slane %v416, %v423
        %v426 = vunpack.c.l.s4 1983009808
        %v427 = vunpack.c.0.s8 %v426
        %v428 = vlaneseq
        %v429 = vshrl.u32 %v428, 7
        %v430 = vsub.s32 %v427, %v429
        %v431 = vrot.slane %v417, %v430
        %v432 = vcombine.low %v362, %v366
        %v433 = vcombine.high %v362, %v366
        %v435 = vunpack.c.l.s4 1983009808
        %v436 = vunpack.c.0.s8 %v435
        %v437 = vlaneseq
        %v438 = vshrl.u32 %v437, 7
        %v439 = vsub.s32 %v436, %v438
        %v440 = vrot.slane %v432, %v439
        %v442 = vunpack.c.l.s4 1983009808
        %v443 = vunpack.c.0.s8 %v442
        %v444 = vlaneseq
        %v445 = vshrl.u32 %v444, 7
        %v446 = vsub.s32 %v443, %v445
        %v447 = vrot.slane %v433, %v446
        %v448 = vcombine.low %v392, %v408
        %v449 = vcombine.high %v392, %v408
        %v451 = vunpack.c.l.s4 1934713408
        %v452 = vunpack.c.0.s8 %v451
        %v453 = vlaneseq
        %v454 = vshrl.u32 %v453, 7
        %v455 = vsub.s32 %v452, %v454
        %v456 = vrot.slane %v448, %v455
        %v458 = vunpack.c.l.s4 1934713408
        %v459 = vunpack.c.0.s8 %v458
        %v460 = vlaneseq
        %v461 = vshrl.u32 %v460, 7
        %v462 = vsub.s32 %v459, %v461
        %v463 = vrot.slane %v449, %v462
        %v464 = vcombine.low %v399, %v415
        %v465 = vcombine.high %v399, %v415
        %v467 = vunpack.c.l.s4 1934713408
        %v468 = vunpack.c.0.s8 %v467
        %v469 = vlaneseq
        %v470 = vshrl.u32 %v469, 7
        %v471 = vsub.s32 %v468, %v470
        %v472 = vrot.slane %v464, %v471
        %v474 = vunpack.c.l.s4 1934713408
        %v475 = vunpack.c.0.s8 %v474
        %v476 = vlaneseq
        %v477 = vshrl.u32 %v476, 7
        %v478 = vsub.s32 %v475, %v477
        %v479 = vrot.slane %v465, %v478
        %v480 = vcombine.low %v424, %v440
        %v481 = vcombine.high %v424, %v440
        %v483 = vunpack.c.l.s4 1934713408
        %v484 = vunpack.c.0.s8 %v483
        %v485 = vlaneseq
        %v486 = vshrl.u32 %v485, 7
        %v487 = vsub.s32 %v484, %v486
        %v488 = vrot.slane %v480, %v487
        %v490 = vunpack.c.l.s4 1934713408
        %v491 = vunpack.c.0.s8 %v490
        %v492 = vlaneseq
        %v493 = vshrl.u32 %v492, 7
        %v494 = vsub.s32 %v491, %v493
        %v495 = vrot.slane %v481, %v494
        %v496 = vcombine.low %v431, %v447
        %v497 = vcombine.high %v431, %v447
        %v499 = vunpack.c.l.s4 1934713408
        %v500 = vunpack.c.0.s8 %v499
        %v501 = vlaneseq
        %v502 = vshrl.u32 %v501, 7
        %v503 = vsub.s32 %v500, %v502
        %v504 = vrot.slane %v496, %v503
        %v506 = vunpack.c.l.s4 1934713408
        %v507 = vunpack.c.0.s8 %v506
        %v508 = vlaneseq
        %v509 = vshrl.u32 %v508, 7
        %v510 = vsub.s32 %v507, %v509
        %v511 = vrot.slane %v497, %v510
        %v512 = vcombine.low %v456, %v488
        %v513 = vcombine.high %v456, %v488
        %v514 = vcombine.low %v463, %v495
        %v515 = vcombine.high %v463, %v495
        %v516 = vcombine.low %v472, %v504
        %v517 = vcombine.high %v472, %v504
        %v518 = vcombine.low %v479, %v511
        %v519 = vcombine.high %v479, %v511
        %v520 = vcombine.low %v368, %v372
        %v521 = vcombine.high %v368, %v372
        %v523 = vunpack.c.l.s4 1983009808
        %v524 = vunpack.c.0.s8 %v523
        %v525 = vlaneseq
        %v526 = vshrl.u32 %v525, 7
        %v527 = vsub.s32 %v524, %v526
        %v528 = vrot.slane %v520, %v527
        %v530 = vunpack.c.l.s4 1983009808
        %v531 = vunpack.c.0.s8 %v530
        %v532 = vlaneseq
        %v533 = vshrl.u32 %v532, 7
        %v534 = vsub.s32 %v531, %v533
        %v535 = vrot.slane %v521, %v534
        %v536 = vcombine.low %v370, %v374
        %v537 = vcombine.high %v370, %v374
        %v539 = vunpack.c.l.s4 1983009808
        %v540 = vunpack.c.0.s8 %v539
        %v541 = vlaneseq
        %v542 = vshrl.u32 %v541, 7
        %v543 = vsub.s32 %v540, %v542
        %v544 = vrot.slane %v536, %v543
        %v546 = vunpack.c.l.s4 1983009808
        %v547 = vunpack.c.0.s8 %v546
        %v548 = vlaneseq
        %v549 = vshrl.u32 %v548, 7
        %v550 = vsub.s32 %v547, %v549
        %v551 = vrot.slane %v537, %v550
        %v552 = vcombine.low %v376, %v380
        %v553 = vcombine.high %v376, %v380
        %v555 = vunpack.c.l.s4 1983009808
        %v556 = vunpack.c.0.s8 %v555
        %v557 = vlaneseq
        %v558 = vshrl.u32 %v557, 7
        %v559 = vsub.s32 %v556, %v558
        %v560 = vrot.slane %v552, %v559
        %v562 = vunpack.c.l.s4 1983009808
        %v563 = vunpack.c.0.s8 %v562
        %v564 = vlaneseq
        %v565 = vshrl.u32 %v564, 7
        %v566 = vsub.s32 %v563, %v565
        %v567 = vrot.slane %v553, %v566
        %v568 = vcombine.low %v378, %v382
        %v569 = vcombine.high %v378, %v382
        %v571 = vunpack.c.l.s4 1983009808
        %v572 = vunpack.c.0.s8 %v571
        %v573 = vlaneseq
        %v574 = vshrl.u32 %v573, 7
        %v575 = vsub.s32 %v572, %v574
        %v576 = vrot.slane %v568, %v575
        %v578 = vunpack.c.l.s4 1983009808
        %v579 = vunpack.c.0.s8 %v578
        %v580 = vlaneseq
        %v581 = vshrl.u32 %v580, 7
        %v582 = vsub.s32 %v579, %v581
        %v583 = vrot.slane %v569, %v582
        %v584 = vcombine.low %v528, %v544
        %v585 = vcombine.high %v528, %v544
        %v587 = vunpack.c.l.s4 1934713408
        %v588 = vunpack.c.0.s8 %v587
        %v589 = vlaneseq
        %v590 = vshrl.u32 %v589, 7
        %v591 = vsub.s32 %v588, %v590
        %v592 = vrot.slane %v584, %v591
        %v594 = vunpack.c.l.s4 1934713408
        %v595 = vunpack.c.0.s8 %v594
        %v596 = vlaneseq
        %v597 = vshrl.u32 %v596, 7
        %v598 = vsub.s32 %v595, %v597
        %v599 = vrot.slane %v585, %v598
        %v600 = vcombine.low %v535, %v551
        %v601 = vcombine.high %v535, %v551
        %v603 = vunpack.c.l.s4 1934713408
        %v604 = vunpack.c.0.s8 %v603
        %v605 = vlaneseq
        %v606 = vshrl.u32 %v605, 7
        %v607 = vsub.s32 %v604, %v606
        %v608 = vrot.slane %v600, %v607
        %v610 = vunpack.c.l.s4 1934713408
        %v611 = vunpack.c.0.s8 %v610
        %v612 = vlaneseq
        %v613 = vshrl.u32 %v612, 7
        %v614 = vsub.s32 %v611, %v613
        %v615 = vrot.slane %v601, %v614
        %v616 = vcombine.low %v560, %v576
        %v617 = vcombine.high %v560, %v576
        %v619 = vunpack.c.l.s4 1934713408
        %v620 = vunpack.c.0.s8 %v619
        %v621 = vlaneseq
        %v622 = vshrl.u32 %v621, 7
        %v623 = vsub.s32 %v620, %v622
        %v624 = vrot.slane %v616, %v623
        %v626 = vunpack.c.l.s4 1934713408
        %v627 = vunpack.c.0.s8 %v626
        %v628 = vlaneseq
        %v629 = vshrl.u32 %v628, 7
        %v630 = vsub.s32 %v627, %v629
        %v631 = vrot.slane %v617, %v630
        %v632 = vcombine.low %v567, %v583
        %v633 = vcombine.high %v567, %v583
        %v635 = vunpack.c.l.s4 1934713408
        %v636 = vunpack.c.0.s8 %v635
        %v637 = vlaneseq
        %v638 = vshrl.u32 %v637, 7
        %v639 = vsub.s32 %v636, %v638
        %v640 = vrot.slane %v632, %v639
        %v642 = vunpack.c.l.s4 1934713408
        %v643 = vunpack.c.0.s8 %v642
        %v644 = vlaneseq
        %v645 = vshrl.u32 %v644, 7
        %v646 = vsub.s32 %v643, %v645
        %v647 = vrot.slane %v633, %v646
        %v648 = vcombine.low %v592, %v624
        %v649 = vcombine.high %v592, %v624
        %v650 = vcombine.low %v599, %v631
        %v651 = vcombine.high %v599, %v631
        %v652 = vcombine.low %v608, %v640
        %v653 = vcombine.high %v608, %v640
        %v654 = vcombine.low %v615, %v647
        %v655 = vcombine.high %v615, %v647
        %v656 = vcombine.low %v353, %v357
        %v657 = vcombine.high %v353, %v357
        %v659 = vunpack.c.l.s4 1983009808
        %v660 = vunpack.c.0.s8 %v659
        %v661 = vlaneseq
        %v662 = vshrl.u32 %v661, 7
        %v663 = vsub.s32 %v660, %v662
        %v664 = vrot.slane %v656, %v663
        %v666 = vunpack.c.l.s4 1983009808
        %v667 = vunpack.c.0.s8 %v666
        %v668 = vlaneseq
        %v669 = vshrl.u32 %v668, 7
        %v670 = vsub.s32 %v667, %v669
        %v671 = vrot.slane %v657, %v670
        %v672 = vcombine.low %v355, %v359
        %v673 = vcombine.high %v355, %v359
        %v675 = vunpack.c.l.s4 1983009808
        %v676 = vunpack.c.0.s8 %v675
        %v677 = vlaneseq
        %v678 = vshrl.u32 %v677, 7
        %v679 = vsub.s32 %v676, %v678
        %v680 = vrot.slane %v672, %v679
        %v682 = vunpack.c.l.s4 1983009808
        %v683 = vunpack.c.0.s8 %v682
        %v684 = vlaneseq
        %v685 = vshrl.u32 %v684, 7
        %v686 = vsub.s32 %v683, %v685
        %v687 = vrot.slane %v673, %v686
        %v688 = vcombine.low %v361, %v365
        %v689 = vcombine.high %v361, %v365
        %v691 = vunpack.c.l.s4 1983009808
        %v692 = vunpack.c.0.s8 %v691
        %v693 = vlaneseq
        %v694 = vshrl.u32 %v693, 7
        %v695 = vsub.s32 %v692, %v694
        %v696 = vrot.slane %v688, %v695
        %v698 = vunpack.c.l.s4 1983009808
        %v699 = vunpack.c.0.s8 %v698
        %v700 = vlaneseq
        %v701 = vshrl.u32 %v700, 7
        %v702 = vsub.s32 %v699, %v701
        %v703 = vrot.slane %v689, %v702
        %v704 = vcombine.low %v363, %v367
        %v705 = vcombine.high %v363, %v367
        %v707 = vunpack.c.l.s4 1983009808
        %v708 = vunpack.c.0.s8 %v707
        %v709 = vlaneseq
        %v710 = vshrl.u32 %v709, 7
        %v711 = vsub.s32 %v708, %v710
        %v712 = vrot.slane %v704, %v711
        %v714 = vunpack.c.l.s4 1983009808
        %v715 = vunpack.c.0.s8 %v714
        %v716 = vlaneseq
        %v717 = vshrl.u32 %v716, 7
        %v718 = vsub.s32 %v715, %v717
        %v719 = vrot.slane %v705, %v718
        %v720 = vcombine.low %v664, %v680
        %v721 = vcombine.high %v664, %v680
        %v723 = vunpack.c.l.s4 1934713408
        %v724 = vunpack.c.0.s8 %v723
        %v725 = vlaneseq
        %v726 = vshrl.u32 %v725, 7
        %v727 = vsub.s32 %v724, %v726
        %v728 = vrot.slane %v720, %v727
        %v730 = vunpack.c.l.s4 1934713408
        %v731 = vunpack.c.0.s8 %v730
        %v732 = vlaneseq
        %v733 = vshrl.u32 %v732, 7
        %v734 = vsub.s32 %v731, %v733
        %v735 = vrot.slane %v721, %v734
        %v736 = vcombine.low %v671, %v687
        %v737 = vcombine.high %v671, %v687
        %v739 = vunpack.c.l.s4 1934713408
        %v740 = vunpack.c.0.s8 %v739
        %v741 = vlaneseq
        %v742 = vshrl.u32 %v741, 7
        %v743 = vsub.s32 %v740, %v742
        %v744 = vrot.slane %v736, %v743
        %v746 = vunpack.c.l.s4 1934713408
        %v747 = vunpack.c.0.s8 %v746
        %v748 = vlaneseq
        %v749 = vshrl.u32 %v748, 7
        %v750 = vsub.s32 %v747, %v749
        %v751 = vrot.slane %v737, %v750
        %v752 = vcombine.low %v696, %v712
        %v753 = vcombine.high %v696, %v712
        %v755 = vunpack.c.l.s4 1934713408
        %v756 = vunpack.c.0.s8 %v755
        %v757 = vlaneseq
        %v758 = vshrl.u32 %v757, 7
        %v759 = vsub.s32 %v756, %v758
        %v760 = vrot.slane %v752, %v759
        %v762 = vunpack.c.l.s4 1934713408
        %v763 = vunpack.c.0.s8 %v762
        %v764 = vlaneseq
        %v765 = vshrl.u32 %v764, 7
        %v766 = vsub.s32 %v763, %v765
        %v767 = vrot.slane %v753, %v766
        %v768 = vcombine.low %v703, %v719
        %v769 = vcombine.high %v703, %v719
        %v771 = vunpack.c.l.s4 1934713408
        %v772 = vunpack.c.0.s8 %v771
        %v773 = vlaneseq
        %v774 = vshrl.u32 %v773, 7
        %v775 = vsub.s32 %v772, %v774
        %v776 = vrot.slane %v768, %v775
        %v778 = vunpack.c.l.s4 1934713408
        %v779 = vunpack.c.0.s8 %v778
        %v780 = vlaneseq
        %v781 = vshrl.u32 %v780, 7
        %v782 = vsub.s32 %v779, %v781
        %v783 = vrot.slane %v769, %v782
        %v784 = vcombine.low %v728, %v760
        %v785 = vcombine.high %v728, %v760
        %v786 = vcombine.low %v735, %v767
        %v787 = vcombine.high %v735, %v767
        %v788 = vcombine.low %v744, %v776
        %v789 = vcombine.high %v744, %v776
        %v790 = vcombine.low %v751, %v783
        %v791 = vcombine.high %v751, %v783
        %v792 = vcombine.low %v369, %v373
        %v793 = vcombine.high %v369, %v373
        %v795 = vunpack.c.l.s4 1983009808
        %v796 = vunpack.c.0.s8 %v795
        %v797 = vlaneseq
        %v798 = vshrl.u32 %v797, 7
        %v799 = vsub.s32 %v796, %v798
        %v800 = vrot.slane %v792, %v799
        %v802 = vunpack.c.l.s4 1983009808
        %v803 = vunpack.c.0.s8 %v802
        %v804 = vlaneseq
        %v805 = vshrl.u32 %v804, 7
        %v806 = vsub.s32 %v803, %v805
        %v807 = vrot.slane %v793, %v806
        %v808 = vcombine.low %v371, %v375
        %v809 = vcombine.high %v371, %v375
        %v811 = vunpack.c.l.s4 1983009808
        %v812 = vunpack.c.0.s8 %v811
        %v813 = vlaneseq
        %v814 = vshrl.u32 %v813, 7
        %v815 = vsub.s32 %v812, %v814
        %v816 = vrot.slane %v808, %v815
        %v818 = vunpack.c.l.s4 1983009808
        %v819 = vunpack.c.0.s8 %v818
        %v820 = vlaneseq
        %v821 = vshrl.u32 %v820, 7
        %v822 = vsub.s32 %v819, %v821
        %v823 = vrot.slane %v809, %v822
        %v824 = vcombine.low %v377, %v381
        %v825 = vcombine.high %v377, %v381
        %v827 = vunpack.c.l.s4 1983009808
        %v828 = vunpack.c.0.s8 %v827
        %v829 = vlaneseq
        %v830 = vshrl.u32 %v829, 7
        %v831 = vsub.s32 %v828, %v830
        %v832 = vrot.slane %v824, %v831
        %v834 = vunpack.c.l.s4 1983009808
        %v835 = vunpack.c.0.s8 %v834
        %v836 = vlaneseq
        %v837 = vshrl.u32 %v836, 7
        %v838 = vsub.s32 %v835, %v837
        %v839 = vrot.slane %v825, %v838
        %v840 = vcombine.low %v379, %v383
        %v841 = vcombine.high %v379, %v383
        %v843 = vunpack.c.l.s4 1983009808
        %v844 = vunpack.c.0.s8 %v843
        %v845 = vlaneseq
        %v846 = vshrl.u32 %v845, 7
        %v847 = vsub.s32 %v844, %v846
        %v848 = vrot.slane %v840, %v847
        %v850 = vunpack.c.l.s4 1983009808
        %v851 = vunpack.c.0.s8 %v850
        %v852 = vlaneseq
        %v853 = vshrl.u32 %v852, 7
        %v854 = vsub.s32 %v851, %v853
        %v855 = vrot.slane %v841, %v854
        %v856 = vcombine.low %v800, %v816
        %v857 = vcombine.high %v800, %v816
        %v859 = vunpack.c.l.s4 1934713408
        %v860 = vunpack.c.0.s8 %v859
        %v861 = vlaneseq
        %v862 = vshrl.u32 %v861, 7
        %v863 = vsub.s32 %v860, %v862
        %v864 = vrot.slane %v856, %v863
        %v866 = vunpack.c.l.s4 1934713408
        %v867 = vunpack.c.0.s8 %v866
        %v868 = vlaneseq
        %v869 = vshrl.u32 %v868, 7
        %v870 = vsub.s32 %v867, %v869
        %v871 = vrot.slane %v857, %v870
        %v872 = vcombine.low %v807, %v823
        %v873 = vcombine.high %v807, %v823
        %v875 = vunpack.c.l.s4 1934713408
        %v876 = vunpack.c.0.s8 %v875
        %v877 = vlaneseq
        %v878 = vshrl.u32 %v877, 7
        %v879 = vsub.s32 %v876, %v878
        %v880 = vrot.slane %v872, %v879
        %v882 = vunpack.c.l.s4 1934713408
        %v883 = vunpack.c.0.s8 %v882
        %v884 = vlaneseq
        %v885 = vshrl.u32 %v884, 7
        %v886 = vsub.s32 %v883, %v885
        %v887 = vrot.slane %v873, %v886
        %v888 = vcombine.low %v832, %v848
        %v889 = vcombine.high %v832, %v848
        %v891 = vunpack.c.l.s4 1934713408
        %v892 = vunpack.c.0.s8 %v891
        %v893 = vlaneseq
        %v894 = vshrl.u32 %v893, 7
        %v895 = vsub.s32 %v892, %v894
        %v896 = vrot.slane %v888, %v895
        %v898 = vunpack.c.l.s4 1934713408
        %v899 = vunpack.c.0.s8 %v898
        %v900 = vlaneseq
        %v901 = vshrl.u32 %v900, 7
        %v902 = vsub.s32 %v899, %v901
        %v903 = vrot.slane %v889, %v902
        %v904 = vcombine.low %v839, %v855
        %v905 = vcombine.high %v839, %v855
        %v907 = vunpack.c.l.s4 1934713408
        %v908 = vunpack.c.0.s8 %v907
        %v909 = vlaneseq
        %v910 = vshrl.u32 %v909, 7
        %v911 = vsub.s32 %v908, %v910
        %v912 = vrot.slane %v904, %v911
        %v914 = vunpack.c.l.s4 1934713408
        %v915 = vunpack.c.0.s8 %v914
        %v916 = vlaneseq
        %v917 = vshrl.u32 %v916, 7
        %v918 = vsub.s32 %v915, %v917
        %v919 = vrot.slane %v905, %v918
        %v920 = vcombine.low %v864, %v896
        %v921 = vcombine.high %v864, %v896
        %v922 = vcombine.low %v871, %v903
        %v923 = vcombine.high %v871, %v903
        %v924 = vcombine.low %v880, %v912
        %v925 = vcombine.high %v880, %v912
        %v926 = vcombine.low %v887, %v919
        %v927 = vcombine.high %v887, %v919
        %930 = vrot.lane.b32.xlu0 %v513, 16
        %v931 = vpop.permute.xlu0 %930
        %932 = vrot.lane.b32.xlu0 %v649, 16
        %v933 = vpop.permute.xlu0 %932
        %938 = vrot.lane.b32.xlu0 %v514, 32
        %v939 = vpop.permute.xlu0 %938
        %940 = vrot.lane.b32.xlu0 %v650, 32
        %v941 = vpop.permute.xlu0 %940
        %946 = vrot.lane.b32.xlu0 %v515, 48
        %v947 = vpop.permute.xlu0 %946
        %948 = vrot.lane.b32.xlu0 %v651, 48
        %v949 = vpop.permute.xlu0 %948
        %954 = vrot.lane.b32.xlu0 %v516, 64
        %v955 = vpop.permute.xlu0 %954
        %956 = vrot.lane.b32.xlu0 %v652, 64
        %v957 = vpop.permute.xlu0 %956
        %962 = vrot.lane.b32.xlu0 %v517, 80
        %v963 = vpop.permute.xlu0 %962
        %964 = vrot.lane.b32.xlu0 %v653, 80
        %v965 = vpop.permute.xlu0 %964
        %970 = vrot.lane.b32.xlu0 %v518, 96
        %v971 = vpop.permute.xlu0 %970
        %972 = vrot.lane.b32.xlu0 %v654, 96
        %v973 = vpop.permute.xlu0 %972
        %978 = vrot.lane.b32.xlu0 %v519, 112
        %v979 = vpop.permute.xlu0 %978
        %980 = vrot.lane.b32.xlu0 %v655, 112
        %v981 = vpop.permute.xlu0 %980
        %986 = vrot.lane.b32.xlu0 %v785, 16
        %v987 = vpop.permute.xlu0 %986
        %988 = vrot.lane.b32.xlu0 %v921, 16
        %v989 = vpop.permute.xlu0 %988
        %994 = vrot.lane.b32.xlu0 %v786, 32
        %v995 = vpop.permute.xlu0 %994
        %996 = vrot.lane.b32.xlu0 %v922, 32
        %v997 = vpop.permute.xlu0 %996
        %1002 = vrot.lane.b32.xlu0 %v787, 48
        %v1003 = vpop.permute.xlu0 %1002
        %1004 = vrot.lane.b32.xlu0 %v923, 48
        %v1005 = vpop.permute.xlu0 %1004
        %1010 = vrot.lane.b32.xlu0 %v788, 64
        %v1011 = vpop.permute.xlu0 %1010
        %1012 = vrot.lane.b32.xlu0 %v924, 64
        %v1013 = vpop.permute.xlu0 %1012
        %1018 = vrot.lane.b32.xlu0 %v789, 80
        %v1019 = vpop.permute.xlu0 %1018
        %1020 = vrot.lane.b32.xlu0 %v925, 80
        %v1021 = vpop.permute.xlu0 %1020
        %1026 = vrot.lane.b32.xlu0 %v790, 96
        %v1027 = vpop.permute.xlu0 %1026
        %1028 = vrot.lane.b32.xlu0 %v926, 96
        %v1029 = vpop.permute.xlu0 %1028
        %1034 = vrot.lane.b32.xlu0 %v791, 112
        %v1035 = vpop.permute.xlu0 %1034
        %1036 = vrot.lane.b32.xlu0 %v927, 112
        %v1037 = vpop.permute.xlu0 %1036
        %vm1040 = vcmask 130048
        %v1041 = vsel %vm1040, %v512, %v931
        %v1042 = vsel %vm1040, %v648, %v933
        %vm1043 = vcmask 261120
        %v1044 = vsel %vm1043, %v1041, %v939
        %v1045 = vsel %vm1043, %v1042, %v941
        %vm1046 = vcmask 392192
        %v1047 = vsel %vm1046, %v1044, %v947
        %v1048 = vsel %vm1046, %v1045, %v949
        %vm1049 = vcmask 523264
        %v1050 = vsel %vm1049, %v1047, %v955
        %v1051 = vsel %vm1049, %v1048, %v957
        %vm1052 = vcmask 654336
        %v1053 = vsel %vm1052, %v1050, %v963
        %v1054 = vsel %vm1052, %v1051, %v965
        %vm1055 = vcmask 785408
        %v1056 = vsel %vm1055, %v1053, %v971
        %v1057 = vsel %vm1055, %v1054, %v973
        %vm1058 = vcmask 916480
        %v1059 = vsel %vm1058, %v1056, %v979
        %v1060 = vsel %vm1058, %v1057, %v981
        %v1061 = vsel %vm1040, %v784, %v987
        %v1062 = vsel %vm1040, %v920, %v989
        %v1063 = vsel %vm1043, %v1061, %v995
        %v1064 = vsel %vm1043, %v1062, %v997
        %v1065 = vsel %vm1046, %v1063, %v1003
        %v1066 = vsel %vm1046, %v1064, %v1005
        %v1067 = vsel %vm1049, %v1065, %v1011
        %v1068 = vsel %vm1049, %v1066, %v1013
        %v1069 = vsel %vm1052, %v1067, %v1019
        %v1070 = vsel %vm1052, %v1068, %v1021
        %v1071 = vsel %vm1055, %v1069, %v1027
        %v1072 = vsel %vm1055, %v1070, %v1029
        %v1073 = vsel %vm1058, %v1071, %v1035
        %v1074 = vsel %vm1058, %v1072, %v1037
        %1075 = vxpose.xlu0.b32.start [1/16] %v1059, 128
        %1076 = vxpose.xlu0.b32.cont [2/16] %v1060, 128
        %1077 = vxpose.xlu0.b32.cont [3/16] 0.0, 128
        %1078 = vxpose.xlu0.b32.cont [4/16] 0.0, 128
        %1079 = vxpose.xlu0.b32.cont [5/16] 0.0, 128
        %1080 = vxpose.xlu0.b32.cont [6/16] 0.0, 128
        %1081 = vxpose.xlu0.b32.cont [7/16] 0.0, 128
        %1082 = vxpose.xlu0.b32.cont [8/16] 0.0, 128
        %1083 = vxpose.xlu0.b32.cont [9/16] 0.0, 128
        %1084 = vxpose.xlu0.b32.cont [10/16] 0.0, 128
        %1085 = vxpose.xlu0.b32.cont [11/16] 0.0, 128
        %1086 = vxpose.xlu0.b32.cont [12/16] 0.0, 128
        %1087 = vxpose.xlu0.b32.cont [13/16] 0.0, 128
        %1088 = vxpose.xlu0.b32.cont [14/16] 0.0, 128
        %1089 = vxpose.xlu0.b32.cont [15/16] 0.0, 128
        %1090 = vxpose.xlu0.b32.end [16/16] 0.0, 128
        %v1091 = vpop.trf.xlu0
        %v1092 = vpop.trf.xlu0
        %v1093 = vpop.trf.xlu0
        %v1094 = vpop.trf.xlu0
        %v1095 = vpop.trf.xlu0
        %v1096 = vpop.trf.xlu0
        %v1097 = vpop.trf.xlu0
        %v1098 = vpop.trf.xlu0
        %v1099 = vpop.trf.xlu0
        %v1100 = vpop.trf.xlu0
        %v1101 = vpop.trf.xlu0
        %v1102 = vpop.trf.xlu0
        %v1103 = vpop.trf.xlu0
        %v1104 = vpop.trf.xlu0
        %v1105 = vpop.trf.xlu0
        %v1106 = vpop.trf.xlu0
        %1107 = vxpose.xlu0.b32.start [1/16] %v1073, 128
        %1108 = vxpose.xlu0.b32.cont [2/16] %v1074, 128
        %1109 = vxpose.xlu0.b32.cont [3/16] 0.0, 128
        %1110 = vxpose.xlu0.b32.cont [4/16] 0.0, 128
        %1111 = vxpose.xlu0.b32.cont [5/16] 0.0, 128
        %1112 = vxpose.xlu0.b32.cont [6/16] 0.0, 128
        %1113 = vxpose.xlu0.b32.cont [7/16] 0.0, 128
        %1114 = vxpose.xlu0.b32.cont [8/16] 0.0, 128
        %1115 = vxpose.xlu0.b32.cont [9/16] 0.0, 128
        %1116 = vxpose.xlu0.b32.cont [10/16] 0.0, 128
        %1117 = vxpose.xlu0.b32.cont [11/16] 0.0, 128
        %1118 = vxpose.xlu0.b32.cont [12/16] 0.0, 128
        %1119 = vxpose.xlu0.b32.cont [13/16] 0.0, 128
        %1120 = vxpose.xlu0.b32.cont [14/16] 0.0, 128
        %1121 = vxpose.xlu0.b32.cont [15/16] 0.0, 128
        %1122 = vxpose.xlu0.b32.end [16/16] 0.0, 128
        %v1123 = vpop.trf.xlu0
        %v1124 = vpop.trf.xlu0
        %v1125 = vpop.trf.xlu0
        %v1126 = vpop.trf.xlu0
        %v1127 = vpop.trf.xlu0
        %v1128 = vpop.trf.xlu0
        %v1129 = vpop.trf.xlu0
        %v1130 = vpop.trf.xlu0
        %v1131 = vpop.trf.xlu0
        %v1132 = vpop.trf.xlu0
        %v1133 = vpop.trf.xlu0
        %v1134 = vpop.trf.xlu0
        %v1135 = vpop.trf.xlu0
        %v1136 = vpop.trf.xlu0
        %v1137 = vpop.trf.xlu0
        %v1138 = vpop.trf.xlu0
        %v1139 = vpack.c.bf16 %v1092, %v1091
        %v1140 = vpack.c.bf16 %v1094, %v1093
        %v1141 = vpack.c.bf16 %v1096, %v1095
        %v1142 = vpack.c.bf16 %v1098, %v1097
        %v1143 = vpack.c.bf16 %v1100, %v1099
        %v1144 = vpack.c.bf16 %v1102, %v1101
        %v1145 = vpack.c.bf16 %v1104, %v1103
        %v1146 = vpack.c.bf16 %v1106, %v1105
        %v1147 = vpack.c.bf16 %v1124, %v1123
        %v1148 = vpack.c.bf16 %v1126, %v1125
        %v1149 = vpack.c.bf16 %v1128, %v1127
        %v1150 = vpack.c.bf16 %v1130, %v1129
        %v1151 = vpack.c.bf16 %v1132, %v1131
        %v1152 = vpack.c.bf16 %v1134, %v1133
        %v1153 = vpack.c.bf16 %v1136, %v1135
        %v1154 = vpack.c.bf16 %v1138, %v1137
        %v1156 = vshrl.u32 %v1139, 16
        %v1158 = vrot.slane %v1156, 7
        %v1159 = vshll.u32 %v1139, 16
        %v1161 = vor.u32 %v1158, %v1159
        %v1163 = vshrl.u32 %v1140, 16
        %v1165 = vrot.slane %v1163, 7
        %v1166 = vshll.u32 %v1140, 16
        %v1168 = vor.u32 %v1165, %v1166
        %v1170 = vshrl.u32 %v1141, 16
        %v1172 = vrot.slane %v1170, 7
        %v1173 = vshll.u32 %v1141, 16
        %v1175 = vor.u32 %v1172, %v1173
        %v1177 = vshrl.u32 %v1142, 16
        %v1179 = vrot.slane %v1177, 7
        %v1180 = vshll.u32 %v1142, 16
        %v1182 = vor.u32 %v1179, %v1180
        %v1184 = vshrl.u32 %v1143, 16
        %v1186 = vrot.slane %v1184, 7
        %v1187 = vshll.u32 %v1143, 16
        %v1189 = vor.u32 %v1186, %v1187
        %v1191 = vshrl.u32 %v1144, 16
        %v1193 = vrot.slane %v1191, 7
        %v1194 = vshll.u32 %v1144, 16
        %v1196 = vor.u32 %v1193, %v1194
        %v1198 = vshrl.u32 %v1145, 16
        %v1200 = vrot.slane %v1198, 7
        %v1201 = vshll.u32 %v1145, 16
        %v1203 = vor.u32 %v1200, %v1201
        %v1205 = vshrl.u32 %v1146, 16
        %v1207 = vrot.slane %v1205, 7
        %v1208 = vshll.u32 %v1146, 16
        %v1210 = vor.u32 %v1207, %v1208
        %v1212 = vshrl.u32 %v1147, 16
        %v1214 = vrot.slane %v1212, 7
        %v1215 = vshll.u32 %v1147, 16
        %v1217 = vor.u32 %v1214, %v1215
        %v1219 = vshrl.u32 %v1148, 16
        %v1221 = vrot.slane %v1219, 7
        %v1222 = vshll.u32 %v1148, 16
        %v1224 = vor.u32 %v1221, %v1222
        %v1226 = vshrl.u32 %v1149, 16
        %v1228 = vrot.slane %v1226, 7
        %v1229 = vshll.u32 %v1149, 16
        %v1231 = vor.u32 %v1228, %v1229
        %v1233 = vshrl.u32 %v1150, 16
        %v1235 = vrot.slane %v1233, 7
        %v1236 = vshll.u32 %v1150, 16
        %v1238 = vor.u32 %v1235, %v1236
        %v1240 = vshrl.u32 %v1151, 16
        %v1242 = vrot.slane %v1240, 7
        %v1243 = vshll.u32 %v1151, 16
        %v1245 = vor.u32 %v1242, %v1243
        %v1247 = vshrl.u32 %v1152, 16
        %v1249 = vrot.slane %v1247, 7
        %v1250 = vshll.u32 %v1152, 16
        %v1252 = vor.u32 %v1249, %v1250
        %v1254 = vshrl.u32 %v1153, 16
        %v1256 = vrot.slane %v1254, 7
        %v1257 = vshll.u32 %v1153, 16
        %v1259 = vor.u32 %v1256, %v1257
        %v1261 = vshrl.u32 %v1154, 16
        %v1263 = vrot.slane %v1261, 7
        %v1264 = vshll.u32 %v1154, 16
        %v1266 = vor.u32 %v1263, %v1264
        %vm1299 = vcmask 1040384
        %vm1300 = vsmask.f32 256
        %vm1301 = vmand %vm1299, %vm1300
        %v1302 = vsel %vm1301, 0, %v1161
        %v1303 = vsel %vm1301, 0, %v1168
        %v1304 = vsel %vm1301, 0, %v1175
        %v1305 = vsel %vm1301, 0, %v1182
        %v1306 = vsel %vm1301, 0, %v1189
        %v1307 = vsel %vm1301, 0, %v1196
        %v1308 = vsel %vm1301, 0, %v1203
        %v1309 = vsel %vm1301, 0, %v1210
        %v1310 = vsel %vm1301, 0, %v1217
        %v1311 = vsel %vm1301, 0, %v1224
        %v1312 = vsel %vm1301, 0, %v1231
        %v1313 = vsel %vm1301, 0, %v1238
        %v1314 = vsel %vm1301, 0, %v1245
        %v1315 = vsel %vm1301, 0, %v1252
        %v1316 = vsel %vm1301, 0, %v1259
        %v1317 = vsel %vm1301, 0, %v1266
        %v1318 = vsel %vm1301, %v1158, 0
        %v1319 = vsel %vm1301, %v1165, 0
        %v1320 = vsel %vm1301, %v1172, 0
        %v1321 = vsel %vm1301, %v1179, 0
        %v1322 = vsel %vm1301, %v1186, 0
        %v1323 = vsel %vm1301, %v1193, 0
        %v1324 = vsel %vm1301, %v1200, 0
        %v1325 = vsel %vm1301, %v1207, 0
        %v1326 = vsel %vm1301, %v1214, 0
        %v1327 = vsel %vm1301, %v1221, 0
        %v1328 = vsel %vm1301, %v1228, 0
        %v1329 = vsel %vm1301, %v1235, 0
        %v1330 = vsel %vm1301, %v1242, 0
        %v1331 = vsel %vm1301, %v1249, 0
        %v1332 = vsel %vm1301, %v1256, 0
        %v1333 = vsel %vm1301, %v1263, 0
        %v1367 = vunpack.c.l.b16 0
        %v1368 = vunpack.c.h.b16 0
        %v1369 = vunpack.c.l.b16 %v1302
        %v1370 = vunpack.c.h.b16 %v1302
        %v1371 = vunpack.c.l.b16 %v1318
        %v1372 = vunpack.c.l.b16 %v1303
        %v1373 = vunpack.c.h.b16 %v1303
        %v1374 = vunpack.c.l.b16 %v1319
        %v1375 = vunpack.c.l.b16 %v1304
        %v1376 = vunpack.c.h.b16 %v1304
        %v1377 = vunpack.c.l.b16 %v1320
        %v1378 = vunpack.c.l.b16 %v1305
        %v1379 = vunpack.c.h.b16 %v1305
        %v1380 = vunpack.c.l.b16 %v1321
        %v1381 = vunpack.c.l.b16 %v1306
        %v1382 = vunpack.c.h.b16 %v1306
        %v1383 = vunpack.c.l.b16 %v1322
        %v1384 = vunpack.c.l.b16 %v1307
        %v1385 = vunpack.c.h.b16 %v1307
        %v1386 = vunpack.c.l.b16 %v1323
        %v1387 = vunpack.c.l.b16 %v1308
        %v1388 = vunpack.c.h.b16 %v1308
        %v1389 = vunpack.c.l.b16 %v1324
        %v1390 = vunpack.c.l.b16 %v1309
        %v1391 = vunpack.c.h.b16 %v1309
        %v1392 = vunpack.c.l.b16 %v1325
        %v1393 = vunpack.c.l.b16 %v1310
        %v1394 = vunpack.c.h.b16 %v1310
        %v1395 = vunpack.c.l.b16 %v1326
        %v1396 = vunpack.c.l.b16 %v1311
        %v1397 = vunpack.c.h.b16 %v1311
        %v1398 = vunpack.c.l.b16 %v1327
        %v1399 = vunpack.c.l.b16 %v1312
        %v1400 = vunpack.c.h.b16 %v1312
        %v1401 = vunpack.c.l.b16 %v1328
        %v1402 = vunpack.c.l.b16 %v1313
        %v1403 = vunpack.c.h.b16 %v1313
        %v1404 = vunpack.c.l.b16 %v1329
        %v1405 = vunpack.c.l.b16 %v1314
        %v1406 = vunpack.c.h.b16 %v1314
        %v1407 = vunpack.c.l.b16 %v1330
        %v1408 = vunpack.c.l.b16 %v1315
        %v1409 = vunpack.c.h.b16 %v1315
        %v1410 = vunpack.c.l.b16 %v1331
        %v1411 = vunpack.c.l.b16 %v1316
        %v1412 = vunpack.c.h.b16 %v1316
        %v1413 = vunpack.c.l.b16 %v1332
        %v1414 = vunpack.c.l.b16 %v1317
        %v1415 = vunpack.c.h.b16 %v1317
        %v1416 = vunpack.c.l.b16 %v1333
        %v1417 = vpack.c.b16 %v1367, %v1367
        %v1418 = vpack.c.b16 %v1368, %v1368
        %v1419 = vpack.c.b16 %v1369, %v1369
        %v1420 = vpack.c.b16 %v1370, %v1370
        %v1421 = vpack.c.b16 %v1371, %v1371
        %v1422 = vpack.c.b16 %v1372, %v1372
        %v1423 = vpack.c.b16 %v1373, %v1373
        %v1424 = vpack.c.b16 %v1374, %v1374
        %v1425 = vpack.c.b16 %v1375, %v1375
        %v1426 = vpack.c.b16 %v1376, %v1376
        %v1427 = vpack.c.b16 %v1377, %v1377
        %v1428 = vpack.c.b16 %v1378, %v1378
        %v1429 = vpack.c.b16 %v1379, %v1379
        %v1430 = vpack.c.b16 %v1380, %v1380
        %v1431 = vpack.c.b16 %v1381, %v1381
        %v1432 = vpack.c.b16 %v1382, %v1382
        %v1433 = vpack.c.b16 %v1383, %v1383
        %v1434 = vpack.c.b16 %v1384, %v1384
        %v1435 = vpack.c.b16 %v1385, %v1385
        %v1436 = vpack.c.b16 %v1386, %v1386
        %v1437 = vpack.c.b16 %v1387, %v1387
        %v1438 = vpack.c.b16 %v1388, %v1388
        %v1439 = vpack.c.b16 %v1389, %v1389
        %v1440 = vpack.c.b16 %v1390, %v1390
        %v1441 = vpack.c.b16 %v1391, %v1391
        %v1442 = vpack.c.b16 %v1392, %v1392
        %v1443 = vpack.c.b16 %v1393, %v1393
        %v1444 = vpack.c.b16 %v1394, %v1394
        %v1445 = vpack.c.b16 %v1395, %v1395
        %v1446 = vpack.c.b16 %v1396, %v1396
        %v1447 = vpack.c.b16 %v1397, %v1397
        %v1448 = vpack.c.b16 %v1398, %v1398
        %v1449 = vpack.c.b16 %v1399, %v1399
        %v1450 = vpack.c.b16 %v1400, %v1400
        %v1451 = vpack.c.b16 %v1401, %v1401
        %v1452 = vpack.c.b16 %v1402, %v1402
        %v1453 = vpack.c.b16 %v1403, %v1403
        %v1454 = vpack.c.b16 %v1404, %v1404
        %v1455 = vpack.c.b16 %v1405, %v1405
        %v1456 = vpack.c.b16 %v1406, %v1406
        %v1457 = vpack.c.b16 %v1407, %v1407
        %v1458 = vpack.c.b16 %v1408, %v1408
        %v1459 = vpack.c.b16 %v1409, %v1409
        %v1460 = vpack.c.b16 %v1410, %v1410
        %v1461 = vpack.c.b16 %v1411, %v1411
        %v1462 = vpack.c.b16 %v1412, %v1412
        %v1463 = vpack.c.b16 %v1413, %v1413
        %v1464 = vpack.c.b16 %v1414, %v1414
        %v1465 = vpack.c.b16 %v1415, %v1415
        %v1466 = vpack.c.b16 %v1416, %v1416
        %vm1517 = vcmask 125952
        %1518 = vst.msk [vmem:[#allocation2] sm:$0xf] %vm1517, %v1417
        %1519 = vst.msk [vmem:[#allocation2 + $0x4] sm:$0xf] %vm1517, %v1418
        %vm1520 = vcmask 122880
        %1521 = vst.msk [vmem:[#allocation2 + $0x8] sm:$0x1] %vm1520, %v1417
        %1522 = vst.msk [vmem:[#allocation2 + $0xc] sm:$0xf] %vm1517, %v1419
        %1523 = vst.msk [vmem:[#allocation2 + $0x10] sm:$0xf] %vm1517, %v1420
        %1524 = vst.msk [vmem:[#allocation2 + $0x14] sm:$0x1] %vm1520, %v1421
        %1525 = vst.msk [vmem:[#allocation2 + $0x18] sm:$0xf] %vm1517, %v1422
        %1526 = vst.msk [vmem:[#allocation2 + $0x1c] sm:$0xf] %vm1517, %v1423
        %1527 = vst.msk [vmem:[#allocation2 + $0x20] sm:$0x1] %vm1520, %v1424
        %1528 = vst.msk [vmem:[#allocation2 + $0x24] sm:$0xf] %vm1517, %v1425
        %1529 = vst.msk [vmem:[#allocation2 + $0x28] sm:$0xf] %vm1517, %v1426
        %1530 = vst.msk [vmem:[#allocation2 + $0x2c] sm:$0x1] %vm1520, %v1427
        %1531 = vst.msk [vmem:[#allocation2 + $0x30] sm:$0xf] %vm1517, %v1428
        %1532 = vst.msk [vmem:[#allocation2 + $0x34] sm:$0xf] %vm1517, %v1429
        %1533 = vst.msk [vmem:[#allocation2 + $0x38] sm:$0x1] %vm1520, %v1430
        %1534 = vst.msk [vmem:[#allocation2 + $0x3c] sm:$0xf] %vm1517, %v1431
        %1535 = vst.msk [vmem:[#allocation2 + $0x40] sm:$0xf] %vm1517, %v1432
        %1536 = vst.msk [vmem:[#allocation2 + $0x44] sm:$0x1] %vm1520, %v1433
        %1537 = vst.msk [vmem:[#allocation2 + $0x48] sm:$0xf] %vm1517, %v1434
        %1538 = vst.msk [vmem:[#allocation2 + $0x4c] sm:$0xf] %vm1517, %v1435
        %1539 = vst.msk [vmem:[#allocation2 + $0x50] sm:$0x1] %vm1520, %v1436
        %1540 = vst.msk [vmem:[#allocation2 + $0x54] sm:$0xf] %vm1517, %v1437
        %1541 = vst.msk [vmem:[#allocation2 + $0x58] sm:$0xf] %vm1517, %v1438
        %1542 = vst.msk [vmem:[#allocation2 + $0x5c] sm:$0x1] %vm1520, %v1439
        %1543 = vst.msk [vmem:[#allocation2 + $0x60] sm:$0xf] %vm1517, %v1440
        %1544 = vst.msk [vmem:[#allocation2 + $0x64] sm:$0xf] %vm1517, %v1441
        %1545 = vst.msk [vmem:[#allocation2 + $0x68] sm:$0x1] %vm1520, %v1442
        %1546 = vst.msk [vmem:[#allocation2 + $0x6c] sm:$0xf] %vm1517, %v1443
        %1547 = vst.msk [vmem:[#allocation2 + $0x70] sm:$0xf] %vm1517, %v1444
        %1548 = vst.msk [vmem:[#allocation2 + $0x74] sm:$0x1] %vm1520, %v1445
        %1549 = vst.msk [vmem:[#allocation2 + $0x78] sm:$0xf] %vm1517, %v1446
        %1550 = vst.msk [vmem:[#allocation2 + $0x7c] sm:$0xf] %vm1517, %v1447
        %1551 = vst.msk [vmem:[#allocation2 + $0x80] sm:$0x1] %vm1520, %v1448
        %1552 = vst.msk [vmem:[#allocation2 + $0x84] sm:$0xf] %vm1517, %v1449
        %1553 = vst.msk [vmem:[#allocation2 + $0x88] sm:$0xf] %vm1517, %v1450
        %1554 = vst.msk [vmem:[#allocation2 + $0x8c] sm:$0x1] %vm1520, %v1451
        %1555 = vst.msk [vmem:[#allocation2 + $0x90] sm:$0xf] %vm1517, %v1452
        %1556 = vst.msk [vmem:[#allocation2 + $0x94] sm:$0xf] %vm1517, %v1453
        %1557 = vst.msk [vmem:[#allocation2 + $0x98] sm:$0x1] %vm1520, %v1454
        %1558 = vst.msk [vmem:[#allocation2 + $0x9c] sm:$0xf] %vm1517, %v1455
        %1559 = vst.msk [vmem:[#allocation2 + $0xa0] sm:$0xf] %vm1517, %v1456
        %1560 = vst.msk [vmem:[#allocation2 + $0xa4] sm:$0x1] %vm1520, %v1457
        %1561 = vst.msk [vmem:[#allocation2 + $0xa8] sm:$0xf] %vm1517, %v1458
        %1562 = vst.msk [vmem:[#allocation2 + $0xac] sm:$0xf] %vm1517, %v1459
        %1563 = vst.msk [vmem:[#allocation2 + $0xb0] sm:$0x1] %vm1520, %v1460
        %1564 = vst.msk [vmem:[#allocation2 + $0xb4] sm:$0xf] %vm1517, %v1461
        %1565 = vst.msk [vmem:[#allocation2 + $0xb8] sm:$0xf] %vm1517, %v1462
        %1566 = vst.msk [vmem:[#allocation2 + $0xbc] sm:$0x1] %vm1520, %v1463
        %1567 = vst.msk [vmem:[#allocation2 + $0xc0] sm:$0xf] %vm1517, %v1464
        %1568 = vst.msk [vmem:[#allocation2 + $0xc4] sm:$0xf] %vm1517, %v1465
        %1569 = vst.msk [vmem:[#allocation2 + $0xc8] sm:$0x1] %vm1520, %v1466
        %1570 = vst.msk [vmem:[#allocation2 + $0xcc] sm:$0xf] %vm1517, %v1417
        %1571 = vst.msk [vmem:[#allocation2 + $0xd0] sm:$0xf] %vm1517, %v1418
        %1572 = vst.msk [vmem:[#allocation2 + $0xd4] sm:$0x1] %vm1520, %v1417
        %v1573 = vld [vmem:[#allocation2] sm:$0xf]
        %v1574 = vld [vmem:[#allocation2 + $0x4] sm:$0xf]
        %v1575 = vld [vmem:[#allocation2 + $0xc] sm:$0xf]
        %v1576 = vld [vmem:[#allocation2 + $0x10] sm:$0xf]
        %v1577 = vld [vmem:[#allocation2 + $0x18] sm:$0xf]
        %v1578 = vld [vmem:[#allocation2 + $0x1c] sm:$0xf]
        %v1579 = vld [vmem:[#allocation2 + $0x24] sm:$0xf]
        %v1580 = vld [vmem:[#allocation2 + $0x28] sm:$0xf]
        %v1581 = vld [vmem:[#allocation2 + $0x30] sm:$0xf]
        %v1582 = vld [vmem:[#allocation2 + $0x34] sm:$0xf]
        %v1583 = vld [vmem:[#allocation2 + $0x3c] sm:$0xf]
        %v1584 = vld [vmem:[#allocation2 + $0x40] sm:$0xf]
        %v1585 = vld [vmem:[#allocation2 + $0x48] sm:$0xf]
        %v1586 = vld [vmem:[#allocation2 + $0x4c] sm:$0xf]
        %v1587 = vld [vmem:[#allocation2 + $0x54] sm:$0xf]
        %v1588 = vld [vmem:[#allocation2 + $0x58] sm:$0xf]
        %v1589 = vld [vmem:[#allocation2 + $0x60] sm:$0xf]
        %v1590 = vld [vmem:[#allocation2 + $0x64] sm:$0xf]
        %v1591 = vld [vmem:[#allocation2 + $0x6c] sm:$0xf]
        %v1592 = vld [vmem:[#allocation2 + $0x70] sm:$0xf]
        %v1593 = vld [vmem:[#allocation2 + $0x78] sm:$0xf]
        %v1594 = vld [vmem:[#allocation2 + $0x7c] sm:$0xf]
        %v1595 = vld [vmem:[#allocation2 + $0x84] sm:$0xf]
        %v1596 = vld [vmem:[#allocation2 + $0x88] sm:$0xf]
        %v1597 = vld [vmem:[#allocation2 + $0x90] sm:$0xf]
        %v1598 = vld [vmem:[#allocation2 + $0x94] sm:$0xf]
        %v1599 = vld [vmem:[#allocation2 + $0x9c] sm:$0xf]
        %v1600 = vld [vmem:[#allocation2 + $0xa0] sm:$0xf]
        %v1601 = vld [vmem:[#allocation2 + $0xa8] sm:$0xf]
        %v1602 = vld [vmem:[#allocation2 + $0xac] sm:$0xf]
        %v1603 = vld [vmem:[#allocation2 + $0xb4] sm:$0xf]
        %v1604 = vld [vmem:[#allocation2 + $0xb8] sm:$0xf]
        %v1605 = vld [vmem:[#allocation2 + $0x8] sm:$0x1]
        %v1606 = vld [vmem:[#allocation2 + $0x14] sm:$0x1]
        %v1607 = vld [vmem:[#allocation2 + $0x20] sm:$0x1]
        %v1608 = vld [vmem:[#allocation2 + $0x2c] sm:$0x1]
        %v1609 = vld [vmem:[#allocation2 + $0x38] sm:$0x1]
        %v1610 = vld [vmem:[#allocation2 + $0x44] sm:$0x1]
        %v1611 = vld [vmem:[#allocation2 + $0x50] sm:$0x1]
        %v1612 = vld [vmem:[#allocation2 + $0x5c] sm:$0x1]
        %v1613 = vld [vmem:[#allocation2 + $0x68] sm:$0x1]
        %v1614 = vld [vmem:[#allocation2 + $0x74] sm:$0x1]
        %v1615 = vld [vmem:[#allocation2 + $0x80] sm:$0x1]
        %v1616 = vld [vmem:[#allocation2 + $0x8c] sm:$0x1]
        %v1617 = vld [vmem:[#allocation2 + $0x98] sm:$0x1]
        %v1618 = vld [vmem:[#allocation2 + $0xa4] sm:$0x1]
        %v1619 = vld [vmem:[#allocation2 + $0xb0] sm:$0x1]
        %v1620 = vld [vmem:[#allocation2 + $0xbc] sm:$0x1]
        %vm1621 = vsmask.f32 3328
        %vm1622 = vsmask.f32 7440
        %vm1623 = vmor %vm1621, %vm1622
        %v1625 = vshrl.u32 %v1573, 16
        %v1627 = vrot.slane %v1625, 4
        %v1628 = vshll.u32 %v1573, 16
        %v1630 = vrot.slane %v1628, 5
        %v1631 = vor.u32 %v1627, %v1630
        %v1632 = vrot.slane %v1631, 4
        %v1634 = vshll.u32 %v1574, 16
        %v1636 = vrot.slane %v1634, 5
        %v1637 = vsel %vm1623, %v1632, %v1636
        %v1638 = vshrl.u32 %v1574, 16
        %v1640 = vrot.slane %v1638, 4
        %v1641 = vor.u32 %v1640, %v1636
        %v1642 = vrot.slane %v1641, 4
        %v1644 = vshll.u32 %v1605, 16
        %v1646 = vrot.slane %v1644, 5
        %v1647 = vsel %vm1623, %v1642, %v1646
        %v1649 = vshrl.u32 %v1575, 16
        %v1651 = vrot.slane %v1649, 4
        %v1652 = vshll.u32 %v1575, 16
        %v1654 = vrot.slane %v1652, 5
        %v1655 = vor.u32 %v1651, %v1654
        %v1656 = vrot.slane %v1655, 4
        %v1658 = vshll.u32 %v1576, 16
        %v1660 = vrot.slane %v1658, 5
        %v1661 = vsel %vm1623, %v1656, %v1660
        %v1662 = vshrl.u32 %v1576, 16
        %v1664 = vrot.slane %v1662, 4
        %v1665 = vor.u32 %v1664, %v1660
        %v1666 = vrot.slane %v1665, 4
        %v1668 = vshll.u32 %v1606, 16
        %v1670 = vrot.slane %v1668, 5
        %v1671 = vsel %vm1623, %v1666, %v1670
        %v1673 = vshrl.u32 %v1577, 16
        %v1675 = vrot.slane %v1673, 4
        %v1676 = vshll.u32 %v1577, 16
        %v1678 = vrot.slane %v1676, 5
        %v1679 = vor.u32 %v1675, %v1678
        %v1680 = vrot.slane %v1679, 4
        %v1682 = vshll.u32 %v1578, 16
        %v1684 = vrot.slane %v1682, 5
        %v1685 = vsel %vm1623, %v1680, %v1684
        %v1686 = vshrl.u32 %v1578, 16
        %v1688 = vrot.slane %v1686, 4
        %v1689 = vor.u32 %v1688, %v1684
        %v1690 = vrot.slane %v1689, 4
        %v1692 = vshll.u32 %v1607, 16
        %v1694 = vrot.slane %v1692, 5
        %v1695 = vsel %vm1623, %v1690, %v1694
        %v1697 = vshrl.u32 %v1579, 16
        %v1699 = vrot.slane %v1697, 4
        %v1700 = vshll.u32 %v1579, 16
        %v1702 = vrot.slane %v1700, 5
        %v1703 = vor.u32 %v1699, %v1702
        %v1704 = vrot.slane %v1703, 4
        %v1706 = vshll.u32 %v1580, 16
        %v1708 = vrot.slane %v1706, 5
        %v1709 = vsel %vm1623, %v1704, %v1708
        %v1710 = vshrl.u32 %v1580, 16
        %v1712 = vrot.slane %v1710, 4
        %v1713 = vor.u32 %v1712, %v1708
        %v1714 = vrot.slane %v1713, 4
        %v1716 = vshll.u32 %v1608, 16
        %v1718 = vrot.slane %v1716, 5
        %v1719 = vsel %vm1623, %v1714, %v1718
        %v1721 = vshrl.u32 %v1581, 16
        %v1723 = vrot.slane %v1721, 4
        %v1724 = vshll.u32 %v1581, 16
        %v1726 = vrot.slane %v1724, 5
        %v1727 = vor.u32 %v1723, %v1726
        %v1728 = vrot.slane %v1727, 4
        %v1730 = vshll.u32 %v1582, 16
        %v1732 = vrot.slane %v1730, 5
        %v1733 = vsel %vm1623, %v1728, %v1732
        %v1734 = vshrl.u32 %v1582, 16
        %v1736 = vrot.slane %v1734, 4
        %v1737 = vor.u32 %v1736, %v1732
        %v1738 = vrot.slane %v1737, 4
        %v1740 = vshll.u32 %v1609, 16
        %v1742 = vrot.slane %v1740, 5
        %v1743 = vsel %vm1623, %v1738, %v1742
        %v1745 = vshrl.u32 %v1583, 16
        %v1747 = vrot.slane %v1745, 4
        %v1748 = vshll.u32 %v1583, 16
        %v1750 = vrot.slane %v1748, 5
        %v1751 = vor.u32 %v1747, %v1750
        %v1752 = vrot.slane %v1751, 4
        %v1754 = vshll.u32 %v1584, 16
        %v1756 = vrot.slane %v1754, 5
        %v1757 = vsel %vm1623, %v1752, %v1756
        %v1758 = vshrl.u32 %v1584, 16
        %v1760 = vrot.slane %v1758, 4
        %v1761 = vor.u32 %v1760, %v1756
        %v1762 = vrot.slane %v1761, 4
        %v1764 = vshll.u32 %v1610, 16
        %v1766 = vrot.slane %v1764, 5
        %v1767 = vsel %vm1623, %v1762, %v1766
        %v1769 = vshrl.u32 %v1585, 16
        %v1771 = vrot.slane %v1769, 4
        %v1772 = vshll.u32 %v1585, 16
        %v1774 = vrot.slane %v1772, 5
        %v1775 = vor.u32 %v1771, %v1774
        %v1776 = vrot.slane %v1775, 4
        %v1778 = vshll.u32 %v1586, 16
        %v1780 = vrot.slane %v1778, 5
        %v1781 = vsel %vm1623, %v1776, %v1780
        %v1782 = vshrl.u32 %v1586, 16
        %v1784 = vrot.slane %v1782, 4
        %v1785 = vor.u32 %v1784, %v1780
        %v1786 = vrot.slane %v1785, 4
        %v1788 = vshll.u32 %v1611, 16
        %v1790 = vrot.slane %v1788, 5
        %v1791 = vsel %vm1623, %v1786, %v1790
        %v1793 = vshrl.u32 %v1587, 16
        %v1795 = vrot.slane %v1793, 4
        %v1796 = vshll.u32 %v1587, 16
        %v1798 = vrot.slane %v1796, 5
        %v1799 = vor.u32 %v1795, %v1798
        %v1800 = vrot.slane %v1799, 4
        %v1802 = vshll.u32 %v1588, 16
        %v1804 = vrot.slane %v1802, 5
        %v1805 = vsel %vm1623, %v1800, %v1804
        %v1806 = vshrl.u32 %v1588, 16
        %v1808 = vrot.slane %v1806, 4
        %v1809 = vor.u32 %v1808, %v1804
        %v1810 = vrot.slane %v1809, 4
        %v1812 = vshll.u32 %v1612, 16
        %v1814 = vrot.slane %v1812, 5
        %v1815 = vsel %vm1623, %v1810, %v1814
        %v1817 = vshrl.u32 %v1589, 16
        %v1819 = vrot.slane %v1817, 4
        %v1820 = vshll.u32 %v1589, 16
        %v1822 = vrot.slane %v1820, 5
        %v1823 = vor.u32 %v1819, %v1822
        %v1824 = vrot.slane %v1823, 4
        %v1826 = vshll.u32 %v1590, 16
        %v1828 = vrot.slane %v1826, 5
        %v1829 = vsel %vm1623, %v1824, %v1828
        %v1830 = vshrl.u32 %v1590, 16
        %v1832 = vrot.slane %v1830, 4
        %v1833 = vor.u32 %v1832, %v1828
        %v1834 = vrot.slane %v1833, 4
        %v1836 = vshll.u32 %v1613, 16
        %v1838 = vrot.slane %v1836, 5
        %v1839 = vsel %vm1623, %v1834, %v1838
        %v1841 = vshrl.u32 %v1591, 16
        %v1843 = vrot.slane %v1841, 4
        %v1844 = vshll.u32 %v1591, 16
        %v1846 = vrot.slane %v1844, 5
        %v1847 = vor.u32 %v1843, %v1846
        %v1848 = vrot.slane %v1847, 4
        %v1850 = vshll.u32 %v1592, 16
        %v1852 = vrot.slane %v1850, 5
        %v1853 = vsel %vm1623, %v1848, %v1852
        %v1854 = vshrl.u32 %v1592, 16
        %v1856 = vrot.slane %v1854, 4
        %v1857 = vor.u32 %v1856, %v1852
        %v1858 = vrot.slane %v1857, 4
        %v1860 = vshll.u32 %v1614, 16
        %v1862 = vrot.slane %v1860, 5
        %v1863 = vsel %vm1623, %v1858, %v1862
        %v1865 = vshrl.u32 %v1593, 16
        %v1867 = vrot.slane %v1865, 4
        %v1868 = vshll.u32 %v1593, 16
        %v1870 = vrot.slane %v1868, 5
        %v1871 = vor.u32 %v1867, %v1870
        %v1872 = vrot.slane %v1871, 4
        %v1874 = vshll.u32 %v1594, 16
        %v1876 = vrot.slane %v1874, 5
        %v1877 = vsel %vm1623, %v1872, %v1876
        %v1878 = vshrl.u32 %v1594, 16
        %v1880 = vrot.slane %v1878, 4
        %v1881 = vor.u32 %v1880, %v1876
        %v1882 = vrot.slane %v1881, 4
        %v1884 = vshll.u32 %v1615, 16
        %v1886 = vrot.slane %v1884, 5
        %v1887 = vsel %vm1623, %v1882, %v1886
        %v1889 = vshrl.u32 %v1595, 16
        %v1891 = vrot.slane %v1889, 4
        %v1892 = vshll.u32 %v1595, 16
        %v1894 = vrot.slane %v1892, 5
        %v1895 = vor.u32 %v1891, %v1894
        %v1896 = vrot.slane %v1895, 4
        %v1898 = vshll.u32 %v1596, 16
        %v1900 = vrot.slane %v1898, 5
        %v1901 = vsel %vm1623, %v1896, %v1900
        %v1902 = vshrl.u32 %v1596, 16
        %v1904 = vrot.slane %v1902, 4
        %v1905 = vor.u32 %v1904, %v1900
        %v1906 = vrot.slane %v1905, 4
        %v1908 = vshll.u32 %v1616, 16
        %v1910 = vrot.slane %v1908, 5
        %v1911 = vsel %vm1623, %v1906, %v1910
        %v1913 = vshrl.u32 %v1597, 16
        %v1915 = vrot.slane %v1913, 4
        %v1916 = vshll.u32 %v1597, 16
        %v1918 = vrot.slane %v1916, 5
        %v1919 = vor.u32 %v1915, %v1918
        %v1920 = vrot.slane %v1919, 4
        %v1922 = vshll.u32 %v1598, 16
        %v1924 = vrot.slane %v1922, 5
        %v1925 = vsel %vm1623, %v1920, %v1924
        %v1926 = vshrl.u32 %v1598, 16
        %v1928 = vrot.slane %v1926, 4
        %v1929 = vor.u32 %v1928, %v1924
        %v1930 = vrot.slane %v1929, 4
        %v1932 = vshll.u32 %v1617, 16
        %v1934 = vrot.slane %v1932, 5
        %v1935 = vsel %vm1623, %v1930, %v1934
        %v1937 = vshrl.u32 %v1599, 16
        %v1939 = vrot.slane %v1937, 4
        %v1940 = vshll.u32 %v1599, 16
        %v1942 = vrot.slane %v1940, 5
        %v1943 = vor.u32 %v1939, %v1942
        %v1944 = vrot.slane %v1943, 4
        %v1946 = vshll.u32 %v1600, 16
        %v1948 = vrot.slane %v1946, 5
        %v1949 = vsel %vm1623, %v1944, %v1948
        %v1950 = vshrl.u32 %v1600, 16
        %v1952 = vrot.slane %v1950, 4
        %v1953 = vor.u32 %v1952, %v1948
        %v1954 = vrot.slane %v1953, 4
        %v1956 = vshll.u32 %v1618, 16
        %v1958 = vrot.slane %v1956, 5
        %v1959 = vsel %vm1623, %v1954, %v1958
        %v1961 = vshrl.u32 %v1601, 16
        %v1963 = vrot.slane %v1961, 4
        %v1964 = vshll.u32 %v1601, 16
        %v1966 = vrot.slane %v1964, 5
        %v1967 = vor.u32 %v1963, %v1966
        %v1968 = vrot.slane %v1967, 4
        %v1970 = vshll.u32 %v1602, 16
        %v1972 = vrot.slane %v1970, 5
        %v1973 = vsel %vm1623, %v1968, %v1972
        %v1974 = vshrl.u32 %v1602, 16
        %v1976 = vrot.slane %v1974, 4
        %v1977 = vor.u32 %v1976, %v1972
        %v1978 = vrot.slane %v1977, 4
        %v1980 = vshll.u32 %v1619, 16
        %v1982 = vrot.slane %v1980, 5
        %v1983 = vsel %vm1623, %v1978, %v1982
        %v1985 = vshrl.u32 %v1603, 16
        %v1987 = vrot.slane %v1985, 4
        %v1988 = vshll.u32 %v1603, 16
        %v1990 = vrot.slane %v1988, 5
        %v1991 = vor.u32 %v1987, %v1990
        %v1992 = vrot.slane %v1991, 4
        %v1994 = vshll.u32 %v1604, 16
        %v1996 = vrot.slane %v1994, 5
        %v1997 = vsel %vm1623, %v1992, %v1996
        %v1998 = vshrl.u32 %v1604, 16
        %v2000 = vrot.slane %v1998, 4
        %v2001 = vor.u32 %v2000, %v1996
        %v2002 = vrot.slane %v2001, 4
        %v2004 = vshll.u32 %v1620, 16
        %v2006 = vrot.slane %v2004, 5
        %v2007 = vsel %vm1623, %v2002, %v2006
        %v2008 = vld [vmem:[#allocation2] sm:$0xe]
        %v2009 = vld [vmem:[#allocation2 + $0xc] sm:$0xe]
        %v2010 = vld [vmem:[#allocation2 + $0x18] sm:$0xe]
        %v2011 = vld [vmem:[#allocation2 + $0x24] sm:$0xe]
        %v2012 = vld [vmem:[#allocation2 + $0x30] sm:$0xe]
        %v2013 = vld [vmem:[#allocation2 + $0x3c] sm:$0xe]
        %v2014 = vld [vmem:[#allocation2 + $0x48] sm:$0xe]
        %v2015 = vld [vmem:[#allocation2 + $0x54] sm:$0xe]
        %v2016 = vld [vmem:[#allocation2 + $0x60] sm:$0xe]
        %v2017 = vld [vmem:[#allocation2 + $0x6c] sm:$0xe]
        %v2018 = vld [vmem:[#allocation2 + $0x78] sm:$0xe]
        %v2019 = vld [vmem:[#allocation2 + $0x84] sm:$0xe]
        %v2020 = vld [vmem:[#allocation2 + $0x90] sm:$0xe]
        %v2021 = vld [vmem:[#allocation2 + $0x9c] sm:$0xe]
        %v2022 = vld [vmem:[#allocation2 + $0xa8] sm:$0xe]
        %v2023 = vld [vmem:[#allocation2 + $0xb4] sm:$0xe]
        %vm2072 = vcmask 1042432
        %vm2073 = vcmask 1046532
        %vm2074 = vmor %vm2072, %vm2073
        %v2075 = vrot.slane %v2008, 5
        %v2076 = vrot.slane %v2075, 4
        %v2077 = vrot.slane %v1574, 5
        %v2078 = vsel %vm2074, %v2076, %v2077
        %v2079 = vrot.slane %v2077, 4
        %v2080 = vrot.slane %v1605, 5
        %v2081 = vsel %vm2074, %v2079, %v2080
        %v2082 = vrot.slane %v2009, 5
        %v2083 = vrot.slane %v2082, 4
        %v2084 = vrot.slane %v1576, 5
        %v2085 = vsel %vm2074, %v2083, %v2084
        %v2086 = vrot.slane %v2084, 4
        %v2087 = vrot.slane %v1606, 5
        %v2088 = vsel %vm2074, %v2086, %v2087
        %v2089 = vrot.slane %v2010, 5
        %v2090 = vrot.slane %v2089, 4
        %v2091 = vrot.slane %v1578, 5
        %v2092 = vsel %vm2074, %v2090, %v2091
        %v2093 = vrot.slane %v2091, 4
        %v2094 = vrot.slane %v1607, 5
        %v2095 = vsel %vm2074, %v2093, %v2094
        %v2096 = vrot.slane %v2011, 5
        %v2097 = vrot.slane %v2096, 4
        %v2098 = vrot.slane %v1580, 5
        %v2099 = vsel %vm2074, %v2097, %v2098
        %v2100 = vrot.slane %v2098, 4
        %v2101 = vrot.slane %v1608, 5
        %v2102 = vsel %vm2074, %v2100, %v2101
        %v2103 = vrot.slane %v2012, 5
        %v2104 = vrot.slane %v2103, 4
        %v2105 = vrot.slane %v1582, 5
        %v2106 = vsel %vm2074, %v2104, %v2105
        %v2107 = vrot.slane %v2105, 4
        %v2108 = vrot.slane %v1609, 5
        %v2109 = vsel %vm2074, %v2107, %v2108
        %v2110 = vrot.slane %v2013, 5
        %v2111 = vrot.slane %v2110, 4
        %v2112 = vrot.slane %v1584, 5
        %v2113 = vsel %vm2074, %v2111, %v2112
        %v2114 = vrot.slane %v2112, 4
        %v2115 = vrot.slane %v1610, 5
        %v2116 = vsel %vm2074, %v2114, %v2115
        %v2117 = vrot.slane %v2014, 5
        %v2118 = vrot.slane %v2117, 4
        %v2119 = vrot.slane %v1586, 5
        %v2120 = vsel %vm2074, %v2118, %v2119
        %v2121 = vrot.slane %v2119, 4
        %v2122 = vrot.slane %v1611, 5
        %v2123 = vsel %vm2074, %v2121, %v2122
        %v2124 = vrot.slane %v2015, 5
        %v2125 = vrot.slane %v2124, 4
        %v2126 = vrot.slane %v1588, 5
        %v2127 = vsel %vm2074, %v2125, %v2126
        %v2128 = vrot.slane %v2126, 4
        %v2129 = vrot.slane %v1612, 5
        %v2130 = vsel %vm2074, %v2128, %v2129
        %v2131 = vrot.slane %v2016, 5
        %v2132 = vrot.slane %v2131, 4
        %v2133 = vrot.slane %v1590, 5
        %v2134 = vsel %vm2074, %v2132, %v2133
        %v2135 = vrot.slane %v2133, 4
        %v2136 = vrot.slane %v1613, 5
        %v2137 = vsel %vm2074, %v2135, %v2136
        %v2138 = vrot.slane %v2017, 5
        %v2139 = vrot.slane %v2138, 4
        %v2140 = vrot.slane %v1592, 5
        %v2141 = vsel %vm2074, %v2139, %v2140
        %v2142 = vrot.slane %v2140, 4
        %v2143 = vrot.slane %v1614, 5
        %v2144 = vsel %vm2074, %v2142, %v2143
        %v2145 = vrot.slane %v2018, 5
        %v2146 = vrot.slane %v2145, 4
        %v2147 = vrot.slane %v1594, 5
        %v2148 = vsel %vm2074, %v2146, %v2147
        %v2149 = vrot.slane %v2147, 4
        %v2150 = vrot.slane %v1615, 5
        %v2151 = vsel %vm2074, %v2149, %v2150
        %v2152 = vrot.slane %v2019, 5
        %v2153 = vrot.slane %v2152, 4
        %v2154 = vrot.slane %v1596, 5
        %v2155 = vsel %vm2074, %v2153, %v2154
        %v2156 = vrot.slane %v2154, 4
        %v2157 = vrot.slane %v1616, 5
        %v2158 = vsel %vm2074, %v2156, %v2157
        %v2159 = vrot.slane %v2020, 5
        %v2160 = vrot.slane %v2159, 4
        %v2161 = vrot.slane %v1598, 5
        %v2162 = vsel %vm2074, %v2160, %v2161
        %v2163 = vrot.slane %v2161, 4
        %v2164 = vrot.slane %v1617, 5
        %v2165 = vsel %vm2074, %v2163, %v2164
        %v2166 = vrot.slane %v2021, 5
        %v2167 = vrot.slane %v2166, 4
        %v2168 = vrot.slane %v1600, 5
        %v2169 = vsel %vm2074, %v2167, %v2168
        %v2170 = vrot.slane %v2168, 4
        %v2171 = vrot.slane %v1618, 5
        %v2172 = vsel %vm2074, %v2170, %v2171
        %v2173 = vrot.slane %v2022, 5
        %v2174 = vrot.slane %v2173, 4
        %v2175 = vrot.slane %v1602, 5
        %v2176 = vsel %vm2074, %v2174, %v2175
        %v2177 = vrot.slane %v2175, 4
        %v2178 = vrot.slane %v1619, 5
        %v2179 = vsel %vm2074, %v2177, %v2178
        %v2180 = vrot.slane %v2023, 5
        %v2181 = vrot.slane %v2180, 4
        %v2182 = vrot.slane %v1604, 5
        %v2183 = vsel %vm2074, %v2181, %v2182
        %v2184 = vrot.slane %v2182, 4
        %v2185 = vrot.slane %v1620, 5
        %v2186 = vsel %vm2074, %v2184, %v2185
        %s2187 = scalar_lea.vmem [#allocation2], 12
        %v2188 = vld [vmem:[%s2187] sm:$0xf]
        %v2189 = vld [vmem:[%s2187 + $0x4] sm:$0xf]
        %v2190 = vld [vmem:[%s2187 + $0xc] sm:$0xf]
        %v2191 = vld [vmem:[%s2187 + $0x10] sm:$0xf]
        %v2192 = vld [vmem:[%s2187 + $0x18] sm:$0xf]
        %v2193 = vld [vmem:[%s2187 + $0x1c] sm:$0xf]
        %v2194 = vld [vmem:[%s2187 + $0x24] sm:$0xf]
        %v2195 = vld [vmem:[%s2187 + $0x28] sm:$0xf]
        %v2196 = vld [vmem:[%s2187 + $0x30] sm:$0xf]
        %v2197 = vld [vmem:[%s2187 + $0x34] sm:$0xf]
        %v2198 = vld [vmem:[%s2187 + $0x3c] sm:$0xf]
        %v2199 = vld [vmem:[%s2187 + $0x40] sm:$0xf]
        %v2200 = vld [vmem:[%s2187 + $0x48] sm:$0xf]
        %v2201 = vld [vmem:[%s2187 + $0x4c] sm:$0xf]
        %v2202 = vld [vmem:[%s2187 + $0x54] sm:$0xf]
        %v2203 = vld [vmem:[%s2187 + $0x58] sm:$0xf]
        %v2204 = vld [vmem:[%s2187 + $0x60] sm:$0xf]
        %v2205 = vld [vmem:[%s2187 + $0x64] sm:$0xf]
        %v2206 = vld [vmem:[%s2187 + $0x6c] sm:$0xf]
        %v2207 = vld [vmem:[%s2187 + $0x70] sm:$0xf]
        %v2208 = vld [vmem:[%s2187 + $0x78] sm:$0xf]
        %v2209 = vld [vmem:[%s2187 + $0x7c] sm:$0xf]
        %v2210 = vld [vmem:[%s2187 + $0x84] sm:$0xf]
        %v2211 = vld [vmem:[%s2187 + $0x88] sm:$0xf]
        %v2212 = vld [vmem:[%s2187 + $0x90] sm:$0xf]
        %v2213 = vld [vmem:[%s2187 + $0x94] sm:$0xf]
        %v2214 = vld [vmem:[%s2187 + $0x9c] sm:$0xf]
        %v2215 = vld [vmem:[%s2187 + $0xa0] sm:$0xf]
        %v2216 = vld [vmem:[%s2187 + $0xa8] sm:$0xf]
        %v2217 = vld [vmem:[%s2187 + $0xac] sm:$0xf]
        %v2218 = vld [vmem:[%s2187 + $0xb4] sm:$0xf]
        %v2219 = vld [vmem:[%s2187 + $0xb8] sm:$0xf]
        %v2220 = vld [vmem:[%s2187 + $0x8] sm:$0x1]
        %v2221 = vld [vmem:[%s2187 + $0x14] sm:$0x1]
        %v2222 = vld [vmem:[%s2187 + $0x20] sm:$0x1]
        %v2223 = vld [vmem:[%s2187 + $0x2c] sm:$0x1]
        %v2224 = vld [vmem:[%s2187 + $0x38] sm:$0x1]
        %v2225 = vld [vmem:[%s2187 + $0x44] sm:$0x1]
        %v2226 = vld [vmem:[%s2187 + $0x50] sm:$0x1]
        %v2227 = vld [vmem:[%s2187 + $0x5c] sm:$0x1]
        %v2228 = vld [vmem:[%s2187 + $0x68] sm:$0x1]
        %v2229 = vld [vmem:[%s2187 + $0x74] sm:$0x1]
        %v2230 = vld [vmem:[%s2187 + $0x80] sm:$0x1]
        %v2231 = vld [vmem:[%s2187 + $0x8c] sm:$0x1]
        %v2232 = vld [vmem:[%s2187 + $0x98] sm:$0x1]
        %v2233 = vld [vmem:[%s2187 + $0xa4] sm:$0x1]
        %v2234 = vld [vmem:[%s2187 + $0xb0] sm:$0x1]
        %v2235 = vld [vmem:[%s2187 + $0xbc] sm:$0x1]
        %v2237 = vshrl.u32 %v2188, 16
        %v2239 = vrot.slane %v2237, 4
        %v2240 = vshll.u32 %v2188, 16
        %v2242 = vrot.slane %v2240, 5
        %v2243 = vor.u32 %v2239, %v2242
        %v2244 = vrot.slane %v2243, 4
        %v2246 = vshll.u32 %v2189, 16
        %v2248 = vrot.slane %v2246, 5
        %v2249 = vsel %vm1623, %v2244, %v2248
        %v2250 = vshrl.u32 %v2189, 16
        %v2252 = vrot.slane %v2250, 4
        %v2253 = vor.u32 %v2252, %v2248
        %v2254 = vrot.slane %v2253, 4
        %v2256 = vshll.u32 %v2220, 16
        %v2258 = vrot.slane %v2256, 5
        %v2259 = vsel %vm1623, %v2254, %v2258
        %v2261 = vshrl.u32 %v2190, 16
        %v2263 = vrot.slane %v2261, 4
        %v2264 = vshll.u32 %v2190, 16
        %v2266 = vrot.slane %v2264, 5
        %v2267 = vor.u32 %v2263, %v2266
        %v2268 = vrot.slane %v2267, 4
        %v2270 = vshll.u32 %v2191, 16
        %v2272 = vrot.slane %v2270, 5
        %v2273 = vsel %vm1623, %v2268, %v2272
        %v2274 = vshrl.u32 %v2191, 16
        %v2276 = vrot.slane %v2274, 4
        %v2277 = vor.u32 %v2276, %v2272
        %v2278 = vrot.slane %v2277, 4
        %v2280 = vshll.u32 %v2221, 16
        %v2282 = vrot.slane %v2280, 5
        %v2283 = vsel %vm1623, %v2278, %v2282
        %v2285 = vshrl.u32 %v2192, 16
        %v2287 = vrot.slane %v2285, 4
        %v2288 = vshll.u32 %v2192, 16
        %v2290 = vrot.slane %v2288, 5
        %v2291 = vor.u32 %v2287, %v2290
        %v2292 = vrot.slane %v2291, 4
        %v2294 = vshll.u32 %v2193, 16
        %v2296 = vrot.slane %v2294, 5
        %v2297 = vsel %vm1623, %v2292, %v2296
        %v2298 = vshrl.u32 %v2193, 16
        %v2300 = vrot.slane %v2298, 4
        %v2301 = vor.u32 %v2300, %v2296
        %v2302 = vrot.slane %v2301, 4
        %v2304 = vshll.u32 %v2222, 16
        %v2306 = vrot.slane %v2304, 5
        %v2307 = vsel %vm1623, %v2302, %v2306
        %v2309 = vshrl.u32 %v2194, 16
        %v2311 = vrot.slane %v2309, 4
        %v2312 = vshll.u32 %v2194, 16
        %v2314 = vrot.slane %v2312, 5
        %v2315 = vor.u32 %v2311, %v2314
        %v2316 = vrot.slane %v2315, 4
        %v2318 = vshll.u32 %v2195, 16
        %v2320 = vrot.slane %v2318, 5
        %v2321 = vsel %vm1623, %v2316, %v2320
        %v2322 = vshrl.u32 %v2195, 16
        %v2324 = vrot.slane %v2322, 4
        %v2325 = vor.u32 %v2324, %v2320
        %v2326 = vrot.slane %v2325, 4
        %v2328 = vshll.u32 %v2223, 16
        %v2330 = vrot.slane %v2328, 5
        %v2331 = vsel %vm1623, %v2326, %v2330
        %v2333 = vshrl.u32 %v2196, 16
        %v2335 = vrot.slane %v2333, 4
        %v2336 = vshll.u32 %v2196, 16
        %v2338 = vrot.slane %v2336, 5
        %v2339 = vor.u32 %v2335, %v2338
        %v2340 = vrot.slane %v2339, 4
        %v2342 = vshll.u32 %v2197, 16
        %v2344 = vrot.slane %v2342, 5
        %v2345 = vsel %vm1623, %v2340, %v2344
        %v2346 = vshrl.u32 %v2197, 16
        %v2348 = vrot.slane %v2346, 4
        %v2349 = vor.u32 %v2348, %v2344
        %v2350 = vrot.slane %v2349, 4
        %v2352 = vshll.u32 %v2224, 16
        %v2354 = vrot.slane %v2352, 5
        %v2355 = vsel %vm1623, %v2350, %v2354
        %v2357 = vshrl.u32 %v2198, 16
        %v2359 = vrot.slane %v2357, 4
        %v2360 = vshll.u32 %v2198, 16
        %v2362 = vrot.slane %v2360, 5
        %v2363 = vor.u32 %v2359, %v2362
        %v2364 = vrot.slane %v2363, 4
        %v2366 = vshll.u32 %v2199, 16
        %v2368 = vrot.slane %v2366, 5
        %v2369 = vsel %vm1623, %v2364, %v2368
        %v2370 = vshrl.u32 %v2199, 16
        %v2372 = vrot.slane %v2370, 4
        %v2373 = vor.u32 %v2372, %v2368
        %v2374 = vrot.slane %v2373, 4
        %v2376 = vshll.u32 %v2225, 16
        %v2378 = vrot.slane %v2376, 5
        %v2379 = vsel %vm1623, %v2374, %v2378
        %v2381 = vshrl.u32 %v2200, 16
        %v2383 = vrot.slane %v2381, 4
        %v2384 = vshll.u32 %v2200, 16
        %v2386 = vrot.slane %v2384, 5
        %v2387 = vor.u32 %v2383, %v2386
        %v2388 = vrot.slane %v2387, 4
        %v2390 = vshll.u32 %v2201, 16
        %v2392 = vrot.slane %v2390, 5
        %v2393 = vsel %vm1623, %v2388, %v2392
        %v2394 = vshrl.u32 %v2201, 16
        %v2396 = vrot.slane %v2394, 4
        %v2397 = vor.u32 %v2396, %v2392
        %v2398 = vrot.slane %v2397, 4
        %v2400 = vshll.u32 %v2226, 16
        %v2402 = vrot.slane %v2400, 5
        %v2403 = vsel %vm1623, %v2398, %v2402
        %v2405 = vshrl.u32 %v2202, 16
        %v2407 = vrot.slane %v2405, 4
        %v2408 = vshll.u32 %v2202, 16
        %v2410 = vrot.slane %v2408, 5
        %v2411 = vor.u32 %v2407, %v2410
        %v2412 = vrot.slane %v2411, 4
        %v2414 = vshll.u32 %v2203, 16
        %v2416 = vrot.slane %v2414, 5
        %v2417 = vsel %vm1623, %v2412, %v2416
        %v2418 = vshrl.u32 %v2203, 16
        %v2420 = vrot.slane %v2418, 4
        %v2421 = vor.u32 %v2420, %v2416
        %v2422 = vrot.slane %v2421, 4
        %v2424 = vshll.u32 %v2227, 16
        %v2426 = vrot.slane %v2424, 5
        %v2427 = vsel %vm1623, %v2422, %v2426
        %v2429 = vshrl.u32 %v2204, 16
        %v2431 = vrot.slane %v2429, 4
        %v2432 = vshll.u32 %v2204, 16
        %v2434 = vrot.slane %v2432, 5
        %v2435 = vor.u32 %v2431, %v2434
        %v2436 = vrot.slane %v2435, 4
        %v2438 = vshll.u32 %v2205, 16
        %v2440 = vrot.slane %v2438, 5
        %v2441 = vsel %vm1623, %v2436, %v2440
        %v2442 = vshrl.u32 %v2205, 16
        %v2444 = vrot.slane %v2442, 4
        %v2445 = vor.u32 %v2444, %v2440
        %v2446 = vrot.slane %v2445, 4
        %v2448 = vshll.u32 %v2228, 16
        %v2450 = vrot.slane %v2448, 5
        %v2451 = vsel %vm1623, %v2446, %v2450
        %v2453 = vshrl.u32 %v2206, 16
        %v2455 = vrot.slane %v2453, 4
        %v2456 = vshll.u32 %v2206, 16
        %v2458 = vrot.slane %v2456, 5
        %v2459 = vor.u32 %v2455, %v2458
        %v2460 = vrot.slane %v2459, 4
        %v2462 = vshll.u32 %v2207, 16
        %v2464 = vrot.slane %v2462, 5
        %v2465 = vsel %vm1623, %v2460, %v2464
        %v2466 = vshrl.u32 %v2207, 16
        %v2468 = vrot.slane %v2466, 4
        %v2469 = vor.u32 %v2468, %v2464
        %v2470 = vrot.slane %v2469, 4
        %v2472 = vshll.u32 %v2229, 16
        %v2474 = vrot.slane %v2472, 5
        %v2475 = vsel %vm1623, %v2470, %v2474
        %v2477 = vshrl.u32 %v2208, 16
        %v2479 = vrot.slane %v2477, 4
        %v2480 = vshll.u32 %v2208, 16
        %v2482 = vrot.slane %v2480, 5
        %v2483 = vor.u32 %v2479, %v2482
        %v2484 = vrot.slane %v2483, 4
        %v2486 = vshll.u32 %v2209, 16
        %v2488 = vrot.slane %v2486, 5
        %v2489 = vsel %vm1623, %v2484, %v2488
        %v2490 = vshrl.u32 %v2209, 16
        %v2492 = vrot.slane %v2490, 4
        %v2493 = vor.u32 %v2492, %v2488
        %v2494 = vrot.slane %v2493, 4
        %v2496 = vshll.u32 %v2230, 16
        %v2498 = vrot.slane %v2496, 5
        %v2499 = vsel %vm1623, %v2494, %v2498
        %v2501 = vshrl.u32 %v2210, 16
        %v2503 = vrot.slane %v2501, 4
        %v2504 = vshll.u32 %v2210, 16
        %v2506 = vrot.slane %v2504, 5
        %v2507 = vor.u32 %v2503, %v2506
        %v2508 = vrot.slane %v2507, 4
        %v2510 = vshll.u32 %v2211, 16
        %v2512 = vrot.slane %v2510, 5
        %v2513 = vsel %vm1623, %v2508, %v2512
        %v2514 = vshrl.u32 %v2211, 16
        %v2516 = vrot.slane %v2514, 4
        %v2517 = vor.u32 %v2516, %v2512
        %v2518 = vrot.slane %v2517, 4
        %v2520 = vshll.u32 %v2231, 16
        %v2522 = vrot.slane %v2520, 5
        %v2523 = vsel %vm1623, %v2518, %v2522
        %v2525 = vshrl.u32 %v2212, 16
        %v2527 = vrot.slane %v2525, 4
        %v2528 = vshll.u32 %v2212, 16
        %v2530 = vrot.slane %v2528, 5
        %v2531 = vor.u32 %v2527, %v2530
        %v2532 = vrot.slane %v2531, 4
        %v2534 = vshll.u32 %v2213, 16
        %v2536 = vrot.slane %v2534, 5
        %v2537 = vsel %vm1623, %v2532, %v2536
        %v2538 = vshrl.u32 %v2213, 16
        %v2540 = vrot.slane %v2538, 4
        %v2541 = vor.u32 %v2540, %v2536
        %v2542 = vrot.slane %v2541, 4
        %v2544 = vshll.u32 %v2232, 16
        %v2546 = vrot.slane %v2544, 5
        %v2547 = vsel %vm1623, %v2542, %v2546
        %v2549 = vshrl.u32 %v2214, 16
        %v2551 = vrot.slane %v2549, 4
        %v2552 = vshll.u32 %v2214, 16
        %v2554 = vrot.slane %v2552, 5
        %v2555 = vor.u32 %v2551, %v2554
        %v2556 = vrot.slane %v2555, 4
        %v2558 = vshll.u32 %v2215, 16
        %v2560 = vrot.slane %v2558, 5
        %v2561 = vsel %vm1623, %v2556, %v2560
        %v2562 = vshrl.u32 %v2215, 16
        %v2564 = vrot.slane %v2562, 4
        %v2565 = vor.u32 %v2564, %v2560
        %v2566 = vrot.slane %v2565, 4
        %v2568 = vshll.u32 %v2233, 16
        %v2570 = vrot.slane %v2568, 5
        %v2571 = vsel %vm1623, %v2566, %v2570
        %v2573 = vshrl.u32 %v2216, 16
        %v2575 = vrot.slane %v2573, 4
        %v2576 = vshll.u32 %v2216, 16
        %v2578 = vrot.slane %v2576, 5
        %v2579 = vor.u32 %v2575, %v2578
        %v2580 = vrot.slane %v2579, 4
        %v2582 = vshll.u32 %v2217, 16
        %v2584 = vrot.slane %v2582, 5
        %v2585 = vsel %vm1623, %v2580, %v2584
        %v2586 = vshrl.u32 %v2217, 16
        %v2588 = vrot.slane %v2586, 4
        %v2589 = vor.u32 %v2588, %v2584
        %v2590 = vrot.slane %v2589, 4
        %v2592 = vshll.u32 %v2234, 16
        %v2594 = vrot.slane %v2592, 5
        %v2595 = vsel %vm1623, %v2590, %v2594
        %v2597 = vshrl.u32 %v2218, 16
        %v2599 = vrot.slane %v2597, 4
        %v2600 = vshll.u32 %v2218, 16
        %v2602 = vrot.slane %v2600, 5
        %v2603 = vor.u32 %v2599, %v2602
        %v2604 = vrot.slane %v2603, 4
        %v2606 = vshll.u32 %v2219, 16
        %v2608 = vrot.slane %v2606, 5
        %v2609 = vsel %vm1623, %v2604, %v2608
        %v2610 = vshrl.u32 %v2219, 16
        %v2612 = vrot.slane %v2610, 4
        %v2613 = vor.u32 %v2612, %v2608
        %v2614 = vrot.slane %v2613, 4
        %v2616 = vshll.u32 %v2235, 16
        %v2618 = vrot.slane %v2616, 5
        %v2619 = vsel %vm1623, %v2614, %v2618
        %v2620 = vld [vmem:[%s2187] sm:$0xe]
        %v2621 = vld [vmem:[%s2187 + $0xc] sm:$0xe]
        %v2622 = vld [vmem:[%s2187 + $0x18] sm:$0xe]
        %v2623 = vld [vmem:[%s2187 + $0x24] sm:$0xe]
        %v2624 = vld [vmem:[%s2187 + $0x30] sm:$0xe]
        %v2625 = vld [vmem:[%s2187 + $0x3c] sm:$0xe]
        %v2626 = vld [vmem:[%s2187 + $0x48] sm:$0xe]
        %v2627 = vld [vmem:[%s2187 + $0x54] sm:$0xe]
        %v2628 = vld [vmem:[%s2187 + $0x60] sm:$0xe]
        %v2629 = vld [vmem:[%s2187 + $0x6c] sm:$0xe]
        %v2630 = vld [vmem:[%s2187 + $0x78] sm:$0xe]
        %v2631 = vld [vmem:[%s2187 + $0x84] sm:$0xe]
        %v2632 = vld [vmem:[%s2187 + $0x90] sm:$0xe]
        %v2633 = vld [vmem:[%s2187 + $0x9c] sm:$0xe]
        %v2634 = vld [vmem:[%s2187 + $0xa8] sm:$0xe]
        %v2635 = vld [vmem:[%s2187 + $0xb4] sm:$0xe]
        %v2684 = vrot.slane %v2620, 5
        %v2685 = vrot.slane %v2684, 4
        %v2686 = vrot.slane %v2189, 5
        %v2687 = vsel %vm2074, %v2685, %v2686
        %v2688 = vrot.slane %v2686, 4
        %v2689 = vrot.slane %v2220, 5
        %v2690 = vsel %vm2074, %v2688, %v2689
        %v2691 = vrot.slane %v2621, 5
        %v2692 = vrot.slane %v2691, 4
        %v2693 = vrot.slane %v2191, 5
        %v2694 = vsel %vm2074, %v2692, %v2693
        %v2695 = vrot.slane %v2693, 4
        %v2696 = vrot.slane %v2221, 5
        %v2697 = vsel %vm2074, %v2695, %v2696
        %v2698 = vrot.slane %v2622, 5
        %v2699 = vrot.slane %v2698, 4
        %v2700 = vrot.slane %v2193, 5
        %v2701 = vsel %vm2074, %v2699, %v2700
        %v2702 = vrot.slane %v2700, 4
        %v2703 = vrot.slane %v2222, 5
        %v2704 = vsel %vm2074, %v2702, %v2703
        %v2705 = vrot.slane %v2623, 5
        %v2706 = vrot.slane %v2705, 4
        %v2707 = vrot.slane %v2195, 5
        %v2708 = vsel %vm2074, %v2706, %v2707
        %v2709 = vrot.slane %v2707, 4
        %v2710 = vrot.slane %v2223, 5
        %v2711 = vsel %vm2074, %v2709, %v2710
        %v2712 = vrot.slane %v2624, 5
        %v2713 = vrot.slane %v2712, 4
        %v2714 = vrot.slane %v2197, 5
        %v2715 = vsel %vm2074, %v2713, %v2714
        %v2716 = vrot.slane %v2714, 4
        %v2717 = vrot.slane %v2224, 5
        %v2718 = vsel %vm2074, %v2716, %v2717
        %v2719 = vrot.slane %v2625, 5
        %v2720 = vrot.slane %v2719, 4
        %v2721 = vrot.slane %v2199, 5
        %v2722 = vsel %vm2074, %v2720, %v2721
        %v2723 = vrot.slane %v2721, 4
        %v2724 = vrot.slane %v2225, 5
        %v2725 = vsel %vm2074, %v2723, %v2724
        %v2726 = vrot.slane %v2626, 5
        %v2727 = vrot.slane %v2726, 4
        %v2728 = vrot.slane %v2201, 5
        %v2729 = vsel %vm2074, %v2727, %v2728
        %v2730 = vrot.slane %v2728, 4
        %v2731 = vrot.slane %v2226, 5
        %v2732 = vsel %vm2074, %v2730, %v2731
        %v2733 = vrot.slane %v2627, 5
        %v2734 = vrot.slane %v2733, 4
        %v2735 = vrot.slane %v2203, 5
        %v2736 = vsel %vm2074, %v2734, %v2735
        %v2737 = vrot.slane %v2735, 4
        %v2738 = vrot.slane %v2227, 5
        %v2739 = vsel %vm2074, %v2737, %v2738
        %v2740 = vrot.slane %v2628, 5
        %v2741 = vrot.slane %v2740, 4
        %v2742 = vrot.slane %v2205, 5
        %v2743 = vsel %vm2074, %v2741, %v2742
        %v2744 = vrot.slane %v2742, 4
        %v2745 = vrot.slane %v2228, 5
        %v2746 = vsel %vm2074, %v2744, %v2745
        %v2747 = vrot.slane %v2629, 5
        %v2748 = vrot.slane %v2747, 4
        %v2749 = vrot.slane %v2207, 5
        %v2750 = vsel %vm2074, %v2748, %v2749
        %v2751 = vrot.slane %v2749, 4
        %v2752 = vrot.slane %v2229, 5
        %v2753 = vsel %vm2074, %v2751, %v2752
        %v2754 = vrot.slane %v2630, 5
        %v2755 = vrot.slane %v2754, 4
        %v2756 = vrot.slane %v2209, 5
        %v2757 = vsel %vm2074, %v2755, %v2756
        %v2758 = vrot.slane %v2756, 4
        %v2759 = vrot.slane %v2230, 5
        %v2760 = vsel %vm2074, %v2758, %v2759
        %v2761 = vrot.slane %v2631, 5
        %v2762 = vrot.slane %v2761, 4
        %v2763 = vrot.slane %v2211, 5
        %v2764 = vsel %vm2074, %v2762, %v2763
        %v2765 = vrot.slane %v2763, 4
        %v2766 = vrot.slane %v2231, 5
        %v2767 = vsel %vm2074, %v2765, %v2766
        %v2768 = vrot.slane %v2632, 5
        %v2769 = vrot.slane %v2768, 4
        %v2770 = vrot.slane %v2213, 5
        %v2771 = vsel %vm2074, %v2769, %v2770
        %v2772 = vrot.slane %v2770, 4
        %v2773 = vrot.slane %v2232, 5
        %v2774 = vsel %vm2074, %v2772, %v2773
        %v2775 = vrot.slane %v2633, 5
        %v2776 = vrot.slane %v2775, 4
        %v2777 = vrot.slane %v2215, 5
        %v2778 = vsel %vm2074, %v2776, %v2777
        %v2779 = vrot.slane %v2777, 4
        %v2780 = vrot.slane %v2233, 5
        %v2781 = vsel %vm2074, %v2779, %v2780
        %v2782 = vrot.slane %v2634, 5
        %v2783 = vrot.slane %v2782, 4
        %v2784 = vrot.slane %v2217, 5
        %v2785 = vsel %vm2074, %v2783, %v2784
        %v2786 = vrot.slane %v2784, 4
        %v2787 = vrot.slane %v2234, 5
        %v2788 = vsel %vm2074, %v2786, %v2787
        %v2789 = vrot.slane %v2635, 5
        %v2790 = vrot.slane %v2789, 4
        %v2791 = vrot.slane %v2219, 5
        %v2792 = vsel %vm2074, %v2790, %v2791
        %v2793 = vrot.slane %v2791, 4
        %v2794 = vrot.slane %v2235, 5
        %v2795 = vsel %vm2074, %v2793, %v2794
        %s2796 = scalar_lea.vmem [#allocation2], 24
        %v2797 = vld [vmem:[%s2796] sm:$0xf]
        %v2798 = vld [vmem:[%s2796 + $0x4] sm:$0xf]
        %v2799 = vld [vmem:[%s2796 + $0xc] sm:$0xf]
        %v2800 = vld [vmem:[%s2796 + $0x10] sm:$0xf]
        %v2801 = vld [vmem:[%s2796 + $0x18] sm:$0xf]
        %v2802 = vld [vmem:[%s2796 + $0x1c] sm:$0xf]
        %v2803 = vld [vmem:[%s2796 + $0x24] sm:$0xf]
        %v2804 = vld [vmem:[%s2796 + $0x28] sm:$0xf]
        %v2805 = vld [vmem:[%s2796 + $0x30] sm:$0xf]
        %v2806 = vld [vmem:[%s2796 + $0x34] sm:$0xf]
        %v2807 = vld [vmem:[%s2796 + $0x3c] sm:$0xf]
        %v2808 = vld [vmem:[%s2796 + $0x40] sm:$0xf]
        %v2809 = vld [vmem:[%s2796 + $0x48] sm:$0xf]
        %v2810 = vld [vmem:[%s2796 + $0x4c] sm:$0xf]
        %v2811 = vld [vmem:[%s2796 + $0x54] sm:$0xf]
        %v2812 = vld [vmem:[%s2796 + $0x58] sm:$0xf]
        %v2813 = vld [vmem:[%s2796 + $0x60] sm:$0xf]
        %v2814 = vld [vmem:[%s2796 + $0x64] sm:$0xf]
        %v2815 = vld [vmem:[%s2796 + $0x6c] sm:$0xf]
        %v2816 = vld [vmem:[%s2796 + $0x70] sm:$0xf]
        %v2817 = vld [vmem:[%s2796 + $0x78] sm:$0xf]
        %v2818 = vld [vmem:[%s2796 + $0x7c] sm:$0xf]
        %v2819 = vld [vmem:[%s2796 + $0x84] sm:$0xf]
        %v2820 = vld [vmem:[%s2796 + $0x88] sm:$0xf]
        %v2821 = vld [vmem:[%s2796 + $0x90] sm:$0xf]
        %v2822 = vld [vmem:[%s2796 + $0x94] sm:$0xf]
        %v2823 = vld [vmem:[%s2796 + $0x9c] sm:$0xf]
        %v2824 = vld [vmem:[%s2796 + $0xa0] sm:$0xf]
        %v2825 = vld [vmem:[%s2796 + $0xa8] sm:$0xf]
        %v2826 = vld [vmem:[%s2796 + $0xac] sm:$0xf]
        %v2827 = vld [vmem:[%s2796 + $0xb4] sm:$0xf]
        %v2828 = vld [vmem:[%s2796 + $0xb8] sm:$0xf]
        %v2829 = vld [vmem:[%s2796 + $0x8] sm:$0x1]
        %v2830 = vld [vmem:[%s2796 + $0x14] sm:$0x1]
        %v2831 = vld [vmem:[%s2796 + $0x20] sm:$0x1]
        %v2832 = vld [vmem:[%s2796 + $0x2c] sm:$0x1]
        %v2833 = vld [vmem:[%s2796 + $0x38] sm:$0x1]
        %v2834 = vld [vmem:[%s2796 + $0x44] sm:$0x1]
        %v2835 = vld [vmem:[%s2796 + $0x50] sm:$0x1]
        %v2836 = vld [vmem:[%s2796 + $0x5c] sm:$0x1]
        %v2837 = vld [vmem:[%s2796 + $0x68] sm:$0x1]
        %v2838 = vld [vmem:[%s2796 + $0x74] sm:$0x1]
        %v2839 = vld [vmem:[%s2796 + $0x80] sm:$0x1]
        %v2840 = vld [vmem:[%s2796 + $0x8c] sm:$0x1]
        %v2841 = vld [vmem:[%s2796 + $0x98] sm:$0x1]
        %v2842 = vld [vmem:[%s2796 + $0xa4] sm:$0x1]
        %v2843 = vld [vmem:[%s2796 + $0xb0] sm:$0x1]
        %v2844 = vld [vmem:[%s2796 + $0xbc] sm:$0x1]
        %v2846 = vshrl.u32 %v2797, 16
        %v2848 = vrot.slane %v2846, 4
        %v2849 = vshll.u32 %v2797, 16
        %v2851 = vrot.slane %v2849, 5
        %v2852 = vor.u32 %v2848, %v2851
        %v2853 = vrot.slane %v2852, 4
        %v2855 = vshll.u32 %v2798, 16
        %v2857 = vrot.slane %v2855, 5
        %v2858 = vsel %vm1623, %v2853, %v2857
        %v2859 = vshrl.u32 %v2798, 16
        %v2861 = vrot.slane %v2859, 4
        %v2862 = vor.u32 %v2861, %v2857
        %v2863 = vrot.slane %v2862, 4
        %v2865 = vshll.u32 %v2829, 16
        %v2867 = vrot.slane %v2865, 5
        %v2868 = vsel %vm1623, %v2863, %v2867
        %v2870 = vshrl.u32 %v2799, 16
        %v2872 = vrot.slane %v2870, 4
        %v2873 = vshll.u32 %v2799, 16
        %v2875 = vrot.slane %v2873, 5
        %v2876 = vor.u32 %v2872, %v2875
        %v2877 = vrot.slane %v2876, 4
        %v2879 = vshll.u32 %v2800, 16
        %v2881 = vrot.slane %v2879, 5
        %v2882 = vsel %vm1623, %v2877, %v2881
        %v2883 = vshrl.u32 %v2800, 16
        %v2885 = vrot.slane %v2883, 4
        %v2886 = vor.u32 %v2885, %v2881
        %v2887 = vrot.slane %v2886, 4
        %v2889 = vshll.u32 %v2830, 16
        %v2891 = vrot.slane %v2889, 5
        %v2892 = vsel %vm1623, %v2887, %v2891
        %v2894 = vshrl.u32 %v2801, 16
        %v2896 = vrot.slane %v2894, 4
        %v2897 = vshll.u32 %v2801, 16
        %v2899 = vrot.slane %v2897, 5
        %v2900 = vor.u32 %v2896, %v2899
        %v2901 = vrot.slane %v2900, 4
        %v2903 = vshll.u32 %v2802, 16
        %v2905 = vrot.slane %v2903, 5
        %v2906 = vsel %vm1623, %v2901, %v2905
        %v2907 = vshrl.u32 %v2802, 16
        %v2909 = vrot.slane %v2907, 4
        %v2910 = vor.u32 %v2909, %v2905
        %v2911 = vrot.slane %v2910, 4
        %v2913 = vshll.u32 %v2831, 16
        %v2915 = vrot.slane %v2913, 5
        %v2916 = vsel %vm1623, %v2911, %v2915
        %v2918 = vshrl.u32 %v2803, 16
        %v2920 = vrot.slane %v2918, 4
        %v2921 = vshll.u32 %v2803, 16
        %v2923 = vrot.slane %v2921, 5
        %v2924 = vor.u32 %v2920, %v2923
        %v2925 = vrot.slane %v2924, 4
        %v2927 = vshll.u32 %v2804, 16
        %v2929 = vrot.slane %v2927, 5
        %v2930 = vsel %vm1623, %v2925, %v2929
        %v2931 = vshrl.u32 %v2804, 16
        %v2933 = vrot.slane %v2931, 4
        %v2934 = vor.u32 %v2933, %v2929
        %v2935 = vrot.slane %v2934, 4
        %v2937 = vshll.u32 %v2832, 16
        %v2939 = vrot.slane %v2937, 5
        %v2940 = vsel %vm1623, %v2935, %v2939
        %v2942 = vshrl.u32 %v2805, 16
        %v2944 = vrot.slane %v2942, 4
        %v2945 = vshll.u32 %v2805, 16
        %v2947 = vrot.slane %v2945, 5
        %v2948 = vor.u32 %v2944, %v2947
        %v2949 = vrot.slane %v2948, 4
        %v2951 = vshll.u32 %v2806, 16
        %v2953 = vrot.slane %v2951, 5
        %v2954 = vsel %vm1623, %v2949, %v2953
        %v2955 = vshrl.u32 %v2806, 16
        %v2957 = vrot.slane %v2955, 4
        %v2958 = vor.u32 %v2957, %v2953
        %v2959 = vrot.slane %v2958, 4
        %v2961 = vshll.u32 %v2833, 16
        %v2963 = vrot.slane %v2961, 5
        %v2964 = vsel %vm1623, %v2959, %v2963
        %v2966 = vshrl.u32 %v2807, 16
        %v2968 = vrot.slane %v2966, 4
        %v2969 = vshll.u32 %v2807, 16
        %v2971 = vrot.slane %v2969, 5
        %v2972 = vor.u32 %v2968, %v2971
        %v2973 = vrot.slane %v2972, 4
        %v2975 = vshll.u32 %v2808, 16
        %v2977 = vrot.slane %v2975, 5
        %v2978 = vsel %vm1623, %v2973, %v2977
        %v2979 = vshrl.u32 %v2808, 16
        %v2981 = vrot.slane %v2979, 4
        %v2982 = vor.u32 %v2981, %v2977
        %v2983 = vrot.slane %v2982, 4
        %v2985 = vshll.u32 %v2834, 16
        %v2987 = vrot.slane %v2985, 5
        %v2988 = vsel %vm1623, %v2983, %v2987
        %v2990 = vshrl.u32 %v2809, 16
        %v2992 = vrot.slane %v2990, 4
        %v2993 = vshll.u32 %v2809, 16
        %v2995 = vrot.slane %v2993, 5
        %v2996 = vor.u32 %v2992, %v2995
        %v2997 = vrot.slane %v2996, 4
        %v2999 = vshll.u32 %v2810, 16
        %v3001 = vrot.slane %v2999, 5
        %v3002 = vsel %vm1623, %v2997, %v3001
        %v3003 = vshrl.u32 %v2810, 16
        %v3005 = vrot.slane %v3003, 4
        %v3006 = vor.u32 %v3005, %v3001
        %v3007 = vrot.slane %v3006, 4
        %v3009 = vshll.u32 %v2835, 16
        %v3011 = vrot.slane %v3009, 5
        %v3012 = vsel %vm1623, %v3007, %v3011
        %v3014 = vshrl.u32 %v2811, 16
        %v3016 = vrot.slane %v3014, 4
        %v3017 = vshll.u32 %v2811, 16
        %v3019 = vrot.slane %v3017, 5
        %v3020 = vor.u32 %v3016, %v3019
        %v3021 = vrot.slane %v3020, 4
        %v3023 = vshll.u32 %v2812, 16
        %v3025 = vrot.slane %v3023, 5
        %v3026 = vsel %vm1623, %v3021, %v3025
        %v3027 = vshrl.u32 %v2812, 16
        %v3029 = vrot.slane %v3027, 4
        %v3030 = vor.u32 %v3029, %v3025
        %v3031 = vrot.slane %v3030, 4
        %v3033 = vshll.u32 %v2836, 16
        %v3035 = vrot.slane %v3033, 5
        %v3036 = vsel %vm1623, %v3031, %v3035
        %v3038 = vshrl.u32 %v2813, 16
        %v3040 = vrot.slane %v3038, 4
        %v3041 = vshll.u32 %v2813, 16
        %v3043 = vrot.slane %v3041, 5
        %v3044 = vor.u32 %v3040, %v3043
        %v3045 = vrot.slane %v3044, 4
        %v3047 = vshll.u32 %v2814, 16
        %v3049 = vrot.slane %v3047, 5
        %v3050 = vsel %vm1623, %v3045, %v3049
        %v3051 = vshrl.u32 %v2814, 16
        %v3053 = vrot.slane %v3051, 4
        %v3054 = vor.u32 %v3053, %v3049
        %v3055 = vrot.slane %v3054, 4
        %v3057 = vshll.u32 %v2837, 16
        %v3059 = vrot.slane %v3057, 5
        %v3060 = vsel %vm1623, %v3055, %v3059
        %v3062 = vshrl.u32 %v2815, 16
        %v3064 = vrot.slane %v3062, 4
        %v3065 = vshll.u32 %v2815, 16
        %v3067 = vrot.slane %v3065, 5
        %v3068 = vor.u32 %v3064, %v3067
        %v3069 = vrot.slane %v3068, 4
        %v3071 = vshll.u32 %v2816, 16
        %v3073 = vrot.slane %v3071, 5
        %v3074 = vsel %vm1623, %v3069, %v3073
        %v3075 = vshrl.u32 %v2816, 16
        %v3077 = vrot.slane %v3075, 4
        %v3078 = vor.u32 %v3077, %v3073
        %v3079 = vrot.slane %v3078, 4
        %v3081 = vshll.u32 %v2838, 16
        %v3083 = vrot.slane %v3081, 5
        %v3084 = vsel %vm1623, %v3079, %v3083
        %v3086 = vshrl.u32 %v2817, 16
        %v3088 = vrot.slane %v3086, 4
        %v3089 = vshll.u32 %v2817, 16
        %v3091 = vrot.slane %v3089, 5
        %v3092 = vor.u32 %v3088, %v3091
        %v3093 = vrot.slane %v3092, 4
        %v3095 = vshll.u32 %v2818, 16
        %v3097 = vrot.slane %v3095, 5
        %v3098 = vsel %vm1623, %v3093, %v3097
        %v3099 = vshrl.u32 %v2818, 16
        %v3101 = vrot.slane %v3099, 4
        %v3102 = vor.u32 %v3101, %v3097
        %v3103 = vrot.slane %v3102, 4
        %v3105 = vshll.u32 %v2839, 16
        %v3107 = vrot.slane %v3105, 5
        %v3108 = vsel %vm1623, %v3103, %v3107
        %v3110 = vshrl.u32 %v2819, 16
        %v3112 = vrot.slane %v3110, 4
        %v3113 = vshll.u32 %v2819, 16
        %v3115 = vrot.slane %v3113, 5
        %v3116 = vor.u32 %v3112, %v3115
        %v3117 = vrot.slane %v3116, 4
        %v3119 = vshll.u32 %v2820, 16
        %v3121 = vrot.slane %v3119, 5
        %v3122 = vsel %vm1623, %v3117, %v3121
        %v3123 = vshrl.u32 %v2820, 16
        %v3125 = vrot.slane %v3123, 4
        %v3126 = vor.u32 %v3125, %v3121
        %v3127 = vrot.slane %v3126, 4
        %v3129 = vshll.u32 %v2840, 16
        %v3131 = vrot.slane %v3129, 5
        %v3132 = vsel %vm1623, %v3127, %v3131
        %v3134 = vshrl.u32 %v2821, 16
        %v3136 = vrot.slane %v3134, 4
        %v3137 = vshll.u32 %v2821, 16
        %v3139 = vrot.slane %v3137, 5
        %v3140 = vor.u32 %v3136, %v3139
        %v3141 = vrot.slane %v3140, 4
        %v3143 = vshll.u32 %v2822, 16
        %v3145 = vrot.slane %v3143, 5
        %v3146 = vsel %vm1623, %v3141, %v3145
        %v3147 = vshrl.u32 %v2822, 16
        %v3149 = vrot.slane %v3147, 4
        %v3150 = vor.u32 %v3149, %v3145
        %v3151 = vrot.slane %v3150, 4
        %v3153 = vshll.u32 %v2841, 16
        %v3155 = vrot.slane %v3153, 5
        %v3156 = vsel %vm1623, %v3151, %v3155
        %v3158 = vshrl.u32 %v2823, 16
        %v3160 = vrot.slane %v3158, 4
        %v3161 = vshll.u32 %v2823, 16
        %v3163 = vrot.slane %v3161, 5
        %v3164 = vor.u32 %v3160, %v3163
        %v3165 = vrot.slane %v3164, 4
        %v3167 = vshll.u32 %v2824, 16
        %v3169 = vrot.slane %v3167, 5
        %v3170 = vsel %vm1623, %v3165, %v3169
        %v3171 = vshrl.u32 %v2824, 16
        %v3173 = vrot.slane %v3171, 4
        %v3174 = vor.u32 %v3173, %v3169
        %v3175 = vrot.slane %v3174, 4
        %v3177 = vshll.u32 %v2842, 16
        %v3179 = vrot.slane %v3177, 5
        %v3180 = vsel %vm1623, %v3175, %v3179
        %v3182 = vshrl.u32 %v2825, 16
        %v3184 = vrot.slane %v3182, 4
        %v3185 = vshll.u32 %v2825, 16
        %v3187 = vrot.slane %v3185, 5
        %v3188 = vor.u32 %v3184, %v3187
        %v3189 = vrot.slane %v3188, 4
        %v3191 = vshll.u32 %v2826, 16
        %v3193 = vrot.slane %v3191, 5
        %v3194 = vsel %vm1623, %v3189, %v3193
        %v3195 = vshrl.u32 %v2826, 16
        %v3197 = vrot.slane %v3195, 4
        %v3198 = vor.u32 %v3197, %v3193
        %v3199 = vrot.slane %v3198, 4
        %v3201 = vshll.u32 %v2843, 16
        %v3203 = vrot.slane %v3201, 5
        %v3204 = vsel %vm1623, %v3199, %v3203
        %v3206 = vshrl.u32 %v2827, 16
        %v3208 = vrot.slane %v3206, 4
        %v3209 = vshll.u32 %v2827, 16
        %v3211 = vrot.slane %v3209, 5
        %v3212 = vor.u32 %v3208, %v3211
        %v3213 = vrot.slane %v3212, 4
        %v3215 = vshll.u32 %v2828, 16
        %v3217 = vrot.slane %v3215, 5
        %v3218 = vsel %vm1623, %v3213, %v3217
        %v3219 = vshrl.u32 %v2828, 16
        %v3221 = vrot.slane %v3219, 4
        %v3222 = vor.u32 %v3221, %v3217
        %v3223 = vrot.slane %v3222, 4
        %v3225 = vshll.u32 %v2844, 16
        %v3227 = vrot.slane %v3225, 5
        %v3228 = vsel %vm1623, %v3223, %v3227
        %v3229 = vld [vmem:[%s2796] sm:$0xe]
        %v3230 = vld [vmem:[%s2796 + $0xc] sm:$0xe]
        %v3231 = vld [vmem:[%s2796 + $0x18] sm:$0xe]
        %v3232 = vld [vmem:[%s2796 + $0x24] sm:$0xe]
        %v3233 = vld [vmem:[%s2796 + $0x30] sm:$0xe]
        %v3234 = vld [vmem:[%s2796 + $0x3c] sm:$0xe]
        %v3235 = vld [vmem:[%s2796 + $0x48] sm:$0xe]
        %v3236 = vld [vmem:[%s2796 + $0x54] sm:$0xe]
        %v3237 = vld [vmem:[%s2796 + $0x60] sm:$0xe]
        %v3238 = vld [vmem:[%s2796 + $0x6c] sm:$0xe]
        %v3239 = vld [vmem:[%s2796 + $0x78] sm:$0xe]
        %v3240 = vld [vmem:[%s2796 + $0x84] sm:$0xe]
        %v3241 = vld [vmem:[%s2796 + $0x90] sm:$0xe]
        %v3242 = vld [vmem:[%s2796 + $0x9c] sm:$0xe]
        %v3243 = vld [vmem:[%s2796 + $0xa8] sm:$0xe]
        %v3244 = vld [vmem:[%s2796 + $0xb4] sm:$0xe]
        %v3293 = vrot.slane %v3229, 5
        %v3294 = vrot.slane %v3293, 4
        %v3295 = vrot.slane %v2798, 5
        %v3296 = vsel %vm2074, %v3294, %v3295
        %v3297 = vrot.slane %v3295, 4
        %v3298 = vrot.slane %v2829, 5
        %v3299 = vsel %vm2074, %v3297, %v3298
        %v3300 = vrot.slane %v3230, 5
        %v3301 = vrot.slane %v3300, 4
        %v3302 = vrot.slane %v2800, 5
        %v3303 = vsel %vm2074, %v3301, %v3302
        %v3304 = vrot.slane %v3302, 4
        %v3305 = vrot.slane %v2830, 5
        %v3306 = vsel %vm2074, %v3304, %v3305
        %v3307 = vrot.slane %v3231, 5
        %v3308 = vrot.slane %v3307, 4
        %v3309 = vrot.slane %v2802, 5
        %v3310 = vsel %vm2074, %v3308, %v3309
        %v3311 = vrot.slane %v3309, 4
        %v3312 = vrot.slane %v2831, 5
        %v3313 = vsel %vm2074, %v3311, %v3312
        %v3314 = vrot.slane %v3232, 5
        %v3315 = vrot.slane %v3314, 4
        %v3316 = vrot.slane %v2804, 5
        %v3317 = vsel %vm2074, %v3315, %v3316
        %v3318 = vrot.slane %v3316, 4
        %v3319 = vrot.slane %v2832, 5
        %v3320 = vsel %vm2074, %v3318, %v3319
        %v3321 = vrot.slane %v3233, 5
        %v3322 = vrot.slane %v3321, 4
        %v3323 = vrot.slane %v2806, 5
        %v3324 = vsel %vm2074, %v3322, %v3323
        %v3325 = vrot.slane %v3323, 4
        %v3326 = vrot.slane %v2833, 5
        %v3327 = vsel %vm2074, %v3325, %v3326
        %v3328 = vrot.slane %v3234, 5
        %v3329 = vrot.slane %v3328, 4
        %v3330 = vrot.slane %v2808, 5
        %v3331 = vsel %vm2074, %v3329, %v3330
        %v3332 = vrot.slane %v3330, 4
        %v3333 = vrot.slane %v2834, 5
        %v3334 = vsel %vm2074, %v3332, %v3333
        %v3335 = vrot.slane %v3235, 5
        %v3336 = vrot.slane %v3335, 4
        %v3337 = vrot.slane %v2810, 5
        %v3338 = vsel %vm2074, %v3336, %v3337
        %v3339 = vrot.slane %v3337, 4
        %v3340 = vrot.slane %v2835, 5
        %v3341 = vsel %vm2074, %v3339, %v3340
        %v3342 = vrot.slane %v3236, 5
        %v3343 = vrot.slane %v3342, 4
        %v3344 = vrot.slane %v2812, 5
        %v3345 = vsel %vm2074, %v3343, %v3344
        %v3346 = vrot.slane %v3344, 4
        %v3347 = vrot.slane %v2836, 5
        %v3348 = vsel %vm2074, %v3346, %v3347
        %v3349 = vrot.slane %v3237, 5
        %v3350 = vrot.slane %v3349, 4
        %v3351 = vrot.slane %v2814, 5
        %v3352 = vsel %vm2074, %v3350, %v3351
        %v3353 = vrot.slane %v3351, 4
        %v3354 = vrot.slane %v2837, 5
        %v3355 = vsel %vm2074, %v3353, %v3354
        %v3356 = vrot.slane %v3238, 5
        %v3357 = vrot.slane %v3356, 4
        %v3358 = vrot.slane %v2816, 5
        %v3359 = vsel %vm2074, %v3357, %v3358
        %v3360 = vrot.slane %v3358, 4
        %v3361 = vrot.slane %v2838, 5
        %v3362 = vsel %vm2074, %v3360, %v3361
        %v3363 = vrot.slane %v3239, 5
        %v3364 = vrot.slane %v3363, 4
        %v3365 = vrot.slane %v2818, 5
        %v3366 = vsel %vm2074, %v3364, %v3365
        %v3367 = vrot.slane %v3365, 4
        %v3368 = vrot.slane %v2839, 5
        %v3369 = vsel %vm2074, %v3367, %v3368
        %v3370 = vrot.slane %v3240, 5
        %v3371 = vrot.slane %v3370, 4
        %v3372 = vrot.slane %v2820, 5
        %v3373 = vsel %vm2074, %v3371, %v3372
        %v3374 = vrot.slane %v3372, 4
        %v3375 = vrot.slane %v2840, 5
        %v3376 = vsel %vm2074, %v3374, %v3375
        %v3377 = vrot.slane %v3241, 5
        %v3378 = vrot.slane %v3377, 4
        %v3379 = vrot.slane %v2822, 5
        %v3380 = vsel %vm2074, %v3378, %v3379
        %v3381 = vrot.slane %v3379, 4
        %v3382 = vrot.slane %v2841, 5
        %v3383 = vsel %vm2074, %v3381, %v3382
        %v3384 = vrot.slane %v3242, 5
        %v3385 = vrot.slane %v3384, 4
        %v3386 = vrot.slane %v2824, 5
        %v3387 = vsel %vm2074, %v3385, %v3386
        %v3388 = vrot.slane %v3386, 4
        %v3389 = vrot.slane %v2842, 5
        %v3390 = vsel %vm2074, %v3388, %v3389
        %v3391 = vrot.slane %v3243, 5
        %v3392 = vrot.slane %v3391, 4
        %v3393 = vrot.slane %v2826, 5
        %v3394 = vsel %vm2074, %v3392, %v3393
        %v3395 = vrot.slane %v3393, 4
        %v3396 = vrot.slane %v2843, 5
        %v3397 = vsel %vm2074, %v3395, %v3396
        %v3398 = vrot.slane %v3244, 5
        %v3399 = vrot.slane %v3398, 4
        %v3400 = vrot.slane %v2828, 5
        %v3401 = vsel %vm2074, %v3399, %v3400
        %v3402 = vrot.slane %v3400, 4
        %v3403 = vrot.slane %v2844, 5
        %v3404 = vsel %vm2074, %v3402, %v3403
        %v3421 = vunpack.c.l.b16 %v1573
        %v3422 = vunpack.c.l.b16 %v1574
        %v3423 = vunpack.c.l.b16 %v1575
        %v3424 = vunpack.c.l.b16 %v1576
        %v3425 = vunpack.c.l.b16 %v1577
        %v3426 = vunpack.c.l.b16 %v1578
        %v3427 = vunpack.c.l.b16 %v1579
        %v3428 = vunpack.c.l.b16 %v1580
        %v3429 = vunpack.c.l.b16 %v1581
        %v3430 = vunpack.c.l.b16 %v1582
        %v3431 = vunpack.c.l.b16 %v1583
        %v3432 = vunpack.c.l.b16 %v1584
        %v3433 = vunpack.c.l.b16 %v1585
        %v3434 = vunpack.c.l.b16 %v1586
        %v3435 = vunpack.c.l.b16 %v1587
        %v3436 = vunpack.c.l.b16 %v1588
        %v3437 = vunpack.c.l.b16 %v1589
        %v3438 = vunpack.c.l.b16 %v1590
        %v3439 = vunpack.c.l.b16 %v1591
        %v3440 = vunpack.c.l.b16 %v1592
        %v3441 = vunpack.c.l.b16 %v1593
        %v3442 = vunpack.c.l.b16 %v1594
        %v3443 = vunpack.c.l.b16 %v1595
        %v3444 = vunpack.c.l.b16 %v1596
        %v3445 = vunpack.c.l.b16 %v1597
        %v3446 = vunpack.c.l.b16 %v1598
        %v3447 = vunpack.c.l.b16 %v1599
        %v3448 = vunpack.c.l.b16 %v1600
        %v3449 = vunpack.c.l.b16 %v1601
        %v3450 = vunpack.c.l.b16 %v1602
        %v3451 = vunpack.c.l.b16 %v1603
        %v3452 = vunpack.c.l.b16 %v1604
        %v3453 = vpack.c.b16 %v3422, %v3421
        %v3454 = vpack.c.b16 %v3424, %v3423
        %v3455 = vpack.c.b16 %v3426, %v3425
        %v3456 = vpack.c.b16 %v3428, %v3427
        %v3457 = vpack.c.b16 %v3430, %v3429
        %v3458 = vpack.c.b16 %v3432, %v3431
        %v3459 = vpack.c.b16 %v3434, %v3433
        %v3460 = vpack.c.b16 %v3436, %v3435
        %v3461 = vpack.c.b16 %v3438, %v3437
        %v3462 = vpack.c.b16 %v3440, %v3439
        %v3463 = vpack.c.b16 %v3442, %v3441
        %v3464 = vpack.c.b16 %v3444, %v3443
        %v3465 = vpack.c.b16 %v3446, %v3445
        %v3466 = vpack.c.b16 %v3448, %v3447
        %v3467 = vpack.c.b16 %v3450, %v3449
        %v3468 = vpack.c.b16 %v3452, %v3451
        %v3469 = vunpack.c.l.b16 %v1637
        %v3470 = vunpack.c.l.b16 %v1647
        %v3471 = vunpack.c.l.b16 %v1661
        %v3472 = vunpack.c.l.b16 %v1671
        %v3473 = vunpack.c.l.b16 %v1685
        %v3474 = vunpack.c.l.b16 %v1695
        %v3475 = vunpack.c.l.b16 %v1709
        %v3476 = vunpack.c.l.b16 %v1719
        %v3477 = vunpack.c.l.b16 %v1733
        %v3478 = vunpack.c.l.b16 %v1743
        %v3479 = vunpack.c.l.b16 %v1757
        %v3480 = vunpack.c.l.b16 %v1767
        %v3481 = vunpack.c.l.b16 %v1781
        %v3482 = vunpack.c.l.b16 %v1791
        %v3483 = vunpack.c.l.b16 %v1805
        %v3484 = vunpack.c.l.b16 %v1815
        %v3485 = vunpack.c.l.b16 %v1829
        %v3486 = vunpack.c.l.b16 %v1839
        %v3487 = vunpack.c.l.b16 %v1853
        %v3488 = vunpack.c.l.b16 %v1863
        %v3489 = vunpack.c.l.b16 %v1877
        %v3490 = vunpack.c.l.b16 %v1887
        %v3491 = vunpack.c.l.b16 %v1901
        %v3492 = vunpack.c.l.b16 %v1911
        %v3493 = vunpack.c.l.b16 %v1925
        %v3494 = vunpack.c.l.b16 %v1935
        %v3495 = vunpack.c.l.b16 %v1949
        %v3496 = vunpack.c.l.b16 %v1959
        %v3497 = vunpack.c.l.b16 %v1973
        %v3498 = vunpack.c.l.b16 %v1983
        %v3499 = vunpack.c.l.b16 %v1997
        %v3500 = vunpack.c.l.b16 %v2007
        %v3501 = vpack.c.b16 %v3470, %v3469
        %v3502 = vpack.c.b16 %v3472, %v3471
        %v3503 = vpack.c.b16 %v3474, %v3473
        %v3504 = vpack.c.b16 %v3476, %v3475
        %v3505 = vpack.c.b16 %v3478, %v3477
        %v3506 = vpack.c.b16 %v3480, %v3479
        %v3507 = vpack.c.b16 %v3482, %v3481
        %v3508 = vpack.c.b16 %v3484, %v3483
        %v3509 = vpack.c.b16 %v3486, %v3485
        %v3510 = vpack.c.b16 %v3488, %v3487
        %v3511 = vpack.c.b16 %v3490, %v3489
        %v3512 = vpack.c.b16 %v3492, %v3491
        %v3513 = vpack.c.b16 %v3494, %v3493
        %v3514 = vpack.c.b16 %v3496, %v3495
        %v3515 = vpack.c.b16 %v3498, %v3497
        %v3516 = vpack.c.b16 %v3500, %v3499
        %3517 = vrot.lane.b32.xlu0 %v3501, 16
        %v3518 = vpop.permute.xlu0 %3517
        %3519 = vrot.lane.b32.xlu0 %v3502, 16
        %v3520 = vpop.permute.xlu0 %3519
        %3521 = vrot.lane.b32.xlu0 %v3503, 16
        %v3522 = vpop.permute.xlu0 %3521
        %3523 = vrot.lane.b32.xlu0 %v3504, 16
        %v3524 = vpop.permute.xlu0 %3523
        %3525 = vrot.lane.b32.xlu0 %v3505, 16
        %v3526 = vpop.permute.xlu0 %3525
        %3527 = vrot.lane.b32.xlu0 %v3506, 16
        %v3528 = vpop.permute.xlu0 %3527
        %3529 = vrot.lane.b32.xlu0 %v3507, 16
        %v3530 = vpop.permute.xlu0 %3529
        %3531 = vrot.lane.b32.xlu0 %v3508, 16
        %v3532 = vpop.permute.xlu0 %3531
        %3533 = vrot.lane.b32.xlu0 %v3509, 16
        %v3534 = vpop.permute.xlu0 %3533
        %3535 = vrot.lane.b32.xlu0 %v3510, 16
        %v3536 = vpop.permute.xlu0 %3535
        %3537 = vrot.lane.b32.xlu0 %v3511, 16
        %v3538 = vpop.permute.xlu0 %3537
        %3539 = vrot.lane.b32.xlu0 %v3512, 16
        %v3540 = vpop.permute.xlu0 %3539
        %3541 = vrot.lane.b32.xlu0 %v3513, 16
        %v3542 = vpop.permute.xlu0 %3541
        %3543 = vrot.lane.b32.xlu0 %v3514, 16
        %v3544 = vpop.permute.xlu0 %3543
        %3545 = vrot.lane.b32.xlu0 %v3515, 16
        %v3546 = vpop.permute.xlu0 %3545
        %3547 = vrot.lane.b32.xlu0 %v3516, 16
        %v3548 = vpop.permute.xlu0 %3547
        %v3549 = vunpack.c.l.b16 %v2078
        %v3550 = vunpack.c.l.b16 %v2081
        %v3551 = vunpack.c.l.b16 %v2085
        %v3552 = vunpack.c.l.b16 %v2088
        %v3553 = vunpack.c.l.b16 %v2092
        %v3554 = vunpack.c.l.b16 %v2095
        %v3555 = vunpack.c.l.b16 %v2099
        %v3556 = vunpack.c.l.b16 %v2102
        %v3557 = vunpack.c.l.b16 %v2106
        %v3558 = vunpack.c.l.b16 %v2109
        %v3559 = vunpack.c.l.b16 %v2113
        %v3560 = vunpack.c.l.b16 %v2116
        %v3561 = vunpack.c.l.b16 %v2120
        %v3562 = vunpack.c.l.b16 %v2123
        %v3563 = vunpack.c.l.b16 %v2127
        %v3564 = vunpack.c.l.b16 %v2130
        %v3565 = vunpack.c.l.b16 %v2134
        %v3566 = vunpack.c.l.b16 %v2137
        %v3567 = vunpack.c.l.b16 %v2141
        %v3568 = vunpack.c.l.b16 %v2144
        %v3569 = vunpack.c.l.b16 %v2148
        %v3570 = vunpack.c.l.b16 %v2151
        %v3571 = vunpack.c.l.b16 %v2155
        %v3572 = vunpack.c.l.b16 %v2158
        %v3573 = vunpack.c.l.b16 %v2162
        %v3574 = vunpack.c.l.b16 %v2165
        %v3575 = vunpack.c.l.b16 %v2169
        %v3576 = vunpack.c.l.b16 %v2172
        %v3577 = vunpack.c.l.b16 %v2176
        %v3578 = vunpack.c.l.b16 %v2179
        %v3579 = vunpack.c.l.b16 %v2183
        %v3580 = vunpack.c.l.b16 %v2186
        %v3581 = vpack.c.b16 %v3550, %v3549
        %v3582 = vpack.c.b16 %v3552, %v3551
        %v3583 = vpack.c.b16 %v3554, %v3553
        %v3584 = vpack.c.b16 %v3556, %v3555
        %v3585 = vpack.c.b16 %v3558, %v3557
        %v3586 = vpack.c.b16 %v3560, %v3559
        %v3587 = vpack.c.b16 %v3562, %v3561
        %v3588 = vpack.c.b16 %v3564, %v3563
        %v3589 = vpack.c.b16 %v3566, %v3565
        %v3590 = vpack.c.b16 %v3568, %v3567
        %v3591 = vpack.c.b16 %v3570, %v3569
        %v3592 = vpack.c.b16 %v3572, %v3571
        %v3593 = vpack.c.b16 %v3574, %v3573
        %v3594 = vpack.c.b16 %v3576, %v3575
        %v3595 = vpack.c.b16 %v3578, %v3577
        %v3596 = vpack.c.b16 %v3580, %v3579
        %3597 = vrot.lane.b32.xlu0 %v3581, 32
        %v3598 = vpop.permute.xlu0 %3597
        %3599 = vrot.lane.b32.xlu0 %v3582, 32
        %v3600 = vpop.permute.xlu0 %3599
        %3601 = vrot.lane.b32.xlu0 %v3583, 32
        %v3602 = vpop.permute.xlu0 %3601
        %3603 = vrot.lane.b32.xlu0 %v3584, 32
        %v3604 = vpop.permute.xlu0 %3603
        %3605 = vrot.lane.b32.xlu0 %v3585, 32
        %v3606 = vpop.permute.xlu0 %3605
        %3607 = vrot.lane.b32.xlu0 %v3586, 32
        %v3608 = vpop.permute.xlu0 %3607
        %3609 = vrot.lane.b32.xlu0 %v3587, 32
        %v3610 = vpop.permute.xlu0 %3609
        %3611 = vrot.lane.b32.xlu0 %v3588, 32
        %v3612 = vpop.permute.xlu0 %3611
        %3613 = vrot.lane.b32.xlu0 %v3589, 32
        %v3614 = vpop.permute.xlu0 %3613
        %3615 = vrot.lane.b32.xlu0 %v3590, 32
        %v3616 = vpop.permute.xlu0 %3615
        %3617 = vrot.lane.b32.xlu0 %v3591, 32
        %v3618 = vpop.permute.xlu0 %3617
        %3619 = vrot.lane.b32.xlu0 %v3592, 32
        %v3620 = vpop.permute.xlu0 %3619
        %3621 = vrot.lane.b32.xlu0 %v3593, 32
        %v3622 = vpop.permute.xlu0 %3621
        %3623 = vrot.lane.b32.xlu0 %v3594, 32
        %v3624 = vpop.permute.xlu0 %3623
        %3625 = vrot.lane.b32.xlu0 %v3595, 32
        %v3626 = vpop.permute.xlu0 %3625
        %3627 = vrot.lane.b32.xlu0 %v3596, 32
        %v3628 = vpop.permute.xlu0 %3627
        %v3645 = vunpack.c.l.b16 %v2188
        %v3646 = vunpack.c.l.b16 %v2189
        %v3647 = vunpack.c.l.b16 %v2190
        %v3648 = vunpack.c.l.b16 %v2191
        %v3649 = vunpack.c.l.b16 %v2192
        %v3650 = vunpack.c.l.b16 %v2193
        %v3651 = vunpack.c.l.b16 %v2194
        %v3652 = vunpack.c.l.b16 %v2195
        %v3653 = vunpack.c.l.b16 %v2196
        %v3654 = vunpack.c.l.b16 %v2197
        %v3655 = vunpack.c.l.b16 %v2198
        %v3656 = vunpack.c.l.b16 %v2199
        %v3657 = vunpack.c.l.b16 %v2200
        %v3658 = vunpack.c.l.b16 %v2201
        %v3659 = vunpack.c.l.b16 %v2202
        %v3660 = vunpack.c.l.b16 %v2203
        %v3661 = vunpack.c.l.b16 %v2204
        %v3662 = vunpack.c.l.b16 %v2205
        %v3663 = vunpack.c.l.b16 %v2206
        %v3664 = vunpack.c.l.b16 %v2207
        %v3665 = vunpack.c.l.b16 %v2208
        %v3666 = vunpack.c.l.b16 %v2209
        %v3667 = vunpack.c.l.b16 %v2210
        %v3668 = vunpack.c.l.b16 %v2211
        %v3669 = vunpack.c.l.b16 %v2212
        %v3670 = vunpack.c.l.b16 %v2213
        %v3671 = vunpack.c.l.b16 %v2214
        %v3672 = vunpack.c.l.b16 %v2215
        %v3673 = vunpack.c.l.b16 %v2216
        %v3674 = vunpack.c.l.b16 %v2217
        %v3675 = vunpack.c.l.b16 %v2218
        %v3676 = vunpack.c.l.b16 %v2219
        %v3677 = vpack.c.b16 %v3646, %v3645
        %v3678 = vpack.c.b16 %v3648, %v3647
        %v3679 = vpack.c.b16 %v3650, %v3649
        %v3680 = vpack.c.b16 %v3652, %v3651
        %v3681 = vpack.c.b16 %v3654, %v3653
        %v3682 = vpack.c.b16 %v3656, %v3655
        %v3683 = vpack.c.b16 %v3658, %v3657
        %v3684 = vpack.c.b16 %v3660, %v3659
        %v3685 = vpack.c.b16 %v3662, %v3661
        %v3686 = vpack.c.b16 %v3664, %v3663
        %v3687 = vpack.c.b16 %v3666, %v3665
        %v3688 = vpack.c.b16 %v3668, %v3667
        %v3689 = vpack.c.b16 %v3670, %v3669
        %v3690 = vpack.c.b16 %v3672, %v3671
        %v3691 = vpack.c.b16 %v3674, %v3673
        %v3692 = vpack.c.b16 %v3676, %v3675
        %3693 = vrot.lane.b32.xlu0 %v3677, 48
        %v3694 = vpop.permute.xlu0 %3693
        %3695 = vrot.lane.b32.xlu0 %v3678, 48
        %v3696 = vpop.permute.xlu0 %3695
        %3697 = vrot.lane.b32.xlu0 %v3679, 48
        %v3698 = vpop.permute.xlu0 %3697
        %3699 = vrot.lane.b32.xlu0 %v3680, 48
        %v3700 = vpop.permute.xlu0 %3699
        %3701 = vrot.lane.b32.xlu0 %v3681, 48
        %v3702 = vpop.permute.xlu0 %3701
        %3703 = vrot.lane.b32.xlu0 %v3682, 48
        %v3704 = vpop.permute.xlu0 %3703
        %3705 = vrot.lane.b32.xlu0 %v3683, 48
        %v3706 = vpop.permute.xlu0 %3705
        %3707 = vrot.lane.b32.xlu0 %v3684, 48
        %v3708 = vpop.permute.xlu0 %3707
        %3709 = vrot.lane.b32.xlu0 %v3685, 48
        %v3710 = vpop.permute.xlu0 %3709
        %3711 = vrot.lane.b32.xlu0 %v3686, 48
        %v3712 = vpop.permute.xlu0 %3711
        %3713 = vrot.lane.b32.xlu0 %v3687, 48
        %v3714 = vpop.permute.xlu0 %3713
        %3715 = vrot.lane.b32.xlu0 %v3688, 48
        %v3716 = vpop.permute.xlu0 %3715
        %3717 = vrot.lane.b32.xlu0 %v3689, 48
        %v3718 = vpop.permute.xlu0 %3717
        %3719 = vrot.lane.b32.xlu0 %v3690, 48
        %v3720 = vpop.permute.xlu0 %3719
        %3721 = vrot.lane.b32.xlu0 %v3691, 48
        %v3722 = vpop.permute.xlu0 %3721
        %3723 = vrot.lane.b32.xlu0 %v3692, 48
        %v3724 = vpop.permute.xlu0 %3723
        %v3725 = vunpack.c.l.b16 %v2249
        %v3726 = vunpack.c.l.b16 %v2259
        %v3727 = vunpack.c.l.b16 %v2273
        %v3728 = vunpack.c.l.b16 %v2283
        %v3729 = vunpack.c.l.b16 %v2297
        %v3730 = vunpack.c.l.b16 %v2307
        %v3731 = vunpack.c.l.b16 %v2321
        %v3732 = vunpack.c.l.b16 %v2331
        %v3733 = vunpack.c.l.b16 %v2345
        %v3734 = vunpack.c.l.b16 %v2355
        %v3735 = vunpack.c.l.b16 %v2369
        %v3736 = vunpack.c.l.b16 %v2379
        %v3737 = vunpack.c.l.b16 %v2393
        %v3738 = vunpack.c.l.b16 %v2403
        %v3739 = vunpack.c.l.b16 %v2417
        %v3740 = vunpack.c.l.b16 %v2427
        %v3741 = vunpack.c.l.b16 %v2441
        %v3742 = vunpack.c.l.b16 %v2451
        %v3743 = vunpack.c.l.b16 %v2465
        %v3744 = vunpack.c.l.b16 %v2475
        %v3745 = vunpack.c.l.b16 %v2489
        %v3746 = vunpack.c.l.b16 %v2499
        %v3747 = vunpack.c.l.b16 %v2513
        %v3748 = vunpack.c.l.b16 %v2523
        %v3749 = vunpack.c.l.b16 %v2537
        %v3750 = vunpack.c.l.b16 %v2547
        %v3751 = vunpack.c.l.b16 %v2561
        %v3752 = vunpack.c.l.b16 %v2571
        %v3753 = vunpack.c.l.b16 %v2585
        %v3754 = vunpack.c.l.b16 %v2595
        %v3755 = vunpack.c.l.b16 %v2609
        %v3756 = vunpack.c.l.b16 %v2619
        %v3757 = vpack.c.b16 %v3726, %v3725
        %v3758 = vpack.c.b16 %v3728, %v3727
        %v3759 = vpack.c.b16 %v3730, %v3729
        %v3760 = vpack.c.b16 %v3732, %v3731
        %v3761 = vpack.c.b16 %v3734, %v3733
        %v3762 = vpack.c.b16 %v3736, %v3735
        %v3763 = vpack.c.b16 %v3738, %v3737
        %v3764 = vpack.c.b16 %v3740, %v3739
        %v3765 = vpack.c.b16 %v3742, %v3741
        %v3766 = vpack.c.b16 %v3744, %v3743
        %v3767 = vpack.c.b16 %v3746, %v3745
        %v3768 = vpack.c.b16 %v3748, %v3747
        %v3769 = vpack.c.b16 %v3750, %v3749
        %v3770 = vpack.c.b16 %v3752, %v3751
        %v3771 = vpack.c.b16 %v3754, %v3753
        %v3772 = vpack.c.b16 %v3756, %v3755
        %3773 = vrot.lane.b32.xlu0 %v3757, 64
        %v3774 = vpop.permute.xlu0 %3773
        %3775 = vrot.lane.b32.xlu0 %v3758, 64
        %v3776 = vpop.permute.xlu0 %3775
        %3777 = vrot.lane.b32.xlu0 %v3759, 64
        %v3778 = vpop.permute.xlu0 %3777
        %3779 = vrot.lane.b32.xlu0 %v3760, 64
        %v3780 = vpop.permute.xlu0 %3779
        %3781 = vrot.lane.b32.xlu0 %v3761, 64
        %v3782 = vpop.permute.xlu0 %3781
        %3783 = vrot.lane.b32.xlu0 %v3762, 64
        %v3784 = vpop.permute.xlu0 %3783
        %3785 = vrot.lane.b32.xlu0 %v3763, 64
        %v3786 = vpop.permute.xlu0 %3785
        %3787 = vrot.lane.b32.xlu0 %v3764, 64
        %v3788 = vpop.permute.xlu0 %3787
        %3789 = vrot.lane.b32.xlu0 %v3765, 64
        %v3790 = vpop.permute.xlu0 %3789
        %3791 = vrot.lane.b32.xlu0 %v3766, 64
        %v3792 = vpop.permute.xlu0 %3791
        %3793 = vrot.lane.b32.xlu0 %v3767, 64
        %v3794 = vpop.permute.xlu0 %3793
        %3795 = vrot.lane.b32.xlu0 %v3768, 64
        %v3796 = vpop.permute.xlu0 %3795
        %3797 = vrot.lane.b32.xlu0 %v3769, 64
        %v3798 = vpop.permute.xlu0 %3797
        %3799 = vrot.lane.b32.xlu0 %v3770, 64
        %v3800 = vpop.permute.xlu0 %3799
        %3801 = vrot.lane.b32.xlu0 %v3771, 64
        %v3802 = vpop.permute.xlu0 %3801
        %3803 = vrot.lane.b32.xlu0 %v3772, 64
        %v3804 = vpop.permute.xlu0 %3803
        %v3805 = vunpack.c.l.b16 %v2687
        %v3806 = vunpack.c.l.b16 %v2690
        %v3807 = vunpack.c.l.b16 %v2694
        %v3808 = vunpack.c.l.b16 %v2697
        %v3809 = vunpack.c.l.b16 %v2701
        %v3810 = vunpack.c.l.b16 %v2704
        %v3811 = vunpack.c.l.b16 %v2708
        %v3812 = vunpack.c.l.b16 %v2711
        %v3813 = vunpack.c.l.b16 %v2715
        %v3814 = vunpack.c.l.b16 %v2718
        %v3815 = vunpack.c.l.b16 %v2722
        %v3816 = vunpack.c.l.b16 %v2725
        %v3817 = vunpack.c.l.b16 %v2729
        %v3818 = vunpack.c.l.b16 %v2732
        %v3819 = vunpack.c.l.b16 %v2736
        %v3820 = vunpack.c.l.b16 %v2739
        %v3821 = vunpack.c.l.b16 %v2743
        %v3822 = vunpack.c.l.b16 %v2746
        %v3823 = vunpack.c.l.b16 %v2750
        %v3824 = vunpack.c.l.b16 %v2753
        %v3825 = vunpack.c.l.b16 %v2757
        %v3826 = vunpack.c.l.b16 %v2760
        %v3827 = vunpack.c.l.b16 %v2764
        %v3828 = vunpack.c.l.b16 %v2767
        %v3829 = vunpack.c.l.b16 %v2771
        %v3830 = vunpack.c.l.b16 %v2774
        %v3831 = vunpack.c.l.b16 %v2778
        %v3832 = vunpack.c.l.b16 %v2781
        %v3833 = vunpack.c.l.b16 %v2785
        %v3834 = vunpack.c.l.b16 %v2788
        %v3835 = vunpack.c.l.b16 %v2792
        %v3836 = vunpack.c.l.b16 %v2795
        %v3837 = vpack.c.b16 %v3806, %v3805
        %v3838 = vpack.c.b16 %v3808, %v3807
        %v3839 = vpack.c.b16 %v3810, %v3809
        %v3840 = vpack.c.b16 %v3812, %v3811
        %v3841 = vpack.c.b16 %v3814, %v3813
        %v3842 = vpack.c.b16 %v3816, %v3815
        %v3843 = vpack.c.b16 %v3818, %v3817
        %v3844 = vpack.c.b16 %v3820, %v3819
        %v3845 = vpack.c.b16 %v3822, %v3821
        %v3846 = vpack.c.b16 %v3824, %v3823
        %v3847 = vpack.c.b16 %v3826, %v3825
        %v3848 = vpack.c.b16 %v3828, %v3827
        %v3849 = vpack.c.b16 %v3830, %v3829
        %v3850 = vpack.c.b16 %v3832, %v3831
        %v3851 = vpack.c.b16 %v3834, %v3833
        %v3852 = vpack.c.b16 %v3836, %v3835
        %3853 = vrot.lane.b32.xlu0 %v3837, 80
        %v3854 = vpop.permute.xlu0 %3853
        %3855 = vrot.lane.b32.xlu0 %v3838, 80
        %v3856 = vpop.permute.xlu0 %3855
        %3857 = vrot.lane.b32.xlu0 %v3839, 80
        %v3858 = vpop.permute.xlu0 %3857
        %3859 = vrot.lane.b32.xlu0 %v3840, 80
        %v3860 = vpop.permute.xlu0 %3859
        %3861 = vrot.lane.b32.xlu0 %v3841, 80
        %v3862 = vpop.permute.xlu0 %3861
        %3863 = vrot.lane.b32.xlu0 %v3842, 80
        %v3864 = vpop.permute.xlu0 %3863
        %3865 = vrot.lane.b32.xlu0 %v3843, 80
        %v3866 = vpop.permute.xlu0 %3865
        %3867 = vrot.lane.b32.xlu0 %v3844, 80
        %v3868 = vpop.permute.xlu0 %3867
        %3869 = vrot.lane.b32.xlu0 %v3845, 80
        %v3870 = vpop.permute.xlu0 %3869
        %3871 = vrot.lane.b32.xlu0 %v3846, 80
        %v3872 = vpop.permute.xlu0 %3871
        %3873 = vrot.lane.b32.xlu0 %v3847, 80
        %v3874 = vpop.permute.xlu0 %3873
        %3875 = vrot.lane.b32.xlu0 %v3848, 80
        %v3876 = vpop.permute.xlu0 %3875
        %3877 = vrot.lane.b32.xlu0 %v3849, 80
        %v3878 = vpop.permute.xlu0 %3877
        %3879 = vrot.lane.b32.xlu0 %v3850, 80
        %v3880 = vpop.permute.xlu0 %3879
        %3881 = vrot.lane.b32.xlu0 %v3851, 80
        %v3882 = vpop.permute.xlu0 %3881
        %3883 = vrot.lane.b32.xlu0 %v3852, 80
        %v3884 = vpop.permute.xlu0 %3883
        %v3901 = vunpack.c.l.b16 %v2797
        %v3902 = vunpack.c.l.b16 %v2798
        %v3903 = vunpack.c.l.b16 %v2799
        %v3904 = vunpack.c.l.b16 %v2800
        %v3905 = vunpack.c.l.b16 %v2801
        %v3906 = vunpack.c.l.b16 %v2802
        %v3907 = vunpack.c.l.b16 %v2803
        %v3908 = vunpack.c.l.b16 %v2804
        %v3909 = vunpack.c.l.b16 %v2805
        %v3910 = vunpack.c.l.b16 %v2806
        %v3911 = vunpack.c.l.b16 %v2807
        %v3912 = vunpack.c.l.b16 %v2808
        %v3913 = vunpack.c.l.b16 %v2809
        %v3914 = vunpack.c.l.b16 %v2810
        %v3915 = vunpack.c.l.b16 %v2811
        %v3916 = vunpack.c.l.b16 %v2812
        %v3917 = vunpack.c.l.b16 %v2813
        %v3918 = vunpack.c.l.b16 %v2814
        %v3919 = vunpack.c.l.b16 %v2815
        %v3920 = vunpack.c.l.b16 %v2816
        %v3921 = vunpack.c.l.b16 %v2817
        %v3922 = vunpack.c.l.b16 %v2818
        %v3923 = vunpack.c.l.b16 %v2819
        %v3924 = vunpack.c.l.b16 %v2820
        %v3925 = vunpack.c.l.b16 %v2821
        %v3926 = vunpack.c.l.b16 %v2822
        %v3927 = vunpack.c.l.b16 %v2823
        %v3928 = vunpack.c.l.b16 %v2824
        %v3929 = vunpack.c.l.b16 %v2825
        %v3930 = vunpack.c.l.b16 %v2826
        %v3931 = vunpack.c.l.b16 %v2827
        %v3932 = vunpack.c.l.b16 %v2828
        %v3933 = vpack.c.b16 %v3902, %v3901
        %v3934 = vpack.c.b16 %v3904, %v3903
        %v3935 = vpack.c.b16 %v3906, %v3905
        %v3936 = vpack.c.b16 %v3908, %v3907
        %v3937 = vpack.c.b16 %v3910, %v3909
        %v3938 = vpack.c.b16 %v3912, %v3911
        %v3939 = vpack.c.b16 %v3914, %v3913
        %v3940 = vpack.c.b16 %v3916, %v3915
        %v3941 = vpack.c.b16 %v3918, %v3917
        %v3942 = vpack.c.b16 %v3920, %v3919
        %v3943 = vpack.c.b16 %v3922, %v3921
        %v3944 = vpack.c.b16 %v3924, %v3923
        %v3945 = vpack.c.b16 %v3926, %v3925
        %v3946 = vpack.c.b16 %v3928, %v3927
        %v3947 = vpack.c.b16 %v3930, %v3929
        %v3948 = vpack.c.b16 %v3932, %v3931
        %3949 = vrot.lane.b32.xlu0 %v3933, 96
        %v3950 = vpop.permute.xlu0 %3949
        %3951 = vrot.lane.b32.xlu0 %v3934, 96
        %v3952 = vpop.permute.xlu0 %3951
        %3953 = vrot.lane.b32.xlu0 %v3935, 96
        %v3954 = vpop.permute.xlu0 %3953
        %3955 = vrot.lane.b32.xlu0 %v3936, 96
        %v3956 = vpop.permute.xlu0 %3955
        %3957 = vrot.lane.b32.xlu0 %v3937, 96
        %v3958 = vpop.permute.xlu0 %3957
        %3959 = vrot.lane.b32.xlu0 %v3938, 96
        %v3960 = vpop.permute.xlu0 %3959
        %3961 = vrot.lane.b32.xlu0 %v3939, 96
        %v3962 = vpop.permute.xlu0 %3961
        %3963 = vrot.lane.b32.xlu0 %v3940, 96
        %v3964 = vpop.permute.xlu0 %3963
        %3965 = vrot.lane.b32.xlu0 %v3941, 96
        %v3966 = vpop.permute.xlu0 %3965
        %3967 = vrot.lane.b32.xlu0 %v3942, 96
        %v3968 = vpop.permute.xlu0 %3967
        %3969 = vrot.lane.b32.xlu0 %v3943, 96
        %v3970 = vpop.permute.xlu0 %3969
        %3971 = vrot.lane.b32.xlu0 %v3944, 96
        %v3972 = vpop.permute.xlu0 %3971
        %3973 = vrot.lane.b32.xlu0 %v3945, 96
        %v3974 = vpop.permute.xlu0 %3973
        %3975 = vrot.lane.b32.xlu0 %v3946, 96
        %v3976 = vpop.permute.xlu0 %3975
        %3977 = vrot.lane.b32.xlu0 %v3947, 96
        %v3978 = vpop.permute.xlu0 %3977
        %3979 = vrot.lane.b32.xlu0 %v3948, 96
        %v3980 = vpop.permute.xlu0 %3979
        %v3981 = vunpack.c.l.b16 %v2858
        %v3982 = vunpack.c.l.b16 %v2868
        %v3983 = vunpack.c.l.b16 %v2882
        %v3984 = vunpack.c.l.b16 %v2892
        %v3985 = vunpack.c.l.b16 %v2906
        %v3986 = vunpack.c.l.b16 %v2916
        %v3987 = vunpack.c.l.b16 %v2930
        %v3988 = vunpack.c.l.b16 %v2940
        %v3989 = vunpack.c.l.b16 %v2954
        %v3990 = vunpack.c.l.b16 %v2964
        %v3991 = vunpack.c.l.b16 %v2978
        %v3992 = vunpack.c.l.b16 %v2988
        %v3993 = vunpack.c.l.b16 %v3002
        %v3994 = vunpack.c.l.b16 %v3012
        %v3995 = vunpack.c.l.b16 %v3026
        %v3996 = vunpack.c.l.b16 %v3036
        %v3997 = vunpack.c.l.b16 %v3050
        %v3998 = vunpack.c.l.b16 %v3060
        %v3999 = vunpack.c.l.b16 %v3074
        %v4000 = vunpack.c.l.b16 %v3084
        %v4001 = vunpack.c.l.b16 %v3098
        %v4002 = vunpack.c.l.b16 %v3108
        %v4003 = vunpack.c.l.b16 %v3122
        %v4004 = vunpack.c.l.b16 %v3132
        %v4005 = vunpack.c.l.b16 %v3146
        %v4006 = vunpack.c.l.b16 %v3156
        %v4007 = vunpack.c.l.b16 %v3170
        %v4008 = vunpack.c.l.b16 %v3180
        %v4009 = vunpack.c.l.b16 %v3194
        %v4010 = vunpack.c.l.b16 %v3204
        %v4011 = vunpack.c.l.b16 %v3218
        %v4012 = vunpack.c.l.b16 %v3228
        %v4013 = vpack.c.b16 %v3982, %v3981
        %v4014 = vpack.c.b16 %v3984, %v3983
        %v4015 = vpack.c.b16 %v3986, %v3985
        %v4016 = vpack.c.b16 %v3988, %v3987
        %v4017 = vpack.c.b16 %v3990, %v3989
        %v4018 = vpack.c.b16 %v3992, %v3991
        %v4019 = vpack.c.b16 %v3994, %v3993
        %v4020 = vpack.c.b16 %v3996, %v3995
        %v4021 = vpack.c.b16 %v3998, %v3997
        %v4022 = vpack.c.b16 %v4000, %v3999
        %v4023 = vpack.c.b16 %v4002, %v4001
        %v4024 = vpack.c.b16 %v4004, %v4003
        %v4025 = vpack.c.b16 %v4006, %v4005
        %v4026 = vpack.c.b16 %v4008, %v4007
        %v4027 = vpack.c.b16 %v4010, %v4009
        %v4028 = vpack.c.b16 %v4012, %v4011
        %4029 = vrot.lane.b32.xlu0 %v4013, 112
        %v4030 = vpop.permute.xlu0 %4029
        %4031 = vrot.lane.b32.xlu0 %v4014, 112
        %v4032 = vpop.permute.xlu0 %4031
        %4033 = vrot.lane.b32.xlu0 %v4015, 112
        %v4034 = vpop.permute.xlu0 %4033
        %4035 = vrot.lane.b32.xlu0 %v4016, 112
        %v4036 = vpop.permute.xlu0 %4035
        %4037 = vrot.lane.b32.xlu0 %v4017, 112
        %v4038 = vpop.permute.xlu0 %4037
        %4039 = vrot.lane.b32.xlu0 %v4018, 112
        %v4040 = vpop.permute.xlu0 %4039
        %4041 = vrot.lane.b32.xlu0 %v4019, 112
        %v4042 = vpop.permute.xlu0 %4041
        %4043 = vrot.lane.b32.xlu0 %v4020, 112
        %v4044 = vpop.permute.xlu0 %4043
        %4045 = vrot.lane.b32.xlu0 %v4021, 112
        %v4046 = vpop.permute.xlu0 %4045
        %4047 = vrot.lane.b32.xlu0 %v4022, 112
        %v4048 = vpop.permute.xlu0 %4047
        %4049 = vrot.lane.b32.xlu0 %v4023, 112
        %v4050 = vpop.permute.xlu0 %4049
        %4051 = vrot.lane.b32.xlu0 %v4024, 112
        %v4052 = vpop.permute.xlu0 %4051
        %4053 = vrot.lane.b32.xlu0 %v4025, 112
        %v4054 = vpop.permute.xlu0 %4053
        %4055 = vrot.lane.b32.xlu0 %v4026, 112
        %v4056 = vpop.permute.xlu0 %4055
        %4057 = vrot.lane.b32.xlu0 %v4027, 112
        %v4058 = vpop.permute.xlu0 %4057
        %4059 = vrot.lane.b32.xlu0 %v4028, 112
        %v4060 = vpop.permute.xlu0 %4059
        %v4061 = vunpack.c.l.b16 %v3296
        %v4062 = vunpack.c.l.b16 %v3299
        %v4063 = vunpack.c.l.b16 %v3303
        %v4064 = vunpack.c.l.b16 %v3306
        %v4065 = vunpack.c.l.b16 %v3310
        %v4066 = vunpack.c.l.b16 %v3313
        %v4067 = vunpack.c.l.b16 %v3317
        %v4068 = vunpack.c.l.b16 %v3320
        %v4069 = vunpack.c.l.b16 %v3324
        %v4070 = vunpack.c.l.b16 %v3327
        %v4071 = vunpack.c.l.b16 %v3331
        %v4072 = vunpack.c.l.b16 %v3334
        %v4073 = vunpack.c.l.b16 %v3338
        %v4074 = vunpack.c.l.b16 %v3341
        %v4075 = vunpack.c.l.b16 %v3345
        %v4076 = vunpack.c.l.b16 %v3348
        %v4077 = vunpack.c.l.b16 %v3352
        %v4078 = vunpack.c.l.b16 %v3355
        %v4079 = vunpack.c.l.b16 %v3359
        %v4080 = vunpack.c.l.b16 %v3362
        %v4081 = vunpack.c.l.b16 %v3366
        %v4082 = vunpack.c.l.b16 %v3369
        %v4083 = vunpack.c.l.b16 %v3373
        %v4084 = vunpack.c.l.b16 %v3376
        %v4085 = vunpack.c.l.b16 %v3380
        %v4086 = vunpack.c.l.b16 %v3383
        %v4087 = vunpack.c.l.b16 %v3387
        %v4088 = vunpack.c.l.b16 %v3390
        %v4089 = vunpack.c.l.b16 %v3394
        %v4090 = vunpack.c.l.b16 %v3397
        %v4091 = vunpack.c.l.b16 %v3401
        %v4092 = vunpack.c.l.b16 %v3404
        %v4093 = vpack.c.b16 %v4062, %v4061
        %v4094 = vpack.c.b16 %v4064, %v4063
        %v4095 = vpack.c.b16 %v4066, %v4065
        %v4096 = vpack.c.b16 %v4068, %v4067
        %v4097 = vpack.c.b16 %v4070, %v4069
        %v4098 = vpack.c.b16 %v4072, %v4071
        %v4099 = vpack.c.b16 %v4074, %v4073
        %v4100 = vpack.c.b16 %v4076, %v4075
        %v4101 = vpack.c.b16 %v4078, %v4077
        %v4102 = vpack.c.b16 %v4080, %v4079
        %v4103 = vpack.c.b16 %v4082, %v4081
        %v4104 = vpack.c.b16 %v4084, %v4083
        %v4105 = vpack.c.b16 %v4086, %v4085
        %v4106 = vpack.c.b16 %v4088, %v4087
        %v4107 = vpack.c.b16 %v4090, %v4089
        %v4108 = vpack.c.b16 %v4092, %v4091
        %v4111 = vsel %vm1040, %v3453, %v3518
        %v4114 = vsel %vm1040, %v3454, %v3520
        %v4117 = vsel %vm1040, %v3455, %v3522
        %v4120 = vsel %vm1040, %v3456, %v3524
        %v4123 = vsel %vm1040, %v3457, %v3526
        %v4126 = vsel %vm1040, %v3458, %v3528
        %v4129 = vsel %vm1040, %v3459, %v3530
        %v4132 = vsel %vm1040, %v3460, %v3532
        %v4135 = vsel %vm1040, %v3461, %v3534
        %v4138 = vsel %vm1040, %v3462, %v3536
        %v4141 = vsel %vm1040, %v3463, %v3538
        %v4144 = vsel %vm1040, %v3464, %v3540
        %v4147 = vsel %vm1040, %v3465, %v3542
        %v4150 = vsel %vm1040, %v3466, %v3544
        %v4153 = vsel %vm1040, %v3467, %v3546
        %v4156 = vsel %vm1040, %v3468, %v3548
        %v4158 = vsel %vm1043, %v4111, %v3598
        %v4160 = vsel %vm1043, %v4114, %v3600
        %v4162 = vsel %vm1043, %v4117, %v3602
        %v4164 = vsel %vm1043, %v4120, %v3604
        %v4166 = vsel %vm1043, %v4123, %v3606
        %v4168 = vsel %vm1043, %v4126, %v3608
        %v4170 = vsel %vm1043, %v4129, %v3610
        %v4172 = vsel %vm1043, %v4132, %v3612
        %v4174 = vsel %vm1043, %v4135, %v3614
        %v4176 = vsel %vm1043, %v4138, %v3616
        %v4178 = vsel %vm1043, %v4141, %v3618
        %v4180 = vsel %vm1043, %v4144, %v3620
        %v4182 = vsel %vm1043, %v4147, %v3622
        %v4184 = vsel %vm1043, %v4150, %v3624
        %v4186 = vsel %vm1043, %v4153, %v3626
        %v4188 = vsel %vm1043, %v4156, %v3628
        %v4190 = vsel %vm1046, %v4158, %v3694
        %v4192 = vsel %vm1046, %v4160, %v3696
        %v4194 = vsel %vm1046, %v4162, %v3698
        %v4196 = vsel %vm1046, %v4164, %v3700
        %v4198 = vsel %vm1046, %v4166, %v3702
        %v4200 = vsel %vm1046, %v4168, %v3704
        %v4202 = vsel %vm1046, %v4170, %v3706
        %v4204 = vsel %vm1046, %v4172, %v3708
        %v4206 = vsel %vm1046, %v4174, %v3710
        %v4208 = vsel %vm1046, %v4176, %v3712
        %v4210 = vsel %vm1046, %v4178, %v3714
        %v4212 = vsel %vm1046, %v4180, %v3716
        %v4214 = vsel %vm1046, %v4182, %v3718
        %v4216 = vsel %vm1046, %v4184, %v3720
        %v4218 = vsel %vm1046, %v4186, %v3722
        %v4220 = vsel %vm1046, %v4188, %v3724
        %v4222 = vsel %vm1049, %v4190, %v3774
        %v4224 = vsel %vm1049, %v4192, %v3776
        %v4226 = vsel %vm1049, %v4194, %v3778
        %v4228 = vsel %vm1049, %v4196, %v3780
        %v4230 = vsel %vm1049, %v4198, %v3782
        %v4232 = vsel %vm1049, %v4200, %v3784
        %v4234 = vsel %vm1049, %v4202, %v3786
        %v4236 = vsel %vm1049, %v4204, %v3788
        %v4238 = vsel %vm1049, %v4206, %v3790
        %v4240 = vsel %vm1049, %v4208, %v3792
        %v4242 = vsel %vm1049, %v4210, %v3794
        %v4244 = vsel %vm1049, %v4212, %v3796
        %v4246 = vsel %vm1049, %v4214, %v3798
        %v4248 = vsel %vm1049, %v4216, %v3800
        %v4250 = vsel %vm1049, %v4218, %v3802
        %v4252 = vsel %vm1049, %v4220, %v3804
        %v4254 = vsel %vm1052, %v4222, %v3854
        %v4256 = vsel %vm1052, %v4224, %v3856
        %v4258 = vsel %vm1052, %v4226, %v3858
        %v4260 = vsel %vm1052, %v4228, %v3860
        %v4262 = vsel %vm1052, %v4230, %v3862
        %v4264 = vsel %vm1052, %v4232, %v3864
        %v4266 = vsel %vm1052, %v4234, %v3866
        %v4268 = vsel %vm1052, %v4236, %v3868
        %v4270 = vsel %vm1052, %v4238, %v3870
        %v4272 = vsel %vm1052, %v4240, %v3872
        %v4274 = vsel %vm1052, %v4242, %v3874
        %v4276 = vsel %vm1052, %v4244, %v3876
        %v4278 = vsel %vm1052, %v4246, %v3878
        %v4280 = vsel %vm1052, %v4248, %v3880
        %v4282 = vsel %vm1052, %v4250, %v3882
        %v4284 = vsel %vm1052, %v4252, %v3884
        %v4286 = vsel %vm1055, %v4254, %v3950
        %v4288 = vsel %vm1055, %v4256, %v3952
        %v4290 = vsel %vm1055, %v4258, %v3954
        %v4292 = vsel %vm1055, %v4260, %v3956
        %v4294 = vsel %vm1055, %v4262, %v3958
        %v4296 = vsel %vm1055, %v4264, %v3960
        %v4298 = vsel %vm1055, %v4266, %v3962
        %v4300 = vsel %vm1055, %v4268, %v3964
        %v4302 = vsel %vm1055, %v4270, %v3966
        %v4304 = vsel %vm1055, %v4272, %v3968
        %v4306 = vsel %vm1055, %v4274, %v3970
        %v4308 = vsel %vm1055, %v4276, %v3972
        %v4310 = vsel %vm1055, %v4278, %v3974
        %v4312 = vsel %vm1055, %v4280, %v3976
        %v4314 = vsel %vm1055, %v4282, %v3978
        %v4316 = vsel %vm1055, %v4284, %v3980
        %v4318 = vsel %vm1058, %v4286, %v4030
        %v4321 = vsel %vm1058, %v4288, %v4032
        %v4324 = vsel %vm1058, %v4290, %v4034
        %v4327 = vsel %vm1058, %v4292, %v4036
        %v4330 = vsel %vm1058, %v4294, %v4038
        %v4333 = vsel %vm1058, %v4296, %v4040
        %v4336 = vsel %vm1058, %v4298, %v4042
        %v4339 = vsel %vm1058, %v4300, %v4044
        %v4342 = vsel %vm1058, %v4302, %v4046
        %v4345 = vsel %vm1058, %v4304, %v4048
        %v4348 = vsel %vm1058, %v4306, %v4050
        %v4351 = vsel %vm1058, %v4308, %v4052
        %v4354 = vsel %vm1058, %v4310, %v4054
        %v4357 = vsel %vm1058, %v4312, %v4056
        %v4360 = vsel %vm1058, %v4314, %v4058
        %v4363 = vsel %vm1058, %v4316, %v4060
        %v4365 = vld [vmem:[%s1] sm:$0xf]
        %v4366 = vld [vmem:[%s1 + $0x4] sm:$0xf]
        %v4367 = vld [vmem:[%s1 + $0x8] sm:$0xf]
        %v4368 = vld [vmem:[%s1 + $0xc] sm:$0xf]
        %v4369 = vld [vmem:[%s1 + $0x10] sm:$0xf]
        %v4370 = vld [vmem:[%s1 + $0x14] sm:$0xf]
        %v4371 = vld [vmem:[%s1 + $0x18] sm:$0xf]
        %v4372 = vld [vmem:[%s1 + $0x1c] sm:$0xf]
        %v4373 = vld [vmem:[%s1 + $0x20] sm:$0xf]
        %v4374 = vld [vmem:[%s1 + $0x24] sm:$0xf]
        %v4375 = vld [vmem:[%s1 + $0x28] sm:$0xf]
        %v4376 = vld [vmem:[%s1 + $0x2c] sm:$0xf]
        %v4377 = vld [vmem:[%s1 + $0x30] sm:$0xf]
        %v4378 = vld [vmem:[%s1 + $0x34] sm:$0xf]
        %v4379 = vld [vmem:[%s1 + $0x38] sm:$0xf]
        %v4380 = vld [vmem:[%s1 + $0x3c] sm:$0xf]
        %v4381 = vld [vmem:[%s1 + $0x40] sm:$0xf]
        %v4382 = vld [vmem:[%s1 + $0x44] sm:$0xf]
        %v4383 = vld [vmem:[%s2] sm:$0x1]
        %v4385 = vlaneseq
        %v4386 = vshrl.u32 %v4385, 7
        %v4387 = vsub.s32 0, %v4386
        %v4388 = vrot.slane %v4383, %v4387
        %v4408 = vunpack.c.l.b16 %v4365
        %v4409 = vunpack.c.l.b16 %v4366
        %v4410 = vunpack.c.l.b16 %v4367
        %v4411 = vunpack.c.l.b16 %v4368
        %v4412 = vunpack.c.l.b16 %v4369
        %v4413 = vunpack.c.l.b16 %v4370
        %v4414 = vunpack.c.l.b16 %v4371
        %v4415 = vunpack.c.l.b16 %v4372
        %v4416 = vunpack.c.l.b16 %v4373
        %v4417 = vunpack.c.l.b16 %v4374
        %v4418 = vunpack.c.l.b16 %v4375
        %v4419 = vunpack.c.l.b16 %v4376
        %v4420 = vunpack.c.l.b16 %v4377
        %v4421 = vunpack.c.l.b16 %v4378
        %v4422 = vunpack.c.l.b16 %v4379
        %v4423 = vunpack.c.l.b16 %v4380
        %v4424 = vunpack.c.l.b16 %v4381
        %v4425 = vunpack.c.l.b16 %v4382
        %v4426 = vpack.c.b16 %v4409, %v4408
        %v4427 = vpack.c.b16 %v4411, %v4410
        %v4428 = vpack.c.b16 %v4413, %v4412
        %v4429 = vpack.c.b16 %v4415, %v4414
        %v4430 = vpack.c.b16 %v4417, %v4416
        %v4431 = vpack.c.b16 %v4419, %v4418
        %v4432 = vpack.c.b16 %v4421, %v4420
        %v4433 = vpack.c.b16 %v4423, %v4422
        %v4434 = vpack.c.b16 %v4425, %v4424
        %v4445 = vsel %vm1040, %v4093, 0
        %v4448 = vsel %vm1040, %v4094, 0
        %v4451 = vsel %vm1040, %v4095, 0
        %v4454 = vsel %vm1040, %v4096, 0
        %v4457 = vsel %vm1040, %v4097, 0
        %v4460 = vsel %vm1040, %v4098, 0
        %v4463 = vsel %vm1040, %v4099, 0
        %v4466 = vsel %vm1040, %v4100, 0
        %v4469 = vsel %vm1040, %v4101, 0
        %v4472 = vsel %vm1040, %v4102, 0
        %v4475 = vsel %vm1040, %v4103, 0
        %v4478 = vsel %vm1040, %v4104, 0
        %v4481 = vsel %vm1040, %v4105, 0
        %v4484 = vsel %vm1040, %v4106, 0
        %v4487 = vsel %vm1040, %v4107, 0
        %v4490 = vsel %vm1040, %v4108, 0
        %4492 = vmatprep.subr.bf16.mxu0 0
        %4493 = vmatpush1.bf16.msra.mxu0 %v4426
        %4494 = vmatprep.subr.bf16.mxu0 0
        %4495 = vmatpush1.bf16.msra.mxu0 %v4427
        %4496 = vmatprep.subr.bf16.mxu0 0
        %4497 = vmatpush1.bf16.msra.mxu0 %v4428
        %4498 = vmatprep.subr.bf16.mxu0 0
        %4499 = vmatpush1.bf16.msra.mxu0 %v4429
        %4500 = vmatprep.subr.bf16.mxu0 0
        %4501 = vmatpush1.bf16.msra.mxu0 %v4430
        %4502 = vmatprep.subr.bf16.mxu0 0
        %4503 = vmatpush1.bf16.msra.mxu0 %v4431
        %4504 = vmatprep.subr.bf16.mxu0 0
        %4505 = vmatpush1.bf16.msra.mxu0 %v4432
        %4506 = vmatprep.subr.bf16.mxu0 0
        %4507 = vmatpush1.bf16.msra.mxu0 %v4433
        %4508 = vmatprep.subr.bf16.mxu0 0
        %4509 = vmatpush1.bf16.msra.mxu0 %v4434
        %4510 = vmatprep.subr.bf16.mxu0 0
        %4511 = vmatpush1.bf16.msra.mxu0 0
        %4512 = vmatprep.subr.bf16.mxu0 0
        %4513 = vmatpush1.bf16.msra.mxu0 0
        %4514 = vmatprep.subr.bf16.mxu0 0
        %4515 = vmatpush1.bf16.msra.mxu0 0
        %4516 = vmatprep.subr.bf16.mxu0 0
        %4517 = vmatpush1.bf16.msra.mxu0 0
        %4518 = vmatprep.subr.bf16.mxu0 0
        %4519 = vmatpush1.bf16.msra.mxu0 0
        %4520 = vmatprep.subr.bf16.mxu0 0
        %4521 = vmatpush1.bf16.msra.mxu0 0
        %4522 = vmatprep.subr.bf16.mxu0 0
        %4523 = vmatpush1.bf16.msra.mxu0 0
        %4524 = vmatprep.mubr.bf16.mxu0 %v4445
        %4525 = vmatmul.mubr.bf16.gmra.mrb[0].mxu0 %v4318
        %v4526 = vpop.f32.mrb[0].mxu0
        %v4527 = vadd.f32 %v4388, %v4526
        %v4528 = vpop.f32.mrb[0].mxu0
        %v4529 = vpop.f32.mrb[0].mxu0
        %v4530 = vadd.f32 %v4388, %v4529
        %v4531 = vpop.f32.mrb[0].mxu0
        %4532 = vmatprep.mubr.bf16.mxu0 %v4448
        %4533 = vmatmul.mubr.bf16.gmra.mrb[0].mxu0 %v4321
        %v4534 = vpop.f32.mrb[0].mxu0
        %v4535 = vadd.f32 %v4388, %v4534
        %v4536 = vpop.f32.mrb[0].mxu0
        %v4537 = vpop.f32.mrb[0].mxu0
        %v4538 = vadd.f32 %v4388, %v4537
        %v4539 = vpop.f32.mrb[0].mxu0
        %4540 = vmatprep.mubr.bf16.mxu0 %v4451
        %4541 = vmatmul.mubr.bf16.gmra.mrb[0].mxu0 %v4324
        %v4542 = vpop.f32.mrb[0].mxu0
        %v4543 = vadd.f32 %v4388, %v4542
        %v4544 = vpop.f32.mrb[0].mxu0
        %v4545 = vpop.f32.mrb[0].mxu0
        %v4546 = vadd.f32 %v4388, %v4545
        %v4547 = vpop.f32.mrb[0].mxu0
        %4548 = vmatprep.mubr.bf16.mxu0 %v4454
        %4549 = vmatmul.mubr.bf16.gmra.mrb[0].mxu0 %v4327
        %v4550 = vpop.f32.mrb[0].mxu0
        %v4551 = vadd.f32 %v4388, %v4550
        %v4552 = vpop.f32.mrb[0].mxu0
        %v4553 = vpop.f32.mrb[0].mxu0
        %v4554 = vadd.f32 %v4388, %v4553
        %v4555 = vpop.f32.mrb[0].mxu0
        %4556 = vmatprep.mubr.bf16.mxu0 %v4457
        %4557 = vmatmul.mubr.bf16.gmra.mrb[0].mxu0 %v4330
        %v4558 = vpop.f32.mrb[0].mxu0
        %v4559 = vadd.f32 %v4388, %v4558
        %v4560 = vpop.f32.mrb[0].mxu0
        %v4561 = vpop.f32.mrb[0].mxu0
        %v4562 = vadd.f32 %v4388, %v4561
        %v4563 = vpop.f32.mrb[0].mxu0
        %4564 = vmatprep.mubr.bf16.mxu0 %v4460
        %4565 = vmatmul.mubr.bf16.gmra.mrb[0].mxu0 %v4333
        %v4566 = vpop.f32.mrb[0].mxu0
        %v4567 = vadd.f32 %v4388, %v4566
        %v4568 = vpop.f32.mrb[0].mxu0
        %v4569 = vpop.f32.mrb[0].mxu0
        %v4570 = vadd.f32 %v4388, %v4569
        %v4571 = vpop.f32.mrb[0].mxu0
        %4572 = vmatprep.mubr.bf16.mxu0 %v4463
        %4573 = vmatmul.mubr.bf16.gmra.mrb[0].mxu0 %v4336
        %v4574 = vpop.f32.mrb[0].mxu0
        %v4575 = vadd.f32 %v4388, %v4574
        %v4576 = vpop.f32.mrb[0].mxu0
        %v4577 = vpop.f32.mrb[0].mxu0
        %v4578 = vadd.f32 %v4388, %v4577
        %v4579 = vpop.f32.mrb[0].mxu0
        %4580 = vmatprep.mubr.bf16.mxu0 %v4466
        %4581 = vmatmul.mubr.bf16.gmra.mrb[0].mxu0 %v4339
        %v4582 = vpop.f32.mrb[0].mxu0
        %v4583 = vadd.f32 %v4388, %v4582
        %v4584 = vpop.f32.mrb[0].mxu0
        %v4585 = vpop.f32.mrb[0].mxu0
        %v4586 = vadd.f32 %v4388, %v4585
        %v4587 = vpop.f32.mrb[0].mxu0
        %4588 = vmatprep.mubr.bf16.mxu0 %v4469
        %4589 = vmatmul.mubr.bf16.gmra.mrb[0].mxu0 %v4342
        %v4590 = vpop.f32.mrb[0].mxu0
        %v4591 = vadd.f32 %v4388, %v4590
        %v4592 = vpop.f32.mrb[0].mxu0
        %v4593 = vpop.f32.mrb[0].mxu0
        %v4594 = vadd.f32 %v4388, %v4593
        %v4595 = vpop.f32.mrb[0].mxu0
        %4596 = vmatprep.mubr.bf16.mxu0 %v4472
        %4597 = vmatmul.mubr.bf16.gmra.mrb[0].mxu0 %v4345
        %v4598 = vpop.f32.mrb[0].mxu0
        %v4599 = vadd.f32 %v4388, %v4598
        %v4600 = vpop.f32.mrb[0].mxu0
        %v4601 = vpop.f32.mrb[0].mxu0
        %v4602 = vadd.f32 %v4388, %v4601
        %v4603 = vpop.f32.mrb[0].mxu0
        %4604 = vmatprep.mubr.bf16.mxu0 %v4475
        %4605 = vmatmul.mubr.bf16.gmra.mrb[0].mxu0 %v4348
        %v4606 = vpop.f32.mrb[0].mxu0
        %v4607 = vadd.f32 %v4388, %v4606
        %v4608 = vpop.f32.mrb[0].mxu0
        %v4609 = vpop.f32.mrb[0].mxu0
        %v4610 = vadd.f32 %v4388, %v4609
        %v4611 = vpop.f32.mrb[0].mxu0
        %4612 = vmatprep.mubr.bf16.mxu0 %v4478
        %4613 = vmatmul.mubr.bf16.gmra.mrb[0].mxu0 %v4351
        %v4614 = vpop.f32.mrb[0].mxu0
        %v4615 = vadd.f32 %v4388, %v4614
        %v4616 = vpop.f32.mrb[0].mxu0
        %v4617 = vpop.f32.mrb[0].mxu0
        %v4618 = vadd.f32 %v4388, %v4617
        %v4619 = vpop.f32.mrb[0].mxu0
        %4620 = vmatprep.mubr.bf16.mxu0 %v4481
        %4621 = vmatmul.mubr.bf16.gmra.mrb[0].mxu0 %v4354
        %v4622 = vpop.f32.mrb[0].mxu0
        %v4623 = vadd.f32 %v4388, %v4622
        %v4624 = vpop.f32.mrb[0].mxu0
        %v4625 = vpop.f32.mrb[0].mxu0
        %v4626 = vadd.f32 %v4388, %v4625
        %v4627 = vpop.f32.mrb[0].mxu0
        %4628 = vmatprep.mubr.bf16.mxu0 %v4484
        %4629 = vmatmul.mubr.bf16.gmra.mrb[0].mxu0 %v4357
        %v4630 = vpop.f32.mrb[0].mxu0
        %v4631 = vadd.f32 %v4388, %v4630
        %v4632 = vpop.f32.mrb[0].mxu0
        %v4633 = vpop.f32.mrb[0].mxu0
        %v4634 = vadd.f32 %v4388, %v4633
        %v4635 = vpop.f32.mrb[0].mxu0
        %4636 = vmatprep.mubr.bf16.mxu0 %v4487
        %4637 = vmatmul.mubr.bf16.gmra.mrb[0].mxu0 %v4360
        %v4638 = vpop.f32.mrb[0].mxu0
        %v4639 = vadd.f32 %v4388, %v4638
        %v4640 = vpop.f32.mrb[0].mxu0
        %v4641 = vpop.f32.mrb[0].mxu0
        %v4642 = vadd.f32 %v4388, %v4641
        %v4643 = vpop.f32.mrb[0].mxu0
        %4644 = vmatprep.mubr.bf16.mxu0 %v4490
        %4645 = vmatmul.mubr.bf16.gmra.mrb[0].mxu0 %v4363
        %v4646 = vpop.f32.mrb[0].mxu0
        %v4647 = vadd.f32 %v4388, %v4646
        %v4648 = vpop.f32.mrb[0].mxu0
        %v4649 = vpop.f32.mrb[0].mxu0
        %v4650 = vadd.f32 %v4388, %v4649
        %v4651 = vpop.f32.mrb[0].mxu0
        %4652 = vdwg.mxu0
        %v4653 = vmax.f32 %v4527, 0.0
        %v4654 = vmax.f32 %v4530, 0.0
        %v4655 = vmax.f32 %v4535, 0.0
        %v4656 = vmax.f32 %v4538, 0.0
        %v4657 = vmax.f32 %v4543, 0.0
        %v4658 = vmax.f32 %v4546, 0.0
        %v4659 = vmax.f32 %v4551, 0.0
        %v4660 = vmax.f32 %v4554, 0.0
        %v4661 = vmax.f32 %v4559, 0.0
        %v4662 = vmax.f32 %v4562, 0.0
        %v4663 = vmax.f32 %v4567, 0.0
        %v4664 = vmax.f32 %v4570, 0.0
        %v4665 = vmax.f32 %v4575, 0.0
        %v4666 = vmax.f32 %v4578, 0.0
        %v4667 = vmax.f32 %v4583, 0.0
        %v4668 = vmax.f32 %v4586, 0.0
        %v4669 = vmax.f32 %v4591, 0.0
        %v4670 = vmax.f32 %v4594, 0.0
        %v4671 = vmax.f32 %v4599, 0.0
        %v4672 = vmax.f32 %v4602, 0.0
        %v4673 = vmax.f32 %v4607, 0.0
        %v4674 = vmax.f32 %v4610, 0.0
        %v4675 = vmax.f32 %v4615, 0.0
        %v4676 = vmax.f32 %v4618, 0.0
        %v4677 = vmax.f32 %v4623, 0.0
        %v4678 = vmax.f32 %v4626, 0.0
        %v4679 = vmax.f32 %v4631, 0.0
        %v4680 = vmax.f32 %v4634, 0.0
        %v4681 = vmax.f32 %v4639, 0.0
        %v4682 = vmax.f32 %v4642, 0.0
        %v4683 = vmax.f32 %v4647, 0.0
        %v4684 = vmax.f32 %v4650, 0.0
        %v4685 = vpack.c.bf16 %v4654, %v4653
        %v4686 = vpack.c.bf16 %v4656, %v4655
        %v4687 = vpack.c.bf16 %v4658, %v4657
        %v4688 = vpack.c.bf16 %v4660, %v4659
        %v4689 = vpack.c.bf16 %v4662, %v4661
        %v4690 = vpack.c.bf16 %v4664, %v4663
        %v4691 = vpack.c.bf16 %v4666, %v4665
        %v4692 = vpack.c.bf16 %v4668, %v4667
        %v4693 = vpack.c.bf16 %v4670, %v4669
        %v4694 = vpack.c.bf16 %v4672, %v4671
        %v4695 = vpack.c.bf16 %v4674, %v4673
        %v4696 = vpack.c.bf16 %v4676, %v4675
        %v4697 = vpack.c.bf16 %v4678, %v4677
        %v4698 = vpack.c.bf16 %v4680, %v4679
        %v4699 = vpack.c.bf16 %v4682, %v4681
        %v4700 = vpack.c.bf16 %v4684, %v4683
        %v4702 = vshrl.u32 %v4685, 16
        %v4704 = vrot.slane %v4702, 7
        %v4705 = vshll.u32 %v4685, 16
        %v4707 = vor.u32 %v4704, %v4705
        %v4709 = vshrl.u32 %v4686, 16
        %v4711 = vrot.slane %v4709, 7
        %v4712 = vshll.u32 %v4686, 16
        %v4714 = vor.u32 %v4711, %v4712
        %v4716 = vshrl.u32 %v4687, 16
        %v4718 = vrot.slane %v4716, 7
        %v4719 = vshll.u32 %v4687, 16
        %v4721 = vor.u32 %v4718, %v4719
        %v4723 = vshrl.u32 %v4688, 16
        %v4725 = vrot.slane %v4723, 7
        %v4726 = vshll.u32 %v4688, 16
        %v4728 = vor.u32 %v4725, %v4726
        %v4730 = vshrl.u32 %v4689, 16
        %v4732 = vrot.slane %v4730, 7
        %v4733 = vshll.u32 %v4689, 16
        %v4735 = vor.u32 %v4732, %v4733
        %v4737 = vshrl.u32 %v4690, 16
        %v4739 = vrot.slane %v4737, 7
        %v4740 = vshll.u32 %v4690, 16
        %v4742 = vor.u32 %v4739, %v4740
        %v4744 = vshrl.u32 %v4691, 16
        %v4746 = vrot.slane %v4744, 7
        %v4747 = vshll.u32 %v4691, 16
        %v4749 = vor.u32 %v4746, %v4747
        %v4751 = vshrl.u32 %v4692, 16
        %v4753 = vrot.slane %v4751, 7
        %v4754 = vshll.u32 %v4692, 16
        %v4756 = vor.u32 %v4753, %v4754
        %v4758 = vshrl.u32 %v4693, 16
        %v4760 = vrot.slane %v4758, 7
        %v4761 = vshll.u32 %v4693, 16
        %v4763 = vor.u32 %v4760, %v4761
        %v4765 = vshrl.u32 %v4694, 16
        %v4767 = vrot.slane %v4765, 7
        %v4768 = vshll.u32 %v4694, 16
        %v4770 = vor.u32 %v4767, %v4768
        %v4772 = vshrl.u32 %v4695, 16
        %v4774 = vrot.slane %v4772, 7
        %v4775 = vshll.u32 %v4695, 16
        %v4777 = vor.u32 %v4774, %v4775
        %v4779 = vshrl.u32 %v4696, 16
        %v4781 = vrot.slane %v4779, 7
        %v4782 = vshll.u32 %v4696, 16
        %v4784 = vor.u32 %v4781, %v4782
        %v4786 = vshrl.u32 %v4697, 16
        %v4788 = vrot.slane %v4786, 7
        %v4789 = vshll.u32 %v4697, 16
        %v4791 = vor.u32 %v4788, %v4789
        %v4793 = vshrl.u32 %v4698, 16
        %v4795 = vrot.slane %v4793, 7
        %v4796 = vshll.u32 %v4698, 16
        %v4798 = vor.u32 %v4795, %v4796
        %v4800 = vshrl.u32 %v4699, 16
        %v4802 = vrot.slane %v4800, 7
        %v4803 = vshll.u32 %v4699, 16
        %v4805 = vor.u32 %v4802, %v4803
        %v4807 = vshrl.u32 %v4700, 16
        %v4809 = vrot.slane %v4807, 7
        %v4810 = vshll.u32 %v4700, 16
        %v4812 = vor.u32 %v4809, %v4810
        %v4845 = vsel %vm1301, 0, %v4707
        %v4846 = vsel %vm1301, 0, %v4714
        %v4847 = vsel %vm1301, 0, %v4721
        %v4848 = vsel %vm1301, 0, %v4728
        %v4849 = vsel %vm1301, 0, %v4735
        %v4850 = vsel %vm1301, 0, %v4742
        %v4851 = vsel %vm1301, 0, %v4749
        %v4852 = vsel %vm1301, 0, %v4756
        %v4853 = vsel %vm1301, 0, %v4763
        %v4854 = vsel %vm1301, 0, %v4770
        %v4855 = vsel %vm1301, 0, %v4777
        %v4856 = vsel %vm1301, 0, %v4784
        %v4857 = vsel %vm1301, 0, %v4791
        %v4858 = vsel %vm1301, 0, %v4798
        %v4859 = vsel %vm1301, 0, %v4805
        %v4860 = vsel %vm1301, 0, %v4812
        %v4861 = vsel %vm1301, %v4704, 0
        %v4862 = vsel %vm1301, %v4711, 0
        %v4863 = vsel %vm1301, %v4718, 0
        %v4864 = vsel %vm1301, %v4725, 0
        %v4865 = vsel %vm1301, %v4732, 0
        %v4866 = vsel %vm1301, %v4739, 0
        %v4867 = vsel %vm1301, %v4746, 0
        %v4868 = vsel %vm1301, %v4753, 0
        %v4869 = vsel %vm1301, %v4760, 0
        %v4870 = vsel %vm1301, %v4767, 0
        %v4871 = vsel %vm1301, %v4774, 0
        %v4872 = vsel %vm1301, %v4781, 0
        %v4873 = vsel %vm1301, %v4788, 0
        %v4874 = vsel %vm1301, %v4795, 0
        %v4875 = vsel %vm1301, %v4802, 0
        %v4876 = vsel %vm1301, %v4809, 0
        %v4909 = vunpack.c.l.b16 %v4845
        %v4910 = vunpack.c.h.b16 %v4845
        %v4911 = vunpack.c.l.b16 %v4861
        %v4912 = vunpack.c.l.b16 %v4846
        %v4913 = vunpack.c.h.b16 %v4846
        %v4914 = vunpack.c.l.b16 %v4862
        %v4915 = vunpack.c.l.b16 %v4847
        %v4916 = vunpack.c.h.b16 %v4847
        %v4917 = vunpack.c.l.b16 %v4863
        %v4918 = vunpack.c.l.b16 %v4848
        %v4919 = vunpack.c.h.b16 %v4848
        %v4920 = vunpack.c.l.b16 %v4864
        %v4921 = vunpack.c.l.b16 %v4849
        %v4922 = vunpack.c.h.b16 %v4849
        %v4923 = vunpack.c.l.b16 %v4865
        %v4924 = vunpack.c.l.b16 %v4850
        %v4925 = vunpack.c.h.b16 %v4850
        %v4926 = vunpack.c.l.b16 %v4866
        %v4927 = vunpack.c.l.b16 %v4851
        %v4928 = vunpack.c.h.b16 %v4851
        %v4929 = vunpack.c.l.b16 %v4867
        %v4930 = vunpack.c.l.b16 %v4852
        %v4931 = vunpack.c.h.b16 %v4852
        %v4932 = vunpack.c.l.b16 %v4868
        %v4933 = vunpack.c.l.b16 %v4853
        %v4934 = vunpack.c.h.b16 %v4853
        %v4935 = vunpack.c.l.b16 %v4869
        %v4936 = vunpack.c.l.b16 %v4854
        %v4937 = vunpack.c.h.b16 %v4854
        %v4938 = vunpack.c.l.b16 %v4870
        %v4939 = vunpack.c.l.b16 %v4855
        %v4940 = vunpack.c.h.b16 %v4855
        %v4941 = vunpack.c.l.b16 %v4871
        %v4942 = vunpack.c.l.b16 %v4856
        %v4943 = vunpack.c.h.b16 %v4856
        %v4944 = vunpack.c.l.b16 %v4872
        %v4945 = vunpack.c.l.b16 %v4857
        %v4946 = vunpack.c.h.b16 %v4857
        %v4947 = vunpack.c.l.b16 %v4873
        %v4948 = vunpack.c.l.b16 %v4858
        %v4949 = vunpack.c.h.b16 %v4858
        %v4950 = vunpack.c.l.b16 %v4874
        %v4951 = vunpack.c.l.b16 %v4859
        %v4952 = vunpack.c.h.b16 %v4859
        %v4953 = vunpack.c.l.b16 %v4875
        %v4954 = vunpack.c.l.b16 %v4860
        %v4955 = vunpack.c.h.b16 %v4860
        %v4956 = vunpack.c.l.b16 %v4876
        %v4957 = vpack.c.b16 %v4909, %v4909
        %v4958 = vpack.c.b16 %v4910, %v4910
        %v4959 = vpack.c.b16 %v4911, %v4911
        %v4960 = vpack.c.b16 %v4912, %v4912
        %v4961 = vpack.c.b16 %v4913, %v4913
        %v4962 = vpack.c.b16 %v4914, %v4914
        %v4963 = vpack.c.b16 %v4915, %v4915
        %v4964 = vpack.c.b16 %v4916, %v4916
        %v4965 = vpack.c.b16 %v4917, %v4917
        %v4966 = vpack.c.b16 %v4918, %v4918
        %v4967 = vpack.c.b16 %v4919, %v4919
        %v4968 = vpack.c.b16 %v4920, %v4920
        %v4969 = vpack.c.b16 %v4921, %v4921
        %v4970 = vpack.c.b16 %v4922, %v4922
        %v4971 = vpack.c.b16 %v4923, %v4923
        %v4972 = vpack.c.b16 %v4924, %v4924
        %v4973 = vpack.c.b16 %v4925, %v4925
        %v4974 = vpack.c.b16 %v4926, %v4926
        %v4975 = vpack.c.b16 %v4927, %v4927
        %v4976 = vpack.c.b16 %v4928, %v4928
        %v4977 = vpack.c.b16 %v4929, %v4929
        %v4978 = vpack.c.b16 %v4930, %v4930
        %v4979 = vpack.c.b16 %v4931, %v4931
        %v4980 = vpack.c.b16 %v4932, %v4932
        %v4981 = vpack.c.b16 %v4933, %v4933
        %v4982 = vpack.c.b16 %v4934, %v4934
        %v4983 = vpack.c.b16 %v4935, %v4935
        %v4984 = vpack.c.b16 %v4936, %v4936
        %v4985 = vpack.c.b16 %v4937, %v4937
        %v4986 = vpack.c.b16 %v4938, %v4938
        %v4987 = vpack.c.b16 %v4939, %v4939
        %v4988 = vpack.c.b16 %v4940, %v4940
        %v4989 = vpack.c.b16 %v4941, %v4941
        %v4990 = vpack.c.b16 %v4942, %v4942
        %v4991 = vpack.c.b16 %v4943, %v4943
        %v4992 = vpack.c.b16 %v4944, %v4944
        %v4993 = vpack.c.b16 %v4945, %v4945
        %v4994 = vpack.c.b16 %v4946, %v4946
        %v4995 = vpack.c.b16 %v4947, %v4947
        %v4996 = vpack.c.b16 %v4948, %v4948
        %v4997 = vpack.c.b16 %v4949, %v4949
        %v4998 = vpack.c.b16 %v4950, %v4950
        %v4999 = vpack.c.b16 %v4951, %v4951
        %v5000 = vpack.c.b16 %v4952, %v4952
        %v5001 = vpack.c.b16 %v4953, %v4953
        %v5002 = vpack.c.b16 %v4954, %v4954
        %v5003 = vpack.c.b16 %v4955, %v4955
        %v5004 = vpack.c.b16 %v4956, %v4956
        %5053 = vst.msk [vmem:[#allocation3] sm:$0xf] %vm1517, %v1417
        %5054 = vst.msk [vmem:[#allocation3 + $0x4] sm:$0xf] %vm1517, %v1418
        %5055 = vst.msk [vmem:[#allocation3 + $0x8] sm:$0x1] %vm1520, %v1417
        %5056 = vst.msk [vmem:[#allocation3 + $0xc] sm:$0xf] %vm1517, %v4957
        %5057 = vst.msk [vmem:[#allocation3 + $0x10] sm:$0xf] %vm1517, %v4958
        %5058 = vst.msk [vmem:[#allocation3 + $0x14] sm:$0x1] %vm1520, %v4959
        %5059 = vst.msk [vmem:[#allocation3 + $0x18] sm:$0xf] %vm1517, %v4960
        %5060 = vst.msk [vmem:[#allocation3 + $0x1c] sm:$0xf] %vm1517, %v4961
        %5061 = vst.msk [vmem:[#allocation3 + $0x20] sm:$0x1] %vm1520, %v4962
        %5062 = vst.msk [vmem:[#allocation3 + $0x24] sm:$0xf] %vm1517, %v4963
        %5063 = vst.msk [vmem:[#allocation3 + $0x28] sm:$0xf] %vm1517, %v4964
        %5064 = vst.msk [vmem:[#allocation3 + $0x2c] sm:$0x1] %vm1520, %v4965
        %5065 = vst.msk [vmem:[#allocation3 + $0x30] sm:$0xf] %vm1517, %v4966
        %5066 = vst.msk [vmem:[#allocation3 + $0x34] sm:$0xf] %vm1517, %v4967
        %5067 = vst.msk [vmem:[#allocation3 + $0x38] sm:$0x1] %vm1520, %v4968
        %5068 = vst.msk [vmem:[#allocation3 + $0x3c] sm:$0xf] %vm1517, %v4969
        %5069 = vst.msk [vmem:[#allocation3 + $0x40] sm:$0xf] %vm1517, %v4970
        %5070 = vst.msk [vmem:[#allocation3 + $0x44] sm:$0x1] %vm1520, %v4971
        %5071 = vst.msk [vmem:[#allocation3 + $0x48] sm:$0xf] %vm1517, %v4972
        %5072 = vst.msk [vmem:[#allocation3 + $0x4c] sm:$0xf] %vm1517, %v4973
        %5073 = vst.msk [vmem:[#allocation3 + $0x50] sm:$0x1] %vm1520, %v4974
        %5074 = vst.msk [vmem:[#allocation3 + $0x54] sm:$0xf] %vm1517, %v4975
        %5075 = vst.msk [vmem:[#allocation3 + $0x58] sm:$0xf] %vm1517, %v4976
        %5076 = vst.msk [vmem:[#allocation3 + $0x5c] sm:$0x1] %vm1520, %v4977
        %5077 = vst.msk [vmem:[#allocation3 + $0x60] sm:$0xf] %vm1517, %v4978
        %5078 = vst.msk [vmem:[#allocation3 + $0x64] sm:$0xf] %vm1517, %v4979
        %5079 = vst.msk [vmem:[#allocation3 + $0x68] sm:$0x1] %vm1520, %v4980
        %5080 = vst.msk [vmem:[#allocation3 + $0x6c] sm:$0xf] %vm1517, %v4981
        %5081 = vst.msk [vmem:[#allocation3 + $0x70] sm:$0xf] %vm1517, %v4982
        %5082 = vst.msk [vmem:[#allocation3 + $0x74] sm:$0x1] %vm1520, %v4983
        %5083 = vst.msk [vmem:[#allocation3 + $0x78] sm:$0xf] %vm1517, %v4984
        %5084 = vst.msk [vmem:[#allocation3 + $0x7c] sm:$0xf] %vm1517, %v4985
        %5085 = vst.msk [vmem:[#allocation3 + $0x80] sm:$0x1] %vm1520, %v4986
        %5086 = vst.msk [vmem:[#allocation3 + $0x84] sm:$0xf] %vm1517, %v4987
        %5087 = vst.msk [vmem:[#allocation3 + $0x88] sm:$0xf] %vm1517, %v4988
        %5088 = vst.msk [vmem:[#allocation3 + $0x8c] sm:$0x1] %vm1520, %v4989
        %5089 = vst.msk [vmem:[#allocation3 + $0x90] sm:$0xf] %vm1517, %v4990
        %5090 = vst.msk [vmem:[#allocation3 + $0x94] sm:$0xf] %vm1517, %v4991
        %5091 = vst.msk [vmem:[#allocation3 + $0x98] sm:$0x1] %vm1520, %v4992
        %5092 = vst.msk [vmem:[#allocation3 + $0x9c] sm:$0xf] %vm1517, %v4993
        %5093 = vst.msk [vmem:[#allocation3 + $0xa0] sm:$0xf] %vm1517, %v4994
        %5094 = vst.msk [vmem:[#allocation3 + $0xa4] sm:$0x1] %vm1520, %v4995
        %5095 = vst.msk [vmem:[#allocation3 + $0xa8] sm:$0xf] %vm1517, %v4996
        %5096 = vst.msk [vmem:[#allocation3 + $0xac] sm:$0xf] %vm1517, %v4997
        %5097 = vst.msk [vmem:[#allocation3 + $0xb0] sm:$0x1] %vm1520, %v4998
        %5098 = vst.msk [vmem:[#allocation3 + $0xb4] sm:$0xf] %vm1517, %v4999
        %5099 = vst.msk [vmem:[#allocation3 + $0xb8] sm:$0xf] %vm1517, %v5000
        %5100 = vst.msk [vmem:[#allocation3 + $0xbc] sm:$0x1] %vm1520, %v5001
        %5101 = vst.msk [vmem:[#allocation3 + $0xc0] sm:$0xf] %vm1517, %v5002
        %5102 = vst.msk [vmem:[#allocation3 + $0xc4] sm:$0xf] %vm1517, %v5003
        %5103 = vst.msk [vmem:[#allocation3 + $0xc8] sm:$0x1] %vm1520, %v5004
        %5104 = vst.msk [vmem:[#allocation3 + $0xcc] sm:$0xf] %vm1517, %v1417
        %5105 = vst.msk [vmem:[#allocation3 + $0xd0] sm:$0xf] %vm1517, %v1418
        %5106 = vst.msk [vmem:[#allocation3 + $0xd4] sm:$0x1] %vm1520, %v1417
        %v5107 = vld [vmem:[#allocation3] sm:$0xf]
        %v5108 = vld [vmem:[#allocation3 + $0x4] sm:$0xf]
        %v5109 = vld [vmem:[#allocation3 + $0xc] sm:$0xf]
        %v5110 = vld [vmem:[#allocation3 + $0x10] sm:$0xf]
        %v5111 = vld [vmem:[#allocation3 + $0x18] sm:$0xf]
        %v5112 = vld [vmem:[#allocation3 + $0x1c] sm:$0xf]
        %v5113 = vld [vmem:[#allocation3 + $0x24] sm:$0xf]
        %v5114 = vld [vmem:[#allocation3 + $0x28] sm:$0xf]
        %v5115 = vld [vmem:[#allocation3 + $0x30] sm:$0xf]
        %v5116 = vld [vmem:[#allocation3 + $0x34] sm:$0xf]
        %v5117 = vld [vmem:[#allocation3 + $0x3c] sm:$0xf]
        %v5118 = vld [vmem:[#allocation3 + $0x40] sm:$0xf]
        %v5119 = vld [vmem:[#allocation3 + $0x48] sm:$0xf]
        %v5120 = vld [vmem:[#allocation3 + $0x4c] sm:$0xf]
        %v5121 = vld [vmem:[#allocation3 + $0x54] sm:$0xf]
        %v5122 = vld [vmem:[#allocation3 + $0x58] sm:$0xf]
        %v5123 = vld [vmem:[#allocation3 + $0x60] sm:$0xf]
        %v5124 = vld [vmem:[#allocation3 + $0x64] sm:$0xf]
        %v5125 = vld [vmem:[#allocation3 + $0x6c] sm:$0xf]
        %v5126 = vld [vmem:[#allocation3 + $0x70] sm:$0xf]
        %v5127 = vld [vmem:[#allocation3 + $0x78] sm:$0xf]
        %v5128 = vld [vmem:[#allocation3 + $0x7c] sm:$0xf]
        %v5129 = vld [vmem:[#allocation3 + $0x84] sm:$0xf]
        %v5130 = vld [vmem:[#allocation3 + $0x88] sm:$0xf]
        %v5131 = vld [vmem:[#allocation3 + $0x90] sm:$0xf]
        %v5132 = vld [vmem:[#allocation3 + $0x94] sm:$0xf]
        %v5133 = vld [vmem:[#allocation3 + $0x9c] sm:$0xf]
        %v5134 = vld [vmem:[#allocation3 + $0xa0] sm:$0xf]
        %v5135 = vld [vmem:[#allocation3 + $0xa8] sm:$0xf]
        %v5136 = vld [vmem:[#allocation3 + $0xac] sm:$0xf]
        %v5137 = vld [vmem:[#allocation3 + $0xb4] sm:$0xf]
        %v5138 = vld [vmem:[#allocation3 + $0xb8] sm:$0xf]
        %v5139 = vld [vmem:[#allocation3 + $0x8] sm:$0x1]
        %v5140 = vld [vmem:[#allocation3 + $0x14] sm:$0x1]
        %v5141 = vld [vmem:[#allocation3 + $0x20] sm:$0x1]
        %v5142 = vld [vmem:[#allocation3 + $0x2c] sm:$0x1]
        %v5143 = vld [vmem:[#allocation3 + $0x38] sm:$0x1]
        %v5144 = vld [vmem:[#allocation3 + $0x44] sm:$0x1]
        %v5145 = vld [vmem:[#allocation3 + $0x50] sm:$0x1]
        %v5146 = vld [vmem:[#allocation3 + $0x5c] sm:$0x1]
        %v5147 = vld [vmem:[#allocation3 + $0x68] sm:$0x1]
        %v5148 = vld [vmem:[#allocation3 + $0x74] sm:$0x1]
        %v5149 = vld [vmem:[#allocation3 + $0x80] sm:$0x1]
        %v5150 = vld [vmem:[#allocation3 + $0x8c] sm:$0x1]
        %v5151 = vld [vmem:[#allocation3 + $0x98] sm:$0x1]
        %v5152 = vld [vmem:[#allocation3 + $0xa4] sm:$0x1]
        %v5153 = vld [vmem:[#allocation3 + $0xb0] sm:$0x1]
        %v5154 = vld [vmem:[#allocation3 + $0xbc] sm:$0x1]
        %v5156 = vshrl.u32 %v5107, 16
        %v5158 = vrot.slane %v5156, 4
        %v5159 = vshll.u32 %v5107, 16
        %v5161 = vrot.slane %v5159, 5
        %v5162 = vor.u32 %v5158, %v5161
        %v5163 = vrot.slane %v5162, 4
        %v5165 = vshll.u32 %v5108, 16
        %v5167 = vrot.slane %v5165, 5
        %v5168 = vsel %vm1623, %v5163, %v5167
        %v5169 = vshrl.u32 %v5108, 16
        %v5171 = vrot.slane %v5169, 4
        %v5172 = vor.u32 %v5171, %v5167
        %v5173 = vrot.slane %v5172, 4
        %v5175 = vshll.u32 %v5139, 16
        %v5177 = vrot.slane %v5175, 5
        %v5178 = vsel %vm1623, %v5173, %v5177
        %v5180 = vshrl.u32 %v5109, 16
        %v5182 = vrot.slane %v5180, 4
        %v5183 = vshll.u32 %v5109, 16
        %v5185 = vrot.slane %v5183, 5
        %v5186 = vor.u32 %v5182, %v5185
        %v5187 = vrot.slane %v5186, 4
        %v5189 = vshll.u32 %v5110, 16
        %v5191 = vrot.slane %v5189, 5
        %v5192 = vsel %vm1623, %v5187, %v5191
        %v5193 = vshrl.u32 %v5110, 16
        %v5195 = vrot.slane %v5193, 4
        %v5196 = vor.u32 %v5195, %v5191
        %v5197 = vrot.slane %v5196, 4
        %v5199 = vshll.u32 %v5140, 16
        %v5201 = vrot.slane %v5199, 5
        %v5202 = vsel %vm1623, %v5197, %v5201
        %v5204 = vshrl.u32 %v5111, 16
        %v5206 = vrot.slane %v5204, 4
        %v5207 = vshll.u32 %v5111, 16
        %v5209 = vrot.slane %v5207, 5
        %v5210 = vor.u32 %v5206, %v5209
        %v5211 = vrot.slane %v5210, 4
        %v5213 = vshll.u32 %v5112, 16
        %v5215 = vrot.slane %v5213, 5
        %v5216 = vsel %vm1623, %v5211, %v5215
        %v5217 = vshrl.u32 %v5112, 16
        %v5219 = vrot.slane %v5217, 4
        %v5220 = vor.u32 %v5219, %v5215
        %v5221 = vrot.slane %v5220, 4
        %v5223 = vshll.u32 %v5141, 16
        %v5225 = vrot.slane %v5223, 5
        %v5226 = vsel %vm1623, %v5221, %v5225
        %v5228 = vshrl.u32 %v5113, 16
        %v5230 = vrot.slane %v5228, 4
        %v5231 = vshll.u32 %v5113, 16
        %v5233 = vrot.slane %v5231, 5
        %v5234 = vor.u32 %v5230, %v5233
        %v5235 = vrot.slane %v5234, 4
        %v5237 = vshll.u32 %v5114, 16
        %v5239 = vrot.slane %v5237, 5
        %v5240 = vsel %vm1623, %v5235, %v5239
        %v5241 = vshrl.u32 %v5114, 16
        %v5243 = vrot.slane %v5241, 4
        %v5244 = vor.u32 %v5243, %v5239
        %v5245 = vrot.slane %v5244, 4
        %v5247 = vshll.u32 %v5142, 16
        %v5249 = vrot.slane %v5247, 5
        %v5250 = vsel %vm1623, %v5245, %v5249
        %v5252 = vshrl.u32 %v5115, 16
        %v5254 = vrot.slane %v5252, 4
        %v5255 = vshll.u32 %v5115, 16
        %v5257 = vrot.slane %v5255, 5
        %v5258 = vor.u32 %v5254, %v5257
        %v5259 = vrot.slane %v5258, 4
        %v5261 = vshll.u32 %v5116, 16
        %v5263 = vrot.slane %v5261, 5
        %v5264 = vsel %vm1623, %v5259, %v5263
        %v5265 = vshrl.u32 %v5116, 16
        %v5267 = vrot.slane %v5265, 4
        %v5268 = vor.u32 %v5267, %v5263
        %v5269 = vrot.slane %v5268, 4
        %v5271 = vshll.u32 %v5143, 16
        %v5273 = vrot.slane %v5271, 5
        %v5274 = vsel %vm1623, %v5269, %v5273
        %v5276 = vshrl.u32 %v5117, 16
        %v5278 = vrot.slane %v5276, 4
        %v5279 = vshll.u32 %v5117, 16
        %v5281 = vrot.slane %v5279, 5
        %v5282 = vor.u32 %v5278, %v5281
        %v5283 = vrot.slane %v5282, 4
        %v5285 = vshll.u32 %v5118, 16
        %v5287 = vrot.slane %v5285, 5
        %v5288 = vsel %vm1623, %v5283, %v5287
        %v5289 = vshrl.u32 %v5118, 16
        %v5291 = vrot.slane %v5289, 4
        %v5292 = vor.u32 %v5291, %v5287
        %v5293 = vrot.slane %v5292, 4
        %v5295 = vshll.u32 %v5144, 16
        %v5297 = vrot.slane %v5295, 5
        %v5298 = vsel %vm1623, %v5293, %v5297
        %v5300 = vshrl.u32 %v5119, 16
        %v5302 = vrot.slane %v5300, 4
        %v5303 = vshll.u32 %v5119, 16
        %v5305 = vrot.slane %v5303, 5
        %v5306 = vor.u32 %v5302, %v5305
        %v5307 = vrot.slane %v5306, 4
        %v5309 = vshll.u32 %v5120, 16
        %v5311 = vrot.slane %v5309, 5
        %v5312 = vsel %vm1623, %v5307, %v5311
        %v5313 = vshrl.u32 %v5120, 16
        %v5315 = vrot.slane %v5313, 4
        %v5316 = vor.u32 %v5315, %v5311
        %v5317 = vrot.slane %v5316, 4
        %v5319 = vshll.u32 %v5145, 16
        %v5321 = vrot.slane %v5319, 5
        %v5322 = vsel %vm1623, %v5317, %v5321
        %v5324 = vshrl.u32 %v5121, 16
        %v5326 = vrot.slane %v5324, 4
        %v5327 = vshll.u32 %v5121, 16
        %v5329 = vrot.slane %v5327, 5
        %v5330 = vor.u32 %v5326, %v5329
        %v5331 = vrot.slane %v5330, 4
        %v5333 = vshll.u32 %v5122, 16
        %v5335 = vrot.slane %v5333, 5
        %v5336 = vsel %vm1623, %v5331, %v5335
        %v5337 = vshrl.u32 %v5122, 16
        %v5339 = vrot.slane %v5337, 4
        %v5340 = vor.u32 %v5339, %v5335
        %v5341 = vrot.slane %v5340, 4
        %v5343 = vshll.u32 %v5146, 16
        %v5345 = vrot.slane %v5343, 5
        %v5346 = vsel %vm1623, %v5341, %v5345
        %v5348 = vshrl.u32 %v5123, 16
        %v5350 = vrot.slane %v5348, 4
        %v5351 = vshll.u32 %v5123, 16
        %v5353 = vrot.slane %v5351, 5
        %v5354 = vor.u32 %v5350, %v5353
        %v5355 = vrot.slane %v5354, 4
        %v5357 = vshll.u32 %v5124, 16
        %v5359 = vrot.slane %v5357, 5
        %v5360 = vsel %vm1623, %v5355, %v5359
        %v5361 = vshrl.u32 %v5124, 16
        %v5363 = vrot.slane %v5361, 4
        %v5364 = vor.u32 %v5363, %v5359
        %v5365 = vrot.slane %v5364, 4
        %v5367 = vshll.u32 %v5147, 16
        %v5369 = vrot.slane %v5367, 5
        %v5370 = vsel %vm1623, %v5365, %v5369
        %v5372 = vshrl.u32 %v5125, 16
        %v5374 = vrot.slane %v5372, 4
        %v5375 = vshll.u32 %v5125, 16
        %v5377 = vrot.slane %v5375, 5
        %v5378 = vor.u32 %v5374, %v5377
        %v5379 = vrot.slane %v5378, 4
        %v5381 = vshll.u32 %v5126, 16
        %v5383 = vrot.slane %v5381, 5
        %v5384 = vsel %vm1623, %v5379, %v5383
        %v5385 = vshrl.u32 %v5126, 16
        %v5387 = vrot.slane %v5385, 4
        %v5388 = vor.u32 %v5387, %v5383
        %v5389 = vrot.slane %v5388, 4
        %v5391 = vshll.u32 %v5148, 16
        %v5393 = vrot.slane %v5391, 5
        %v5394 = vsel %vm1623, %v5389, %v5393
        %v5396 = vshrl.u32 %v5127, 16
        %v5398 = vrot.slane %v5396, 4
        %v5399 = vshll.u32 %v5127, 16
        %v5401 = vrot.slane %v5399, 5
        %v5402 = vor.u32 %v5398, %v5401
        %v5403 = vrot.slane %v5402, 4
        %v5405 = vshll.u32 %v5128, 16
        %v5407 = vrot.slane %v5405, 5
        %v5408 = vsel %vm1623, %v5403, %v5407
        %v5409 = vshrl.u32 %v5128, 16
        %v5411 = vrot.slane %v5409, 4
        %v5412 = vor.u32 %v5411, %v5407
        %v5413 = vrot.slane %v5412, 4
        %v5415 = vshll.u32 %v5149, 16
        %v5417 = vrot.slane %v5415, 5
        %v5418 = vsel %vm1623, %v5413, %v5417
        %v5420 = vshrl.u32 %v5129, 16
        %v5422 = vrot.slane %v5420, 4
        %v5423 = vshll.u32 %v5129, 16
        %v5425 = vrot.slane %v5423, 5
        %v5426 = vor.u32 %v5422, %v5425
        %v5427 = vrot.slane %v5426, 4
        %v5429 = vshll.u32 %v5130, 16
        %v5431 = vrot.slane %v5429, 5
        %v5432 = vsel %vm1623, %v5427, %v5431
        %v5433 = vshrl.u32 %v5130, 16
        %v5435 = vrot.slane %v5433, 4
        %v5436 = vor.u32 %v5435, %v5431
        %v5437 = vrot.slane %v5436, 4
        %v5439 = vshll.u32 %v5150, 16
        %v5441 = vrot.slane %v5439, 5
        %v5442 = vsel %vm1623, %v5437, %v5441
        %v5444 = vshrl.u32 %v5131, 16
        %v5446 = vrot.slane %v5444, 4
        %v5447 = vshll.u32 %v5131, 16
        %v5449 = vrot.slane %v5447, 5
        %v5450 = vor.u32 %v5446, %v5449
        %v5451 = vrot.slane %v5450, 4
        %v5453 = vshll.u32 %v5132, 16
        %v5455 = vrot.slane %v5453, 5
        %v5456 = vsel %vm1623, %v5451, %v5455
        %v5457 = vshrl.u32 %v5132, 16
        %v5459 = vrot.slane %v5457, 4
        %v5460 = vor.u32 %v5459, %v5455
        %v5461 = vrot.slane %v5460, 4
        %v5463 = vshll.u32 %v5151, 16
        %v5465 = vrot.slane %v5463, 5
        %v5466 = vsel %vm1623, %v5461, %v5465
        %v5468 = vshrl.u32 %v5133, 16
        %v5470 = vrot.slane %v5468, 4
        %v5471 = vshll.u32 %v5133, 16
        %v5473 = vrot.slane %v5471, 5
        %v5474 = vor.u32 %v5470, %v5473
        %v5475 = vrot.slane %v5474, 4
        %v5477 = vshll.u32 %v5134, 16
        %v5479 = vrot.slane %v5477, 5
        %v5480 = vsel %vm1623, %v5475, %v5479
        %v5481 = vshrl.u32 %v5134, 16
        %v5483 = vrot.slane %v5481, 4
        %v5484 = vor.u32 %v5483, %v5479
        %v5485 = vrot.slane %v5484, 4
        %v5487 = vshll.u32 %v5152, 16
        %v5489 = vrot.slane %v5487, 5
        %v5490 = vsel %vm1623, %v5485, %v5489
        %v5492 = vshrl.u32 %v5135, 16
        %v5494 = vrot.slane %v5492, 4
        %v5495 = vshll.u32 %v5135, 16
        %v5497 = vrot.slane %v5495, 5
        %v5498 = vor.u32 %v5494, %v5497
        %v5499 = vrot.slane %v5498, 4
        %v5501 = vshll.u32 %v5136, 16
        %v5503 = vrot.slane %v5501, 5
        %v5504 = vsel %vm1623, %v5499, %v5503
        %v5505 = vshrl.u32 %v5136, 16
        %v5507 = vrot.slane %v5505, 4
        %v5508 = vor.u32 %v5507, %v5503
        %v5509 = vrot.slane %v5508, 4
        %v5511 = vshll.u32 %v5153, 16
        %v5513 = vrot.slane %v5511, 5
        %v5514 = vsel %vm1623, %v5509, %v5513
        %v5516 = vshrl.u32 %v5137, 16
        %v5518 = vrot.slane %v5516, 4
        %v5519 = vshll.u32 %v5137, 16
        %v5521 = vrot.slane %v5519, 5
        %v5522 = vor.u32 %v5518, %v5521
        %v5523 = vrot.slane %v5522, 4
        %v5525 = vshll.u32 %v5138, 16
        %v5527 = vrot.slane %v5525, 5
        %v5528 = vsel %vm1623, %v5523, %v5527
        %v5529 = vshrl.u32 %v5138, 16
        %v5531 = vrot.slane %v5529, 4
        %v5532 = vor.u32 %v5531, %v5527
        %v5533 = vrot.slane %v5532, 4
        %v5535 = vshll.u32 %v5154, 16
        %v5537 = vrot.slane %v5535, 5
        %v5538 = vsel %vm1623, %v5533, %v5537
        %v5539 = vld [vmem:[#allocation3] sm:$0xe]
        %v5540 = vld [vmem:[#allocation3 + $0xc] sm:$0xe]
        %v5541 = vld [vmem:[#allocation3 + $0x18] sm:$0xe]
        %v5542 = vld [vmem:[#allocation3 + $0x24] sm:$0xe]
        %v5543 = vld [vmem:[#allocation3 + $0x30] sm:$0xe]
        %v5544 = vld [vmem:[#allocation3 + $0x3c] sm:$0xe]
        %v5545 = vld [vmem:[#allocation3 + $0x48] sm:$0xe]
        %v5546 = vld [vmem:[#allocation3 + $0x54] sm:$0xe]
        %v5547 = vld [vmem:[#allocation3 + $0x60] sm:$0xe]
        %v5548 = vld [vmem:[#allocation3 + $0x6c] sm:$0xe]
        %v5549 = vld [vmem:[#allocation3 + $0x78] sm:$0xe]
        %v5550 = vld [vmem:[#allocation3 + $0x84] sm:$0xe]
        %v5551 = vld [vmem:[#allocation3 + $0x90] sm:$0xe]
        %v5552 = vld [vmem:[#allocation3 + $0x9c] sm:$0xe]
        %v5553 = vld [vmem:[#allocation3 + $0xa8] sm:$0xe]
        %v5554 = vld [vmem:[#allocation3 + $0xb4] sm:$0xe]
        %v5603 = vrot.slane %v5539, 5
        %v5604 = vrot.slane %v5603, 4
        %v5605 = vrot.slane %v5108, 5
        %v5606 = vsel %vm2074, %v5604, %v5605
        %v5607 = vrot.slane %v5605, 4
        %v5608 = vrot.slane %v5139, 5
        %v5609 = vsel %vm2074, %v5607, %v5608
        %v5610 = vrot.slane %v5540, 5
        %v5611 = vrot.slane %v5610, 4
        %v5612 = vrot.slane %v5110, 5
        %v5613 = vsel %vm2074, %v5611, %v5612
        %v5614 = vrot.slane %v5612, 4
        %v5615 = vrot.slane %v5140, 5
        %v5616 = vsel %vm2074, %v5614, %v5615
        %v5617 = vrot.slane %v5541, 5
        %v5618 = vrot.slane %v5617, 4
        %v5619 = vrot.slane %v5112, 5
        %v5620 = vsel %vm2074, %v5618, %v5619
        %v5621 = vrot.slane %v5619, 4
        %v5622 = vrot.slane %v5141, 5
        %v5623 = vsel %vm2074, %v5621, %v5622
        %v5624 = vrot.slane %v5542, 5
        %v5625 = vrot.slane %v5624, 4
        %v5626 = vrot.slane %v5114, 5
        %v5627 = vsel %vm2074, %v5625, %v5626
        %v5628 = vrot.slane %v5626, 4
        %v5629 = vrot.slane %v5142, 5
        %v5630 = vsel %vm2074, %v5628, %v5629
        %v5631 = vrot.slane %v5543, 5
        %v5632 = vrot.slane %v5631, 4
        %v5633 = vrot.slane %v5116, 5
        %v5634 = vsel %vm2074, %v5632, %v5633
        %v5635 = vrot.slane %v5633, 4
        %v5636 = vrot.slane %v5143, 5
        %v5637 = vsel %vm2074, %v5635, %v5636
        %v5638 = vrot.slane %v5544, 5
        %v5639 = vrot.slane %v5638, 4
        %v5640 = vrot.slane %v5118, 5
        %v5641 = vsel %vm2074, %v5639, %v5640
        %v5642 = vrot.slane %v5640, 4
        %v5643 = vrot.slane %v5144, 5
        %v5644 = vsel %vm2074, %v5642, %v5643
        %v5645 = vrot.slane %v5545, 5
        %v5646 = vrot.slane %v5645, 4
        %v5647 = vrot.slane %v5120, 5
        %v5648 = vsel %vm2074, %v5646, %v5647
        %v5649 = vrot.slane %v5647, 4
        %v5650 = vrot.slane %v5145, 5
        %v5651 = vsel %vm2074, %v5649, %v5650
        %v5652 = vrot.slane %v5546, 5
        %v5653 = vrot.slane %v5652, 4
        %v5654 = vrot.slane %v5122, 5
        %v5655 = vsel %vm2074, %v5653, %v5654
        %v5656 = vrot.slane %v5654, 4
        %v5657 = vrot.slane %v5146, 5
        %v5658 = vsel %vm2074, %v5656, %v5657
        %v5659 = vrot.slane %v5547, 5
        %v5660 = vrot.slane %v5659, 4
        %v5661 = vrot.slane %v5124, 5
        %v5662 = vsel %vm2074, %v5660, %v5661
        %v5663 = vrot.slane %v5661, 4
        %v5664 = vrot.slane %v5147, 5
        %v5665 = vsel %vm2074, %v5663, %v5664
        %v5666 = vrot.slane %v5548, 5
        %v5667 = vrot.slane %v5666, 4
        %v5668 = vrot.slane %v5126, 5
        %v5669 = vsel %vm2074, %v5667, %v5668
        %v5670 = vrot.slane %v5668, 4
        %v5671 = vrot.slane %v5148, 5
        %v5672 = vsel %vm2074, %v5670, %v5671
        %v5673 = vrot.slane %v5549, 5
        %v5674 = vrot.slane %v5673, 4
        %v5675 = vrot.slane %v5128, 5
        %v5676 = vsel %vm2074, %v5674, %v5675
        %v5677 = vrot.slane %v5675, 4
        %v5678 = vrot.slane %v5149, 5
        %v5679 = vsel %vm2074, %v5677, %v5678
        %v5680 = vrot.slane %v5550, 5
        %v5681 = vrot.slane %v5680, 4
        %v5682 = vrot.slane %v5130, 5
        %v5683 = vsel %vm2074, %v5681, %v5682
        %v5684 = vrot.slane %v5682, 4
        %v5685 = vrot.slane %v5150, 5
        %v5686 = vsel %vm2074, %v5684, %v5685
        %v5687 = vrot.slane %v5551, 5
        %v5688 = vrot.slane %v5687, 4
        %v5689 = vrot.slane %v5132, 5
        %v5690 = vsel %vm2074, %v5688, %v5689
        %v5691 = vrot.slane %v5689, 4
        %v5692 = vrot.slane %v5151, 5
        %v5693 = vsel %vm2074, %v5691, %v5692
        %v5694 = vrot.slane %v5552, 5
        %v5695 = vrot.slane %v5694, 4
        %v5696 = vrot.slane %v5134, 5
        %v5697 = vsel %vm2074, %v5695, %v5696
        %v5698 = vrot.slane %v5696, 4
        %v5699 = vrot.slane %v5152, 5
        %v5700 = vsel %vm2074, %v5698, %v5699
        %v5701 = vrot.slane %v5553, 5
        %v5702 = vrot.slane %v5701, 4
        %v5703 = vrot.slane %v5136, 5
        %v5704 = vsel %vm2074, %v5702, %v5703
        %v5705 = vrot.slane %v5703, 4
        %v5706 = vrot.slane %v5153, 5
        %v5707 = vsel %vm2074, %v5705, %v5706
        %v5708 = vrot.slane %v5554, 5
        %v5709 = vrot.slane %v5708, 4
        %v5710 = vrot.slane %v5138, 5
        %v5711 = vsel %vm2074, %v5709, %v5710
        %v5712 = vrot.slane %v5710, 4
        %v5713 = vrot.slane %v5154, 5
        %v5714 = vsel %vm2074, %v5712, %v5713
        %s5715 = scalar_lea.vmem [#allocation3], 12
        %v5716 = vld [vmem:[%s5715] sm:$0xf]
        %v5717 = vld [vmem:[%s5715 + $0x4] sm:$0xf]
        %v5718 = vld [vmem:[%s5715 + $0xc] sm:$0xf]
        %v5719 = vld [vmem:[%s5715 + $0x10] sm:$0xf]
        %v5720 = vld [vmem:[%s5715 + $0x18] sm:$0xf]
        %v5721 = vld [vmem:[%s5715 + $0x1c] sm:$0xf]
        %v5722 = vld [vmem:[%s5715 + $0x24] sm:$0xf]
        %v5723 = vld [vmem:[%s5715 + $0x28] sm:$0xf]
        %v5724 = vld [vmem:[%s5715 + $0x30] sm:$0xf]
        %v5725 = vld [vmem:[%s5715 + $0x34] sm:$0xf]
        %v5726 = vld [vmem:[%s5715 + $0x3c] sm:$0xf]
        %v5727 = vld [vmem:[%s5715 + $0x40] sm:$0xf]
        %v5728 = vld [vmem:[%s5715 + $0x48] sm:$0xf]
        %v5729 = vld [vmem:[%s5715 + $0x4c] sm:$0xf]
        %v5730 = vld [vmem:[%s5715 + $0x54] sm:$0xf]
        %v5731 = vld [vmem:[%s5715 + $0x58] sm:$0xf]
        %v5732 = vld [vmem:[%s5715 + $0x60] sm:$0xf]
        %v5733 = vld [vmem:[%s5715 + $0x64] sm:$0xf]
        %v5734 = vld [vmem:[%s5715 + $0x6c] sm:$0xf]
        %v5735 = vld [vmem:[%s5715 + $0x70] sm:$0xf]
        %v5736 = vld [vmem:[%s5715 + $0x78] sm:$0xf]
        %v5737 = vld [vmem:[%s5715 + $0x7c] sm:$0xf]
        %v5738 = vld [vmem:[%s5715 + $0x84] sm:$0xf]
        %v5739 = vld [vmem:[%s5715 + $0x88] sm:$0xf]
        %v5740 = vld [vmem:[%s5715 + $0x90] sm:$0xf]
        %v5741 = vld [vmem:[%s5715 + $0x94] sm:$0xf]
        %v5742 = vld [vmem:[%s5715 + $0x9c] sm:$0xf]
        %v5743 = vld [vmem:[%s5715 + $0xa0] sm:$0xf]
        %v5744 = vld [vmem:[%s5715 + $0xa8] sm:$0xf]
        %v5745 = vld [vmem:[%s5715 + $0xac] sm:$0xf]
        %v5746 = vld [vmem:[%s5715 + $0xb4] sm:$0xf]
        %v5747 = vld [vmem:[%s5715 + $0xb8] sm:$0xf]
        %v5748 = vld [vmem:[%s5715 + $0x8] sm:$0x1]
        %v5749 = vld [vmem:[%s5715 + $0x14] sm:$0x1]
        %v5750 = vld [vmem:[%s5715 + $0x20] sm:$0x1]
        %v5751 = vld [vmem:[%s5715 + $0x2c] sm:$0x1]
        %v5752 = vld [vmem:[%s5715 + $0x38] sm:$0x1]
        %v5753 = vld [vmem:[%s5715 + $0x44] sm:$0x1]
        %v5754 = vld [vmem:[%s5715 + $0x50] sm:$0x1]
        %v5755 = vld [vmem:[%s5715 + $0x5c] sm:$0x1]
        %v5756 = vld [vmem:[%s5715 + $0x68] sm:$0x1]
        %v5757 = vld [vmem:[%s5715 + $0x74] sm:$0x1]
        %v5758 = vld [vmem:[%s5715 + $0x80] sm:$0x1]
        %v5759 = vld [vmem:[%s5715 + $0x8c] sm:$0x1]
        %v5760 = vld [vmem:[%s5715 + $0x98] sm:$0x1]
        %v5761 = vld [vmem:[%s5715 + $0xa4] sm:$0x1]
        %v5762 = vld [vmem:[%s5715 + $0xb0] sm:$0x1]
        %v5763 = vld [vmem:[%s5715 + $0xbc] sm:$0x1]
        %v5765 = vshrl.u32 %v5716, 16
        %v5767 = vrot.slane %v5765, 4
        %v5768 = vshll.u32 %v5716, 16
        %v5770 = vrot.slane %v5768, 5
        %v5771 = vor.u32 %v5767, %v5770
        %v5772 = vrot.slane %v5771, 4
        %v5774 = vshll.u32 %v5717, 16
        %v5776 = vrot.slane %v5774, 5
        %v5777 = vsel %vm1623, %v5772, %v5776
        %v5778 = vshrl.u32 %v5717, 16
        %v5780 = vrot.slane %v5778, 4
        %v5781 = vor.u32 %v5780, %v5776
        %v5782 = vrot.slane %v5781, 4
        %v5784 = vshll.u32 %v5748, 16
        %v5786 = vrot.slane %v5784, 5
        %v5787 = vsel %vm1623, %v5782, %v5786
        %v5789 = vshrl.u32 %v5718, 16
        %v5791 = vrot.slane %v5789, 4
        %v5792 = vshll.u32 %v5718, 16
        %v5794 = vrot.slane %v5792, 5
        %v5795 = vor.u32 %v5791, %v5794
        %v5796 = vrot.slane %v5795, 4
        %v5798 = vshll.u32 %v5719, 16
        %v5800 = vrot.slane %v5798, 5
        %v5801 = vsel %vm1623, %v5796, %v5800
        %v5802 = vshrl.u32 %v5719, 16
        %v5804 = vrot.slane %v5802, 4
        %v5805 = vor.u32 %v5804, %v5800
        %v5806 = vrot.slane %v5805, 4
        %v5808 = vshll.u32 %v5749, 16
        %v5810 = vrot.slane %v5808, 5
        %v5811 = vsel %vm1623, %v5806, %v5810
        %v5813 = vshrl.u32 %v5720, 16
        %v5815 = vrot.slane %v5813, 4
        %v5816 = vshll.u32 %v5720, 16
        %v5818 = vrot.slane %v5816, 5
        %v5819 = vor.u32 %v5815, %v5818
        %v5820 = vrot.slane %v5819, 4
        %v5822 = vshll.u32 %v5721, 16
        %v5824 = vrot.slane %v5822, 5
        %v5825 = vsel %vm1623, %v5820, %v5824
        %v5826 = vshrl.u32 %v5721, 16
        %v5828 = vrot.slane %v5826, 4
        %v5829 = vor.u32 %v5828, %v5824
        %v5830 = vrot.slane %v5829, 4
        %v5832 = vshll.u32 %v5750, 16
        %v5834 = vrot.slane %v5832, 5
        %v5835 = vsel %vm1623, %v5830, %v5834
        %v5837 = vshrl.u32 %v5722, 16
        %v5839 = vrot.slane %v5837, 4
        %v5840 = vshll.u32 %v5722, 16
        %v5842 = vrot.slane %v5840, 5
        %v5843 = vor.u32 %v5839, %v5842
        %v5844 = vrot.slane %v5843, 4
        %v5846 = vshll.u32 %v5723, 16
        %v5848 = vrot.slane %v5846, 5
        %v5849 = vsel %vm1623, %v5844, %v5848
        %v5850 = vshrl.u32 %v5723, 16
        %v5852 = vrot.slane %v5850, 4
        %v5853 = vor.u32 %v5852, %v5848
        %v5854 = vrot.slane %v5853, 4
        %v5856 = vshll.u32 %v5751, 16
        %v5858 = vrot.slane %v5856, 5
        %v5859 = vsel %vm1623, %v5854, %v5858
        %v5861 = vshrl.u32 %v5724, 16
        %v5863 = vrot.slane %v5861, 4
        %v5864 = vshll.u32 %v5724, 16
        %v5866 = vrot.slane %v5864, 5
        %v5867 = vor.u32 %v5863, %v5866
        %v5868 = vrot.slane %v5867, 4
        %v5870 = vshll.u32 %v5725, 16
        %v5872 = vrot.slane %v5870, 5
        %v5873 = vsel %vm1623, %v5868, %v5872
        %v5874 = vshrl.u32 %v5725, 16
        %v5876 = vrot.slane %v5874, 4
        %v5877 = vor.u32 %v5876, %v5872
        %v5878 = vrot.slane %v5877, 4
        %v5880 = vshll.u32 %v5752, 16
        %v5882 = vrot.slane %v5880, 5
        %v5883 = vsel %vm1623, %v5878, %v5882
        %v5885 = vshrl.u32 %v5726, 16
        %v5887 = vrot.slane %v5885, 4
        %v5888 = vshll.u32 %v5726, 16
        %v5890 = vrot.slane %v5888, 5
        %v5891 = vor.u32 %v5887, %v5890
        %v5892 = vrot.slane %v5891, 4
        %v5894 = vshll.u32 %v5727, 16
        %v5896 = vrot.slane %v5894, 5
        %v5897 = vsel %vm1623, %v5892, %v5896
        %v5898 = vshrl.u32 %v5727, 16
        %v5900 = vrot.slane %v5898, 4
        %v5901 = vor.u32 %v5900, %v5896
        %v5902 = vrot.slane %v5901, 4
        %v5904 = vshll.u32 %v5753, 16
        %v5906 = vrot.slane %v5904, 5
        %v5907 = vsel %vm1623, %v5902, %v5906
        %v5909 = vshrl.u32 %v5728, 16
        %v5911 = vrot.slane %v5909, 4
        %v5912 = vshll.u32 %v5728, 16
        %v5914 = vrot.slane %v5912, 5
        %v5915 = vor.u32 %v5911, %v5914
        %v5916 = vrot.slane %v5915, 4
        %v5918 = vshll.u32 %v5729, 16
        %v5920 = vrot.slane %v5918, 5
        %v5921 = vsel %vm1623, %v5916, %v5920
        %v5922 = vshrl.u32 %v5729, 16
        %v5924 = vrot.slane %v5922, 4
        %v5925 = vor.u32 %v5924, %v5920
        %v5926 = vrot.slane %v5925, 4
        %v5928 = vshll.u32 %v5754, 16
        %v5930 = vrot.slane %v5928, 5
        %v5931 = vsel %vm1623, %v5926, %v5930
        %v5933 = vshrl.u32 %v5730, 16
        %v5935 = vrot.slane %v5933, 4
        %v5936 = vshll.u32 %v5730, 16
        %v5938 = vrot.slane %v5936, 5
        %v5939 = vor.u32 %v5935, %v5938
        %v5940 = vrot.slane %v5939, 4
        %v5942 = vshll.u32 %v5731, 16
        %v5944 = vrot.slane %v5942, 5
        %v5945 = vsel %vm1623, %v5940, %v5944
        %v5946 = vshrl.u32 %v5731, 16
        %v5948 = vrot.slane %v5946, 4
        %v5949 = vor.u32 %v5948, %v5944
        %v5950 = vrot.slane %v5949, 4
        %v5952 = vshll.u32 %v5755, 16
        %v5954 = vrot.slane %v5952, 5
        %v5955 = vsel %vm1623, %v5950, %v5954
        %v5957 = vshrl.u32 %v5732, 16
        %v5959 = vrot.slane %v5957, 4
        %v5960 = vshll.u32 %v5732, 16
        %v5962 = vrot.slane %v5960, 5
        %v5963 = vor.u32 %v5959, %v5962
        %v5964 = vrot.slane %v5963, 4
        %v5966 = vshll.u32 %v5733, 16
        %v5968 = vrot.slane %v5966, 5
        %v5969 = vsel %vm1623, %v5964, %v5968
        %v5970 = vshrl.u32 %v5733, 16
        %v5972 = vrot.slane %v5970, 4
        %v5973 = vor.u32 %v5972, %v5968
        %v5974 = vrot.slane %v5973, 4
        %v5976 = vshll.u32 %v5756, 16
        %v5978 = vrot.slane %v5976, 5
        %v5979 = vsel %vm1623, %v5974, %v5978
        %v5981 = vshrl.u32 %v5734, 16
        %v5983 = vrot.slane %v5981, 4
        %v5984 = vshll.u32 %v5734, 16
        %v5986 = vrot.slane %v5984, 5
        %v5987 = vor.u32 %v5983, %v5986
        %v5988 = vrot.slane %v5987, 4
        %v5990 = vshll.u32 %v5735, 16
        %v5992 = vrot.slane %v5990, 5
        %v5993 = vsel %vm1623, %v5988, %v5992
        %v5994 = vshrl.u32 %v5735, 16
        %v5996 = vrot.slane %v5994, 4
        %v5997 = vor.u32 %v5996, %v5992
        %v5998 = vrot.slane %v5997, 4
        %v6000 = vshll.u32 %v5757, 16
        %v6002 = vrot.slane %v6000, 5
        %v6003 = vsel %vm1623, %v5998, %v6002
        %v6005 = vshrl.u32 %v5736, 16
        %v6007 = vrot.slane %v6005, 4
        %v6008 = vshll.u32 %v5736, 16
        %v6010 = vrot.slane %v6008, 5
        %v6011 = vor.u32 %v6007, %v6010
        %v6012 = vrot.slane %v6011, 4
        %v6014 = vshll.u32 %v5737, 16
        %v6016 = vrot.slane %v6014, 5
        %v6017 = vsel %vm1623, %v6012, %v6016
        %v6018 = vshrl.u32 %v5737, 16
        %v6020 = vrot.slane %v6018, 4
        %v6021 = vor.u32 %v6020, %v6016
        %v6022 = vrot.slane %v6021, 4
        %v6024 = vshll.u32 %v5758, 16
        %v6026 = vrot.slane %v6024, 5
        %v6027 = vsel %vm1623, %v6022, %v6026
        %v6029 = vshrl.u32 %v5738, 16
        %v6031 = vrot.slane %v6029, 4
        %v6032 = vshll.u32 %v5738, 16
        %v6034 = vrot.slane %v6032, 5
        %v6035 = vor.u32 %v6031, %v6034
        %v6036 = vrot.slane %v6035, 4
        %v6038 = vshll.u32 %v5739, 16
        %v6040 = vrot.slane %v6038, 5
        %v6041 = vsel %vm1623, %v6036, %v6040
        %v6042 = vshrl.u32 %v5739, 16
        %v6044 = vrot.slane %v6042, 4
        %v6045 = vor.u32 %v6044, %v6040
        %v6046 = vrot.slane %v6045, 4
        %v6048 = vshll.u32 %v5759, 16
        %v6050 = vrot.slane %v6048, 5
        %v6051 = vsel %vm1623, %v6046, %v6050
        %v6053 = vshrl.u32 %v5740, 16
        %v6055 = vrot.slane %v6053, 4
        %v6056 = vshll.u32 %v5740, 16
        %v6058 = vrot.slane %v6056, 5
        %v6059 = vor.u32 %v6055, %v6058
        %v6060 = vrot.slane %v6059, 4
        %v6062 = vshll.u32 %v5741, 16
        %v6064 = vrot.slane %v6062, 5
        %v6065 = vsel %vm1623, %v6060, %v6064
        %v6066 = vshrl.u32 %v5741, 16
        %v6068 = vrot.slane %v6066, 4
        %v6069 = vor.u32 %v6068, %v6064
        %v6070 = vrot.slane %v6069, 4
        %v6072 = vshll.u32 %v5760, 16
        %v6074 = vrot.slane %v6072, 5
        %v6075 = vsel %vm1623, %v6070, %v6074
        %v6077 = vshrl.u32 %v5742, 16
        %v6079 = vrot.slane %v6077, 4
        %v6080 = vshll.u32 %v5742, 16
        %v6082 = vrot.slane %v6080, 5
        %v6083 = vor.u32 %v6079, %v6082
        %v6084 = vrot.slane %v6083, 4
        %v6086 = vshll.u32 %v5743, 16
        %v6088 = vrot.slane %v6086, 5
        %v6089 = vsel %vm1623, %v6084, %v6088
        %v6090 = vshrl.u32 %v5743, 16
        %v6092 = vrot.slane %v6090, 4
        %v6093 = vor.u32 %v6092, %v6088
        %v6094 = vrot.slane %v6093, 4
        %v6096 = vshll.u32 %v5761, 16
        %v6098 = vrot.slane %v6096, 5
        %v6099 = vsel %vm1623, %v6094, %v6098
        %v6101 = vshrl.u32 %v5744, 16
        %v6103 = vrot.slane %v6101, 4
        %v6104 = vshll.u32 %v5744, 16
        %v6106 = vrot.slane %v6104, 5
        %v6107 = vor.u32 %v6103, %v6106
        %v6108 = vrot.slane %v6107, 4
        %v6110 = vshll.u32 %v5745, 16
        %v6112 = vrot.slane %v6110, 5
        %v6113 = vsel %vm1623, %v6108, %v6112
        %v6114 = vshrl.u32 %v5745, 16
        %v6116 = vrot.slane %v6114, 4
        %v6117 = vor.u32 %v6116, %v6112
        %v6118 = vrot.slane %v6117, 4
        %v6120 = vshll.u32 %v5762, 16
        %v6122 = vrot.slane %v6120, 5
        %v6123 = vsel %vm1623, %v6118, %v6122
        %v6125 = vshrl.u32 %v5746, 16
        %v6127 = vrot.slane %v6125, 4
        %v6128 = vshll.u32 %v5746, 16
        %v6130 = vrot.slane %v6128, 5
        %v6131 = vor.u32 %v6127, %v6130
        %v6132 = vrot.slane %v6131, 4
        %v6134 = vshll.u32 %v5747, 16
        %v6136 = vrot.slane %v6134, 5
        %v6137 = vsel %vm1623, %v6132, %v6136
        %v6138 = vshrl.u32 %v5747, 16
        %v6140 = vrot.slane %v6138, 4
        %v6141 = vor.u32 %v6140, %v6136
        %v6142 = vrot.slane %v6141, 4
        %v6144 = vshll.u32 %v5763, 16
        %v6146 = vrot.slane %v6144, 5
        %v6147 = vsel %vm1623, %v6142, %v6146
        %v6148 = vld [vmem:[%s5715] sm:$0xe]
        %v6149 = vld [vmem:[%s5715 + $0xc] sm:$0xe]
        %v6150 = vld [vmem:[%s5715 + $0x18] sm:$0xe]
        %v6151 = vld [vmem:[%s5715 + $0x24] sm:$0xe]
        %v6152 = vld [vmem:[%s5715 + $0x30] sm:$0xe]
        %v6153 = vld [vmem:[%s5715 + $0x3c] sm:$0xe]
        %v6154 = vld [vmem:[%s5715 + $0x48] sm:$0xe]
        %v6155 = vld [vmem:[%s5715 + $0x54] sm:$0xe]
        %v6156 = vld [vmem:[%s5715 + $0x60] sm:$0xe]
        %v6157 = vld [vmem:[%s5715 + $0x6c] sm:$0xe]
        %v6158 = vld [vmem:[%s5715 + $0x78] sm:$0xe]
        %v6159 = vld [vmem:[%s5715 + $0x84] sm:$0xe]
        %v6160 = vld [vmem:[%s5715 + $0x90] sm:$0xe]
        %v6161 = vld [vmem:[%s5715 + $0x9c] sm:$0xe]
        %v6162 = vld [vmem:[%s5715 + $0xa8] sm:$0xe]
        %v6163 = vld [vmem:[%s5715 + $0xb4] sm:$0xe]
        %v6212 = vrot.slane %v6148, 5
        %v6213 = vrot.slane %v6212, 4
        %v6214 = vrot.slane %v5717, 5
        %v6215 = vsel %vm2074, %v6213, %v6214
        %v6216 = vrot.slane %v6214, 4
        %v6217 = vrot.slane %v5748, 5
        %v6218 = vsel %vm2074, %v6216, %v6217
        %v6219 = vrot.slane %v6149, 5
        %v6220 = vrot.slane %v6219, 4
        %v6221 = vrot.slane %v5719, 5
        %v6222 = vsel %vm2074, %v6220, %v6221
        %v6223 = vrot.slane %v6221, 4
        %v6224 = vrot.slane %v5749, 5
        %v6225 = vsel %vm2074, %v6223, %v6224
        %v6226 = vrot.slane %v6150, 5
        %v6227 = vrot.slane %v6226, 4
        %v6228 = vrot.slane %v5721, 5
        %v6229 = vsel %vm2074, %v6227, %v6228
        %v6230 = vrot.slane %v6228, 4
        %v6231 = vrot.slane %v5750, 5
        %v6232 = vsel %vm2074, %v6230, %v6231
        %v6233 = vrot.slane %v6151, 5
        %v6234 = vrot.slane %v6233, 4
        %v6235 = vrot.slane %v5723, 5
        %v6236 = vsel %vm2074, %v6234, %v6235
        %v6237 = vrot.slane %v6235, 4
        %v6238 = vrot.slane %v5751, 5
        %v6239 = vsel %vm2074, %v6237, %v6238
        %v6240 = vrot.slane %v6152, 5
        %v6241 = vrot.slane %v6240, 4
        %v6242 = vrot.slane %v5725, 5
        %v6243 = vsel %vm2074, %v6241, %v6242
        %v6244 = vrot.slane %v6242, 4
        %v6245 = vrot.slane %v5752, 5
        %v6246 = vsel %vm2074, %v6244, %v6245
        %v6247 = vrot.slane %v6153, 5
        %v6248 = vrot.slane %v6247, 4
        %v6249 = vrot.slane %v5727, 5
        %v6250 = vsel %vm2074, %v6248, %v6249
        %v6251 = vrot.slane %v6249, 4
        %v6252 = vrot.slane %v5753, 5
        %v6253 = vsel %vm2074, %v6251, %v6252
        %v6254 = vrot.slane %v6154, 5
        %v6255 = vrot.slane %v6254, 4
        %v6256 = vrot.slane %v5729, 5
        %v6257 = vsel %vm2074, %v6255, %v6256
        %v6258 = vrot.slane %v6256, 4
        %v6259 = vrot.slane %v5754, 5
        %v6260 = vsel %vm2074, %v6258, %v6259
        %v6261 = vrot.slane %v6155, 5
        %v6262 = vrot.slane %v6261, 4
        %v6263 = vrot.slane %v5731, 5
        %v6264 = vsel %vm2074, %v6262, %v6263
        %v6265 = vrot.slane %v6263, 4
        %v6266 = vrot.slane %v5755, 5
        %v6267 = vsel %vm2074, %v6265, %v6266
        %v6268 = vrot.slane %v6156, 5
        %v6269 = vrot.slane %v6268, 4
        %v6270 = vrot.slane %v5733, 5
        %v6271 = vsel %vm2074, %v6269, %v6270
        %v6272 = vrot.slane %v6270, 4
        %v6273 = vrot.slane %v5756, 5
        %v6274 = vsel %vm2074, %v6272, %v6273
        %v6275 = vrot.slane %v6157, 5
        %v6276 = vrot.slane %v6275, 4
        %v6277 = vrot.slane %v5735, 5
        %v6278 = vsel %vm2074, %v6276, %v6277
        %v6279 = vrot.slane %v6277, 4
        %v6280 = vrot.slane %v5757, 5
        %v6281 = vsel %vm2074, %v6279, %v6280
        %v6282 = vrot.slane %v6158, 5
        %v6283 = vrot.slane %v6282, 4
        %v6284 = vrot.slane %v5737, 5
        %v6285 = vsel %vm2074, %v6283, %v6284
        %v6286 = vrot.slane %v6284, 4
        %v6287 = vrot.slane %v5758, 5
        %v6288 = vsel %vm2074, %v6286, %v6287
        %v6289 = vrot.slane %v6159, 5
        %v6290 = vrot.slane %v6289, 4
        %v6291 = vrot.slane %v5739, 5
        %v6292 = vsel %vm2074, %v6290, %v6291
        %v6293 = vrot.slane %v6291, 4
        %v6294 = vrot.slane %v5759, 5
        %v6295 = vsel %vm2074, %v6293, %v6294
        %v6296 = vrot.slane %v6160, 5
        %v6297 = vrot.slane %v6296, 4
        %v6298 = vrot.slane %v5741, 5
        %v6299 = vsel %vm2074, %v6297, %v6298
        %v6300 = vrot.slane %v6298, 4
        %v6301 = vrot.slane %v5760, 5
        %v6302 = vsel %vm2074, %v6300, %v6301
        %v6303 = vrot.slane %v6161, 5
        %v6304 = vrot.slane %v6303, 4
        %v6305 = vrot.slane %v5743, 5
        %v6306 = vsel %vm2074, %v6304, %v6305
        %v6307 = vrot.slane %v6305, 4
        %v6308 = vrot.slane %v5761, 5
        %v6309 = vsel %vm2074, %v6307, %v6308
        %v6310 = vrot.slane %v6162, 5
        %v6311 = vrot.slane %v6310, 4
        %v6312 = vrot.slane %v5745, 5
        %v6313 = vsel %vm2074, %v6311, %v6312
        %v6314 = vrot.slane %v6312, 4
        %v6315 = vrot.slane %v5762, 5
        %v6316 = vsel %vm2074, %v6314, %v6315
        %v6317 = vrot.slane %v6163, 5
        %v6318 = vrot.slane %v6317, 4
        %v6319 = vrot.slane %v5747, 5
        %v6320 = vsel %vm2074, %v6318, %v6319
        %v6321 = vrot.slane %v6319, 4
        %v6322 = vrot.slane %v5763, 5
        %v6323 = vsel %vm2074, %v6321, %v6322
        %s6324 = scalar_lea.vmem [#allocation3], 24
        %v6325 = vld [vmem:[%s6324] sm:$0xf]
        %v6326 = vld [vmem:[%s6324 + $0x4] sm:$0xf]
        %v6327 = vld [vmem:[%s6324 + $0xc] sm:$0xf]
        %v6328 = vld [vmem:[%s6324 + $0x10] sm:$0xf]
        %v6329 = vld [vmem:[%s6324 + $0x18] sm:$0xf]
        %v6330 = vld [vmem:[%s6324 + $0x1c] sm:$0xf]
        %v6331 = vld [vmem:[%s6324 + $0x24] sm:$0xf]
        %v6332 = vld [vmem:[%s6324 + $0x28] sm:$0xf]
        %v6333 = vld [vmem:[%s6324 + $0x30] sm:$0xf]
        %v6334 = vld [vmem:[%s6324 + $0x34] sm:$0xf]
        %v6335 = vld [vmem:[%s6324 + $0x3c] sm:$0xf]
        %v6336 = vld [vmem:[%s6324 + $0x40] sm:$0xf]
        %v6337 = vld [vmem:[%s6324 + $0x48] sm:$0xf]
        %v6338 = vld [vmem:[%s6324 + $0x4c] sm:$0xf]
        %v6339 = vld [vmem:[%s6324 + $0x54] sm:$0xf]
        %v6340 = vld [vmem:[%s6324 + $0x58] sm:$0xf]
        %v6341 = vld [vmem:[%s6324 + $0x60] sm:$0xf]
        %v6342 = vld [vmem:[%s6324 + $0x64] sm:$0xf]
        %v6343 = vld [vmem:[%s6324 + $0x6c] sm:$0xf]
        %v6344 = vld [vmem:[%s6324 + $0x70] sm:$0xf]
        %v6345 = vld [vmem:[%s6324 + $0x78] sm:$0xf]
        %v6346 = vld [vmem:[%s6324 + $0x7c] sm:$0xf]
        %v6347 = vld [vmem:[%s6324 + $0x84] sm:$0xf]
        %v6348 = vld [vmem:[%s6324 + $0x88] sm:$0xf]
        %v6349 = vld [vmem:[%s6324 + $0x90] sm:$0xf]
        %v6350 = vld [vmem:[%s6324 + $0x94] sm:$0xf]
        %v6351 = vld [vmem:[%s6324 + $0x9c] sm:$0xf]
        %v6352 = vld [vmem:[%s6324 + $0xa0] sm:$0xf]
        %v6353 = vld [vmem:[%s6324 + $0xa8] sm:$0xf]
        %v6354 = vld [vmem:[%s6324 + $0xac] sm:$0xf]
        %v6355 = vld [vmem:[%s6324 + $0xb4] sm:$0xf]
        %v6356 = vld [vmem:[%s6324 + $0xb8] sm:$0xf]
        %v6357 = vld [vmem:[%s6324 + $0x8] sm:$0x1]
        %v6358 = vld [vmem:[%s6324 + $0x14] sm:$0x1]
        %v6359 = vld [vmem:[%s6324 + $0x20] sm:$0x1]
        %v6360 = vld [vmem:[%s6324 + $0x2c] sm:$0x1]
        %v6361 = vld [vmem:[%s6324 + $0x38] sm:$0x1]
        %v6362 = vld [vmem:[%s6324 + $0x44] sm:$0x1]
        %v6363 = vld [vmem:[%s6324 + $0x50] sm:$0x1]
        %v6364 = vld [vmem:[%s6324 + $0x5c] sm:$0x1]
        %v6365 = vld [vmem:[%s6324 + $0x68] sm:$0x1]
        %v6366 = vld [vmem:[%s6324 + $0x74] sm:$0x1]
        %v6367 = vld [vmem:[%s6324 + $0x80] sm:$0x1]
        %v6368 = vld [vmem:[%s6324 + $0x8c] sm:$0x1]
        %v6369 = vld [vmem:[%s6324 + $0x98] sm:$0x1]
        %v6370 = vld [vmem:[%s6324 + $0xa4] sm:$0x1]
        %v6371 = vld [vmem:[%s6324 + $0xb0] sm:$0x1]
        %v6372 = vld [vmem:[%s6324 + $0xbc] sm:$0x1]
        %v6374 = vshrl.u32 %v6325, 16
        %v6376 = vrot.slane %v6374, 4
        %v6377 = vshll.u32 %v6325, 16
        %v6379 = vrot.slane %v6377, 5
        %v6380 = vor.u32 %v6376, %v6379
        %v6381 = vrot.slane %v6380, 4
        %v6383 = vshll.u32 %v6326, 16
        %v6385 = vrot.slane %v6383, 5
        %v6386 = vsel %vm1623, %v6381, %v6385
        %v6387 = vshrl.u32 %v6326, 16
        %v6389 = vrot.slane %v6387, 4
        %v6390 = vor.u32 %v6389, %v6385
        %v6391 = vrot.slane %v6390, 4
        %v6393 = vshll.u32 %v6357, 16
        %v6395 = vrot.slane %v6393, 5
        %v6396 = vsel %vm1623, %v6391, %v6395
        %v6398 = vshrl.u32 %v6327, 16
        %v6400 = vrot.slane %v6398, 4
        %v6401 = vshll.u32 %v6327, 16
        %v6403 = vrot.slane %v6401, 5
        %v6404 = vor.u32 %v6400, %v6403
        %v6405 = vrot.slane %v6404, 4
        %v6407 = vshll.u32 %v6328, 16
        %v6409 = vrot.slane %v6407, 5
        %v6410 = vsel %vm1623, %v6405, %v6409
        %v6411 = vshrl.u32 %v6328, 16
        %v6413 = vrot.slane %v6411, 4
        %v6414 = vor.u32 %v6413, %v6409
        %v6415 = vrot.slane %v6414, 4
        %v6417 = vshll.u32 %v6358, 16
        %v6419 = vrot.slane %v6417, 5
        %v6420 = vsel %vm1623, %v6415, %v6419
        %v6422 = vshrl.u32 %v6329, 16
        %v6424 = vrot.slane %v6422, 4
        %v6425 = vshll.u32 %v6329, 16
        %v6427 = vrot.slane %v6425, 5
        %v6428 = vor.u32 %v6424, %v6427
        %v6429 = vrot.slane %v6428, 4
        %v6431 = vshll.u32 %v6330, 16
        %v6433 = vrot.slane %v6431, 5
        %v6434 = vsel %vm1623, %v6429, %v6433
        %v6435 = vshrl.u32 %v6330, 16
        %v6437 = vrot.slane %v6435, 4
        %v6438 = vor.u32 %v6437, %v6433
        %v6439 = vrot.slane %v6438, 4
        %v6441 = vshll.u32 %v6359, 16
        %v6443 = vrot.slane %v6441, 5
        %v6444 = vsel %vm1623, %v6439, %v6443
        %v6446 = vshrl.u32 %v6331, 16
        %v6448 = vrot.slane %v6446, 4
        %v6449 = vshll.u32 %v6331, 16
        %v6451 = vrot.slane %v6449, 5
        %v6452 = vor.u32 %v6448, %v6451
        %v6453 = vrot.slane %v6452, 4
        %v6455 = vshll.u32 %v6332, 16
        %v6457 = vrot.slane %v6455, 5
        %v6458 = vsel %vm1623, %v6453, %v6457
        %v6459 = vshrl.u32 %v6332, 16
        %v6461 = vrot.slane %v6459, 4
        %v6462 = vor.u32 %v6461, %v6457
        %v6463 = vrot.slane %v6462, 4
        %v6465 = vshll.u32 %v6360, 16
        %v6467 = vrot.slane %v6465, 5
        %v6468 = vsel %vm1623, %v6463, %v6467
        %v6470 = vshrl.u32 %v6333, 16
        %v6472 = vrot.slane %v6470, 4
        %v6473 = vshll.u32 %v6333, 16
        %v6475 = vrot.slane %v6473, 5
        %v6476 = vor.u32 %v6472, %v6475
        %v6477 = vrot.slane %v6476, 4
        %v6479 = vshll.u32 %v6334, 16
        %v6481 = vrot.slane %v6479, 5
        %v6482 = vsel %vm1623, %v6477, %v6481
        %v6483 = vshrl.u32 %v6334, 16
        %v6485 = vrot.slane %v6483, 4
        %v6486 = vor.u32 %v6485, %v6481
        %v6487 = vrot.slane %v6486, 4
        %v6489 = vshll.u32 %v6361, 16
        %v6491 = vrot.slane %v6489, 5
        %v6492 = vsel %vm1623, %v6487, %v6491
        %v6494 = vshrl.u32 %v6335, 16
        %v6496 = vrot.slane %v6494, 4
        %v6497 = vshll.u32 %v6335, 16
        %v6499 = vrot.slane %v6497, 5
        %v6500 = vor.u32 %v6496, %v6499
        %v6501 = vrot.slane %v6500, 4
        %v6503 = vshll.u32 %v6336, 16
        %v6505 = vrot.slane %v6503, 5
        %v6506 = vsel %vm1623, %v6501, %v6505
        %v6507 = vshrl.u32 %v6336, 16
        %v6509 = vrot.slane %v6507, 4
        %v6510 = vor.u32 %v6509, %v6505
        %v6511 = vrot.slane %v6510, 4
        %v6513 = vshll.u32 %v6362, 16
        %v6515 = vrot.slane %v6513, 5
        %v6516 = vsel %vm1623, %v6511, %v6515
        %v6518 = vshrl.u32 %v6337, 16
        %v6520 = vrot.slane %v6518, 4
        %v6521 = vshll.u32 %v6337, 16
        %v6523 = vrot.slane %v6521, 5
        %v6524 = vor.u32 %v6520, %v6523
        %v6525 = vrot.slane %v6524, 4
        %v6527 = vshll.u32 %v6338, 16
        %v6529 = vrot.slane %v6527, 5
        %v6530 = vsel %vm1623, %v6525, %v6529
        %v6531 = vshrl.u32 %v6338, 16
        %v6533 = vrot.slane %v6531, 4
        %v6534 = vor.u32 %v6533, %v6529
        %v6535 = vrot.slane %v6534, 4
        %v6537 = vshll.u32 %v6363, 16
        %v6539 = vrot.slane %v6537, 5
        %v6540 = vsel %vm1623, %v6535, %v6539
        %v6542 = vshrl.u32 %v6339, 16
        %v6544 = vrot.slane %v6542, 4
        %v6545 = vshll.u32 %v6339, 16
        %v6547 = vrot.slane %v6545, 5
        %v6548 = vor.u32 %v6544, %v6547
        %v6549 = vrot.slane %v6548, 4
        %v6551 = vshll.u32 %v6340, 16
        %v6553 = vrot.slane %v6551, 5
        %v6554 = vsel %vm1623, %v6549, %v6553
        %v6555 = vshrl.u32 %v6340, 16
        %v6557 = vrot.slane %v6555, 4
        %v6558 = vor.u32 %v6557, %v6553
        %v6559 = vrot.slane %v6558, 4
        %v6561 = vshll.u32 %v6364, 16
        %v6563 = vrot.slane %v6561, 5
        %v6564 = vsel %vm1623, %v6559, %v6563
        %v6566 = vshrl.u32 %v6341, 16
        %v6568 = vrot.slane %v6566, 4
        %v6569 = vshll.u32 %v6341, 16
        %v6571 = vrot.slane %v6569, 5
        %v6572 = vor.u32 %v6568, %v6571
        %v6573 = vrot.slane %v6572, 4
        %v6575 = vshll.u32 %v6342, 16
        %v6577 = vrot.slane %v6575, 5
        %v6578 = vsel %vm1623, %v6573, %v6577
        %v6579 = vshrl.u32 %v6342, 16
        %v6581 = vrot.slane %v6579, 4
        %v6582 = vor.u32 %v6581, %v6577
        %v6583 = vrot.slane %v6582, 4
        %v6585 = vshll.u32 %v6365, 16
        %v6587 = vrot.slane %v6585, 5
        %v6588 = vsel %vm1623, %v6583, %v6587
        %v6590 = vshrl.u32 %v6343, 16
        %v6592 = vrot.slane %v6590, 4
        %v6593 = vshll.u32 %v6343, 16
        %v6595 = vrot.slane %v6593, 5
        %v6596 = vor.u32 %v6592, %v6595
        %v6597 = vrot.slane %v6596, 4
        %v6599 = vshll.u32 %v6344, 16
        %v6601 = vrot.slane %v6599, 5
        %v6602 = vsel %vm1623, %v6597, %v6601
        %v6603 = vshrl.u32 %v6344, 16
        %v6605 = vrot.slane %v6603, 4
        %v6606 = vor.u32 %v6605, %v6601
        %v6607 = vrot.slane %v6606, 4
        %v6609 = vshll.u32 %v6366, 16
        %v6611 = vrot.slane %v6609, 5
        %v6612 = vsel %vm1623, %v6607, %v6611
        %v6614 = vshrl.u32 %v6345, 16
        %v6616 = vrot.slane %v6614, 4
        %v6617 = vshll.u32 %v6345, 16
        %v6619 = vrot.slane %v6617, 5
        %v6620 = vor.u32 %v6616, %v6619
        %v6621 = vrot.slane %v6620, 4
        %v6623 = vshll.u32 %v6346, 16
        %v6625 = vrot.slane %v6623, 5
        %v6626 = vsel %vm1623, %v6621, %v6625
        %v6627 = vshrl.u32 %v6346, 16
        %v6629 = vrot.slane %v6627, 4
        %v6630 = vor.u32 %v6629, %v6625
        %v6631 = vrot.slane %v6630, 4
        %v6633 = vshll.u32 %v6367, 16
        %v6635 = vrot.slane %v6633, 5
        %v6636 = vsel %vm1623, %v6631, %v6635
        %v6638 = vshrl.u32 %v6347, 16
        %v6640 = vrot.slane %v6638, 4
        %v6641 = vshll.u32 %v6347, 16
        %v6643 = vrot.slane %v6641, 5
        %v6644 = vor.u32 %v6640, %v6643
        %v6645 = vrot.slane %v6644, 4
        %v6647 = vshll.u32 %v6348, 16
        %v6649 = vrot.slane %v6647, 5
        %v6650 = vsel %vm1623, %v6645, %v6649
        %v6651 = vshrl.u32 %v6348, 16
        %v6653 = vrot.slane %v6651, 4
        %v6654 = vor.u32 %v6653, %v6649
        %v6655 = vrot.slane %v6654, 4
        %v6657 = vshll.u32 %v6368, 16
        %v6659 = vrot.slane %v6657, 5
        %v6660 = vsel %vm1623, %v6655, %v6659
        %v6662 = vshrl.u32 %v6349, 16
        %v6664 = vrot.slane %v6662, 4
        %v6665 = vshll.u32 %v6349, 16
        %v6667 = vrot.slane %v6665, 5
        %v6668 = vor.u32 %v6664, %v6667
        %v6669 = vrot.slane %v6668, 4
        %v6671 = vshll.u32 %v6350, 16
        %v6673 = vrot.slane %v6671, 5
        %v6674 = vsel %vm1623, %v6669, %v6673
        %v6675 = vshrl.u32 %v6350, 16
        %v6677 = vrot.slane %v6675, 4
        %v6678 = vor.u32 %v6677, %v6673
        %v6679 = vrot.slane %v6678, 4
        %v6681 = vshll.u32 %v6369, 16
        %v6683 = vrot.slane %v6681, 5
        %v6684 = vsel %vm1623, %v6679, %v6683
        %v6686 = vshrl.u32 %v6351, 16
        %v6688 = vrot.slane %v6686, 4
        %v6689 = vshll.u32 %v6351, 16
        %v6691 = vrot.slane %v6689, 5
        %v6692 = vor.u32 %v6688, %v6691
        %v6693 = vrot.slane %v6692, 4
        %v6695 = vshll.u32 %v6352, 16
        %v6697 = vrot.slane %v6695, 5
        %v6698 = vsel %vm1623, %v6693, %v6697
        %v6699 = vshrl.u32 %v6352, 16
        %v6701 = vrot.slane %v6699, 4
        %v6702 = vor.u32 %v6701, %v6697
        %v6703 = vrot.slane %v6702, 4
        %v6705 = vshll.u32 %v6370, 16
        %v6707 = vrot.slane %v6705, 5
        %v6708 = vsel %vm1623, %v6703, %v6707
        %v6710 = vshrl.u32 %v6353, 16
        %v6712 = vrot.slane %v6710, 4
        %v6713 = vshll.u32 %v6353, 16
        %v6715 = vrot.slane %v6713, 5
        %v6716 = vor.u32 %v6712, %v6715
        %v6717 = vrot.slane %v6716, 4
        %v6719 = vshll.u32 %v6354, 16
        %v6721 = vrot.slane %v6719, 5
        %v6722 = vsel %vm1623, %v6717, %v6721
        %v6723 = vshrl.u32 %v6354, 16
        %v6725 = vrot.slane %v6723, 4
        %v6726 = vor.u32 %v6725, %v6721
        %v6727 = vrot.slane %v6726, 4
        %v6729 = vshll.u32 %v6371, 16
        %v6731 = vrot.slane %v6729, 5
        %v6732 = vsel %vm1623, %v6727, %v6731
        %v6734 = vshrl.u32 %v6355, 16
        %v6736 = vrot.slane %v6734, 4
        %v6737 = vshll.u32 %v6355, 16
        %v6739 = vrot.slane %v6737, 5
        %v6740 = vor.u32 %v6736, %v6739
        %v6741 = vrot.slane %v6740, 4
        %v6743 = vshll.u32 %v6356, 16
        %v6745 = vrot.slane %v6743, 5
        %v6746 = vsel %vm1623, %v6741, %v6745
        %v6747 = vshrl.u32 %v6356, 16
        %v6749 = vrot.slane %v6747, 4
        %v6750 = vor.u32 %v6749, %v6745
        %v6751 = vrot.slane %v6750, 4
        %v6753 = vshll.u32 %v6372, 16
        %v6755 = vrot.slane %v6753, 5
        %v6756 = vsel %vm1623, %v6751, %v6755
        %v6757 = vld [vmem:[%s6324] sm:$0xe]
        %v6758 = vld [vmem:[%s6324 + $0xc] sm:$0xe]
        %v6759 = vld [vmem:[%s6324 + $0x18] sm:$0xe]
        %v6760 = vld [vmem:[%s6324 + $0x24] sm:$0xe]
        %v6761 = vld [vmem:[%s6324 + $0x30] sm:$0xe]
        %v6762 = vld [vmem:[%s6324 + $0x3c] sm:$0xe]
        %v6763 = vld [vmem:[%s6324 + $0x48] sm:$0xe]
        %v6764 = vld [vmem:[%s6324 + $0x54] sm:$0xe]
        %v6765 = vld [vmem:[%s6324 + $0x60] sm:$0xe]
        %v6766 = vld [vmem:[%s6324 + $0x6c] sm:$0xe]
        %v6767 = vld [vmem:[%s6324 + $0x78] sm:$0xe]
        %v6768 = vld [vmem:[%s6324 + $0x84] sm:$0xe]
        %v6769 = vld [vmem:[%s6324 + $0x90] sm:$0xe]
        %v6770 = vld [vmem:[%s6324 + $0x9c] sm:$0xe]
        %v6771 = vld [vmem:[%s6324 + $0xa8] sm:$0xe]
        %v6772 = vld [vmem:[%s6324 + $0xb4] sm:$0xe]
        %v6821 = vrot.slane %v6757, 5
        %v6822 = vrot.slane %v6821, 4
        %v6823 = vrot.slane %v6326, 5
        %v6824 = vsel %vm2074, %v6822, %v6823
        %v6825 = vrot.slane %v6823, 4
        %v6826 = vrot.slane %v6357, 5
        %v6827 = vsel %vm2074, %v6825, %v6826
        %v6828 = vrot.slane %v6758, 5
        %v6829 = vrot.slane %v6828, 4
        %v6830 = vrot.slane %v6328, 5
        %v6831 = vsel %vm2074, %v6829, %v6830
        %v6832 = vrot.slane %v6830, 4
        %v6833 = vrot.slane %v6358, 5
        %v6834 = vsel %vm2074, %v6832, %v6833
        %v6835 = vrot.slane %v6759, 5
        %v6836 = vrot.slane %v6835, 4
        %v6837 = vrot.slane %v6330, 5
        %v6838 = vsel %vm2074, %v6836, %v6837
        %v6839 = vrot.slane %v6837, 4
        %v6840 = vrot.slane %v6359, 5
        %v6841 = vsel %vm2074, %v6839, %v6840
        %v6842 = vrot.slane %v6760, 5
        %v6843 = vrot.slane %v6842, 4
        %v6844 = vrot.slane %v6332, 5
        %v6845 = vsel %vm2074, %v6843, %v6844
        %v6846 = vrot.slane %v6844, 4
        %v6847 = vrot.slane %v6360, 5
        %v6848 = vsel %vm2074, %v6846, %v6847
        %v6849 = vrot.slane %v6761, 5
        %v6850 = vrot.slane %v6849, 4
        %v6851 = vrot.slane %v6334, 5
        %v6852 = vsel %vm2074, %v6850, %v6851
        %v6853 = vrot.slane %v6851, 4
        %v6854 = vrot.slane %v6361, 5
        %v6855 = vsel %vm2074, %v6853, %v6854
        %v6856 = vrot.slane %v6762, 5
        %v6857 = vrot.slane %v6856, 4
        %v6858 = vrot.slane %v6336, 5
        %v6859 = vsel %vm2074, %v6857, %v6858
        %v6860 = vrot.slane %v6858, 4
        %v6861 = vrot.slane %v6362, 5
        %v6862 = vsel %vm2074, %v6860, %v6861
        %v6863 = vrot.slane %v6763, 5
        %v6864 = vrot.slane %v6863, 4
        %v6865 = vrot.slane %v6338, 5
        %v6866 = vsel %vm2074, %v6864, %v6865
        %v6867 = vrot.slane %v6865, 4
        %v6868 = vrot.slane %v6363, 5
        %v6869 = vsel %vm2074, %v6867, %v6868
        %v6870 = vrot.slane %v6764, 5
        %v6871 = vrot.slane %v6870, 4
        %v6872 = vrot.slane %v6340, 5
        %v6873 = vsel %vm2074, %v6871, %v6872
        %v6874 = vrot.slane %v6872, 4
        %v6875 = vrot.slane %v6364, 5
        %v6876 = vsel %vm2074, %v6874, %v6875
        %v6877 = vrot.slane %v6765, 5
        %v6878 = vrot.slane %v6877, 4
        %v6879 = vrot.slane %v6342, 5
        %v6880 = vsel %vm2074, %v6878, %v6879
        %v6881 = vrot.slane %v6879, 4
        %v6882 = vrot.slane %v6365, 5
        %v6883 = vsel %vm2074, %v6881, %v6882
        %v6884 = vrot.slane %v6766, 5
        %v6885 = vrot.slane %v6884, 4
        %v6886 = vrot.slane %v6344, 5
        %v6887 = vsel %vm2074, %v6885, %v6886
        %v6888 = vrot.slane %v6886, 4
        %v6889 = vrot.slane %v6366, 5
        %v6890 = vsel %vm2074, %v6888, %v6889
        %v6891 = vrot.slane %v6767, 5
        %v6892 = vrot.slane %v6891, 4
        %v6893 = vrot.slane %v6346, 5
        %v6894 = vsel %vm2074, %v6892, %v6893
        %v6895 = vrot.slane %v6893, 4
        %v6896 = vrot.slane %v6367, 5
        %v6897 = vsel %vm2074, %v6895, %v6896
        %v6898 = vrot.slane %v6768, 5
        %v6899 = vrot.slane %v6898, 4
        %v6900 = vrot.slane %v6348, 5
        %v6901 = vsel %vm2074, %v6899, %v6900
        %v6902 = vrot.slane %v6900, 4
        %v6903 = vrot.slane %v6368, 5
        %v6904 = vsel %vm2074, %v6902, %v6903
        %v6905 = vrot.slane %v6769, 5
        %v6906 = vrot.slane %v6905, 4
        %v6907 = vrot.slane %v6350, 5
        %v6908 = vsel %vm2074, %v6906, %v6907
        %v6909 = vrot.slane %v6907, 4
        %v6910 = vrot.slane %v6369, 5
        %v6911 = vsel %vm2074, %v6909, %v6910
        %v6912 = vrot.slane %v6770, 5
        %v6913 = vrot.slane %v6912, 4
        %v6914 = vrot.slane %v6352, 5
        %v6915 = vsel %vm2074, %v6913, %v6914
        %v6916 = vrot.slane %v6914, 4
        %v6917 = vrot.slane %v6370, 5
        %v6918 = vsel %vm2074, %v6916, %v6917
        %v6919 = vrot.slane %v6771, 5
        %v6920 = vrot.slane %v6919, 4
        %v6921 = vrot.slane %v6354, 5
        %v6922 = vsel %vm2074, %v6920, %v6921
        %v6923 = vrot.slane %v6921, 4
        %v6924 = vrot.slane %v6371, 5
        %v6925 = vsel %vm2074, %v6923, %v6924
        %v6926 = vrot.slane %v6772, 5
        %v6927 = vrot.slane %v6926, 4
        %v6928 = vrot.slane %v6356, 5
        %v6929 = vsel %vm2074, %v6927, %v6928
        %v6930 = vrot.slane %v6928, 4
        %v6931 = vrot.slane %v6372, 5
        %v6932 = vsel %vm2074, %v6930, %v6931
        %v6949 = vunpack.c.l.b16 %v5107
        %v6950 = vunpack.c.l.b16 %v5108
        %v6951 = vunpack.c.l.b16 %v5109
        %v6952 = vunpack.c.l.b16 %v5110
        %v6953 = vunpack.c.l.b16 %v5111
        %v6954 = vunpack.c.l.b16 %v5112
        %v6955 = vunpack.c.l.b16 %v5113
        %v6956 = vunpack.c.l.b16 %v5114
        %v6957 = vunpack.c.l.b16 %v5115
        %v6958 = vunpack.c.l.b16 %v5116
        %v6959 = vunpack.c.l.b16 %v5117
        %v6960 = vunpack.c.l.b16 %v5118
        %v6961 = vunpack.c.l.b16 %v5119
        %v6962 = vunpack.c.l.b16 %v5120
        %v6963 = vunpack.c.l.b16 %v5121
        %v6964 = vunpack.c.l.b16 %v5122
        %v6965 = vunpack.c.l.b16 %v5123
        %v6966 = vunpack.c.l.b16 %v5124
        %v6967 = vunpack.c.l.b16 %v5125
        %v6968 = vunpack.c.l.b16 %v5126
        %v6969 = vunpack.c.l.b16 %v5127
        %v6970 = vunpack.c.l.b16 %v5128
        %v6971 = vunpack.c.l.b16 %v5129
        %v6972 = vunpack.c.l.b16 %v5130
        %v6973 = vunpack.c.l.b16 %v5131
        %v6974 = vunpack.c.l.b16 %v5132
        %v6975 = vunpack.c.l.b16 %v5133
        %v6976 = vunpack.c.l.b16 %v5134
        %v6977 = vunpack.c.l.b16 %v5135
        %v6978 = vunpack.c.l.b16 %v5136
        %v6979 = vunpack.c.l.b16 %v5137
        %v6980 = vunpack.c.l.b16 %v5138
        %v6981 = vpack.c.b16 %v6950, %v6949
        %v6982 = vpack.c.b16 %v6952, %v6951
        %v6983 = vpack.c.b16 %v6954, %v6953
        %v6984 = vpack.c.b16 %v6956, %v6955
        %v6985 = vpack.c.b16 %v6958, %v6957
        %v6986 = vpack.c.b16 %v6960, %v6959
        %v6987 = vpack.c.b16 %v6962, %v6961
        %v6988 = vpack.c.b16 %v6964, %v6963
        %v6989 = vpack.c.b16 %v6966, %v6965
        %v6990 = vpack.c.b16 %v6968, %v6967
        %v6991 = vpack.c.b16 %v6970, %v6969
        %v6992 = vpack.c.b16 %v6972, %v6971
        %v6993 = vpack.c.b16 %v6974, %v6973
        %v6994 = vpack.c.b16 %v6976, %v6975
        %v6995 = vpack.c.b16 %v6978, %v6977
        %v6996 = vpack.c.b16 %v6980, %v6979
        %v6997 = vunpack.c.l.b16 %v5168
        %v6998 = vunpack.c.l.b16 %v5178
        %v6999 = vunpack.c.l.b16 %v5192
        %v7000 = vunpack.c.l.b16 %v5202
        %v7001 = vunpack.c.l.b16 %v5216
        %v7002 = vunpack.c.l.b16 %v5226
        %v7003 = vunpack.c.l.b16 %v5240
        %v7004 = vunpack.c.l.b16 %v5250
        %v7005 = vunpack.c.l.b16 %v5264
        %v7006 = vunpack.c.l.b16 %v5274
        %v7007 = vunpack.c.l.b16 %v5288
        %v7008 = vunpack.c.l.b16 %v5298
        %v7009 = vunpack.c.l.b16 %v5312
        %v7010 = vunpack.c.l.b16 %v5322
        %v7011 = vunpack.c.l.b16 %v5336
        %v7012 = vunpack.c.l.b16 %v5346
        %v7013 = vunpack.c.l.b16 %v5360
        %v7014 = vunpack.c.l.b16 %v5370
        %v7015 = vunpack.c.l.b16 %v5384
        %v7016 = vunpack.c.l.b16 %v5394
        %v7017 = vunpack.c.l.b16 %v5408
        %v7018 = vunpack.c.l.b16 %v5418
        %v7019 = vunpack.c.l.b16 %v5432
        %v7020 = vunpack.c.l.b16 %v5442
        %v7021 = vunpack.c.l.b16 %v5456
        %v7022 = vunpack.c.l.b16 %v5466
        %v7023 = vunpack.c.l.b16 %v5480
        %v7024 = vunpack.c.l.b16 %v5490
        %v7025 = vunpack.c.l.b16 %v5504
        %v7026 = vunpack.c.l.b16 %v5514
        %v7027 = vunpack.c.l.b16 %v5528
        %v7028 = vunpack.c.l.b16 %v5538
        %v7029 = vpack.c.b16 %v6998, %v6997
        %v7030 = vpack.c.b16 %v7000, %v6999
        %v7031 = vpack.c.b16 %v7002, %v7001
        %v7032 = vpack.c.b16 %v7004, %v7003
        %v7033 = vpack.c.b16 %v7006, %v7005
        %v7034 = vpack.c.b16 %v7008, %v7007
        %v7035 = vpack.c.b16 %v7010, %v7009
        %v7036 = vpack.c.b16 %v7012, %v7011
        %v7037 = vpack.c.b16 %v7014, %v7013
        %v7038 = vpack.c.b16 %v7016, %v7015
        %v7039 = vpack.c.b16 %v7018, %v7017
        %v7040 = vpack.c.b16 %v7020, %v7019
        %v7041 = vpack.c.b16 %v7022, %v7021
        %v7042 = vpack.c.b16 %v7024, %v7023
        %v7043 = vpack.c.b16 %v7026, %v7025
        %v7044 = vpack.c.b16 %v7028, %v7027
        %7045 = vrot.lane.b32.xlu0 %v7029, 16
        %v7046 = vpop.permute.xlu0 %7045
        %7047 = vrot.lane.b32.xlu0 %v7030, 16
        %v7048 = vpop.permute.xlu0 %7047
        %7049 = vrot.lane.b32.xlu0 %v7031, 16
        %v7050 = vpop.permute.xlu0 %7049
        %7051 = vrot.lane.b32.xlu0 %v7032, 16
        %v7052 = vpop.permute.xlu0 %7051
        %7053 = vrot.lane.b32.xlu0 %v7033, 16
        %v7054 = vpop.permute.xlu0 %7053
        %7055 = vrot.lane.b32.xlu0 %v7034, 16
        %v7056 = vpop.permute.xlu0 %7055
        %7057 = vrot.lane.b32.xlu0 %v7035, 16
        %v7058 = vpop.permute.xlu0 %7057
        %7059 = vrot.lane.b32.xlu0 %v7036, 16
        %v7060 = vpop.permute.xlu0 %7059
        %7061 = vrot.lane.b32.xlu0 %v7037, 16
        %v7062 = vpop.permute.xlu0 %7061
        %7063 = vrot.lane.b32.xlu0 %v7038, 16
        %v7064 = vpop.permute.xlu0 %7063
        %7065 = vrot.lane.b32.xlu0 %v7039, 16
        %v7066 = vpop.permute.xlu0 %7065
        %7067 = vrot.lane.b32.xlu0 %v7040, 16
        %v7068 = vpop.permute.xlu0 %7067
        %7069 = vrot.lane.b32.xlu0 %v7041, 16
        %v7070 = vpop.permute.xlu0 %7069
        %7071 = vrot.lane.b32.xlu0 %v7042, 16
        %v7072 = vpop.permute.xlu0 %7071
        %7073 = vrot.lane.b32.xlu0 %v7043, 16
        %v7074 = vpop.permute.xlu0 %7073
        %7075 = vrot.lane.b32.xlu0 %v7044, 16
        %v7076 = vpop.permute.xlu0 %7075
        %v7077 = vunpack.c.l.b16 %v5606
        %v7078 = vunpack.c.l.b16 %v5609
        %v7079 = vunpack.c.l.b16 %v5613
        %v7080 = vunpack.c.l.b16 %v5616
        %v7081 = vunpack.c.l.b16 %v5620
        %v7082 = vunpack.c.l.b16 %v5623
        %v7083 = vunpack.c.l.b16 %v5627
        %v7084 = vunpack.c.l.b16 %v5630
        %v7085 = vunpack.c.l.b16 %v5634
        %v7086 = vunpack.c.l.b16 %v5637
        %v7087 = vunpack.c.l.b16 %v5641
        %v7088 = vunpack.c.l.b16 %v5644
        %v7089 = vunpack.c.l.b16 %v5648
        %v7090 = vunpack.c.l.b16 %v5651
        %v7091 = vunpack.c.l.b16 %v5655
        %v7092 = vunpack.c.l.b16 %v5658
        %v7093 = vunpack.c.l.b16 %v5662
        %v7094 = vunpack.c.l.b16 %v5665
        %v7095 = vunpack.c.l.b16 %v5669
        %v7096 = vunpack.c.l.b16 %v5672
        %v7097 = vunpack.c.l.b16 %v5676
        %v7098 = vunpack.c.l.b16 %v5679
        %v7099 = vunpack.c.l.b16 %v5683
        %v7100 = vunpack.c.l.b16 %v5686
        %v7101 = vunpack.c.l.b16 %v5690
        %v7102 = vunpack.c.l.b16 %v5693
        %v7103 = vunpack.c.l.b16 %v5697
        %v7104 = vunpack.c.l.b16 %v5700
        %v7105 = vunpack.c.l.b16 %v5704
        %v7106 = vunpack.c.l.b16 %v5707
        %v7107 = vunpack.c.l.b16 %v5711
        %v7108 = vunpack.c.l.b16 %v5714
        %v7109 = vpack.c.b16 %v7078, %v7077
        %v7110 = vpack.c.b16 %v7080, %v7079
        %v7111 = vpack.c.b16 %v7082, %v7081
        %v7112 = vpack.c.b16 %v7084, %v7083
        %v7113 = vpack.c.b16 %v7086, %v7085
        %v7114 = vpack.c.b16 %v7088, %v7087
        %v7115 = vpack.c.b16 %v7090, %v7089
        %v7116 = vpack.c.b16 %v7092, %v7091
        %v7117 = vpack.c.b16 %v7094, %v7093
        %v7118 = vpack.c.b16 %v7096, %v7095
        %v7119 = vpack.c.b16 %v7098, %v7097
        %v7120 = vpack.c.b16 %v7100, %v7099
        %v7121 = vpack.c.b16 %v7102, %v7101
        %v7122 = vpack.c.b16 %v7104, %v7103
        %v7123 = vpack.c.b16 %v7106, %v7105
        %v7124 = vpack.c.b16 %v7108, %v7107
        %7125 = vrot.lane.b32.xlu0 %v7109, 32
        %v7126 = vpop.permute.xlu0 %7125
        %7127 = vrot.lane.b32.xlu0 %v7110, 32
        %v7128 = vpop.permute.xlu0 %7127
        %7129 = vrot.lane.b32.xlu0 %v7111, 32
        %v7130 = vpop.permute.xlu0 %7129
        %7131 = vrot.lane.b32.xlu0 %v7112, 32
        %v7132 = vpop.permute.xlu0 %7131
        %7133 = vrot.lane.b32.xlu0 %v7113, 32
        %v7134 = vpop.permute.xlu0 %7133
        %7135 = vrot.lane.b32.xlu0 %v7114, 32
        %v7136 = vpop.permute.xlu0 %7135
        %7137 = vrot.lane.b32.xlu0 %v7115, 32
        %v7138 = vpop.permute.xlu0 %7137
        %7139 = vrot.lane.b32.xlu0 %v7116, 32
        %v7140 = vpop.permute.xlu0 %7139
        %7141 = vrot.lane.b32.xlu0 %v7117, 32
        %v7142 = vpop.permute.xlu0 %7141
        %7143 = vrot.lane.b32.xlu0 %v7118, 32
        %v7144 = vpop.permute.xlu0 %7143
        %7145 = vrot.lane.b32.xlu0 %v7119, 32
        %v7146 = vpop.permute.xlu0 %7145
        %7147 = vrot.lane.b32.xlu0 %v7120, 32
        %v7148 = vpop.permute.xlu0 %7147
        %7149 = vrot.lane.b32.xlu0 %v7121, 32
        %v7150 = vpop.permute.xlu0 %7149
        %7151 = vrot.lane.b32.xlu0 %v7122, 32
        %v7152 = vpop.permute.xlu0 %7151
        %7153 = vrot.lane.b32.xlu0 %v7123, 32
        %v7154 = vpop.permute.xlu0 %7153
        %7155 = vrot.lane.b32.xlu0 %v7124, 32
        %v7156 = vpop.permute.xlu0 %7155
        %v7173 = vunpack.c.l.b16 %v5716
        %v7174 = vunpack.c.l.b16 %v5717
        %v7175 = vunpack.c.l.b16 %v5718
        %v7176 = vunpack.c.l.b16 %v5719
        %v7177 = vunpack.c.l.b16 %v5720
        %v7178 = vunpack.c.l.b16 %v5721
        %v7179 = vunpack.c.l.b16 %v5722
        %v7180 = vunpack.c.l.b16 %v5723
        %v7181 = vunpack.c.l.b16 %v5724
        %v7182 = vunpack.c.l.b16 %v5725
        %v7183 = vunpack.c.l.b16 %v5726
        %v7184 = vunpack.c.l.b16 %v5727
        %v7185 = vunpack.c.l.b16 %v5728
        %v7186 = vunpack.c.l.b16 %v5729
        %v7187 = vunpack.c.l.b16 %v5730
        %v7188 = vunpack.c.l.b16 %v5731
        %v7189 = vunpack.c.l.b16 %v5732
        %v7190 = vunpack.c.l.b16 %v5733
        %v7191 = vunpack.c.l.b16 %v5734
        %v7192 = vunpack.c.l.b16 %v5735
        %v7193 = vunpack.c.l.b16 %v5736
        %v7194 = vunpack.c.l.b16 %v5737
        %v7195 = vunpack.c.l.b16 %v5738
        %v7196 = vunpack.c.l.b16 %v5739
        %v7197 = vunpack.c.l.b16 %v5740
        %v7198 = vunpack.c.l.b16 %v5741
        %v7199 = vunpack.c.l.b16 %v5742
        %v7200 = vunpack.c.l.b16 %v5743
        %v7201 = vunpack.c.l.b16 %v5744
        %v7202 = vunpack.c.l.b16 %v5745
        %v7203 = vunpack.c.l.b16 %v5746
        %v7204 = vunpack.c.l.b16 %v5747
        %v7205 = vpack.c.b16 %v7174, %v7173
        %v7206 = vpack.c.b16 %v7176, %v7175
        %v7207 = vpack.c.b16 %v7178, %v7177
        %v7208 = vpack.c.b16 %v7180, %v7179
        %v7209 = vpack.c.b16 %v7182, %v7181
        %v7210 = vpack.c.b16 %v7184, %v7183
        %v7211 = vpack.c.b16 %v7186, %v7185
        %v7212 = vpack.c.b16 %v7188, %v7187
        %v7213 = vpack.c.b16 %v7190, %v7189
        %v7214 = vpack.c.b16 %v7192, %v7191
        %v7215 = vpack.c.b16 %v7194, %v7193
        %v7216 = vpack.c.b16 %v7196, %v7195
        %v7217 = vpack.c.b16 %v7198, %v7197
        %v7218 = vpack.c.b16 %v7200, %v7199
        %v7219 = vpack.c.b16 %v7202, %v7201
        %v7220 = vpack.c.b16 %v7204, %v7203
        %7221 = vrot.lane.b32.xlu0 %v7205, 48
        %v7222 = vpop.permute.xlu0 %7221
        %7223 = vrot.lane.b32.xlu0 %v7206, 48
        %v7224 = vpop.permute.xlu0 %7223
        %7225 = vrot.lane.b32.xlu0 %v7207, 48
        %v7226 = vpop.permute.xlu0 %7225
        %7227 = vrot.lane.b32.xlu0 %v7208, 48
        %v7228 = vpop.permute.xlu0 %7227
        %7229 = vrot.lane.b32.xlu0 %v7209, 48
        %v7230 = vpop.permute.xlu0 %7229
        %7231 = vrot.lane.b32.xlu0 %v7210, 48
        %v7232 = vpop.permute.xlu0 %7231
        %7233 = vrot.lane.b32.xlu0 %v7211, 48
        %v7234 = vpop.permute.xlu0 %7233
        %7235 = vrot.lane.b32.xlu0 %v7212, 48
        %v7236 = vpop.permute.xlu0 %7235
        %7237 = vrot.lane.b32.xlu0 %v7213, 48
        %v7238 = vpop.permute.xlu0 %7237
        %7239 = vrot.lane.b32.xlu0 %v7214, 48
        %v7240 = vpop.permute.xlu0 %7239
        %7241 = vrot.lane.b32.xlu0 %v7215, 48
        %v7242 = vpop.permute.xlu0 %7241
        %7243 = vrot.lane.b32.xlu0 %v7216, 48
        %v7244 = vpop.permute.xlu0 %7243
        %7245 = vrot.lane.b32.xlu0 %v7217, 48
        %v7246 = vpop.permute.xlu0 %7245
        %7247 = vrot.lane.b32.xlu0 %v7218, 48
        %v7248 = vpop.permute.xlu0 %7247
        %7249 = vrot.lane.b32.xlu0 %v7219, 48
        %v7250 = vpop.permute.xlu0 %7249
        %7251 = vrot.lane.b32.xlu0 %v7220, 48
        %v7252 = vpop.permute.xlu0 %7251
        %v7253 = vunpack.c.l.b16 %v5777
        %v7254 = vunpack.c.l.b16 %v5787
        %v7255 = vunpack.c.l.b16 %v5801
        %v7256 = vunpack.c.l.b16 %v5811
        %v7257 = vunpack.c.l.b16 %v5825
        %v7258 = vunpack.c.l.b16 %v5835
        %v7259 = vunpack.c.l.b16 %v5849
        %v7260 = vunpack.c.l.b16 %v5859
        %v7261 = vunpack.c.l.b16 %v5873
        %v7262 = vunpack.c.l.b16 %v5883
        %v7263 = vunpack.c.l.b16 %v5897
        %v7264 = vunpack.c.l.b16 %v5907
        %v7265 = vunpack.c.l.b16 %v5921
        %v7266 = vunpack.c.l.b16 %v5931
        %v7267 = vunpack.c.l.b16 %v5945
        %v7268 = vunpack.c.l.b16 %v5955
        %v7269 = vunpack.c.l.b16 %v5969
        %v7270 = vunpack.c.l.b16 %v5979
        %v7271 = vunpack.c.l.b16 %v5993
        %v7272 = vunpack.c.l.b16 %v6003
        %v7273 = vunpack.c.l.b16 %v6017
        %v7274 = vunpack.c.l.b16 %v6027
        %v7275 = vunpack.c.l.b16 %v6041
        %v7276 = vunpack.c.l.b16 %v6051
        %v7277 = vunpack.c.l.b16 %v6065
        %v7278 = vunpack.c.l.b16 %v6075
        %v7279 = vunpack.c.l.b16 %v6089
        %v7280 = vunpack.c.l.b16 %v6099
        %v7281 = vunpack.c.l.b16 %v6113
        %v7282 = vunpack.c.l.b16 %v6123
        %v7283 = vunpack.c.l.b16 %v6137
        %v7284 = vunpack.c.l.b16 %v6147
        %v7285 = vpack.c.b16 %v7254, %v7253
        %v7286 = vpack.c.b16 %v7256, %v7255
        %v7287 = vpack.c.b16 %v7258, %v7257
        %v7288 = vpack.c.b16 %v7260, %v7259
        %v7289 = vpack.c.b16 %v7262, %v7261
        %v7290 = vpack.c.b16 %v7264, %v7263
        %v7291 = vpack.c.b16 %v7266, %v7265
        %v7292 = vpack.c.b16 %v7268, %v7267
        %v7293 = vpack.c.b16 %v7270, %v7269
        %v7294 = vpack.c.b16 %v7272, %v7271
        %v7295 = vpack.c.b16 %v7274, %v7273
        %v7296 = vpack.c.b16 %v7276, %v7275
        %v7297 = vpack.c.b16 %v7278, %v7277
        %v7298 = vpack.c.b16 %v7280, %v7279
        %v7299 = vpack.c.b16 %v7282, %v7281
        %v7300 = vpack.c.b16 %v7284, %v7283
        %7301 = vrot.lane.b32.xlu0 %v7285, 64
        %v7302 = vpop.permute.xlu0 %7301
        %7303 = vrot.lane.b32.xlu0 %v7286, 64
        %v7304 = vpop.permute.xlu0 %7303
        %7305 = vrot.lane.b32.xlu0 %v7287, 64
        %v7306 = vpop.permute.xlu0 %7305
        %7307 = vrot.lane.b32.xlu0 %v7288, 64
        %v7308 = vpop.permute.xlu0 %7307
        %7309 = vrot.lane.b32.xlu0 %v7289, 64
        %v7310 = vpop.permute.xlu0 %7309
        %7311 = vrot.lane.b32.xlu0 %v7290, 64
        %v7312 = vpop.permute.xlu0 %7311
        %7313 = vrot.lane.b32.xlu0 %v7291, 64
        %v7314 = vpop.permute.xlu0 %7313
        %7315 = vrot.lane.b32.xlu0 %v7292, 64
        %v7316 = vpop.permute.xlu0 %7315
        %7317 = vrot.lane.b32.xlu0 %v7293, 64
        %v7318 = vpop.permute.xlu0 %7317
        %7319 = vrot.lane.b32.xlu0 %v7294, 64
        %v7320 = vpop.permute.xlu0 %7319
        %7321 = vrot.lane.b32.xlu0 %v7295, 64
        %v7322 = vpop.permute.xlu0 %7321
        %7323 = vrot.lane.b32.xlu0 %v7296, 64
        %v7324 = vpop.permute.xlu0 %7323
        %7325 = vrot.lane.b32.xlu0 %v7297, 64
        %v7326 = vpop.permute.xlu0 %7325
        %7327 = vrot.lane.b32.xlu0 %v7298, 64
        %v7328 = vpop.permute.xlu0 %7327
        %7329 = vrot.lane.b32.xlu0 %v7299, 64
        %v7330 = vpop.permute.xlu0 %7329
        %7331 = vrot.lane.b32.xlu0 %v7300, 64
        %v7332 = vpop.permute.xlu0 %7331
        %v7333 = vunpack.c.l.b16 %v6215
        %v7334 = vunpack.c.l.b16 %v6218
        %v7335 = vunpack.c.l.b16 %v6222
        %v7336 = vunpack.c.l.b16 %v6225
        %v7337 = vunpack.c.l.b16 %v6229
        %v7338 = vunpack.c.l.b16 %v6232
        %v7339 = vunpack.c.l.b16 %v6236
        %v7340 = vunpack.c.l.b16 %v6239
        %v7341 = vunpack.c.l.b16 %v6243
        %v7342 = vunpack.c.l.b16 %v6246
        %v7343 = vunpack.c.l.b16 %v6250
        %v7344 = vunpack.c.l.b16 %v6253
        %v7345 = vunpack.c.l.b16 %v6257
        %v7346 = vunpack.c.l.b16 %v6260
        %v7347 = vunpack.c.l.b16 %v6264
        %v7348 = vunpack.c.l.b16 %v6267
        %v7349 = vunpack.c.l.b16 %v6271
        %v7350 = vunpack.c.l.b16 %v6274
        %v7351 = vunpack.c.l.b16 %v6278
        %v7352 = vunpack.c.l.b16 %v6281
        %v7353 = vunpack.c.l.b16 %v6285
        %v7354 = vunpack.c.l.b16 %v6288
        %v7355 = vunpack.c.l.b16 %v6292
        %v7356 = vunpack.c.l.b16 %v6295
        %v7357 = vunpack.c.l.b16 %v6299
        %v7358 = vunpack.c.l.b16 %v6302
        %v7359 = vunpack.c.l.b16 %v6306
        %v7360 = vunpack.c.l.b16 %v6309
        %v7361 = vunpack.c.l.b16 %v6313
        %v7362 = vunpack.c.l.b16 %v6316
        %v7363 = vunpack.c.l.b16 %v6320
        %v7364 = vunpack.c.l.b16 %v6323
        %v7365 = vpack.c.b16 %v7334, %v7333
        %v7366 = vpack.c.b16 %v7336, %v7335
        %v7367 = vpack.c.b16 %v7338, %v7337
        %v7368 = vpack.c.b16 %v7340, %v7339
        %v7369 = vpack.c.b16 %v7342, %v7341
        %v7370 = vpack.c.b16 %v7344, %v7343
        %v7371 = vpack.c.b16 %v7346, %v7345
        %v7372 = vpack.c.b16 %v7348, %v7347
        %v7373 = vpack.c.b16 %v7350, %v7349
        %v7374 = vpack.c.b16 %v7352, %v7351
        %v7375 = vpack.c.b16 %v7354, %v7353
        %v7376 = vpack.c.b16 %v7356, %v7355
        %v7377 = vpack.c.b16 %v7358, %v7357
        %v7378 = vpack.c.b16 %v7360, %v7359
        %v7379 = vpack.c.b16 %v7362, %v7361
        %v7380 = vpack.c.b16 %v7364, %v7363
        %7381 = vrot.lane.b32.xlu0 %v7365, 80
        %v7382 = vpop.permute.xlu0 %7381
        %7383 = vrot.lane.b32.xlu0 %v7366, 80
        %v7384 = vpop.permute.xlu0 %7383
        %7385 = vrot.lane.b32.xlu0 %v7367, 80
        %v7386 = vpop.permute.xlu0 %7385
        %7387 = vrot.lane.b32.xlu0 %v7368, 80
        %v7388 = vpop.permute.xlu0 %7387
        %7389 = vrot.lane.b32.xlu0 %v7369, 80
        %v7390 = vpop.permute.xlu0 %7389
        %7391 = vrot.lane.b32.xlu0 %v7370, 80
        %v7392 = vpop.permute.xlu0 %7391
        %7393 = vrot.lane.b32.xlu0 %v7371, 80
        %v7394 = vpop.permute.xlu0 %7393
        %7395 = vrot.lane.b32.xlu0 %v7372, 80
        %v7396 = vpop.permute.xlu0 %7395
        %7397 = vrot.lane.b32.xlu0 %v7373, 80
        %v7398 = vpop.permute.xlu0 %7397
        %7399 = vrot.lane.b32.xlu0 %v7374, 80
        %v7400 = vpop.permute.xlu0 %7399
        %7401 = vrot.lane.b32.xlu0 %v7375, 80
        %v7402 = vpop.permute.xlu0 %7401
        %7403 = vrot.lane.b32.xlu0 %v7376, 80
        %v7404 = vpop.permute.xlu0 %7403
        %7405 = vrot.lane.b32.xlu0 %v7377, 80
        %v7406 = vpop.permute.xlu0 %7405
        %7407 = vrot.lane.b32.xlu0 %v7378, 80
        %v7408 = vpop.permute.xlu0 %7407
        %7409 = vrot.lane.b32.xlu0 %v7379, 80
        %v7410 = vpop.permute.xlu0 %7409
        %7411 = vrot.lane.b32.xlu0 %v7380, 80
        %v7412 = vpop.permute.xlu0 %7411
        %v7429 = vunpack.c.l.b16 %v6325
        %v7430 = vunpack.c.l.b16 %v6326
        %v7431 = vunpack.c.l.b16 %v6327
        %v7432 = vunpack.c.l.b16 %v6328
        %v7433 = vunpack.c.l.b16 %v6329
        %v7434 = vunpack.c.l.b16 %v6330
        %v7435 = vunpack.c.l.b16 %v6331
        %v7436 = vunpack.c.l.b16 %v6332
        %v7437 = vunpack.c.l.b16 %v6333
        %v7438 = vunpack.c.l.b16 %v6334
        %v7439 = vunpack.c.l.b16 %v6335
        %v7440 = vunpack.c.l.b16 %v6336
        %v7441 = vunpack.c.l.b16 %v6337
        %v7442 = vunpack.c.l.b16 %v6338
        %v7443 = vunpack.c.l.b16 %v6339
        %v7444 = vunpack.c.l.b16 %v6340
        %v7445 = vunpack.c.l.b16 %v6341
        %v7446 = vunpack.c.l.b16 %v6342
        %v7447 = vunpack.c.l.b16 %v6343
        %v7448 = vunpack.c.l.b16 %v6344
        %v7449 = vunpack.c.l.b16 %v6345
        %v7450 = vunpack.c.l.b16 %v6346
        %v7451 = vunpack.c.l.b16 %v6347
        %v7452 = vunpack.c.l.b16 %v6348
        %v7453 = vunpack.c.l.b16 %v6349
        %v7454 = vunpack.c.l.b16 %v6350
        %v7455 = vunpack.c.l.b16 %v6351
        %v7456 = vunpack.c.l.b16 %v6352
        %v7457 = vunpack.c.l.b16 %v6353
        %v7458 = vunpack.c.l.b16 %v6354
        %v7459 = vunpack.c.l.b16 %v6355
        %v7460 = vunpack.c.l.b16 %v6356
        %v7461 = vpack.c.b16 %v7430, %v7429
        %v7462 = vpack.c.b16 %v7432, %v7431
        %v7463 = vpack.c.b16 %v7434, %v7433
        %v7464 = vpack.c.b16 %v7436, %v7435
        %v7465 = vpack.c.b16 %v7438, %v7437
        %v7466 = vpack.c.b16 %v7440, %v7439
        %v7467 = vpack.c.b16 %v7442, %v7441
        %v7468 = vpack.c.b16 %v7444, %v7443
        %v7469 = vpack.c.b16 %v7446, %v7445
        %v7470 = vpack.c.b16 %v7448, %v7447
        %v7471 = vpack.c.b16 %v7450, %v7449
        %v7472 = vpack.c.b16 %v7452, %v7451
        %v7473 = vpack.c.b16 %v7454, %v7453
        %v7474 = vpack.c.b16 %v7456, %v7455
        %v7475 = vpack.c.b16 %v7458, %v7457
        %v7476 = vpack.c.b16 %v7460, %v7459
        %7477 = vrot.lane.b32.xlu0 %v7461, 96
        %v7478 = vpop.permute.xlu0 %7477
        %7479 = vrot.lane.b32.xlu0 %v7462, 96
        %v7480 = vpop.permute.xlu0 %7479
        %7481 = vrot.lane.b32.xlu0 %v7463, 96
        %v7482 = vpop.permute.xlu0 %7481
        %7483 = vrot.lane.b32.xlu0 %v7464, 96
        %v7484 = vpop.permute.xlu0 %7483
        %7485 = vrot.lane.b32.xlu0 %v7465, 96
        %v7486 = vpop.permute.xlu0 %7485
        %7487 = vrot.lane.b32.xlu0 %v7466, 96
        %v7488 = vpop.permute.xlu0 %7487
        %7489 = vrot.lane.b32.xlu0 %v7467, 96
        %v7490 = vpop.permute.xlu0 %7489
        %7491 = vrot.lane.b32.xlu0 %v7468, 96
        %v7492 = vpop.permute.xlu0 %7491
        %7493 = vrot.lane.b32.xlu0 %v7469, 96
        %v7494 = vpop.permute.xlu0 %7493
        %7495 = vrot.lane.b32.xlu0 %v7470, 96
        %v7496 = vpop.permute.xlu0 %7495
        %7497 = vrot.lane.b32.xlu0 %v7471, 96
        %v7498 = vpop.permute.xlu0 %7497
        %7499 = vrot.lane.b32.xlu0 %v7472, 96
        %v7500 = vpop.permute.xlu0 %7499
        %7501 = vrot.lane.b32.xlu0 %v7473, 96
        %v7502 = vpop.permute.xlu0 %7501
        %7503 = vrot.lane.b32.xlu0 %v7474, 96
        %v7504 = vpop.permute.xlu0 %7503
        %7505 = vrot.lane.b32.xlu0 %v7475, 96
        %v7506 = vpop.permute.xlu0 %7505
        %7507 = vrot.lane.b32.xlu0 %v7476, 96
        %v7508 = vpop.permute.xlu0 %7507
        %v7509 = vunpack.c.l.b16 %v6386
        %v7510 = vunpack.c.l.b16 %v6396
        %v7511 = vunpack.c.l.b16 %v6410
        %v7512 = vunpack.c.l.b16 %v6420
        %v7513 = vunpack.c.l.b16 %v6434
        %v7514 = vunpack.c.l.b16 %v6444
        %v7515 = vunpack.c.l.b16 %v6458
        %v7516 = vunpack.c.l.b16 %v6468
        %v7517 = vunpack.c.l.b16 %v6482
        %v7518 = vunpack.c.l.b16 %v6492
        %v7519 = vunpack.c.l.b16 %v6506
        %v7520 = vunpack.c.l.b16 %v6516
        %v7521 = vunpack.c.l.b16 %v6530
        %v7522 = vunpack.c.l.b16 %v6540
        %v7523 = vunpack.c.l.b16 %v6554
        %v7524 = vunpack.c.l.b16 %v6564
        %v7525 = vunpack.c.l.b16 %v6578
        %v7526 = vunpack.c.l.b16 %v6588
        %v7527 = vunpack.c.l.b16 %v6602
        %v7528 = vunpack.c.l.b16 %v6612
        %v7529 = vunpack.c.l.b16 %v6626
        %v7530 = vunpack.c.l.b16 %v6636
        %v7531 = vunpack.c.l.b16 %v6650
        %v7532 = vunpack.c.l.b16 %v6660
        %v7533 = vunpack.c.l.b16 %v6674
        %v7534 = vunpack.c.l.b16 %v6684
        %v7535 = vunpack.c.l.b16 %v6698
        %v7536 = vunpack.c.l.b16 %v6708
        %v7537 = vunpack.c.l.b16 %v6722
        %v7538 = vunpack.c.l.b16 %v6732
        %v7539 = vunpack.c.l.b16 %v6746
        %v7540 = vunpack.c.l.b16 %v6756
        %v7541 = vpack.c.b16 %v7510, %v7509
        %v7542 = vpack.c.b16 %v7512, %v7511
        %v7543 = vpack.c.b16 %v7514, %v7513
        %v7544 = vpack.c.b16 %v7516, %v7515
        %v7545 = vpack.c.b16 %v7518, %v7517
        %v7546 = vpack.c.b16 %v7520, %v7519
        %v7547 = vpack.c.b16 %v7522, %v7521
        %v7548 = vpack.c.b16 %v7524, %v7523
        %v7549 = vpack.c.b16 %v7526, %v7525
        %v7550 = vpack.c.b16 %v7528, %v7527
        %v7551 = vpack.c.b16 %v7530, %v7529
        %v7552 = vpack.c.b16 %v7532, %v7531
        %v7553 = vpack.c.b16 %v7534, %v7533
        %v7554 = vpack.c.b16 %v7536, %v7535
        %v7555 = vpack.c.b16 %v7538, %v7537
        %v7556 = vpack.c.b16 %v7540, %v7539
        %7557 = vrot.lane.b32.xlu0 %v7541, 112
        %v7558 = vpop.permute.xlu0 %7557
        %7559 = vrot.lane.b32.xlu0 %v7542, 112
        %v7560 = vpop.permute.xlu0 %7559
        %7561 = vrot.lane.b32.xlu0 %v7543, 112
        %v7562 = vpop.permute.xlu0 %7561
        %7563 = vrot.lane.b32.xlu0 %v7544, 112
        %v7564 = vpop.permute.xlu0 %7563
        %7565 = vrot.lane.b32.xlu0 %v7545, 112
        %v7566 = vpop.permute.xlu0 %7565
        %7567 = vrot.lane.b32.xlu0 %v7546, 112
        %v7568 = vpop.permute.xlu0 %7567
        %7569 = vrot.lane.b32.xlu0 %v7547, 112
        %v7570 = vpop.permute.xlu0 %7569
        %7571 = vrot.lane.b32.xlu0 %v7548, 112
        %v7572 = vpop.permute.xlu0 %7571
        %7573 = vrot.lane.b32.xlu0 %v7549, 112
        %v7574 = vpop.permute.xlu0 %7573
        %7575 = vrot.lane.b32.xlu0 %v7550, 112
        %v7576 = vpop.permute.xlu0 %7575
        %7577 = vrot.lane.b32.xlu0 %v7551, 112
        %v7578 = vpop.permute.xlu0 %7577
        %7579 = vrot.lane.b32.xlu0 %v7552, 112
        %v7580 = vpop.permute.xlu0 %7579
        %7581 = vrot.lane.b32.xlu0 %v7553, 112
        %v7582 = vpop.permute.xlu0 %7581
        %7583 = vrot.lane.b32.xlu0 %v7554, 112
        %v7584 = vpop.permute.xlu0 %7583
        %7585 = vrot.lane.b32.xlu0 %v7555, 112
        %v7586 = vpop.permute.xlu0 %7585
        %7587 = vrot.lane.b32.xlu0 %v7556, 112
        %v7588 = vpop.permute.xlu0 %7587
        %v7589 = vunpack.c.l.b16 %v6824
        %v7590 = vunpack.c.l.b16 %v6827
        %v7591 = vunpack.c.l.b16 %v6831
        %v7592 = vunpack.c.l.b16 %v6834
        %v7593 = vunpack.c.l.b16 %v6838
        %v7594 = vunpack.c.l.b16 %v6841
        %v7595 = vunpack.c.l.b16 %v6845
        %v7596 = vunpack.c.l.b16 %v6848
        %v7597 = vunpack.c.l.b16 %v6852
        %v7598 = vunpack.c.l.b16 %v6855
        %v7599 = vunpack.c.l.b16 %v6859
        %v7600 = vunpack.c.l.b16 %v6862
        %v7601 = vunpack.c.l.b16 %v6866
        %v7602 = vunpack.c.l.b16 %v6869
        %v7603 = vunpack.c.l.b16 %v6873
        %v7604 = vunpack.c.l.b16 %v6876
        %v7605 = vunpack.c.l.b16 %v6880
        %v7606 = vunpack.c.l.b16 %v6883
        %v7607 = vunpack.c.l.b16 %v6887
        %v7608 = vunpack.c.l.b16 %v6890
        %v7609 = vunpack.c.l.b16 %v6894
        %v7610 = vunpack.c.l.b16 %v6897
        %v7611 = vunpack.c.l.b16 %v6901
        %v7612 = vunpack.c.l.b16 %v6904
        %v7613 = vunpack.c.l.b16 %v6908
        %v7614 = vunpack.c.l.b16 %v6911
        %v7615 = vunpack.c.l.b16 %v6915
        %v7616 = vunpack.c.l.b16 %v6918
        %v7617 = vunpack.c.l.b16 %v6922
        %v7618 = vunpack.c.l.b16 %v6925
        %v7619 = vunpack.c.l.b16 %v6929
        %v7620 = vunpack.c.l.b16 %v6932
        %v7621 = vpack.c.b16 %v7590, %v7589
        %v7622 = vpack.c.b16 %v7592, %v7591
        %v7623 = vpack.c.b16 %v7594, %v7593
        %v7624 = vpack.c.b16 %v7596, %v7595
        %v7625 = vpack.c.b16 %v7598, %v7597
        %v7626 = vpack.c.b16 %v7600, %v7599
        %v7627 = vpack.c.b16 %v7602, %v7601
        %v7628 = vpack.c.b16 %v7604, %v7603
        %v7629 = vpack.c.b16 %v7606, %v7605
        %v7630 = vpack.c.b16 %v7608, %v7607
        %v7631 = vpack.c.b16 %v7610, %v7609
        %v7632 = vpack.c.b16 %v7612, %v7611
        %v7633 = vpack.c.b16 %v7614, %v7613
        %v7634 = vpack.c.b16 %v7616, %v7615
        %v7635 = vpack.c.b16 %v7618, %v7617
        %v7636 = vpack.c.b16 %v7620, %v7619
        %v7639 = vsel %vm1040, %v6981, %v7046
        %v7642 = vsel %vm1040, %v6982, %v7048
        %v7645 = vsel %vm1040, %v6983, %v7050
        %v7648 = vsel %vm1040, %v6984, %v7052
        %v7651 = vsel %vm1040, %v6985, %v7054
        %v7654 = vsel %vm1040, %v6986, %v7056
        %v7657 = vsel %vm1040, %v6987, %v7058
        %v7660 = vsel %vm1040, %v6988, %v7060
        %v7663 = vsel %vm1040, %v6989, %v7062
        %v7666 = vsel %vm1040, %v6990, %v7064
        %v7669 = vsel %vm1040, %v6991, %v7066
        %v7672 = vsel %vm1040, %v6992, %v7068
        %v7675 = vsel %vm1040, %v6993, %v7070
        %v7678 = vsel %vm1040, %v6994, %v7072
        %v7681 = vsel %vm1040, %v6995, %v7074
        %v7684 = vsel %vm1040, %v6996, %v7076
        %v7686 = vsel %vm1043, %v7639, %v7126
        %v7688 = vsel %vm1043, %v7642, %v7128
        %v7690 = vsel %vm1043, %v7645, %v7130
        %v7692 = vsel %vm1043, %v7648, %v7132
        %v7694 = vsel %vm1043, %v7651, %v7134
        %v7696 = vsel %vm1043, %v7654, %v7136
        %v7698 = vsel %vm1043, %v7657, %v7138
        %v7700 = vsel %vm1043, %v7660, %v7140
        %v7702 = vsel %vm1043, %v7663, %v7142
        %v7704 = vsel %vm1043, %v7666, %v7144
        %v7706 = vsel %vm1043, %v7669, %v7146
        %v7708 = vsel %vm1043, %v7672, %v7148
        %v7710 = vsel %vm1043, %v7675, %v7150
        %v7712 = vsel %vm1043, %v7678, %v7152
        %v7714 = vsel %vm1043, %v7681, %v7154
        %v7716 = vsel %vm1043, %v7684, %v7156
        %v7718 = vsel %vm1046, %v7686, %v7222
        %v7720 = vsel %vm1046, %v7688, %v7224
        %v7722 = vsel %vm1046, %v7690, %v7226
        %v7724 = vsel %vm1046, %v7692, %v7228
        %v7726 = vsel %vm1046, %v7694, %v7230
        %v7728 = vsel %vm1046, %v7696, %v7232
        %v7730 = vsel %vm1046, %v7698, %v7234
        %v7732 = vsel %vm1046, %v7700, %v7236
        %v7734 = vsel %vm1046, %v7702, %v7238
        %v7736 = vsel %vm1046, %v7704, %v7240
        %v7738 = vsel %vm1046, %v7706, %v7242
        %v7740 = vsel %vm1046, %v7708, %v7244
        %v7742 = vsel %vm1046, %v7710, %v7246
        %v7744 = vsel %vm1046, %v7712, %v7248
        %v7746 = vsel %vm1046, %v7714, %v7250
        %v7748 = vsel %vm1046, %v7716, %v7252
        %v7750 = vsel %vm1049, %v7718, %v7302
        %v7752 = vsel %vm1049, %v7720, %v7304
        %v7754 = vsel %vm1049, %v7722, %v7306
        %v7756 = vsel %vm1049, %v7724, %v7308
        %v7758 = vsel %vm1049, %v7726, %v7310
        %v7760 = vsel %vm1049, %v7728, %v7312
        %v7762 = vsel %vm1049, %v7730, %v7314
        %v7764 = vsel %vm1049, %v7732, %v7316
        %v7766 = vsel %vm1049, %v7734, %v7318
        %v7768 = vsel %vm1049, %v7736, %v7320
        %v7770 = vsel %vm1049, %v7738, %v7322
        %v7772 = vsel %vm1049, %v7740, %v7324
        %v7774 = vsel %vm1049, %v7742, %v7326
        %v7776 = vsel %vm1049, %v7744, %v7328
        %v7778 = vsel %vm1049, %v7746, %v7330
        %v7780 = vsel %vm1049, %v7748, %v7332
        %v7782 = vsel %vm1052, %v7750, %v7382
        %v7784 = vsel %vm1052, %v7752, %v7384
        %v7786 = vsel %vm1052, %v7754, %v7386
        %v7788 = vsel %vm1052, %v7756, %v7388
        %v7790 = vsel %vm1052, %v7758, %v7390
        %v7792 = vsel %vm1052, %v7760, %v7392
        %v7794 = vsel %vm1052, %v7762, %v7394
        %v7796 = vsel %vm1052, %v7764, %v7396
        %v7798 = vsel %vm1052, %v7766, %v7398
        %v7800 = vsel %vm1052, %v7768, %v7400
        %v7802 = vsel %vm1052, %v7770, %v7402
        %v7804 = vsel %vm1052, %v7772, %v7404
        %v7806 = vsel %vm1052, %v7774, %v7406
        %v7808 = vsel %vm1052, %v7776, %v7408
        %v7810 = vsel %vm1052, %v7778, %v7410
        %v7812 = vsel %vm1052, %v7780, %v7412
        %v7814 = vsel %vm1055, %v7782, %v7478
        %v7816 = vsel %vm1055, %v7784, %v7480
        %v7818 = vsel %vm1055, %v7786, %v7482
        %v7820 = vsel %vm1055, %v7788, %v7484
        %v7822 = vsel %vm1055, %v7790, %v7486
        %v7824 = vsel %vm1055, %v7792, %v7488
        %v7826 = vsel %vm1055, %v7794, %v7490
        %v7828 = vsel %vm1055, %v7796, %v7492
        %v7830 = vsel %vm1055, %v7798, %v7494
        %v7832 = vsel %vm1055, %v7800, %v7496
        %v7834 = vsel %vm1055, %v7802, %v7498
        %v7836 = vsel %vm1055, %v7804, %v7500
        %v7838 = vsel %vm1055, %v7806, %v7502
        %v7840 = vsel %vm1055, %v7808, %v7504
        %v7842 = vsel %vm1055, %v7810, %v7506
        %v7844 = vsel %vm1055, %v7812, %v7508
        %v7846 = vsel %vm1058, %v7814, %v7558
        %v7849 = vsel %vm1058, %v7816, %v7560
        %v7852 = vsel %vm1058, %v7818, %v7562
        %v7855 = vsel %vm1058, %v7820, %v7564
        %v7858 = vsel %vm1058, %v7822, %v7566
        %v7861 = vsel %vm1058, %v7824, %v7568
        %v7864 = vsel %vm1058, %v7826, %v7570
        %v7867 = vsel %vm1058, %v7828, %v7572
        %v7870 = vsel %vm1058, %v7830, %v7574
        %v7873 = vsel %vm1058, %v7832, %v7576
        %v7876 = vsel %vm1058, %v7834, %v7578
        %v7879 = vsel %vm1058, %v7836, %v7580
        %v7882 = vsel %vm1058, %v7838, %v7582
        %v7885 = vsel %vm1058, %v7840, %v7584
        %v7888 = vsel %vm1058, %v7842, %v7586
        %v7891 = vsel %vm1058, %v7844, %v7588
        %v7893 = vld [vmem:[%s3] sm:$0xf]
        %v7894 = vld [vmem:[%s3 + $0x4] sm:$0xf]
        %v7895 = vld [vmem:[%s3 + $0x8] sm:$0xf]
        %v7896 = vld [vmem:[%s3 + $0xc] sm:$0xf]
        %v7897 = vld [vmem:[%s3 + $0x10] sm:$0xf]
        %v7898 = vld [vmem:[%s3 + $0x14] sm:$0xf]
        %v7899 = vld [vmem:[%s3 + $0x18] sm:$0xf]
        %v7900 = vld [vmem:[%s3 + $0x1c] sm:$0xf]
        %v7901 = vld [vmem:[%s3 + $0x20] sm:$0xf]
        %v7902 = vld [vmem:[%s3 + $0x24] sm:$0xf]
        %v7903 = vld [vmem:[%s3 + $0x28] sm:$0xf]
        %v7904 = vld [vmem:[%s3 + $0x2c] sm:$0xf]
        %v7905 = vld [vmem:[%s3 + $0x30] sm:$0xf]
        %v7906 = vld [vmem:[%s3 + $0x34] sm:$0xf]
        %v7907 = vld [vmem:[%s3 + $0x38] sm:$0xf]
        %v7908 = vld [vmem:[%s3 + $0x3c] sm:$0xf]
        %v7909 = vld [vmem:[%s3 + $0x40] sm:$0xf]
        %v7910 = vld [vmem:[%s3 + $0x44] sm:$0xf]
        %v7929 = vunpack.c.l.b16 %v7893
        %v7930 = vunpack.c.l.b16 %v7894
        %v7931 = vunpack.c.l.b16 %v7895
        %v7932 = vunpack.c.l.b16 %v7896
        %v7933 = vunpack.c.l.b16 %v7897
        %v7934 = vunpack.c.l.b16 %v7898
        %v7935 = vunpack.c.l.b16 %v7899
        %v7936 = vunpack.c.l.b16 %v7900
        %v7937 = vunpack.c.l.b16 %v7901
        %v7938 = vunpack.c.l.b16 %v7902
        %v7939 = vunpack.c.l.b16 %v7903
        %v7940 = vunpack.c.l.b16 %v7904
        %v7941 = vunpack.c.l.b16 %v7905
        %v7942 = vunpack.c.l.b16 %v7906
        %v7943 = vunpack.c.l.b16 %v7907
        %v7944 = vunpack.c.l.b16 %v7908
        %v7945 = vunpack.c.l.b16 %v7909
        %v7946 = vunpack.c.l.b16 %v7910
        %v7947 = vpack.c.b16 %v7930, %v7929
        %v7948 = vpack.c.b16 %v7932, %v7931
        %v7949 = vpack.c.b16 %v7934, %v7933
        %v7950 = vpack.c.b16 %v7936, %v7935
        %v7951 = vpack.c.b16 %v7938, %v7937
        %v7952 = vpack.c.b16 %v7940, %v7939
        %v7953 = vpack.c.b16 %v7942, %v7941
        %v7954 = vpack.c.b16 %v7944, %v7943
        %v7955 = vpack.c.b16 %v7946, %v7945
        %v7966 = vsel %vm1040, %v7621, 0
        %v7969 = vsel %vm1040, %v7622, 0
        %v7972 = vsel %vm1040, %v7623, 0
        %v7975 = vsel %vm1040, %v7624, 0
        %v7978 = vsel %vm1040, %v7625, 0
        %v7981 = vsel %vm1040, %v7626, 0
        %v7984 = vsel %vm1040, %v7627, 0
        %v7987 = vsel %vm1040, %v7628, 0
        %v7990 = vsel %vm1040, %v7629, 0
        %v7993 = vsel %vm1040, %v7630, 0
        %v7996 = vsel %vm1040, %v7631, 0
        %v7999 = vsel %vm1040, %v7632, 0
        %v8002 = vsel %vm1040, %v7633, 0
        %v8005 = vsel %vm1040, %v7634, 0
        %v8008 = vsel %vm1040, %v7635, 0
        %v8011 = vsel %vm1040, %v7636, 0
        %8013 = vmatprep.subr.bf16.mxu0 0
        %8014 = vmatpush1.bf16.msra.mxu0 %v7947
        %8015 = vmatprep.subr.bf16.mxu0 0
        %8016 = vmatpush1.bf16.msra.mxu0 %v7948
        %8017 = vmatprep.subr.bf16.mxu0 0
        %8018 = vmatpush1.bf16.msra.mxu0 %v7949
        %8019 = vmatprep.subr.bf16.mxu0 0
        %8020 = vmatpush1.bf16.msra.mxu0 %v7950
        %8021 = vmatprep.subr.bf16.mxu0 0
        %8022 = vmatpush1.bf16.msra.mxu0 %v7951
        %8023 = vmatprep.subr.bf16.mxu0 0
        %8024 = vmatpush1.bf16.msra.mxu0 %v7952
        %8025 = vmatprep.subr.bf16.mxu0 0
        %8026 = vmatpush1.bf16.msra.mxu0 %v7953
        %8027 = vmatprep.subr.bf16.mxu0 0
        %8028 = vmatpush1.bf16.msra.mxu0 %v7954
        %8029 = vmatprep.subr.bf16.mxu0 0
        %8030 = vmatpush1.bf16.msra.mxu0 %v7955
        %8031 = vmatprep.subr.bf16.mxu0 0
        %8032 = vmatpush1.bf16.msra.mxu0 0
        %8033 = vmatprep.subr.bf16.mxu0 0
        %8034 = vmatpush1.bf16.msra.mxu0 0
        %8035 = vmatprep.subr.bf16.mxu0 0
        %8036 = vmatpush1.bf16.msra.mxu0 0
        %8037 = vmatprep.subr.bf16.mxu0 0
        %8038 = vmatpush1.bf16.msra.mxu0 0
        %8039 = vmatprep.subr.bf16.mxu0 0
        %8040 = vmatpush1.bf16.msra.mxu0 0
        %8041 = vmatprep.subr.bf16.mxu0 0
        %8042 = vmatpush1.bf16.msra.mxu0 0
        %8043 = vmatprep.subr.bf16.mxu0 0
        %8044 = vmatpush1.bf16.msra.mxu0 0
        %8045 = vmatprep.mubr.bf16.mxu0 %v7966
        %8046 = vmatmul.mubr.bf16.gmra.mrb[0].mxu0 %v7846
        %v8047 = vpop.f32.mrb[0].mxu0
        %v8048 = vadd.f32 0.0, %v8047
        %v8049 = vpop.f32.mrb[0].mxu0
        %v8050 = vpop.f32.mrb[0].mxu0
        %v8051 = vadd.f32 0.0, %v8050
        %v8052 = vpop.f32.mrb[0].mxu0
        %8053 = vmatprep.mubr.bf16.mxu0 %v7969
        %8054 = vmatmul.mubr.bf16.gmra.mrb[0].mxu0 %v7849
        %v8055 = vpop.f32.mrb[0].mxu0
        %v8056 = vadd.f32 0.0, %v8055
        %v8057 = vpop.f32.mrb[0].mxu0
        %v8058 = vpop.f32.mrb[0].mxu0
        %v8059 = vadd.f32 0.0, %v8058
        %v8060 = vpop.f32.mrb[0].mxu0
        %8061 = vmatprep.mubr.bf16.mxu0 %v7972
        %8062 = vmatmul.mubr.bf16.gmra.mrb[0].mxu0 %v7852
        %v8063 = vpop.f32.mrb[0].mxu0
        %v8064 = vadd.f32 0.0, %v8063
        %v8065 = vpop.f32.mrb[0].mxu0
        %v8066 = vpop.f32.mrb[0].mxu0
        %v8067 = vadd.f32 0.0, %v8066
        %v8068 = vpop.f32.mrb[0].mxu0
        %8069 = vmatprep.mubr.bf16.mxu0 %v7975
        %8070 = vmatmul.mubr.bf16.gmra.mrb[0].mxu0 %v7855
        %v8071 = vpop.f32.mrb[0].mxu0
        %v8072 = vadd.f32 0.0, %v8071
        %v8073 = vpop.f32.mrb[0].mxu0
        %v8074 = vpop.f32.mrb[0].mxu0
        %v8075 = vadd.f32 0.0, %v8074
        %v8076 = vpop.f32.mrb[0].mxu0
        %8077 = vmatprep.mubr.bf16.mxu0 %v7978
        %8078 = vmatmul.mubr.bf16.gmra.mrb[0].mxu0 %v7858
        %v8079 = vpop.f32.mrb[0].mxu0
        %v8080 = vadd.f32 0.0, %v8079
        %v8081 = vpop.f32.mrb[0].mxu0
        %v8082 = vpop.f32.mrb[0].mxu0
        %v8083 = vadd.f32 0.0, %v8082
        %v8084 = vpop.f32.mrb[0].mxu0
        %8085 = vmatprep.mubr.bf16.mxu0 %v7981
        %8086 = vmatmul.mubr.bf16.gmra.mrb[0].mxu0 %v7861
        %v8087 = vpop.f32.mrb[0].mxu0
        %v8088 = vadd.f32 0.0, %v8087
        %v8089 = vpop.f32.mrb[0].mxu0
        %v8090 = vpop.f32.mrb[0].mxu0
        %v8091 = vadd.f32 0.0, %v8090
        %v8092 = vpop.f32.mrb[0].mxu0
        %8093 = vmatprep.mubr.bf16.mxu0 %v7984
        %8094 = vmatmul.mubr.bf16.gmra.mrb[0].mxu0 %v7864
        %v8095 = vpop.f32.mrb[0].mxu0
        %v8096 = vadd.f32 0.0, %v8095
        %v8097 = vpop.f32.mrb[0].mxu0
        %v8098 = vpop.f32.mrb[0].mxu0
        %v8099 = vadd.f32 0.0, %v8098
        %v8100 = vpop.f32.mrb[0].mxu0
        %8101 = vmatprep.mubr.bf16.mxu0 %v7987
        %8102 = vmatmul.mubr.bf16.gmra.mrb[0].mxu0 %v7867
        %v8103 = vpop.f32.mrb[0].mxu0
        %v8104 = vadd.f32 0.0, %v8103
        %v8105 = vpop.f32.mrb[0].mxu0
        %v8106 = vpop.f32.mrb[0].mxu0
        %v8107 = vadd.f32 0.0, %v8106
        %v8108 = vpop.f32.mrb[0].mxu0
        %8109 = vmatprep.mubr.bf16.mxu0 %v7990
        %8110 = vmatmul.mubr.bf16.gmra.mrb[0].mxu0 %v7870
        %v8111 = vpop.f32.mrb[0].mxu0
        %v8112 = vadd.f32 0.0, %v8111
        %v8113 = vpop.f32.mrb[0].mxu0
        %v8114 = vpop.f32.mrb[0].mxu0
        %v8115 = vadd.f32 0.0, %v8114
        %v8116 = vpop.f32.mrb[0].mxu0
        %8117 = vmatprep.mubr.bf16.mxu0 %v7993
        %8118 = vmatmul.mubr.bf16.gmra.mrb[0].mxu0 %v7873
        %v8119 = vpop.f32.mrb[0].mxu0
        %v8120 = vadd.f32 0.0, %v8119
        %v8121 = vpop.f32.mrb[0].mxu0
        %v8122 = vpop.f32.mrb[0].mxu0
        %v8123 = vadd.f32 0.0, %v8122
        %v8124 = vpop.f32.mrb[0].mxu0
        %8125 = vmatprep.mubr.bf16.mxu0 %v7996
        %8126 = vmatmul.mubr.bf16.gmra.mrb[0].mxu0 %v7876
        %v8127 = vpop.f32.mrb[0].mxu0
        %v8128 = vadd.f32 0.0, %v8127
        %v8129 = vpop.f32.mrb[0].mxu0
        %v8130 = vpop.f32.mrb[0].mxu0
        %v8131 = vadd.f32 0.0, %v8130
        %v8132 = vpop.f32.mrb[0].mxu0
        %8133 = vmatprep.mubr.bf16.mxu0 %v7999
        %8134 = vmatmul.mubr.bf16.gmra.mrb[0].mxu0 %v7879
        %v8135 = vpop.f32.mrb[0].mxu0
        %v8136 = vadd.f32 0.0, %v8135
        %v8137 = vpop.f32.mrb[0].mxu0
        %v8138 = vpop.f32.mrb[0].mxu0
        %v8139 = vadd.f32 0.0, %v8138
        %v8140 = vpop.f32.mrb[0].mxu0
        %8141 = vmatprep.mubr.bf16.mxu0 %v8002
        %8142 = vmatmul.mubr.bf16.gmra.mrb[0].mxu0 %v7882
        %v8143 = vpop.f32.mrb[0].mxu0
        %v8144 = vadd.f32 0.0, %v8143
        %v8145 = vpop.f32.mrb[0].mxu0
        %v8146 = vpop.f32.mrb[0].mxu0
        %v8147 = vadd.f32 0.0, %v8146
        %v8148 = vpop.f32.mrb[0].mxu0
        %8149 = vmatprep.mubr.bf16.mxu0 %v8005
        %8150 = vmatmul.mubr.bf16.gmra.mrb[0].mxu0 %v7885
        %v8151 = vpop.f32.mrb[0].mxu0
        %v8152 = vadd.f32 0.0, %v8151
        %v8153 = vpop.f32.mrb[0].mxu0
        %v8154 = vpop.f32.mrb[0].mxu0
        %v8155 = vadd.f32 0.0, %v8154
        %v8156 = vpop.f32.mrb[0].mxu0
        %8157 = vmatprep.mubr.bf16.mxu0 %v8008
        %8158 = vmatmul.mubr.bf16.gmra.mrb[0].mxu0 %v7888
        %v8159 = vpop.f32.mrb[0].mxu0
        %v8160 = vadd.f32 0.0, %v8159
        %v8161 = vpop.f32.mrb[0].mxu0
        %v8162 = vpop.f32.mrb[0].mxu0
        %v8163 = vadd.f32 0.0, %v8162
        %v8164 = vpop.f32.mrb[0].mxu0
        %8165 = vmatprep.mubr.bf16.mxu0 %v8011
        %8166 = vmatmul.mubr.bf16.gmra.mrb[0].mxu0 %v7891
        %v8167 = vpop.f32.mrb[0].mxu0
        %v8168 = vadd.f32 0.0, %v8167
        %v8169 = vpop.f32.mrb[0].mxu0
        %v8170 = vpop.f32.mrb[0].mxu0
        %v8171 = vadd.f32 0.0, %v8170
        %v8172 = vpop.f32.mrb[0].mxu0
        %8173 = vdwg.mxu0
        %v8174 = vsel %vm1040, %v8048, 0.0
        %v8175 = vsel %vm1040, %v8051, 0.0
        %v8176 = vadd.f32 %v8174, %v8175
        %v8177 = vsel %vm1040, %v8056, 0.0
        %v8178 = vadd.f32 %v8176, %v8177
        %v8179 = vsel %vm1040, %v8059, 0.0
        %v8180 = vadd.f32 %v8178, %v8179
        %v8181 = vsel %vm1040, %v8064, 0.0
        %v8182 = vadd.f32 %v8180, %v8181
        %v8183 = vsel %vm1040, %v8067, 0.0
        %v8184 = vadd.f32 %v8182, %v8183
        %v8185 = vsel %vm1040, %v8072, 0.0
        %v8186 = vadd.f32 %v8184, %v8185
        %v8187 = vsel %vm1040, %v8075, 0.0
        %v8188 = vadd.f32 %v8186, %v8187
        %v8189 = vsel %vm1040, %v8080, 0.0
        %v8190 = vadd.f32 %v8188, %v8189
        %v8191 = vsel %vm1040, %v8083, 0.0
        %v8192 = vadd.f32 %v8190, %v8191
        %v8193 = vsel %vm1040, %v8088, 0.0
        %v8194 = vadd.f32 %v8192, %v8193
        %v8195 = vsel %vm1040, %v8091, 0.0
        %v8196 = vadd.f32 %v8194, %v8195
        %v8197 = vsel %vm1040, %v8096, 0.0
        %v8198 = vadd.f32 %v8196, %v8197
        %v8199 = vsel %vm1040, %v8099, 0.0
        %v8200 = vadd.f32 %v8198, %v8199
        %v8201 = vsel %vm1040, %v8104, 0.0
        %v8202 = vadd.f32 %v8200, %v8201
        %v8203 = vsel %vm1040, %v8107, 0.0
        %v8204 = vadd.f32 %v8202, %v8203
        %v8205 = vsel %vm1040, %v8112, 0.0
        %v8206 = vadd.f32 %v8204, %v8205
        %v8207 = vsel %vm1040, %v8115, 0.0
        %v8208 = vadd.f32 %v8206, %v8207
        %v8209 = vsel %vm1040, %v8120, 0.0
        %v8210 = vadd.f32 %v8208, %v8209
        %v8211 = vsel %vm1040, %v8123, 0.0
        %v8212 = vadd.f32 %v8210, %v8211
        %v8213 = vsel %vm1040, %v8128, 0.0
        %v8214 = vadd.f32 %v8212, %v8213
        %v8215 = vsel %vm1040, %v8131, 0.0
        %v8216 = vadd.f32 %v8214, %v8215
        %v8217 = vsel %vm1040, %v8136, 0.0
        %v8218 = vadd.f32 %v8216, %v8217
        %v8219 = vsel %vm1040, %v8139, 0.0
        %v8220 = vadd.f32 %v8218, %v8219
        %v8221 = vsel %vm1040, %v8144, 0.0
        %v8222 = vadd.f32 %v8220, %v8221
        %v8223 = vsel %vm1040, %v8147, 0.0
        %v8224 = vadd.f32 %v8222, %v8223
        %v8225 = vsel %vm1040, %v8152, 0.0
        %v8226 = vadd.f32 %v8224, %v8225
        %v8227 = vsel %vm1040, %v8155, 0.0
        %v8228 = vadd.f32 %v8226, %v8227
        %v8229 = vsel %vm1040, %v8160, 0.0
        %v8230 = vadd.f32 %v8228, %v8229
        %v8231 = vsel %vm1040, %v8163, 0.0
        %v8232 = vadd.f32 %v8230, %v8231
        %v8233 = vsel %vm1040, %v8168, 0.0
        %v8234 = vadd.f32 %v8232, %v8233
        %v8235 = vsel %vm1040, %v8171, 0.0
        %v8236 = vadd.f32 %v8234, %v8235
        %v8237 = vrot.slane %v8236, 4
        %v8238 = vadd.f32 %v8236, %v8237
        %v8239 = vrot.slane %v8238, 2
        %v8240 = vadd.f32 %v8238, %v8239
        %v8241 = vrot.slane %v8240, 1
        %v8242 = vadd.f32 %v8240, %v8241
        %v8243 = vrcp.pop 256.0
        %v8244 = vmul.f32 %v8242, %v8243
        %v8245 = vld [vmem:[%s4] sm:$0x1]
        %v8246 = vadd.f32 %v8244, %v8245
        %v8247 = vld [vmem:[%s5] sm:$0xff]
        %v8248 = vld [vmem:[%s5 + $0x8] sm:$0xff]
        %v8249 = vld [vmem:[%s6] sm:$0x1]
        %v8251 = vsel %vm1040, %v8246, 0
        %8253 = vmatprep.subr.mxu0 0.0
        %8254 = vmatpush1.msra.mxu0 %v8247
        %8255 = vmatprep.subr.mxu0 0.0
        %8256 = vmatpush1.msra.mxu0 %v8248
        %8257 = vmatprep.subr.mxu0 0.0
        %8258 = vmatpush1.msra.mxu0 0.0
        %8259 = vmatprep.subr.mxu0 0.0
        %8260 = vmatpush1.msra.mxu0 0.0
        %8261 = vmatprep.subr.mxu0 0.0
        %8262 = vmatpush1.msra.mxu0 0.0
        %8263 = vmatprep.subr.mxu0 0.0
        %8264 = vmatpush1.msra.mxu0 0.0
        %8265 = vmatprep.subr.mxu0 0.0
        %8266 = vmatpush1.msra.mxu0 0.0
        %8267 = vmatprep.subr.mxu0 0.0
        %8268 = vmatpush1.msra.mxu0 0.0
        %8269 = vmatprep.subr.mxu0 0.0
        %8270 = vmatpush1.msra.mxu0 0.0
        %8271 = vmatprep.subr.mxu0 0.0
        %8272 = vmatpush1.msra.mxu0 0.0
        %8273 = vmatprep.subr.mxu0 0.0
        %8274 = vmatpush1.msra.mxu0 0.0
        %8275 = vmatprep.subr.mxu0 0.0
        %8276 = vmatpush1.msra.mxu0 0.0
        %8277 = vmatprep.subr.mxu0 0.0
        %8278 = vmatpush1.msra.mxu0 0.0
        %8279 = vmatprep.subr.mxu0 0.0
        %8280 = vmatpush1.msra.mxu0 0.0
        %8281 = vmatprep.subr.mxu0 0.0
        %8282 = vmatpush1.msra.mxu0 0.0
        %8283 = vmatprep.subr.mxu0 0.0
        %8284 = vmatpush1.msra.mxu0 0.0
        %8285 = vmatprep.subr.mxu0 0.0
        %8286 = vmatpush1.msra.mxu0 0.0
        %8287 = vmatprep.subr.mxu0 0.0
        %8288 = vmatpush1.msra.mxu0 0.0
        %8289 = vmatprep.subr.mxu0 0.0
        %8290 = vmatpush1.msra.mxu0 0.0
        %8291 = vmatprep.subr.mxu0 0.0
        %8292 = vmatpush1.msra.mxu0 0.0
        %8293 = vmatprep.subr.mxu0 0.0
        %8294 = vmatpush1.msra.mxu0 0.0
        %8295 = vmatprep.subr.mxu0 0.0
        %8296 = vmatpush1.msra.mxu0 0.0
        %8297 = vmatprep.subr.mxu0 0.0
        %8298 = vmatpush1.msra.mxu0 0.0
        %8299 = vmatprep.subr.mxu0 0.0
        %8300 = vmatpush1.msra.mxu0 0.0
        %8301 = vmatprep.subr.mxu0 0.0
        %8302 = vmatpush1.msra.mxu0 0.0
        %8303 = vmatprep.subr.mxu0 0.0
        %8304 = vmatpush1.msra.mxu0 0.0
        %8305 = vmatprep.subr.mxu0 0.0
        %8306 = vmatpush1.msra.mxu0 0.0
        %8307 = vmatprep.subr.mxu0 0.0
        %8308 = vmatpush1.msra.mxu0 0.0
        %8309 = vmatprep.subr.mxu0 0.0
        %8310 = vmatpush1.msra.mxu0 0.0
        %8311 = vmatprep.subr.mxu0 0.0
        %8312 = vmatpush1.msra.mxu0 0.0
        %8313 = vmatprep.subr.mxu0 0.0
        %8314 = vmatpush1.msra.mxu0 0.0
        %8315 = vmatprep.subr.mxu0 0.0
        %8316 = vmatpush1.msra.mxu0 0.0
        %8317 = vmatprep.mubr.f32.mxu0 0.0
        %8318 = vmatmul.mubr.f32.gmra.mrb[0].mxu0 %v8251
        %v8319 = vpop.f32.mrb[0].mxu0
        %v8320 = vadd.f32 %v8249, %v8319
        %v8321 = vpop.f32.mrb[0].mxu0
        %8322 = vdwg.mxu0
        %v8323 = vmax.f32 %v8320, 0.0
        %v8324 = vld [vmem:[%s7] sm:$0xf]
        %v8325 = vld [vmem:[%s8] sm:$0x1]
        %vm8326 = vcmask 31744
        %v8328 = vsel %vm8326, %v8323, 0
        %vm8330 = vcmask 1043456
        %v8332 = vsel %vm8330, %v8324, 0
        %8334 = vmatprep.subr.mxu0 0.0
        %8335 = vmatpush1.msra.mxu0 %v8332
        %8336 = vmatprep.subr.mxu0 0.0
        %8337 = vmatpush1.msra.mxu0 0.0
        %8338 = vmatprep.subr.mxu0 0.0
        %8339 = vmatpush1.msra.mxu0 0.0
        %8340 = vmatprep.subr.mxu0 0.0
        %8341 = vmatpush1.msra.mxu0 0.0
        %8342 = vmatprep.subr.mxu0 0.0
        %8343 = vmatpush1.msra.mxu0 0.0
        %8344 = vmatprep.subr.mxu0 0.0
        %8345 = vmatpush1.msra.mxu0 0.0
        %8346 = vmatprep.subr.mxu0 0.0
        %8347 = vmatpush1.msra.mxu0 0.0
        %8348 = vmatprep.subr.mxu0 0.0
        %8349 = vmatpush1.msra.mxu0 0.0
        %8350 = vmatprep.subr.mxu0 0.0
        %8351 = vmatpush1.msra.mxu0 0.0
        %8352 = vmatprep.subr.mxu0 0.0
        %8353 = vmatpush1.msra.mxu0 0.0
        %8354 = vmatprep.subr.mxu0 0.0
        %8355 = vmatpush1.msra.mxu0 0.0
        %8356 = vmatprep.subr.mxu0 0.0
        %8357 = vmatpush1.msra.mxu0 0.0
        %8358 = vmatprep.subr.mxu0 0.0
        %8359 = vmatpush1.msra.mxu0 0.0
        %8360 = vmatprep.subr.mxu0 0.0
        %8361 = vmatpush1.msra.mxu0 0.0
        %8362 = vmatprep.subr.mxu0 0.0
        %8363 = vmatpush1.msra.mxu0 0.0
        %8364 = vmatprep.subr.mxu0 0.0
        %8365 = vmatpush1.msra.mxu0 0.0
        %8366 = vmatprep.subr.mxu0 0.0
        %8367 = vmatpush1.msra.mxu0 0.0
        %8368 = vmatprep.subr.mxu0 0.0
        %8369 = vmatpush1.msra.mxu0 0.0
        %8370 = vmatprep.subr.mxu0 0.0
        %8371 = vmatpush1.msra.mxu0 0.0
        %8372 = vmatprep.subr.mxu0 0.0
        %8373 = vmatpush1.msra.mxu0 0.0
        %8374 = vmatprep.subr.mxu0 0.0
        %8375 = vmatpush1.msra.mxu0 0.0
        %8376 = vmatprep.subr.mxu0 0.0
        %8377 = vmatpush1.msra.mxu0 0.0
        %8378 = vmatprep.subr.mxu0 0.0
        %8379 = vmatpush1.msra.mxu0 0.0
        %8380 = vmatprep.subr.mxu0 0.0
        %8381 = vmatpush1.msra.mxu0 0.0
        %8382 = vmatprep.subr.mxu0 0.0
        %8383 = vmatpush1.msra.mxu0 0.0
        %8384 = vmatprep.subr.mxu0 0.0
        %8385 = vmatpush1.msra.mxu0 0.0
        %8386 = vmatprep.subr.mxu0 0.0
        %8387 = vmatpush1.msra.mxu0 0.0
        %8388 = vmatprep.subr.mxu0 0.0
        %8389 = vmatpush1.msra.mxu0 0.0
        %8390 = vmatprep.subr.mxu0 0.0
        %8391 = vmatpush1.msra.mxu0 0.0
        %8392 = vmatprep.subr.mxu0 0.0
        %8393 = vmatpush1.msra.mxu0 0.0
        %8394 = vmatprep.subr.mxu0 0.0
        %8395 = vmatpush1.msra.mxu0 0.0
        %8396 = vmatprep.subr.mxu0 0.0
        %8397 = vmatpush1.msra.mxu0 0.0
        %8398 = vmatprep.mubr.f32.mxu0 0.0
        %8399 = vmatmul.mubr.f32.gmra.mrb[0].mxu0 %v8328
        %v8400 = vpop.f32.mrb[0].mxu0
        %v8401 = vadd.f32 %v8325, %v8400
        %v8402 = vpop.f32.mrb[0].mxu0
        %8403 = vdwg.mxu0
        %v8404 = vxor.u32 %v8401, 2147483648
        %v8405 = vmul.f32 %v8404, 1.442695
        %v8406 = vpow.pop %v8405
        %v8407 = vadd.f32 %v8406, 1.0
        %v8408 = vrcp.pop %v8407
        %v8409 = vmul.f32 1.0, %v8408
        %8410 = vxpose.xlu0.b32.start [1/16] %v8048, 128
        %8411 = vxpose.xlu0.b32.cont [2/16] %v8051, 128
        %8412 = vxpose.xlu0.b32.cont [3/16] %v8056, 128
        %8413 = vxpose.xlu0.b32.cont [4/16] %v8059, 128
        %8414 = vxpose.xlu0.b32.cont [5/16] %v8064, 128
        %8415 = vxpose.xlu0.b32.cont [6/16] %v8067, 128
        %8416 = vxpose.xlu0.b32.cont [7/16] %v8072, 128
        %8417 = vxpose.xlu0.b32.cont [8/16] %v8075, 128
        %8418 = vxpose.xlu0.b32.cont [9/16] %v8080, 128
        %8419 = vxpose.xlu0.b32.cont [10/16] %v8083, 128
        %8420 = vxpose.xlu0.b32.cont [11/16] %v8088, 128
        %8421 = vxpose.xlu0.b32.cont [12/16] %v8091, 128
        %8422 = vxpose.xlu0.b32.cont [13/16] %v8096, 128
        %8423 = vxpose.xlu0.b32.cont [14/16] %v8099, 128
        %8424 = vxpose.xlu0.b32.cont [15/16] %v8104, 128
        %8425 = vxpose.xlu0.b32.end [16/16] %v8107, 128
        %v8426 = vpop.trf.xlu0
        %v8427 = vpop.trf.xlu0
        %v8428 = vpop.trf.xlu0
        %v8429 = vpop.trf.xlu0
        %v8430 = vpop.trf.xlu0
        %v8431 = vpop.trf.xlu0
        %v8432 = vpop.trf.xlu0
        %v8433 = vpop.trf.xlu0
        %v8434 = vpop.trf.xlu0
        %v8435 = vpop.trf.xlu0
        %v8436 = vpop.trf.xlu0
        %v8437 = vpop.trf.xlu0
        %v8438 = vpop.trf.xlu0
        %v8439 = vpop.trf.xlu0
        %v8440 = vpop.trf.xlu0
        %v8441 = vpop.trf.xlu0
        %8442 = vxpose.xlu0.b32.start [1/16] %v8112, 128
        %8443 = vxpose.xlu0.b32.cont [2/16] %v8115, 128
        %8444 = vxpose.xlu0.b32.cont [3/16] %v8120, 128
        %8445 = vxpose.xlu0.b32.cont [4/16] %v8123, 128
        %8446 = vxpose.xlu0.b32.cont [5/16] %v8128, 128
        %8447 = vxpose.xlu0.b32.cont [6/16] %v8131, 128
        %8448 = vxpose.xlu0.b32.cont [7/16] %v8136, 128
        %8449 = vxpose.xlu0.b32.cont [8/16] %v8139, 128
        %8450 = vxpose.xlu0.b32.cont [9/16] %v8144, 128
        %8451 = vxpose.xlu0.b32.cont [10/16] %v8147, 128
        %8452 = vxpose.xlu0.b32.cont [11/16] %v8152, 128
        %8453 = vxpose.xlu0.b32.cont [12/16] %v8155, 128
        %8454 = vxpose.xlu0.b32.cont [13/16] %v8160, 128
        %8455 = vxpose.xlu0.b32.cont [14/16] %v8163, 128
        %8456 = vxpose.xlu0.b32.cont [15/16] %v8168, 128
        %8457 = vxpose.xlu0.b32.end [16/16] %v8171, 128
        %v8458 = vpop.trf.xlu0
        %v8459 = vpop.trf.xlu0
        %v8460 = vpop.trf.xlu0
        %v8461 = vpop.trf.xlu0
        %v8462 = vpop.trf.xlu0
        %v8463 = vpop.trf.xlu0
        %v8464 = vpop.trf.xlu0
        %v8465 = vpop.trf.xlu0
        %v8466 = vpop.trf.xlu0
        %v8467 = vpop.trf.xlu0
        %v8468 = vpop.trf.xlu0
        %v8469 = vpop.trf.xlu0
        %v8470 = vpop.trf.xlu0
        %v8471 = vpop.trf.xlu0
        %v8472 = vpop.trf.xlu0
        %v8473 = vpop.trf.xlu0
        %8474 = vxpose.xlu0.b32.start [1/16] %v8245, 128
        %8475 = vxpose.xlu0.b32.cont [2/16] 0.0, 128
        %8476 = vxpose.xlu0.b32.cont [3/16] 0.0, 128
        %8477 = vxpose.xlu0.b32.cont [4/16] 0.0, 128
        %8478 = vxpose.xlu0.b32.cont [5/16] 0.0, 128
        %8479 = vxpose.xlu0.b32.cont [6/16] 0.0, 128
        %8480 = vxpose.xlu0.b32.cont [7/16] 0.0, 128
        %8481 = vxpose.xlu0.b32.cont [8/16] 0.0, 128
        %8482 = vxpose.xlu0.b32.cont [9/16] 0.0, 128
        %8483 = vxpose.xlu0.b32.cont [10/16] 0.0, 128
        %8484 = vxpose.xlu0.b32.cont [11/16] 0.0, 128
        %8485 = vxpose.xlu0.b32.cont [12/16] 0.0, 128
        %8486 = vxpose.xlu0.b32.cont [13/16] 0.0, 128
        %8487 = vxpose.xlu0.b32.cont [14/16] 0.0, 128
        %8488 = vxpose.xlu0.b32.cont [15/16] 0.0, 128
        %8489 = vxpose.xlu0.b32.end [16/16] 0.0, 128
        %v8490 = vpop.trf.xlu0
        %v8491 = vpop.trf.xlu0
        %v8492 = vpop.trf.xlu0
        %v8493 = vpop.trf.xlu0
        %v8494 = vpop.trf.xlu0
        %v8495 = vpop.trf.xlu0
        %v8496 = vpop.trf.xlu0
        %v8497 = vpop.trf.xlu0
        %v8498 = vpop.trf.xlu0
        %v8499 = vpop.trf.xlu0
        %v8500 = vpop.trf.xlu0
        %v8501 = vpop.trf.xlu0
        %v8502 = vpop.trf.xlu0
        %v8503 = vpop.trf.xlu0
        %v8504 = vpop.trf.xlu0
        %v8505 = vpop.trf.xlu0
        %8507 = vset.pattern.permute.xlu0 0
        %8508 = vperm.xlu0 %8507, %v8490
        %v8509 = vpop.permute.xlu0 %8508
        %8512 = vset.pattern.permute.xlu0 0
        %8513 = vperm.xlu0 %8512, %v8491
        %v8514 = vpop.permute.xlu0 %8513
        %v8516 = vadd.f32 %v8426, %v8509
        %v8517 = vadd.f32 %v8458, %v8509
        %v8518 = vadd.f32 %v8427, %v8514
        %v8519 = vadd.f32 %v8459, %v8514
        %8520 = vxpose.xlu0.b32.start [1/16] %v8409, 128
        %8521 = vxpose.xlu0.b32.cont [2/16] 0.0, 128
        %8522 = vxpose.xlu0.b32.cont [3/16] 0.0, 128
        %8523 = vxpose.xlu0.b32.cont [4/16] 0.0, 128
        %8524 = vxpose.xlu0.b32.cont [5/16] 0.0, 128
        %8525 = vxpose.xlu0.b32.cont [6/16] 0.0, 128
        %8526 = vxpose.xlu0.b32.cont [7/16] 0.0, 128
        %8527 = vxpose.xlu0.b32.cont [8/16] 0.0, 128
        %8528 = vxpose.xlu0.b32.cont [9/16] 0.0, 128
        %8529 = vxpose.xlu0.b32.cont [10/16] 0.0, 128
        %8530 = vxpose.xlu0.b32.cont [11/16] 0.0, 128
        %8531 = vxpose.xlu0.b32.cont [12/16] 0.0, 128
        %8532 = vxpose.xlu0.b32.cont [13/16] 0.0, 128
        %8533 = vxpose.xlu0.b32.cont [14/16] 0.0, 128
        %8534 = vxpose.xlu0.b32.cont [15/16] 0.0, 128
        %8535 = vxpose.xlu0.b32.end [16/16] 0.0, 128
        %v8536 = vpop.trf.xlu0
        %v8537 = vpop.trf.xlu0
        %v8538 = vpop.trf.xlu0
        %v8539 = vpop.trf.xlu0
        %v8540 = vpop.trf.xlu0
        %v8541 = vpop.trf.xlu0
        %v8542 = vpop.trf.xlu0
        %v8543 = vpop.trf.xlu0
        %v8544 = vpop.trf.xlu0
        %v8545 = vpop.trf.xlu0
        %v8546 = vpop.trf.xlu0
        %v8547 = vpop.trf.xlu0
        %v8548 = vpop.trf.xlu0
        %v8549 = vpop.trf.xlu0
        %v8550 = vpop.trf.xlu0
        %v8551 = vpop.trf.xlu0
        %8553 = vset.pattern.permute.xlu0 0
        %8554 = vperm.xlu0 %8553, %v8536
        %v8555 = vpop.permute.xlu0 %8554
        %8558 = vset.pattern.permute.xlu0 0
        %8559 = vperm.xlu0 %8558, %v8537
        %v8560 = vpop.permute.xlu0 %8559
        %v8562 = vmul.f32 %v8516, %v8555
        %v8563 = vmul.f32 %v8517, %v8555
        %v8564 = vmul.f32 %v8518, %v8560
        %v8565 = vmul.f32 %v8519, %v8560
        %v8566 = vadd.f32 %v8562, %v1059
        %v8567 = vadd.f32 %v8563, %v1073
        %v8568 = vadd.f32 %v8564, %v1060
        %v8569 = vadd.f32 %v8565, %v1074
        %8570 = vst [vmem:[%s350] sm:$0xff] %v8566
        %8571 = vst [vmem:[%s350 + $0x8] sm:$0xff] %v8567
        %8572 = vst [vmem:[%s350 + $0x10] sm:$0xff] %v8568
        %8573 = vst [vmem:[%s350 + $0x18] sm:$0xff] %v8569
        %s8574 = sand.u32 %s228, 1
        %s8575 = scalar_lea.sflag [#allocation6], %s8574
        %s8576 = sand.u32 %s228, 1
        %s8577 = smul.addr %s8576, 32
        %s8578 = scalar_lea.vmem [#allocation7], %s8577
        // Predicated region
        $region61: #{tpu_custom_call.1} parent=55 // pred_check
          %p8579 = pneg %p238
        $region62: #{tpu_custom_call.1} parent=55 // pred_check_branch
          %8581 = sbr.rel (%p8579) target = $region64
        $region63: #{tpu_custom_call.1} parent=55 // pred_region
          %s8583 = ssub.s32 512, 512
          %8584 = vsyncadd %s8575, %s8583
          %s8585 = smul.addr %s26, 4
          %s8586 = smul.addr %s8585, 128
          %s8587 = scalar_lea.hbm %s9, %s8586
          %s8588 = sshll.u32 %s8578, 4
          %s8589 = int_to_ptr.vmem [resolvable:$true] %s8588
          %8594 = dma.vmem_to_hbm [thread:$0]  %s8589, 512, %s8587, %s8575, 256, 256, 16
        $region64: #{tpu_custom_call.1} parent=55 // pred_fallthru
          _
      $region56: #{tpu_custom_call.1} parent=5 // pred_fallthru
        _
      %p8595 = scmp.le.s32.totalorder 2, %s21
      // Predicated region
      $region65: #{tpu_custom_call.1} parent=5 // pred_check
        %p8596 = pneg %p8595
      $region66: #{tpu_custom_call.1} parent=5 // pred_check_branch
        %8598 = sbr.rel (%p8596) target = $region68
      $region67: #{tpu_custom_call.1} parent=5 // pred_region
        %s8599 = ssub.s32 %s21, 2
        // Predicated region
        $region69: #{tpu_custom_call.1} parent=67 // pred_check
          %p8600 = pneg %p244
        $region70: #{tpu_custom_call.1} parent=67 // pred_check_branch
          %8602 = sbr.rel (%p8600) target = $region72
        $region71: #{tpu_custom_call.1} parent=67 // pred_region
          %s8603 = sand.u32 %s229, 1
          %s8604 = scalar_lea.sflag [#allocation6], %s8603
          %s8605 = sand.u32 %s229, 1
          %s8606 = smul.addr %s8605, 32
          %s8607 = scalar_lea.vmem [#allocation7], %s8606
          %8608 = dma.done %s8604, 512
        $region72: #{tpu_custom_call.1} parent=67 // pred_fallthru
          _
      $region68: #{tpu_custom_call.1} parent=5 // pred_fallthru
        _
    $region6: #{tpu_custom_call.1} parent=1 // loop_footer
      %s25 = sadd.s32 1, %s21
    $region7: #{tpu_custom_call.1} parent=1 // loop_footer_branch
      %20 = sbr.rel target = $region3
    $region8: #{tpu_custom_call.1} parent=1 // loop_exit
      _
    %8609 = vsyncpa [#allocation5], 1
    %s8610 = scalar_lea.sflag [#allocation5], 1
    %8611 = vsyncpa %s8610, 1
    %8612 = vsyncpa [#allocation6], 1
    %s8613 = scalar_lea.sflag [#allocation6], 1
    %8614 = vsyncpa %s8613, 1

</llo_original>
